<compile_context>
chip_gen: v7x
topology: tpu7x:2x2x1
jax: 0.10.0
libtpu: 0.0.40
codegen_flags: <defaults>
</compile_context>

<pallas_src>
import functools
import math

import jax
import jax.numpy as jnp
from jax import lax
from jax.experimental import pallas as pl
from jax.experimental.pallas import tpu as pltpu

NEG_SLOPE = 0.01      # nn.LeakyReLU default
MASK_BIAS = -1e30     # additive mask sentinel (f32 everywhere)

NODE_TYPES = ("user", "movie", "review")
EDGE_TYPES = (
    ("movie", "commented_by", "review"),
    ("user", "post", "review"),
    ("review", "posted_by", "user"),
)
DST_TYPES = ("review", "user")   # 'movie' has no incoming edge type -> pass-through

_VMEM = pl.BlockSpec(memory_space=pltpu.MemorySpace.VMEM)
_SMEM = pl.BlockSpec(memory_space=pltpu.MemorySpace.SMEM)


# ----------------------------- in-kernel helpers (trace-time) -----------------------------

def _leaky_relu(y):
    return jnp.where(y >= 0.0, y, NEG_SLOPE * y)


def _erf(x):
    # Abramowitz & Stegun 7.1.26, |error| < 1.5e-7 — keeps exact-GELU semantics without
    # relying on an erf lowering in Mosaic. Uses exp (EUP) + VPU math only.
    ax = jnp.abs(x)
    t = 1.0 / (1.0 + 0.3275911 * ax)
    poly = ((((1.061405429 * t - 1.453152027) * t + 1.421413741) * t
             - 0.284496736) * t + 0.254829592) * t
    y = 1.0 - poly * jnp.exp(-ax * ax)
    return jnp.where(x >= 0.0, y, -y)


def _gelu(x):
    # exact (erf-based) GELU, matching F.gelu default
    return 0.5 * x * (1.0 + _erf(x * (1.0 / math.sqrt(2.0))))


def _masked_mha(q, k, v, mask, bias, heads, d):
    # Dense-masked equivalent of PyG segment softmax over incoming edges per dst node.
    # q: [Nd, H*d], k/v: [Ns, H*d] (relation transform, p_rel and 1/sqrt(d) already baked
    # into k), mask/bias: [Nd, Ns] (precomputed once on host).
    msgs = []
    for h in range(heads):
        sl = slice(h * d, (h + 1) * d)
        s = lax.dot_general(q[:, sl], k[:, sl], (((1,), (1,)), ((), ())),
                            preferred_element_type=jnp.float32) + bias
        m = jnp.max(s, axis=-1, keepdims=True)
        p = jnp.exp(s - m) * mask
        den = jnp.sum(p, axis=-1, keepdims=True)
        inv = pl.reciprocal(jnp.where(den > 0.0, den, 1.0), approx=True)
        msgs.append(jnp.dot(p * inv, v[:, sl], preferred_element_type=jnp.float32))
    return jnp.concatenate(msgs, axis=1)


# ----------------------------- the fused kernel -----------------------------

def _hgt_fused_kernel(
        x_u_ref, x_m_ref, x_r_ref,
        mask_rev_ref, bias_rev_ref, mask_usr_ref, bias_usr_ref,
        w1_ref, b1_ref, w2_ref, b2_ref,
        kqv_w_ref, kqv_b_ref,        # [L*3, hid, 3*hid], [L*3, 1, 3*hid]  (user, movie, review)
        out_w_ref, out_b_ref,        # [L*2, hid, hid],   [L*2, 1, hid]    (review, user)
        alpha_ref,                   # SMEM [L*2] = sigmoid(skip)          (review, user)
        o_u_ref, o_m_ref, o_r_ref,
        *, layers, heads, hidden):
    d = hidden // heads

    # shared input Linear + LeakyReLU
    w1 = w1_ref[...]
    b1 = b1_ref[...]
    x_refs = {"user": x_u_ref, "movie": x_m_ref, "review": x_r_ref}
    h = {t: _leaky_relu(jnp.dot(x_refs[t][...], w1,
                                preferred_element_type=jnp.float32) + b1)
         for t in NODE_TYPES}

    mask_rev = mask_rev_ref[...]
    bias_rev = bias_rev_ref[...]
    mask_usr = mask_usr_ref[...]
    bias_usr = bias_usr_ref[...]

    for l in range(layers):
        # per-node-type KQV projection (columns: [K | Q | V], head-major inside each third).
        # The K third already includes blockdiag(a_rel * p_rel / sqrt(d)) of the unique
        # edge type this node type feeds; the V third includes blockdiag(m_rel).
        kqv = {}
        for ti, t in enumerate(NODE_TYPES):
            idx = l * 3 + ti
            kqv[t] = (jnp.dot(h[t], kqv_w_ref[idx],
                              preferred_element_type=jnp.float32) + kqv_b_ref[idx])
        k = {t: kqv[t][:, :hidden] for t in NODE_TYPES}
        q = {t: kqv[t][:, hidden:2 * hidden] for t in NODE_TYPES}
        v = {t: kqv[t][:, 2 * hidden:] for t in NODE_TYPES}

        # dst 'review' <- movie (commented_by) + user (post): joint softmax over both.
        # dst 'user'   <- review (posted_by).
        k_rev = jnp.concatenate([k["movie"], k["user"]], axis=0)
        v_rev = jnp.concatenate([v["movie"], v["user"]], axis=0)
        msg = {
            "review": _masked_mha(q["review"], k_rev, v_rev,
                                  mask_rev, bias_rev, heads, d),
            "user": _masked_mha(q["user"], k["review"], v["review"],
                                mask_usr, bias_usr, heads, d),
        }

        # GELU -> per-type out Linear -> sigmoid-gated skip; 'movie' passes through
        new_h = dict(h)
        for di, t in enumerate(DST_TYPES):
            idx = l * 2 + di
            g = _gelu(msg[t])
            a = (jnp.dot(g, out_w_ref[idx], preferred_element_type=jnp.float32)
                 + out_b_ref[idx])
            al = alpha_ref[idx]
            new_h[t] = al * a + (1.0 - al) * h[t]
        h = new_h
        # TODO(synk): F.dropout(training=self.training) is identity at inference; omitted.

    # shared output Linear + LeakyReLU
    w2 = w2_ref[...]
    b2 = b2_ref[...]
    o_refs = {"user": o_u_ref, "movie": o_m_ref, "review": o_r_ref}
    for t in NODE_TYPES:
        o_refs[t][...] = _leaky_relu(
            jnp.dot(h[t], w2, preferred_element_type=jnp.float32) + b2)


# ----------------------------- host-side packing -----------------------------

def _block_diag(blocks):
    # blocks: [H, d, d] -> block-diagonal [H*d, H*d]
    nh, d, _ = blocks.shape
    out = jnp.zeros((nh * d, nh * d), blocks.dtype)
    for i in range(nh):
        out = out.at[i * d:(i + 1) * d, i * d:(i + 1) * d].set(blocks[i])
    return out


def pack_params(params):
    """Pack per-layer params into stacked, kernel-friendly arrays.

    The per-(edge_type, head) relation matrices, p_rel and the 1/sqrt(d) attention scale
    are folded directly into the K / V thirds of each node type's KQV projection
    (valid because every node type is the source of exactly one edge type here).
    """
    heads = params["heads"]
    hidden = params["w1"].shape[1]
    d = hidden // heads
    scale = 1.0 / math.sqrt(d)
    src_edge = {et[0]: "__".join(et) for et in EDGE_TYPES}   # node type -> its unique out-edge

    kqv_w, kqv_b, out_w, out_b, alpha = [], [], [], [], []
    for cp in params["convs"]:
        for t in NODE_TYPES:
            name = src_edge[t]
            d_k = _block_diag(cp["a_rel"][name]
                              * (scale * cp["p_rel"][name])[:, None, None])
            d_v = _block_diag(cp["m_rel"][name])
            w = cp["kqv_w"][t]
            b = cp["kqv_b"][t].reshape(1, -1)
            kqv_w.append(jnp.concatenate(
                [w[:, :hidden] @ d_k, w[:, hidden:2 * hidden], w[:, 2 * hidden:] @ d_v],
                axis=1))
            kqv_b.append(jnp.concatenate(
                [b[:, :hidden] @ d_k, b[:, hidden:2 * hidden], b[:, 2 * hidden:] @ d_v],
                axis=1))
        for t in DST_TYPES:
            out_w.append(cp["out_w"][t])
            out_b.append(cp["out_b"][t].reshape(1, -1))
            alpha.append(jax.nn.sigmoid(cp["skip"][t]).reshape(()))   # param-only -> hoisted
    return {
        "w1": params["w1"], "b1": params["b1"].reshape(1, -1),
        "w2": params["w2"], "b2": params["b2"].reshape(1, -1),
        "kqv_w": jnp.stack(kqv_w), "kqv_b": jnp.stack(kqv_b),
        "out_w": jnp.stack(out_w), "out_b": jnp.stack(out_b),
        "alpha": jnp.stack(alpha).astype(jnp.float32),
    }


def pack_masks(masks):
    """Concatenate the 'review'-destination masks and precompute the additive biases."""
    e1, e2, e3 = EDGE_TYPES
    mask_rev = jnp.concatenate([masks[e1], masks[e2]], axis=1)   # cols: [movie | user]
    mask_usr = masks[e3]

    def bias(m):
        return jnp.where(m > 0.0, 0.0, MASK_BIAS).astype(jnp.float32)

    return {"mask_rev": mask_rev, "bias_rev": bias(mask_rev),
            "mask_usr": mask_usr, "bias_usr": bias(mask_usr)}


# ----------------------------- forward -----------------------------

def hgt_forward(x_dict, masks, params):
    heads = params["heads"]
    layers = len(params["convs"])
    hidden = params["w1"].shape[1]
    out_c = params["w2"].shape[1]

    fp = pack_params(params)
    mb = pack_masks(masks)
    n = {t: x_dict[t].shape[0] for t in NODE_TYPES}

    kernel = functools.partial(_hgt_fused_kernel,
                               layers=layers, heads=heads, hidden=hidden)
    outs = pl.pallas_call(
        kernel,
        out_shape=tuple(jax.ShapeDtypeStruct((n[t], out_c), jnp.float32)
                        for t in NODE_TYPES),
        in_specs=[_VMEM] * 15 + [_SMEM],
        out_specs=(_VMEM, _VMEM, _VMEM),
    )(x_dict["user"], x_dict["movie"], x_dict["review"],
      mb["mask_rev"], mb["bias_rev"], mb["mask_usr"], mb["bias_usr"],
      fp["w1"], fp["b1"], fp["w2"], fp["b2"],
      fp["kqv_w"], fp["kqv_b"], fp["out_w"], fp["out_b"],
      fp["alpha"])
    return dict(zip(NODE_TYPES, outs))


# ----------------------------- parameters -----------------------------

def init_params(key, in_channels, hidden, out_channels, heads, layers):
    d = hidden // heads
    keys = jax.random.split(key, 4 + layers)
    params = {"heads": heads}
    params["w1"] = 0.1 * jax.random.normal(keys[0], (in_channels, hidden), jnp.float32)
    params["b1"] = 0.1 * jax.random.normal(keys[1], (hidden,), jnp.float32)
    params["w2"] = 0.1 * jax.random.normal(keys[2], (hidden, out_channels), jnp.float32)
    params["b2"] = 0.1 * jax.random.normal(keys[3], (out_channels,), jnp.float32)
    convs = []
    for l in range(layers):
        lk = jax.random.split(keys[4 + l], 16)
        cp = {"kqv_w": {}, "kqv_b": {}, "out_w": {}, "out_b": {}, "skip": {},
              "a_rel": {}, "m_rel": {}, "p_rel": {}}
        i = 0
        for t in NODE_TYPES:
            cp["kqv_w"][t] = 0.1 * jax.random.normal(lk[i], (hidden, 3 * hidden), jnp.float32); i += 1
            cp["kqv_b"][t] = jnp.zeros((3 * hidden,), jnp.float32)
            cp["out_w"][t] = 0.1 * jax.random.normal(lk[i], (hidden, hidden), jnp.float32); i += 1
            cp["out_b"][t] = jnp.zeros((hidden,), jnp.float32)
            cp["skip"][t] = jnp.ones((1,), jnp.float32)          # PyG init: ones
        for et in EDGE_TYPES:
            name = "__".join(et)
            cp["a_rel"][name] = 0.2 * jax.random.normal(lk[i], (heads, d, d), jnp.float32); i += 1
            cp["m_rel"][name] = 0.2 * jax.random.normal(lk[i], (heads, d, d), jnp.float32); i += 1
            cp["p_rel"][name] = jnp.ones((heads,), jnp.float32)  # PyG init: ones
        convs.append(cp)
    params["convs"] = convs
    return params


# ----------------------------- main -----------------------------

if __name__ == "__main__":
    in_channels, hidden, out_channels, heads, layers = 8, 32, 16, 4, 2
    num_nodes = {"user": 16, "movie": 8, "review": 24}

    key = jax.random.PRNGKey(0)
    k_feat, k_edge, k_par = jax.random.split(key, 3)

    fkeys = jax.random.split(k_feat, 3)
    x_dict = {t: jax.random.normal(fkeys[i], (num_nodes[t], in_channels), jnp.float32)
              for i, t in enumerate(NODE_TYPES)}

    # deterministic edge_index per edge type, densified to (num_dst, num_src) masks
    # TODO(synk): densification collapses duplicate (src,dst) multi-edges; PyG's segment
    #             softmax would count each duplicate separately.
    edge_counts = {EDGE_TYPES[0]: 32, EDGE_TYPES[1]: 40, EDGE_TYPES[2]: 40}
    ekeys = jax.random.split(k_edge, 3)
    masks = {}
    edge_index_dict = {}
    for i, et in enumerate(EDGE_TYPES):
        src_t, _, dst_t = et
        e = edge_counts[et]
        ks, kd = jax.random.split(ekeys[i])
        src_idx = jax.random.randint(ks, (e,), 0, num_nodes[src_t])
        dst_idx = jax.random.randint(kd, (e,), 0, num_nodes[dst_t])
        edge_index_dict[et] = jnp.stack([src_idx, dst_idx])
        masks[et] = jnp.zeros((num_nodes[dst_t], num_nodes[src_t]),
                              jnp.float32).at[dst_idx, src_idx].set(1.0)

    params = init_params(k_par, in_channels, hidden, out_channels, heads, layers)

    out = hgt_forward(x_dict, masks, params)
    out = jax.tree_util.tree_map(jax.block_until_ready, out)

    assert out["user"].shape == (num_nodes["user"], out_channels)
    assert out["movie"].shape == (num_nodes["movie"], out_channels)
    assert out["review"].shape == (num_nodes["review"], out_channels)
    assert all(bool(jnp.all(jnp.isfinite(v))) for v in out.values())
    print("KERNEL_OK")
</pallas_src>

<mosaic_0001>
module attributes {stable_mosaic.version = 11 : i64} {
  func.func @_hgt_fused_kernel(%arg0: memref<16x8xf32, #tpu.memory_space<vmem>>, %arg1: memref<8x8xf32, #tpu.memory_space<vmem>>, %arg2: memref<24x8xf32, #tpu.memory_space<vmem>>, %arg3: memref<24x24xf32, #tpu.memory_space<vmem>>, %arg4: memref<24x24xf32, #tpu.memory_space<vmem>>, %arg5: memref<16x24xf32, #tpu.memory_space<vmem>>, %arg6: memref<16x24xf32, #tpu.memory_space<vmem>>, %arg7: memref<8x32xf32, #tpu.memory_space<vmem>>, %arg8: memref<1x32xf32, #tpu.memory_space<vmem>>, %arg9: memref<32x16xf32, #tpu.memory_space<vmem>>, %arg10: memref<1x16xf32, #tpu.memory_space<vmem>>, %arg11: memref<6x32x96xf32, #tpu.memory_space<vmem>>, %arg12: memref<6x1x96xf32, #tpu.memory_space<vmem>>, %arg13: memref<4x32x32xf32, #tpu.memory_space<vmem>>, %arg14: memref<4x1x32xf32, #tpu.memory_space<vmem>>, %arg15: memref<4xf32, #tpu.memory_space<smem>>, %arg16: memref<16x16xf32, #tpu.memory_space<vmem>>, %arg17: memref<8x16xf32, #tpu.memory_space<vmem>>, %arg18: memref<24x16xf32, #tpu.memory_space<vmem>>) attributes {dimension_semantics = [], scalar_prefetch = 0 : i64, scratch_operands = 0 : i64, tpu.core_type = #tpu.core_type<tc>} {
    %c0 = arith.constant 0 : index
    %c0_0 = arith.constant 0 : index
    %0 = vector.load %arg7[%c0, %c0_0] : memref<8x32xf32, #tpu.memory_space<vmem>>, vector<8x32xf32>
    %c0_1 = arith.constant 0 : index
    %c0_2 = arith.constant 0 : index
    %1 = vector.load %arg8[%c0_1, %c0_2] : memref<1x32xf32, #tpu.memory_space<vmem>>, vector<1x32xf32>
    %c0_3 = arith.constant 0 : index
    %c0_4 = arith.constant 0 : index
    %2 = vector.load %arg0[%c0_3, %c0_4] : memref<16x8xf32, #tpu.memory_space<vmem>>, vector<16x8xf32>
    %cst = arith.constant dense<0.000000e+00> : vector<16x32xf32>
    %3 = tpu.matmul %2, %0, %cst {dimension_numbers = #tpu.dot_dimension_numbers<[1], [0], [0], [1], [0, 0, 1, 1], [], []>} : vector<16x8xf32>, vector<8x32xf32>, vector<16x32xf32> -> vector<16x32xf32>
    %4 = vector.broadcast %1 : vector<1x32xf32> to vector<16x32xf32>
    %5 = arith.addf %3, %4 : vector<16x32xf32>
    %cst_5 = arith.constant 0.000000e+00 : f32
    %6 = vector.broadcast %cst_5 : f32 to vector<16x32xf32>
    %7 = arith.cmpf oge, %5, %6 : vector<16x32xf32>
    %cst_6 = arith.constant 0.00999999977 : f32
    %8 = vector.broadcast %cst_6 : f32 to vector<16x32xf32>
    %9 = arith.mulf %8, %5 : vector<16x32xf32>
    %10 = arith.select %7, %5, %9 : vector<16x32xi1>, vector<16x32xf32>
    %c0_7 = arith.constant 0 : index
    %c0_8 = arith.constant 0 : index
    %11 = vector.load %arg1[%c0_7, %c0_8] : memref<8x8xf32, #tpu.memory_space<vmem>>, vector<8x8xf32>
    %cst_9 = arith.constant dense<0.000000e+00> : vector<8x32xf32>
    %12 = tpu.matmul %11, %0, %cst_9 {dimension_numbers = #tpu.dot_dimension_numbers<[1], [0], [0], [1], [0, 0, 1, 1], [], []>} : vector<8x8xf32>, vector<8x32xf32>, vector<8x32xf32> -> vector<8x32xf32>
    %13 = vector.broadcast %1 : vector<1x32xf32> to vector<8x32xf32>
    %14 = arith.addf %12, %13 : vector<8x32xf32>
    %cst_10 = arith.constant 0.000000e+00 : f32
    %15 = vector.broadcast %cst_10 : f32 to vector<8x32xf32>
    %16 = arith.cmpf oge, %14, %15 : vector<8x32xf32>
    %cst_11 = arith.constant 0.00999999977 : f32
    %17 = vector.broadcast %cst_11 : f32 to vector<8x32xf32>
    %18 = arith.mulf %17, %14 : vector<8x32xf32>
    %19 = arith.select %16, %14, %18 : vector<8x32xi1>, vector<8x32xf32>
    %c0_12 = arith.constant 0 : index
    %c0_13 = arith.constant 0 : index
    %20 = vector.load %arg2[%c0_12, %c0_13] : memref<24x8xf32, #tpu.memory_space<vmem>>, vector<24x8xf32>
    %cst_14 = arith.constant dense<0.000000e+00> : vector<24x32xf32>
    %21 = tpu.matmul %20, %0, %cst_14 {dimension_numbers = #tpu.dot_dimension_numbers<[1], [0], [0], [1], [0, 0, 1, 1], [], []>} : vector<24x8xf32>, vector<8x32xf32>, vector<24x32xf32> -> vector<24x32xf32>
    %22 = vector.broadcast %1 : vector<1x32xf32> to vector<24x32xf32>
    %23 = arith.addf %21, %22 : vector<24x32xf32>
    %cst_15 = arith.constant 0.000000e+00 : f32
    %24 = vector.broadcast %cst_15 : f32 to vector<24x32xf32>
    %25 = arith.cmpf oge, %23, %24 : vector<24x32xf32>
    %cst_16 = arith.constant 0.00999999977 : f32
    %26 = vector.broadcast %cst_16 : f32 to vector<24x32xf32>
    %27 = arith.mulf %26, %23 : vector<24x32xf32>
    %28 = arith.select %25, %23, %27 : vector<24x32xi1>, vector<24x32xf32>
    %c0_17 = arith.constant 0 : index
    %c0_18 = arith.constant 0 : index
    %29 = vector.load %arg3[%c0_17, %c0_18] : memref<24x24xf32, #tpu.memory_space<vmem>>, vector<24x24xf32>
    %c0_19 = arith.constant 0 : index
    %c0_20 = arith.constant 0 : index
    %30 = vector.load %arg4[%c0_19, %c0_20] : memref<24x24xf32, #tpu.memory_space<vmem>>, vector<24x24xf32>
    %c0_21 = arith.constant 0 : index
    %c0_22 = arith.constant 0 : index
    %31 = vector.load %arg5[%c0_21, %c0_22] : memref<16x24xf32, #tpu.memory_space<vmem>>, vector<16x24xf32>
    %c0_23 = arith.constant 0 : index
    %c0_24 = arith.constant 0 : index
    %32 = vector.load %arg6[%c0_23, %c0_24] : memref<16x24xf32, #tpu.memory_space<vmem>>, vector<16x24xf32>
    %c0_25 = arith.constant 0 : index
    %c0_26 = arith.constant 0 : index
    %c0_27 = arith.constant 0 : index
    %33 = vector.load %arg11[%c0_25, %c0_26, %c0_27] : memref<6x32x96xf32, #tpu.memory_space<vmem>>, vector<1x32x96xf32>
    %34 = vector.shape_cast %33 : vector<1x32x96xf32> to vector<32x96xf32>
    %cst_28 = arith.constant dense<0.000000e+00> : vector<16x96xf32>
    %35 = tpu.matmul %10, %34, %cst_28 {dimension_numbers = #tpu.dot_dimension_numbers<[1], [0], [0], [1], [0, 0, 1, 1], [], []>} : vector<16x32xf32>, vector<32x96xf32>, vector<16x96xf32> -> vector<16x96xf32>
    %c0_29 = arith.constant 0 : index
    %c0_30 = arith.constant 0 : index
    %c0_31 = arith.constant 0 : index
    %36 = vector.load %arg12[%c0_29, %c0_30, %c0_31] : memref<6x1x96xf32, #tpu.memory_space<vmem>>, vector<1x1x96xf32>
    %37 = vector.shape_cast %36 : vector<1x1x96xf32> to vector<1x96xf32>
    %38 = vector.broadcast %37 : vector<1x96xf32> to vector<16x96xf32>
    %39 = arith.addf %35, %38 : vector<16x96xf32>
    %c1 = arith.constant 1 : index
    %c0_32 = arith.constant 0 : index
    %c0_33 = arith.constant 0 : index
    %40 = vector.load %arg11[%c1, %c0_32, %c0_33] : memref<6x32x96xf32, #tpu.memory_space<vmem>>, vector<1x32x96xf32>
    %41 = vector.shape_cast %40 : vector<1x32x96xf32> to vector<32x96xf32>
    %cst_34 = arith.constant dense<0.000000e+00> : vector<8x96xf32>
    %42 = tpu.matmul %19, %41, %cst_34 {dimension_numbers = #tpu.dot_dimension_numbers<[1], [0], [0], [1], [0, 0, 1, 1], [], []>} : vector<8x32xf32>, vector<32x96xf32>, vector<8x96xf32> -> vector<8x96xf32>
    %c1_35 = arith.constant 1 : index
    %c0_36 = arith.constant 0 : index
    %c0_37 = arith.constant 0 : index
    %43 = vector.load %arg12[%c1_35, %c0_36, %c0_37] : memref<6x1x96xf32, #tpu.memory_space<vmem>>, vector<1x1x96xf32>
    %44 = vector.shape_cast %43 : vector<1x1x96xf32> to vector<1x96xf32>
    %45 = vector.broadcast %44 : vector<1x96xf32> to vector<8x96xf32>
    %46 = arith.addf %42, %45 : vector<8x96xf32>
    %c2 = arith.constant 2 : index
    %c0_38 = arith.constant 0 : index
    %c0_39 = arith.constant 0 : index
    %47 = vector.load %arg11[%c2, %c0_38, %c0_39] : memref<6x32x96xf32, #tpu.memory_space<vmem>>, vector<1x32x96xf32>
    %48 = vector.shape_cast %47 : vector<1x32x96xf32> to vector<32x96xf32>
    %cst_40 = arith.constant dense<0.000000e+00> : vector<24x96xf32>
    %49 = tpu.matmul %28, %48, %cst_40 {dimension_numbers = #tpu.dot_dimension_numbers<[1], [0], [0], [1], [0, 0, 1, 1], [], []>} : vector<24x32xf32>, vector<32x96xf32>, vector<24x96xf32> -> vector<24x96xf32>
    %c2_41 = arith.constant 2 : index
    %c0_42 = arith.constant 0 : index
    %c0_43 = arith.constant 0 : index
    %50 = vector.load %arg12[%c2_41, %c0_42, %c0_43] : memref<6x1x96xf32, #tpu.memory_space<vmem>>, vector<1x1x96xf32>
    %51 = vector.shape_cast %50 : vector<1x1x96xf32> to vector<1x96xf32>
    %52 = vector.broadcast %51 : vector<1x96xf32> to vector<24x96xf32>
    %53 = arith.addf %49, %52 : vector<24x96xf32>
    %54 = vector.extract_strided_slice %39 {offsets = [0, 0], sizes = [16, 32], strides = [1, 1]} : vector<16x96xf32> to vector<16x32xf32>
    %55 = vector.extract_strided_slice %46 {offsets = [0, 0], sizes = [8, 32], strides = [1, 1]} : vector<8x96xf32> to vector<8x32xf32>
    %56 = vector.extract_strided_slice %53 {offsets = [0, 0], sizes = [24, 32], strides = [1, 1]} : vector<24x96xf32> to vector<24x32xf32>
    %57 = vector.extract_strided_slice %39 {offsets = [0, 32], sizes = [16, 32], strides = [1, 1]} : vector<16x96xf32> to vector<16x32xf32>
    %58 = vector.extract_strided_slice %53 {offsets = [0, 32], sizes = [24, 32], strides = [1, 1]} : vector<24x96xf32> to vector<24x32xf32>
    %59 = vector.extract_strided_slice %39 {offsets = [0, 64], sizes = [16, 32], strides = [1, 1]} : vector<16x96xf32> to vector<16x32xf32>
    %60 = vector.extract_strided_slice %46 {offsets = [0, 64], sizes = [8, 32], strides = [1, 1]} : vector<8x96xf32> to vector<8x32xf32>
    %61 = vector.extract_strided_slice %53 {offsets = [0, 64], sizes = [24, 32], strides = [1, 1]} : vector<24x96xf32> to vector<24x32xf32>
    %62 = tpu.concatenate %55, %54 in 0 : vector<8x32xf32>, vector<16x32xf32> -> vector<24x32xf32>
    %63 = tpu.concatenate %60, %59 in 0 : vector<8x32xf32>, vector<16x32xf32> -> vector<24x32xf32>
    %64 = vector.extract_strided_slice %58 {offsets = [0, 0], sizes = [24, 8], strides = [1, 1]} : vector<24x32xf32> to vector<24x8xf32>
    %65 = vector.extract_strided_slice %62 {offsets = [0, 0], sizes = [24, 8], strides = [1, 1]} : vector<24x32xf32> to vector<24x8xf32>
    %cst_44 = arith.constant dense<0.000000e+00> : vector<24x24xf32>
    %66 = tpu.matmul %64, %65, %cst_44 {dimension_numbers = #tpu.dot_dimension_numbers<[1], [1], [0], [0], [0, 0, 1, 0], [], []>} : vector<24x8xf32>, vector<24x8xf32>, vector<24x24xf32> -> vector<24x24xf32>
    %67 = arith.addf %66, %30 : vector<24x24xf32>
    %cst_45 = arith.constant dense<0xFF800000> : vector<24xf32>
    %68 = vector.multi_reduction <maximumf>, %67, %cst_45 [1] : vector<24x24xf32> to vector<24xf32>
    %69 = vector.shape_cast %68 : vector<24xf32> to vector<24x1xf32>
    %70 = vector.broadcast %69 : vector<24x1xf32> to vector<24x24xf32>
    %71 = arith.subf %67, %70 : vector<24x24xf32>
    %72 = math.exp %71 : vector<24x24xf32>
    %73 = arith.mulf %72, %29 : vector<24x24xf32>
    %cst_46 = arith.constant dense<0.000000e+00> : vector<24xf32>
    %74 = vector.multi_reduction <add>, %73, %cst_46 [1] : vector<24x24xf32> to vector<24xf32>
    %75 = vector.shape_cast %74 : vector<24xf32> to vector<24x1xf32>
    %cst_47 = arith.constant 0.000000e+00 : f32
    %76 = vector.broadcast %cst_47 : f32 to vector<24x1xf32>
    %77 = arith.cmpf ogt, %75, %76 : vector<24x1xf32>
    %cst_48 = arith.constant 1.000000e+00 : f32
    %78 = vector.broadcast %cst_48 : f32 to vector<24x1xf32>
    %79 = arith.select %77, %75, %78 : vector<24x1xi1>, vector<24x1xf32>
    %80 = tpu.reciprocal %79 {approx = true} : vector<24x1xf32> -> vector<24x1xf32>
    %81 = vector.broadcast %80 : vector<24x1xf32> to vector<24x24xf32>
    %82 = arith.mulf %73, %81 : vector<24x24xf32>
    %83 = vector.extract_strided_slice %63 {offsets = [0, 0], sizes = [24, 8], strides = [1, 1]} : vector<24x32xf32> to vector<24x8xf32>
    %cst_49 = arith.constant dense<0.000000e+00> : vector<24x8xf32>
    %84 = tpu.matmul %82, %83, %cst_49 {dimension_numbers = #tpu.dot_dimension_numbers<[1], [0], [0], [1], [0, 0, 1, 1], [], []>} : vector<24x24xf32>, vector<24x8xf32>, vector<24x8xf32> -> vector<24x8xf32>
    %85 = vector.extract_strided_slice %58 {offsets = [0, 8], sizes = [24, 8], strides = [1, 1]} : vector<24x32xf32> to vector<24x8xf32>
    %86 = vector.extract_strided_slice %62 {offsets = [0, 8], sizes = [24, 8], strides = [1, 1]} : vector<24x32xf32> to vector<24x8xf32>
    %cst_50 = arith.constant dense<0.000000e+00> : vector<24x24xf32>
    %87 = tpu.matmul %85, %86, %cst_50 {dimension_numbers = #tpu.dot_dimension_numbers<[1], [1], [0], [0], [0, 0, 1, 0], [], []>} : vector<24x8xf32>, vector<24x8xf32>, vector<24x24xf32> -> vector<24x24xf32>
    %88 = arith.addf %87, %30 : vector<24x24xf32>
    %cst_51 = arith.constant dense<0xFF800000> : vector<24xf32>
    %89 = vector.multi_reduction <maximumf>, %88, %cst_51 [1] : vector<24x24xf32> to vector<24xf32>
    %90 = vector.shape_cast %89 : vector<24xf32> to vector<24x1xf32>
    %91 = vector.broadcast %90 : vector<24x1xf32> to vector<24x24xf32>
    %92 = arith.subf %88, %91 : vector<24x24xf32>
    %93 = math.exp %92 : vector<24x24xf32>
    %94 = arith.mulf %93, %29 : vector<24x24xf32>
    %cst_52 = arith.constant dense<0.000000e+00> : vector<24xf32>
    %95 = vector.multi_reduction <add>, %94, %cst_52 [1] : vector<24x24xf32> to vector<24xf32>
    %96 = vector.shape_cast %95 : vector<24xf32> to vector<24x1xf32>
    %cst_53 = arith.constant 0.000000e+00 : f32
    %97 = vector.broadcast %cst_53 : f32 to vector<24x1xf32>
    %98 = arith.cmpf ogt, %96, %97 : vector<24x1xf32>
    %cst_54 = arith.constant 1.000000e+00 : f32
    %99 = vector.broadcast %cst_54 : f32 to vector<24x1xf32>
    %100 = arith.select %98, %96, %99 : vector<24x1xi1>, vector<24x1xf32>
    %101 = tpu.reciprocal %100 {approx = true} : vector<24x1xf32> -> vector<24x1xf32>
    %102 = vector.broadcast %101 : vector<24x1xf32> to vector<24x24xf32>
    %103 = arith.mulf %94, %102 : vector<24x24xf32>
    %104 = vector.extract_strided_slice %63 {offsets = [0, 8], sizes = [24, 8], strides = [1, 1]} : vector<24x32xf32> to vector<24x8xf32>
    %cst_55 = arith.constant dense<0.000000e+00> : vector<24x8xf32>
    %105 = tpu.matmul %103, %104, %cst_55 {dimension_numbers = #tpu.dot_dimension_numbers<[1], [0], [0], [1], [0, 0, 1, 1], [], []>} : vector<24x24xf32>, vector<24x8xf32>, vector<24x8xf32> -> vector<24x8xf32>
    %106 = vector.extract_strided_slice %58 {offsets = [0, 16], sizes = [24, 8], strides = [1, 1]} : vector<24x32xf32> to vector<24x8xf32>
    %107 = vector.extract_strided_slice %62 {offsets = [0, 16], sizes = [24, 8], strides = [1, 1]} : vector<24x32xf32> to vector<24x8xf32>
    %cst_56 = arith.constant dense<0.000000e+00> : vector<24x24xf32>
    %108 = tpu.matmul %106, %107, %cst_56 {dimension_numbers = #tpu.dot_dimension_numbers<[1], [1], [0], [0], [0, 0, 1, 0], [], []>} : vector<24x8xf32>, vector<24x8xf32>, vector<24x24xf32> -> vector<24x24xf32>
    %109 = arith.addf %108, %30 : vector<24x24xf32>
    %cst_57 = arith.constant dense<0xFF800000> : vector<24xf32>
    %110 = vector.multi_reduction <maximumf>, %109, %cst_57 [1] : vector<24x24xf32> to vector<24xf32>
    %111 = vector.shape_cast %110 : vector<24xf32> to vector<24x1xf32>
    %112 = vector.broadcast %111 : vector<24x1xf32> to vector<24x24xf32>
    %113 = arith.subf %109, %112 : vector<24x24xf32>
    %114 = math.exp %113 : vector<24x24xf32>
    %115 = arith.mulf %114, %29 : vector<24x24xf32>
    %cst_58 = arith.constant dense<0.000000e+00> : vector<24xf32>
    %116 = vector.multi_reduction <add>, %115, %cst_58 [1] : vector<24x24xf32> to vector<24xf32>
    %117 = vector.shape_cast %116 : vector<24xf32> to vector<24x1xf32>
    %cst_59 = arith.constant 0.000000e+00 : f32
    %118 = vector.broadcast %cst_59 : f32 to vector<24x1xf32>
    %119 = arith.cmpf ogt, %117, %118 : vector<24x1xf32>
    %cst_60 = arith.constant 1.000000e+00 : f32
    %120 = vector.broadcast %cst_60 : f32 to vector<24x1xf32>
    %121 = arith.select %119, %117, %120 : vector<24x1xi1>, vector<24x1xf32>
    %122 = tpu.reciprocal %121 {approx = true} : vector<24x1xf32> -> vector<24x1xf32>
    %123 = vector.broadcast %122 : vector<24x1xf32> to vector<24x24xf32>
    %124 = arith.mulf %115, %123 : vector<24x24xf32>
    %125 = vector.extract_strided_slice %63 {offsets = [0, 16], sizes = [24, 8], strides = [1, 1]} : vector<24x32xf32> to vector<24x8xf32>
    %cst_61 = arith.constant dense<0.000000e+00> : vector<24x8xf32>
    %126 = tpu.matmul %124, %125, %cst_61 {dimension_numbers = #tpu.dot_dimension_numbers<[1], [0], [0], [1], [0, 0, 1, 1], [], []>} : vector<24x24xf32>, vector<24x8xf32>, vector<24x8xf32> -> vector<24x8xf32>
    %127 = vector.extract_strided_slice %58 {offsets = [0, 24], sizes = [24, 8], strides = [1, 1]} : vector<24x32xf32> to vector<24x8xf32>
    %128 = vector.extract_strided_slice %62 {offsets = [0, 24], sizes = [24, 8], strides = [1, 1]} : vector<24x32xf32> to vector<24x8xf32>
    %cst_62 = arith.constant dense<0.000000e+00> : vector<24x24xf32>
    %129 = tpu.matmul %127, %128, %cst_62 {dimension_numbers = #tpu.dot_dimension_numbers<[1], [1], [0], [0], [0, 0, 1, 0], [], []>} : vector<24x8xf32>, vector<24x8xf32>, vector<24x24xf32> -> vector<24x24xf32>
    %130 = arith.addf %129, %30 : vector<24x24xf32>
    %cst_63 = arith.constant dense<0xFF800000> : vector<24xf32>
    %131 = vector.multi_reduction <maximumf>, %130, %cst_63 [1] : vector<24x24xf32> to vector<24xf32>
    %132 = vector.shape_cast %131 : vector<24xf32> to vector<24x1xf32>
    %133 = vector.broadcast %132 : vector<24x1xf32> to vector<24x24xf32>
    %134 = arith.subf %130, %133 : vector<24x24xf32>
    %135 = math.exp %134 : vector<24x24xf32>
    %136 = arith.mulf %135, %29 : vector<24x24xf32>
    %cst_64 = arith.constant dense<0.000000e+00> : vector<24xf32>
    %137 = vector.multi_reduction <add>, %136, %cst_64 [1] : vector<24x24xf32> to vector<24xf32>
    %138 = vector.shape_cast %137 : vector<24xf32> to vector<24x1xf32>
    %cst_65 = arith.constant 0.000000e+00 : f32
    %139 = vector.broadcast %cst_65 : f32 to vector<24x1xf32>
    %140 = arith.cmpf ogt, %138, %139 : vector<24x1xf32>
    %cst_66 = arith.constant 1.000000e+00 : f32
    %141 = vector.broadcast %cst_66 : f32 to vector<24x1xf32>
    %142 = arith.select %140, %138, %141 : vector<24x1xi1>, vector<24x1xf32>
    %143 = tpu.reciprocal %142 {approx = true} : vector<24x1xf32> -> vector<24x1xf32>
    %144 = vector.broadcast %143 : vector<24x1xf32> to vector<24x24xf32>
    %145 = arith.mulf %136, %144 : vector<24x24xf32>
    %146 = vector.extract_strided_slice %63 {offsets = [0, 24], sizes = [24, 8], strides = [1, 1]} : vector<24x32xf32> to vector<24x8xf32>
    %cst_67 = arith.constant dense<0.000000e+00> : vector<24x8xf32>
    %147 = tpu.matmul %145, %146, %cst_67 {dimension_numbers = #tpu.dot_dimension_numbers<[1], [0], [0], [1], [0, 0, 1, 1], [], []>} : vector<24x24xf32>, vector<24x8xf32>, vector<24x8xf32> -> vector<24x8xf32>
    %148 = tpu.concatenate %84, %105, %126, %147 in 1 : vector<24x8xf32>, vector<24x8xf32>, vector<24x8xf32>, vector<24x8xf32> -> vector<24x32xf32>
    %149 = vector.extract_strided_slice %57 {offsets = [0, 0], sizes = [16, 8], strides = [1, 1]} : vector<16x32xf32> to vector<16x8xf32>
    %150 = vector.extract_strided_slice %56 {offsets = [0, 0], sizes = [24, 8], strides = [1, 1]} : vector<24x32xf32> to vector<24x8xf32>
    %cst_68 = arith.constant dense<0.000000e+00> : vector<16x24xf32>
    %151 = tpu.matmul %149, %150, %cst_68 {dimension_numbers = #tpu.dot_dimension_numbers<[1], [1], [0], [0], [0, 0, 1, 0], [], []>} : vector<16x8xf32>, vector<24x8xf32>, vector<16x24xf32> -> vector<16x24xf32>
    %152 = arith.addf %151, %32 : vector<16x24xf32>
    %cst_69 = arith.constant dense<0xFF800000> : vector<16xf32>
    %153 = vector.multi_reduction <maximumf>, %152, %cst_69 [1] : vector<16x24xf32> to vector<16xf32>
    %154 = vector.shape_cast %153 : vector<16xf32> to vector<16x1xf32>
    %155 = vector.broadcast %154 : vector<16x1xf32> to vector<16x24xf32>
    %156 = arith.subf %152, %155 : vector<16x24xf32>
    %157 = math.exp %156 : vector<16x24xf32>
    %158 = arith.mulf %157, %31 : vector<16x24xf32>
    %cst_70 = arith.constant dense<0.000000e+00> : vector<16xf32>
    %159 = vector.multi_reduction <add>, %158, %cst_70 [1] : vector<16x24xf32> to vector<16xf32>
    %160 = vector.shape_cast %159 : vector<16xf32> to vector<16x1xf32>
    %cst_71 = arith.constant 0.000000e+00 : f32
    %161 = vector.broadcast %cst_71 : f32 to vector<16x1xf32>
    %162 = arith.cmpf ogt, %160, %161 : vector<16x1xf32>
    %cst_72 = arith.constant 1.000000e+00 : f32
    %163 = vector.broadcast %cst_72 : f32 to vector<16x1xf32>
    %164 = arith.select %162, %160, %163 : vector<16x1xi1>, vector<16x1xf32>
    %165 = tpu.reciprocal %164 {approx = true} : vector<16x1xf32> -> vector<16x1xf32>
    %166 = vector.broadcast %165 : vector<16x1xf32> to vector<16x24xf32>
    %167 = arith.mulf %158, %166 : vector<16x24xf32>
    %168 = vector.extract_strided_slice %61 {offsets = [0, 0], sizes = [24, 8], strides = [1, 1]} : vector<24x32xf32> to vector<24x8xf32>
    %cst_73 = arith.constant dense<0.000000e+00> : vector<16x8xf32>
    %169 = tpu.matmul %167, %168, %cst_73 {dimension_numbers = #tpu.dot_dimension_numbers<[1], [0], [0], [1], [0, 0, 1, 1], [], []>} : vector<16x24xf32>, vector<24x8xf32>, vector<16x8xf32> -> vector<16x8xf32>
    %170 = vector.extract_strided_slice %57 {offsets = [0, 8], sizes = [16, 8], strides = [1, 1]} : vector<16x32xf32> to vector<16x8xf32>
    %171 = vector.extract_strided_slice %56 {offsets = [0, 8], sizes = [24, 8], strides = [1, 1]} : vector<24x32xf32> to vector<24x8xf32>
    %cst_74 = arith.constant dense<0.000000e+00> : vector<16x24xf32>
    %172 = tpu.matmul %170, %171, %cst_74 {dimension_numbers = #tpu.dot_dimension_numbers<[1], [1], [0], [0], [0, 0, 1, 0], [], []>} : vector<16x8xf32>, vector<24x8xf32>, vector<16x24xf32> -> vector<16x24xf32>
    %173 = arith.addf %172, %32 : vector<16x24xf32>
    %cst_75 = arith.constant dense<0xFF800000> : vector<16xf32>
    %174 = vector.multi_reduction <maximumf>, %173, %cst_75 [1] : vector<16x24xf32> to vector<16xf32>
    %175 = vector.shape_cast %174 : vector<16xf32> to vector<16x1xf32>
    %176 = vector.broadcast %175 : vector<16x1xf32> to vector<16x24xf32>
    %177 = arith.subf %173, %176 : vector<16x24xf32>
    %178 = math.exp %177 : vector<16x24xf32>
    %179 = arith.mulf %178, %31 : vector<16x24xf32>
    %cst_76 = arith.constant dense<0.000000e+00> : vector<16xf32>
    %180 = vector.multi_reduction <add>, %179, %cst_76 [1] : vector<16x24xf32> to vector<16xf32>
    %181 = vector.shape_cast %180 : vector<16xf32> to vector<16x1xf32>
    %cst_77 = arith.constant 0.000000e+00 : f32
    %182 = vector.broadcast %cst_77 : f32 to vector<16x1xf32>
    %183 = arith.cmpf ogt, %181, %182 : vector<16x1xf32>
    %cst_78 = arith.constant 1.000000e+00 : f32
    %184 = vector.broadcast %cst_78 : f32 to vector<16x1xf32>
    %185 = arith.select %183, %181, %184 : vector<16x1xi1>, vector<16x1xf32>
    %186 = tpu.reciprocal %185 {approx = true} : vector<16x1xf32> -> vector<16x1xf32>
    %187 = vector.broadcast %186 : vector<16x1xf32> to vector<16x24xf32>
    %188 = arith.mulf %179, %187 : vector<16x24xf32>
    %189 = vector.extract_strided_slice %61 {offsets = [0, 8], sizes = [24, 8], strides = [1, 1]} : vector<24x32xf32> to vector<24x8xf32>
    %cst_79 = arith.constant dense<0.000000e+00> : vector<16x8xf32>
    %190 = tpu.matmul %188, %189, %cst_79 {dimension_numbers = #tpu.dot_dimension_numbers<[1], [0], [0], [1], [0, 0, 1, 1], [], []>} : vector<16x24xf32>, vector<24x8xf32>, vector<16x8xf32> -> vector<16x8xf32>
    %191 = vector.extract_strided_slice %57 {offsets = [0, 16], sizes = [16, 8], strides = [1, 1]} : vector<16x32xf32> to vector<16x8xf32>
    %192 = vector.extract_strided_slice %56 {offsets = [0, 16], sizes = [24, 8], strides = [1, 1]} : vector<24x32xf32> to vector<24x8xf32>
    %cst_80 = arith.constant dense<0.000000e+00> : vector<16x24xf32>
    %193 = tpu.matmul %191, %192, %cst_80 {dimension_numbers = #tpu.dot_dimension_numbers<[1], [1], [0], [0], [0, 0, 1, 0], [], []>} : vector<16x8xf32>, vector<24x8xf32>, vector<16x24xf32> -> vector<16x24xf32>
    %194 = arith.addf %193, %32 : vector<16x24xf32>
    %cst_81 = arith.constant dense<0xFF800000> : vector<16xf32>
    %195 = vector.multi_reduction <maximumf>, %194, %cst_81 [1] : vector<16x24xf32> to vector<16xf32>
    %196 = vector.shape_cast %195 : vector<16xf32> to vector<16x1xf32>
    %197 = vector.broadcast %196 : vector<16x1xf32> to vector<16x24xf32>
    %198 = arith.subf %194, %197 : vector<16x24xf32>
    %199 = math.exp %198 : vector<16x24xf32>
    %200 = arith.mulf %199, %31 : vector<16x24xf32>
    %cst_82 = arith.constant dense<0.000000e+00> : vector<16xf32>
    %201 = vector.multi_reduction <add>, %200, %cst_82 [1] : vector<16x24xf32> to vector<16xf32>
    %202 = vector.shape_cast %201 : vector<16xf32> to vector<16x1xf32>
    %cst_83 = arith.constant 0.000000e+00 : f32
    %203 = vector.broadcast %cst_83 : f32 to vector<16x1xf32>
    %204 = arith.cmpf ogt, %202, %203 : vector<16x1xf32>
    %cst_84 = arith.constant 1.000000e+00 : f32
    %205 = vector.broadcast %cst_84 : f32 to vector<16x1xf32>
    %206 = arith.select %204, %202, %205 : vector<16x1xi1>, vector<16x1xf32>
    %207 = tpu.reciprocal %206 {approx = true} : vector<16x1xf32> -> vector<16x1xf32>
    %208 = vector.broadcast %207 : vector<16x1xf32> to vector<16x24xf32>
    %209 = arith.mulf %200, %208 : vector<16x24xf32>
    %210 = vector.extract_strided_slice %61 {offsets = [0, 16], sizes = [24, 8], strides = [1, 1]} : vector<24x32xf32> to vector<24x8xf32>
    %cst_85 = arith.constant dense<0.000000e+00> : vector<16x8xf32>
    %211 = tpu.matmul %209, %210, %cst_85 {dimension_numbers = #tpu.dot_dimension_numbers<[1], [0], [0], [1], [0, 0, 1, 1], [], []>} : vector<16x24xf32>, vector<24x8xf32>, vector<16x8xf32> -> vector<16x8xf32>
    %212 = vector.extract_strided_slice %57 {offsets = [0, 24], sizes = [16, 8], strides = [1, 1]} : vector<16x32xf32> to vector<16x8xf32>
    %213 = vector.extract_strided_slice %56 {offsets = [0, 24], sizes = [24, 8], strides = [1, 1]} : vector<24x32xf32> to vector<24x8xf32>
    %cst_86 = arith.constant dense<0.000000e+00> : vector<16x24xf32>
    %214 = tpu.matmul %212, %213, %cst_86 {dimension_numbers = #tpu.dot_dimension_numbers<[1], [1], [0], [0], [0, 0, 1, 0], [], []>} : vector<16x8xf32>, vector<24x8xf32>, vector<16x24xf32> -> vector<16x24xf32>
    %215 = arith.addf %214, %32 : vector<16x24xf32>
    %cst_87 = arith.constant dense<0xFF800000> : vector<16xf32>
    %216 = vector.multi_reduction <maximumf>, %215, %cst_87 [1] : vector<16x24xf32> to vector<16xf32>
    %217 = vector.shape_cast %216 : vector<16xf32> to vector<16x1xf32>
    %218 = vector.broadcast %217 : vector<16x1xf32> to vector<16x24xf32>
    %219 = arith.subf %215, %218 : vector<16x24xf32>
    %220 = math.exp %219 : vector<16x24xf32>
    %221 = arith.mulf %220, %31 : vector<16x24xf32>
    %cst_88 = arith.constant dense<0.000000e+00> : vector<16xf32>
    %222 = vector.multi_reduction <add>, %221, %cst_88 [1] : vector<16x24xf32> to vector<16xf32>
    %223 = vector.shape_cast %222 : vector<16xf32> to vector<16x1xf32>
    %cst_89 = arith.constant 0.000000e+00 : f32
    %224 = vector.broadcast %cst_89 : f32 to vector<16x1xf32>
    %225 = arith.cmpf ogt, %223, %224 : vector<16x1xf32>
    %cst_90 = arith.constant 1.000000e+00 : f32
    %226 = vector.broadcast %cst_90 : f32 to vector<16x1xf32>
    %227 = arith.select %225, %223, %226 : vector<16x1xi1>, vector<16x1xf32>
    %228 = tpu.reciprocal %227 {approx = true} : vector<16x1xf32> -> vector<16x1xf32>
    %229 = vector.broadcast %228 : vector<16x1xf32> to vector<16x24xf32>
    %230 = arith.mulf %221, %229 : vector<16x24xf32>
    %231 = vector.extract_strided_slice %61 {offsets = [0, 24], sizes = [24, 8], strides = [1, 1]} : vector<24x32xf32> to vector<24x8xf32>
    %cst_91 = arith.constant dense<0.000000e+00> : vector<16x8xf32>
    %232 = tpu.matmul %230, %231, %cst_91 {dimension_numbers = #tpu.dot_dimension_numbers<[1], [0], [0], [1], [0, 0, 1, 1], [], []>} : vector<16x24xf32>, vector<24x8xf32>, vector<16x8xf32> -> vector<16x8xf32>
    %233 = tpu.concatenate %169, %190, %211, %232 in 1 : vector<16x8xf32>, vector<16x8xf32>, vector<16x8xf32>, vector<16x8xf32> -> vector<16x32xf32>
    %cst_92 = arith.constant 5.000000e-01 : f32
    %234 = vector.broadcast %cst_92 : f32 to vector<24x32xf32>
    %235 = arith.mulf %234, %148 : vector<24x32xf32>
    %cst_93 = arith.constant 0.707106769 : f32
    %236 = vector.broadcast %cst_93 : f32 to vector<24x32xf32>
    %237 = arith.mulf %148, %236 : vector<24x32xf32>
    %238 = math.absf %237 : vector<24x32xf32>
    %cst_94 = arith.constant 0.327591091 : f32
    %239 = vector.broadcast %cst_94 : f32 to vector<24x32xf32>
    %240 = arith.mulf %239, %238 : vector<24x32xf32>
    %cst_95 = arith.constant 1.000000e+00 : f32
    %241 = vector.broadcast %cst_95 : f32 to vector<24x32xf32>
    %242 = arith.addf %241, %240 : vector<24x32xf32>
    %cst_96 = arith.constant 1.000000e+00 : f32
    %243 = vector.broadcast %cst_96 : f32 to vector<24x32xf32>
    %244 = arith.divf %243, %242 : vector<24x32xf32>
    %cst_97 = arith.constant 1.06140542 : f32
    %245 = vector.broadcast %cst_97 : f32 to vector<24x32xf32>
    %246 = arith.mulf %245, %244 : vector<24x32xf32>
    %cst_98 = arith.constant 1.45315206 : f32
    %247 = vector.broadcast %cst_98 : f32 to vector<24x32xf32>
    %248 = arith.subf %246, %247 : vector<24x32xf32>
    %249 = arith.mulf %248, %244 : vector<24x32xf32>
    %cst_99 = arith.constant 1.42141378 : f32
    %250 = vector.broadcast %cst_99 : f32 to vector<24x32xf32>
    %251 = arith.addf %249, %250 : vector<24x32xf32>
    %252 = arith.mulf %251, %244 : vector<24x32xf32>
    %cst_100 = arith.constant 0.284496725 : f32
    %253 = vector.broadcast %cst_100 : f32 to vector<24x32xf32>
    %254 = arith.subf %252, %253 : vector<24x32xf32>
    %255 = arith.mulf %254, %244 : vector<24x32xf32>
    %cst_101 = arith.constant 0.254829586 : f32
    %256 = vector.broadcast %cst_101 : f32 to vector<24x32xf32>
    %257 = arith.addf %255, %256 : vector<24x32xf32>
    %258 = arith.mulf %257, %244 : vector<24x32xf32>
    %cst_102 = arith.constant 0.000000e+00 : f32
    %259 = vector.broadcast %cst_102 : f32 to vector<24x32xf32>
    %260 = arith.subf %259, %238 : vector<24x32xf32>
    %261 = arith.mulf %260, %238 : vector<24x32xf32>
    %262 = math.exp %261 : vector<24x32xf32>
    %263 = arith.mulf %258, %262 : vector<24x32xf32>
    %cst_103 = arith.constant 1.000000e+00 : f32
    %264 = vector.broadcast %cst_103 : f32 to vector<24x32xf32>
    %265 = arith.subf %264, %263 : vector<24x32xf32>
    %cst_104 = arith.constant 0.000000e+00 : f32
    %266 = vector.broadcast %cst_104 : f32 to vector<24x32xf32>
    %267 = arith.cmpf oge, %237, %266 : vector<24x32xf32>
    %cst_105 = arith.constant 0.000000e+00 : f32
    %268 = vector.broadcast %cst_105 : f32 to vector<24x32xf32>
    %269 = arith.subf %268, %265 : vector<24x32xf32>
    %270 = arith.select %267, %265, %269 : vector<24x32xi1>, vector<24x32xf32>
    %cst_106 = arith.constant 1.000000e+00 : f32
    %271 = vector.broadcast %cst_106 : f32 to vector<24x32xf32>
    %272 = arith.addf %271, %270 : vector<24x32xf32>
    %273 = arith.mulf %235, %272 : vector<24x32xf32>
    %c0_107 = arith.constant 0 : index
    %c0_108 = arith.constant 0 : index
    %c0_109 = arith.constant 0 : index
    %274 = vector.load %arg13[%c0_107, %c0_108, %c0_109] : memref<4x32x32xf32, #tpu.memory_space<vmem>>, vector<1x32x32xf32>
    %275 = vector.shape_cast %274 : vector<1x32x32xf32> to vector<32x32xf32>
    %cst_110 = arith.constant dense<0.000000e+00> : vector<24x32xf32>
    %276 = tpu.matmul %273, %275, %cst_110 {dimension_numbers = #tpu.dot_dimension_numbers<[1], [0], [0], [1], [0, 0, 1, 1], [], []>} : vector<24x32xf32>, vector<32x32xf32>, vector<24x32xf32> -> vector<24x32xf32>
    %c0_111 = arith.constant 0 : index
    %c0_112 = arith.constant 0 : index
    %c0_113 = arith.constant 0 : index
    %277 = vector.load %arg14[%c0_111, %c0_112, %c0_113] : memref<4x1x32xf32, #tpu.memory_space<vmem>>, vector<1x1x32xf32>
    %278 = vector.shape_cast %277 : vector<1x1x32xf32> to vector<1x32xf32>
    %279 = vector.broadcast %278 : vector<1x32xf32> to vector<24x32xf32>
    %280 = arith.addf %276, %279 : vector<24x32xf32>
    %c0_114 = arith.constant 0 : index
    %281 = memref.load %arg15[%c0_114] : memref<4xf32, #tpu.memory_space<smem>>
    %282 = vector.broadcast %281 : f32 to vector<24x32xf32>
    %283 = arith.mulf %282, %280 : vector<24x32xf32>
    %cst_115 = arith.constant 1.000000e+00 : f32
    %284 = arith.subf %cst_115, %281 : f32
    %285 = vector.broadcast %284 : f32 to vector<24x32xf32>
    %286 = arith.mulf %285, %28 : vector<24x32xf32>
    %287 = arith.addf %283, %286 : vector<24x32xf32>
    %cst_116 = arith.constant 5.000000e-01 : f32
    %288 = vector.broadcast %cst_116 : f32 to vector<16x32xf32>
    %289 = arith.mulf %288, %233 : vector<16x32xf32>
    %cst_117 = arith.constant 0.707106769 : f32
    %290 = vector.broadcast %cst_117 : f32 to vector<16x32xf32>
    %291 = arith.mulf %233, %290 : vector<16x32xf32>
    %292 = math.absf %291 : vector<16x32xf32>
    %cst_118 = arith.constant 0.327591091 : f32
    %293 = vector.broadcast %cst_118 : f32 to vector<16x32xf32>
    %294 = arith.mulf %293, %292 : vector<16x32xf32>
    %cst_119 = arith.constant 1.000000e+00 : f32
    %295 = vector.broadcast %cst_119 : f32 to vector<16x32xf32>
    %296 = arith.addf %295, %294 : vector<16x32xf32>
    %cst_120 = arith.constant 1.000000e+00 : f32
    %297 = vector.broadcast %cst_120 : f32 to vector<16x32xf32>
    %298 = arith.divf %297, %296 : vector<16x32xf32>
    %cst_121 = arith.constant 1.06140542 : f32
    %299 = vector.broadcast %cst_121 : f32 to vector<16x32xf32>
    %300 = arith.mulf %299, %298 : vector<16x32xf32>
    %cst_122 = arith.constant 1.45315206 : f32
    %301 = vector.broadcast %cst_122 : f32 to vector<16x32xf32>
    %302 = arith.subf %300, %301 : vector<16x32xf32>
    %303 = arith.mulf %302, %298 : vector<16x32xf32>
    %cst_123 = arith.constant 1.42141378 : f32
    %304 = vector.broadcast %cst_123 : f32 to vector<16x32xf32>
    %305 = arith.addf %303, %304 : vector<16x32xf32>
    %306 = arith.mulf %305, %298 : vector<16x32xf32>
    %cst_124 = arith.constant 0.284496725 : f32
    %307 = vector.broadcast %cst_124 : f32 to vector<16x32xf32>
    %308 = arith.subf %306, %307 : vector<16x32xf32>
    %309 = arith.mulf %308, %298 : vector<16x32xf32>
    %cst_125 = arith.constant 0.254829586 : f32
    %310 = vector.broadcast %cst_125 : f32 to vector<16x32xf32>
    %311 = arith.addf %309, %310 : vector<16x32xf32>
    %312 = arith.mulf %311, %298 : vector<16x32xf32>
    %cst_126 = arith.constant 0.000000e+00 : f32
    %313 = vector.broadcast %cst_126 : f32 to vector<16x32xf32>
    %314 = arith.subf %313, %292 : vector<16x32xf32>
    %315 = arith.mulf %314, %292 : vector<16x32xf32>
    %316 = math.exp %315 : vector<16x32xf32>
    %317 = arith.mulf %312, %316 : vector<16x32xf32>
    %cst_127 = arith.constant 1.000000e+00 : f32
    %318 = vector.broadcast %cst_127 : f32 to vector<16x32xf32>
    %319 = arith.subf %318, %317 : vector<16x32xf32>
    %cst_128 = arith.constant 0.000000e+00 : f32
    %320 = vector.broadcast %cst_128 : f32 to vector<16x32xf32>
    %321 = arith.cmpf oge, %291, %320 : vector<16x32xf32>
    %cst_129 = arith.constant 0.000000e+00 : f32
    %322 = vector.broadcast %cst_129 : f32 to vector<16x32xf32>
    %323 = arith.subf %322, %319 : vector<16x32xf32>
    %324 = arith.select %321, %319, %323 : vector<16x32xi1>, vector<16x32xf32>
    %cst_130 = arith.constant 1.000000e+00 : f32
    %325 = vector.broadcast %cst_130 : f32 to vector<16x32xf32>
    %326 = arith.addf %325, %324 : vector<16x32xf32>
    %327 = arith.mulf %289, %326 : vector<16x32xf32>
    %c1_131 = arith.constant 1 : index
    %c0_132 = arith.constant 0 : index
    %c0_133 = arith.constant 0 : index
    %328 = vector.load %arg13[%c1_131, %c0_132, %c0_133] : memref<4x32x32xf32, #tpu.memory_space<vmem>>, vector<1x32x32xf32>
    %329 = vector.shape_cast %328 : vector<1x32x32xf32> to vector<32x32xf32>
    %cst_134 = arith.constant dense<0.000000e+00> : vector<16x32xf32>
    %330 = tpu.matmul %327, %329, %cst_134 {dimension_numbers = #tpu.dot_dimension_numbers<[1], [0], [0], [1], [0, 0, 1, 1], [], []>} : vector<16x32xf32>, vector<32x32xf32>, vector<16x32xf32> -> vector<16x32xf32>
    %c1_135 = arith.constant 1 : index
    %c0_136 = arith.constant 0 : index
    %c0_137 = arith.constant 0 : index
    %331 = vector.load %arg14[%c1_135, %c0_136, %c0_137] : memref<4x1x32xf32, #tpu.memory_space<vmem>>, vector<1x1x32xf32>
    %332 = vector.shape_cast %331 : vector<1x1x32xf32> to vector<1x32xf32>
    %333 = vector.broadcast %332 : vector<1x32xf32> to vector<16x32xf32>
    %334 = arith.addf %330, %333 : vector<16x32xf32>
    %c1_138 = arith.constant 1 : index
    %335 = memref.load %arg15[%c1_138] : memref<4xf32, #tpu.memory_space<smem>>
    %336 = vector.broadcast %335 : f32 to vector<16x32xf32>
    %337 = arith.mulf %336, %334 : vector<16x32xf32>
    %cst_139 = arith.constant 1.000000e+00 : f32
    %338 = arith.subf %cst_139, %335 : f32
    %339 = vector.broadcast %338 : f32 to vector<16x32xf32>
    %340 = arith.mulf %339, %10 : vector<16x32xf32>
    %341 = arith.addf %337, %340 : vector<16x32xf32>
    %c3 = arith.constant 3 : index
    %c0_140 = arith.constant 0 : index
    %c0_141 = arith.constant 0 : index
    %342 = vector.load %arg11[%c3, %c0_140, %c0_141] : memref<6x32x96xf32, #tpu.memory_space<vmem>>, vector<1x32x96xf32>
    %343 = vector.shape_cast %342 : vector<1x32x96xf32> to vector<32x96xf32>
    %cst_142 = arith.constant dense<0.000000e+00> : vector<16x96xf32>
    %344 = tpu.matmul %341, %343, %cst_142 {dimension_numbers = #tpu.dot_dimension_numbers<[1], [0], [0], [1], [0, 0, 1, 1], [], []>} : vector<16x32xf32>, vector<32x96xf32>, vector<16x96xf32> -> vector<16x96xf32>
    %c3_143 = arith.constant 3 : index
    %c0_144 = arith.constant 0 : index
    %c0_145 = arith.constant 0 : index
    %345 = vector.load %arg12[%c3_143, %c0_144, %c0_145] : memref<6x1x96xf32, #tpu.memory_space<vmem>>, vector<1x1x96xf32>
    %346 = vector.shape_cast %345 : vector<1x1x96xf32> to vector<1x96xf32>
    %347 = vector.broadcast %346 : vector<1x96xf32> to vector<16x96xf32>
    %348 = arith.addf %344, %347 : vector<16x96xf32>
    %c4 = arith.constant 4 : index
    %c0_146 = arith.constant 0 : index
    %c0_147 = arith.constant 0 : index
    %349 = vector.load %arg11[%c4, %c0_146, %c0_147] : memref<6x32x96xf32, #tpu.memory_space<vmem>>, vector<1x32x96xf32>
    %350 = vector.shape_cast %349 : vector<1x32x96xf32> to vector<32x96xf32>
    %cst_148 = arith.constant dense<0.000000e+00> : vector<8x96xf32>
    %351 = tpu.matmul %19, %350, %cst_148 {dimension_numbers = #tpu.dot_dimension_numbers<[1], [0], [0], [1], [0, 0, 1, 1], [], []>} : vector<8x32xf32>, vector<32x96xf32>, vector<8x96xf32> -> vector<8x96xf32>
    %c4_149 = arith.constant 4 : index
    %c0_150 = arith.constant 0 : index
    %c0_151 = arith.constant 0 : index
    %352 = vector.load %arg12[%c4_149, %c0_150, %c0_151] : memref<6x1x96xf32, #tpu.memory_space<vmem>>, vector<1x1x96xf32>
    %353 = vector.shape_cast %352 : vector<1x1x96xf32> to vector<1x96xf32>
    %354 = vector.broadcast %353 : vector<1x96xf32> to vector<8x96xf32>
    %355 = arith.addf %351, %354 : vector<8x96xf32>
    %c5 = arith.constant 5 : index
    %c0_152 = arith.constant 0 : index
    %c0_153 = arith.constant 0 : index
    %356 = vector.load %arg11[%c5, %c0_152, %c0_153] : memref<6x32x96xf32, #tpu.memory_space<vmem>>, vector<1x32x96xf32>
    %357 = vector.shape_cast %356 : vector<1x32x96xf32> to vector<32x96xf32>
    %cst_154 = arith.constant dense<0.000000e+00> : vector<24x96xf32>
    %358 = tpu.matmul %287, %357, %cst_154 {dimension_numbers = #tpu.dot_dimension_numbers<[1], [0], [0], [1], [0, 0, 1, 1], [], []>} : vector<24x32xf32>, vector<32x96xf32>, vector<24x96xf32> -> vector<24x96xf32>
    %c5_155 = arith.constant 5 : index
    %c0_156 = arith.constant 0 : index
    %c0_157 = arith.constant 0 : index
    %359 = vector.load %arg12[%c5_155, %c0_156, %c0_157] : memref<6x1x96xf32, #tpu.memory_space<vmem>>, vector<1x1x96xf32>
    %360 = vector.shape_cast %359 : vector<1x1x96xf32> to vector<1x96xf32>
    %361 = vector.broadcast %360 : vector<1x96xf32> to vector<24x96xf32>
    %362 = arith.addf %358, %361 : vector<24x96xf32>
    %363 = vector.extract_strided_slice %348 {offsets = [0, 0], sizes = [16, 32], strides = [1, 1]} : vector<16x96xf32> to vector<16x32xf32>
    %364 = vector.extract_strided_slice %355 {offsets = [0, 0], sizes = [8, 32], strides = [1, 1]} : vector<8x96xf32> to vector<8x32xf32>
    %365 = vector.extract_strided_slice %362 {offsets = [0, 0], sizes = [24, 32], strides = [1, 1]} : vector<24x96xf32> to vector<24x32xf32>
    %366 = vector.extract_strided_slice %348 {offsets = [0, 32], sizes = [16, 32], strides = [1, 1]} : vector<16x96xf32> to vector<16x32xf32>
    %367 = vector.extract_strided_slice %362 {offsets = [0, 32], sizes = [24, 32], strides = [1, 1]} : vector<24x96xf32> to vector<24x32xf32>
    %368 = vector.extract_strided_slice %348 {offsets = [0, 64], sizes = [16, 32], strides = [1, 1]} : vector<16x96xf32> to vector<16x32xf32>
    %369 = vector.extract_strided_slice %355 {offsets = [0, 64], sizes = [8, 32], strides = [1, 1]} : vector<8x96xf32> to vector<8x32xf32>
    %370 = vector.extract_strided_slice %362 {offsets = [0, 64], sizes = [24, 32], strides = [1, 1]} : vector<24x96xf32> to vector<24x32xf32>
    %371 = tpu.concatenate %364, %363 in 0 : vector<8x32xf32>, vector<16x32xf32> -> vector<24x32xf32>
    %372 = tpu.concatenate %369, %368 in 0 : vector<8x32xf32>, vector<16x32xf32> -> vector<24x32xf32>
    %373 = vector.extract_strided_slice %367 {offsets = [0, 0], sizes = [24, 8], strides = [1, 1]} : vector<24x32xf32> to vector<24x8xf32>
    %374 = vector.extract_strided_slice %371 {offsets = [0, 0], sizes = [24, 8], strides = [1, 1]} : vector<24x32xf32> to vector<24x8xf32>
    %cst_158 = arith.constant dense<0.000000e+00> : vector<24x24xf32>
    %375 = tpu.matmul %373, %374, %cst_158 {dimension_numbers = #tpu.dot_dimension_numbers<[1], [1], [0], [0], [0, 0, 1, 0], [], []>} : vector<24x8xf32>, vector<24x8xf32>, vector<24x24xf32> -> vector<24x24xf32>
    %376 = arith.addf %375, %30 : vector<24x24xf32>
    %cst_159 = arith.constant dense<0xFF800000> : vector<24xf32>
    %377 = vector.multi_reduction <maximumf>, %376, %cst_159 [1] : vector<24x24xf32> to vector<24xf32>
    %378 = vector.shape_cast %377 : vector<24xf32> to vector<24x1xf32>
    %379 = vector.broadcast %378 : vector<24x1xf32> to vector<24x24xf32>
    %380 = arith.subf %376, %379 : vector<24x24xf32>
    %381 = math.exp %380 : vector<24x24xf32>
    %382 = arith.mulf %381, %29 : vector<24x24xf32>
    %cst_160 = arith.constant dense<0.000000e+00> : vector<24xf32>
    %383 = vector.multi_reduction <add>, %382, %cst_160 [1] : vector<24x24xf32> to vector<24xf32>
    %384 = vector.shape_cast %383 : vector<24xf32> to vector<24x1xf32>
    %cst_161 = arith.constant 0.000000e+00 : f32
    %385 = vector.broadcast %cst_161 : f32 to vector<24x1xf32>
    %386 = arith.cmpf ogt, %384, %385 : vector<24x1xf32>
    %cst_162 = arith.constant 1.000000e+00 : f32
    %387 = vector.broadcast %cst_162 : f32 to vector<24x1xf32>
    %388 = arith.select %386, %384, %387 : vector<24x1xi1>, vector<24x1xf32>
    %389 = tpu.reciprocal %388 {approx = true} : vector<24x1xf32> -> vector<24x1xf32>
    %390 = vector.broadcast %389 : vector<24x1xf32> to vector<24x24xf32>
    %391 = arith.mulf %382, %390 : vector<24x24xf32>
    %392 = vector.extract_strided_slice %372 {offsets = [0, 0], sizes = [24, 8], strides = [1, 1]} : vector<24x32xf32> to vector<24x8xf32>
    %cst_163 = arith.constant dense<0.000000e+00> : vector<24x8xf32>
    %393 = tpu.matmul %391, %392, %cst_163 {dimension_numbers = #tpu.dot_dimension_numbers<[1], [0], [0], [1], [0, 0, 1, 1], [], []>} : vector<24x24xf32>, vector<24x8xf32>, vector<24x8xf32> -> vector<24x8xf32>
    %394 = vector.extract_strided_slice %367 {offsets = [0, 8], sizes = [24, 8], strides = [1, 1]} : vector<24x32xf32> to vector<24x8xf32>
    %395 = vector.extract_strided_slice %371 {offsets = [0, 8], sizes = [24, 8], strides = [1, 1]} : vector<24x32xf32> to vector<24x8xf32>
    %cst_164 = arith.constant dense<0.000000e+00> : vector<24x24xf32>
    %396 = tpu.matmul %394, %395, %cst_164 {dimension_numbers = #tpu.dot_dimension_numbers<[1], [1], [0], [0], [0, 0, 1, 0], [], []>} : vector<24x8xf32>, vector<24x8xf32>, vector<24x24xf32> -> vector<24x24xf32>
    %397 = arith.addf %396, %30 : vector<24x24xf32>
    %cst_165 = arith.constant dense<0xFF800000> : vector<24xf32>
    %398 = vector.multi_reduction <maximumf>, %397, %cst_165 [1] : vector<24x24xf32> to vector<24xf32>
    %399 = vector.shape_cast %398 : vector<24xf32> to vector<24x1xf32>
    %400 = vector.broadcast %399 : vector<24x1xf32> to vector<24x24xf32>
    %401 = arith.subf %397, %400 : vector<24x24xf32>
    %402 = math.exp %401 : vector<24x24xf32>
    %403 = arith.mulf %402, %29 : vector<24x24xf32>
    %cst_166 = arith.constant dense<0.000000e+00> : vector<24xf32>
    %404 = vector.multi_reduction <add>, %403, %cst_166 [1] : vector<24x24xf32> to vector<24xf32>
    %405 = vector.shape_cast %404 : vector<24xf32> to vector<24x1xf32>
    %cst_167 = arith.constant 0.000000e+00 : f32
    %406 = vector.broadcast %cst_167 : f32 to vector<24x1xf32>
    %407 = arith.cmpf ogt, %405, %406 : vector<24x1xf32>
    %cst_168 = arith.constant 1.000000e+00 : f32
    %408 = vector.broadcast %cst_168 : f32 to vector<24x1xf32>
    %409 = arith.select %407, %405, %408 : vector<24x1xi1>, vector<24x1xf32>
    %410 = tpu.reciprocal %409 {approx = true} : vector<24x1xf32> -> vector<24x1xf32>
    %411 = vector.broadcast %410 : vector<24x1xf32> to vector<24x24xf32>
    %412 = arith.mulf %403, %411 : vector<24x24xf32>
    %413 = vector.extract_strided_slice %372 {offsets = [0, 8], sizes = [24, 8], strides = [1, 1]} : vector<24x32xf32> to vector<24x8xf32>
    %cst_169 = arith.constant dense<0.000000e+00> : vector<24x8xf32>
    %414 = tpu.matmul %412, %413, %cst_169 {dimension_numbers = #tpu.dot_dimension_numbers<[1], [0], [0], [1], [0, 0, 1, 1], [], []>} : vector<24x24xf32>, vector<24x8xf32>, vector<24x8xf32> -> vector<24x8xf32>
    %415 = vector.extract_strided_slice %367 {offsets = [0, 16], sizes = [24, 8], strides = [1, 1]} : vector<24x32xf32> to vector<24x8xf32>
    %416 = vector.extract_strided_slice %371 {offsets = [0, 16], sizes = [24, 8], strides = [1, 1]} : vector<24x32xf32> to vector<24x8xf32>
    %cst_170 = arith.constant dense<0.000000e+00> : vector<24x24xf32>
    %417 = tpu.matmul %415, %416, %cst_170 {dimension_numbers = #tpu.dot_dimension_numbers<[1], [1], [0], [0], [0, 0, 1, 0], [], []>} : vector<24x8xf32>, vector<24x8xf32>, vector<24x24xf32> -> vector<24x24xf32>
    %418 = arith.addf %417, %30 : vector<24x24xf32>
    %cst_171 = arith.constant dense<0xFF800000> : vector<24xf32>
    %419 = vector.multi_reduction <maximumf>, %418, %cst_171 [1] : vector<24x24xf32> to vector<24xf32>
    %420 = vector.shape_cast %419 : vector<24xf32> to vector<24x1xf32>
    %421 = vector.broadcast %420 : vector<24x1xf32> to vector<24x24xf32>
    %422 = arith.subf %418, %421 : vector<24x24xf32>
    %423 = math.exp %422 : vector<24x24xf32>
    %424 = arith.mulf %423, %29 : vector<24x24xf32>
    %cst_172 = arith.constant dense<0.000000e+00> : vector<24xf32>
    %425 = vector.multi_reduction <add>, %424, %cst_172 [1] : vector<24x24xf32> to vector<24xf32>
    %426 = vector.shape_cast %425 : vector<24xf32> to vector<24x1xf32>
    %cst_173 = arith.constant 0.000000e+00 : f32
    %427 = vector.broadcast %cst_173 : f32 to vector<24x1xf32>
    %428 = arith.cmpf ogt, %426, %427 : vector<24x1xf32>
    %cst_174 = arith.constant 1.000000e+00 : f32
    %429 = vector.broadcast %cst_174 : f32 to vector<24x1xf32>
    %430 = arith.select %428, %426, %429 : vector<24x1xi1>, vector<24x1xf32>
    %431 = tpu.reciprocal %430 {approx = true} : vector<24x1xf32> -> vector<24x1xf32>
    %432 = vector.broadcast %431 : vector<24x1xf32> to vector<24x24xf32>
    %433 = arith.mulf %424, %432 : vector<24x24xf32>
    %434 = vector.extract_strided_slice %372 {offsets = [0, 16], sizes = [24, 8], strides = [1, 1]} : vector<24x32xf32> to vector<24x8xf32>
    %cst_175 = arith.constant dense<0.000000e+00> : vector<24x8xf32>
    %435 = tpu.matmul %433, %434, %cst_175 {dimension_numbers = #tpu.dot_dimension_numbers<[1], [0], [0], [1], [0, 0, 1, 1], [], []>} : vector<24x24xf32>, vector<24x8xf32>, vector<24x8xf32> -> vector<24x8xf32>
    %436 = vector.extract_strided_slice %367 {offsets = [0, 24], sizes = [24, 8], strides = [1, 1]} : vector<24x32xf32> to vector<24x8xf32>
    %437 = vector.extract_strided_slice %371 {offsets = [0, 24], sizes = [24, 8], strides = [1, 1]} : vector<24x32xf32> to vector<24x8xf32>
    %cst_176 = arith.constant dense<0.000000e+00> : vector<24x24xf32>
    %438 = tpu.matmul %436, %437, %cst_176 {dimension_numbers = #tpu.dot_dimension_numbers<[1], [1], [0], [0], [0, 0, 1, 0], [], []>} : vector<24x8xf32>, vector<24x8xf32>, vector<24x24xf32> -> vector<24x24xf32>
    %439 = arith.addf %438, %30 : vector<24x24xf32>
    %cst_177 = arith.constant dense<0xFF800000> : vector<24xf32>
    %440 = vector.multi_reduction <maximumf>, %439, %cst_177 [1] : vector<24x24xf32> to vector<24xf32>
    %441 = vector.shape_cast %440 : vector<24xf32> to vector<24x1xf32>
    %442 = vector.broadcast %441 : vector<24x1xf32> to vector<24x24xf32>
    %443 = arith.subf %439, %442 : vector<24x24xf32>
    %444 = math.exp %443 : vector<24x24xf32>
    %445 = arith.mulf %444, %29 : vector<24x24xf32>
    %cst_178 = arith.constant dense<0.000000e+00> : vector<24xf32>
    %446 = vector.multi_reduction <add>, %445, %cst_178 [1] : vector<24x24xf32> to vector<24xf32>
    %447 = vector.shape_cast %446 : vector<24xf32> to vector<24x1xf32>
    %cst_179 = arith.constant 0.000000e+00 : f32
    %448 = vector.broadcast %cst_179 : f32 to vector<24x1xf32>
    %449 = arith.cmpf ogt, %447, %448 : vector<24x1xf32>
    %cst_180 = arith.constant 1.000000e+00 : f32
    %450 = vector.broadcast %cst_180 : f32 to vector<24x1xf32>
    %451 = arith.select %449, %447, %450 : vector<24x1xi1>, vector<24x1xf32>
    %452 = tpu.reciprocal %451 {approx = true} : vector<24x1xf32> -> vector<24x1xf32>
    %453 = vector.broadcast %452 : vector<24x1xf32> to vector<24x24xf32>
    %454 = arith.mulf %445, %453 : vector<24x24xf32>
    %455 = vector.extract_strided_slice %372 {offsets = [0, 24], sizes = [24, 8], strides = [1, 1]} : vector<24x32xf32> to vector<24x8xf32>
    %cst_181 = arith.constant dense<0.000000e+00> : vector<24x8xf32>
    %456 = tpu.matmul %454, %455, %cst_181 {dimension_numbers = #tpu.dot_dimension_numbers<[1], [0], [0], [1], [0, 0, 1, 1], [], []>} : vector<24x24xf32>, vector<24x8xf32>, vector<24x8xf32> -> vector<24x8xf32>
    %457 = tpu.concatenate %393, %414, %435, %456 in 1 : vector<24x8xf32>, vector<24x8xf32>, vector<24x8xf32>, vector<24x8xf32> -> vector<24x32xf32>
    %458 = vector.extract_strided_slice %366 {offsets = [0, 0], sizes = [16, 8], strides = [1, 1]} : vector<16x32xf32> to vector<16x8xf32>
    %459 = vector.extract_strided_slice %365 {offsets = [0, 0], sizes = [24, 8], strides = [1, 1]} : vector<24x32xf32> to vector<24x8xf32>
    %cst_182 = arith.constant dense<0.000000e+00> : vector<16x24xf32>
    %460 = tpu.matmul %458, %459, %cst_182 {dimension_numbers = #tpu.dot_dimension_numbers<[1], [1], [0], [0], [0, 0, 1, 0], [], []>} : vector<16x8xf32>, vector<24x8xf32>, vector<16x24xf32> -> vector<16x24xf32>
    %461 = arith.addf %460, %32 : vector<16x24xf32>
    %cst_183 = arith.constant dense<0xFF800000> : vector<16xf32>
    %462 = vector.multi_reduction <maximumf>, %461, %cst_183 [1] : vector<16x24xf32> to vector<16xf32>
    %463 = vector.shape_cast %462 : vector<16xf32> to vector<16x1xf32>
    %464 = vector.broadcast %463 : vector<16x1xf32> to vector<16x24xf32>
    %465 = arith.subf %461, %464 : vector<16x24xf32>
    %466 = math.exp %465 : vector<16x24xf32>
    %467 = arith.mulf %466, %31 : vector<16x24xf32>
    %cst_184 = arith.constant dense<0.000000e+00> : vector<16xf32>
    %468 = vector.multi_reduction <add>, %467, %cst_184 [1] : vector<16x24xf32> to vector<16xf32>
    %469 = vector.shape_cast %468 : vector<16xf32> to vector<16x1xf32>
    %cst_185 = arith.constant 0.000000e+00 : f32
    %470 = vector.broadcast %cst_185 : f32 to vector<16x1xf32>
    %471 = arith.cmpf ogt, %469, %470 : vector<16x1xf32>
    %cst_186 = arith.constant 1.000000e+00 : f32
    %472 = vector.broadcast %cst_186 : f32 to vector<16x1xf32>
    %473 = arith.select %471, %469, %472 : vector<16x1xi1>, vector<16x1xf32>
    %474 = tpu.reciprocal %473 {approx = true} : vector<16x1xf32> -> vector<16x1xf32>
    %475 = vector.broadcast %474 : vector<16x1xf32> to vector<16x24xf32>
    %476 = arith.mulf %467, %475 : vector<16x24xf32>
    %477 = vector.extract_strided_slice %370 {offsets = [0, 0], sizes = [24, 8], strides = [1, 1]} : vector<24x32xf32> to vector<24x8xf32>
    %cst_187 = arith.constant dense<0.000000e+00> : vector<16x8xf32>
    %478 = tpu.matmul %476, %477, %cst_187 {dimension_numbers = #tpu.dot_dimension_numbers<[1], [0], [0], [1], [0, 0, 1, 1], [], []>} : vector<16x24xf32>, vector<24x8xf32>, vector<16x8xf32> -> vector<16x8xf32>
    %479 = vector.extract_strided_slice %366 {offsets = [0, 8], sizes = [16, 8], strides = [1, 1]} : vector<16x32xf32> to vector<16x8xf32>
    %480 = vector.extract_strided_slice %365 {offsets = [0, 8], sizes = [24, 8], strides = [1, 1]} : vector<24x32xf32> to vector<24x8xf32>
    %cst_188 = arith.constant dense<0.000000e+00> : vector<16x24xf32>
    %481 = tpu.matmul %479, %480, %cst_188 {dimension_numbers = #tpu.dot_dimension_numbers<[1], [1], [0], [0], [0, 0, 1, 0], [], []>} : vector<16x8xf32>, vector<24x8xf32>, vector<16x24xf32> -> vector<16x24xf32>
    %482 = arith.addf %481, %32 : vector<16x24xf32>
    %cst_189 = arith.constant dense<0xFF800000> : vector<16xf32>
    %483 = vector.multi_reduction <maximumf>, %482, %cst_189 [1] : vector<16x24xf32> to vector<16xf32>
    %484 = vector.shape_cast %483 : vector<16xf32> to vector<16x1xf32>
    %485 = vector.broadcast %484 : vector<16x1xf32> to vector<16x24xf32>
    %486 = arith.subf %482, %485 : vector<16x24xf32>
    %487 = math.exp %486 : vector<16x24xf32>
    %488 = arith.mulf %487, %31 : vector<16x24xf32>
    %cst_190 = arith.constant dense<0.000000e+00> : vector<16xf32>
    %489 = vector.multi_reduction <add>, %488, %cst_190 [1] : vector<16x24xf32> to vector<16xf32>
    %490 = vector.shape_cast %489 : vector<16xf32> to vector<16x1xf32>
    %cst_191 = arith.constant 0.000000e+00 : f32
    %491 = vector.broadcast %cst_191 : f32 to vector<16x1xf32>
    %492 = arith.cmpf ogt, %490, %491 : vector<16x1xf32>
    %cst_192 = arith.constant 1.000000e+00 : f32
    %493 = vector.broadcast %cst_192 : f32 to vector<16x1xf32>
    %494 = arith.select %492, %490, %493 : vector<16x1xi1>, vector<16x1xf32>
    %495 = tpu.reciprocal %494 {approx = true} : vector<16x1xf32> -> vector<16x1xf32>
    %496 = vector.broadcast %495 : vector<16x1xf32> to vector<16x24xf32>
    %497 = arith.mulf %488, %496 : vector<16x24xf32>
    %498 = vector.extract_strided_slice %370 {offsets = [0, 8], sizes = [24, 8], strides = [1, 1]} : vector<24x32xf32> to vector<24x8xf32>
    %cst_193 = arith.constant dense<0.000000e+00> : vector<16x8xf32>
    %499 = tpu.matmul %497, %498, %cst_193 {dimension_numbers = #tpu.dot_dimension_numbers<[1], [0], [0], [1], [0, 0, 1, 1], [], []>} : vector<16x24xf32>, vector<24x8xf32>, vector<16x8xf32> -> vector<16x8xf32>
    %500 = vector.extract_strided_slice %366 {offsets = [0, 16], sizes = [16, 8], strides = [1, 1]} : vector<16x32xf32> to vector<16x8xf32>
    %501 = vector.extract_strided_slice %365 {offsets = [0, 16], sizes = [24, 8], strides = [1, 1]} : vector<24x32xf32> to vector<24x8xf32>
    %cst_194 = arith.constant dense<0.000000e+00> : vector<16x24xf32>
    %502 = tpu.matmul %500, %501, %cst_194 {dimension_numbers = #tpu.dot_dimension_numbers<[1], [1], [0], [0], [0, 0, 1, 0], [], []>} : vector<16x8xf32>, vector<24x8xf32>, vector<16x24xf32> -> vector<16x24xf32>
    %503 = arith.addf %502, %32 : vector<16x24xf32>
    %cst_195 = arith.constant dense<0xFF800000> : vector<16xf32>
    %504 = vector.multi_reduction <maximumf>, %503, %cst_195 [1] : vector<16x24xf32> to vector<16xf32>
    %505 = vector.shape_cast %504 : vector<16xf32> to vector<16x1xf32>
    %506 = vector.broadcast %505 : vector<16x1xf32> to vector<16x24xf32>
    %507 = arith.subf %503, %506 : vector<16x24xf32>
    %508 = math.exp %507 : vector<16x24xf32>
    %509 = arith.mulf %508, %31 : vector<16x24xf32>
    %cst_196 = arith.constant dense<0.000000e+00> : vector<16xf32>
    %510 = vector.multi_reduction <add>, %509, %cst_196 [1] : vector<16x24xf32> to vector<16xf32>
    %511 = vector.shape_cast %510 : vector<16xf32> to vector<16x1xf32>
    %cst_197 = arith.constant 0.000000e+00 : f32
    %512 = vector.broadcast %cst_197 : f32 to vector<16x1xf32>
    %513 = arith.cmpf ogt, %511, %512 : vector<16x1xf32>
    %cst_198 = arith.constant 1.000000e+00 : f32
    %514 = vector.broadcast %cst_198 : f32 to vector<16x1xf32>
    %515 = arith.select %513, %511, %514 : vector<16x1xi1>, vector<16x1xf32>
    %516 = tpu.reciprocal %515 {approx = true} : vector<16x1xf32> -> vector<16x1xf32>
    %517 = vector.broadcast %516 : vector<16x1xf32> to vector<16x24xf32>
    %518 = arith.mulf %509, %517 : vector<16x24xf32>
    %519 = vector.extract_strided_slice %370 {offsets = [0, 16], sizes = [24, 8], strides = [1, 1]} : vector<24x32xf32> to vector<24x8xf32>
    %cst_199 = arith.constant dense<0.000000e+00> : vector<16x8xf32>
    %520 = tpu.matmul %518, %519, %cst_199 {dimension_numbers = #tpu.dot_dimension_numbers<[1], [0], [0], [1], [0, 0, 1, 1], [], []>} : vector<16x24xf32>, vector<24x8xf32>, vector<16x8xf32> -> vector<16x8xf32>
    %521 = vector.extract_strided_slice %366 {offsets = [0, 24], sizes = [16, 8], strides = [1, 1]} : vector<16x32xf32> to vector<16x8xf32>
    %522 = vector.extract_strided_slice %365 {offsets = [0, 24], sizes = [24, 8], strides = [1, 1]} : vector<24x32xf32> to vector<24x8xf32>
    %cst_200 = arith.constant dense<0.000000e+00> : vector<16x24xf32>
    %523 = tpu.matmul %521, %522, %cst_200 {dimension_numbers = #tpu.dot_dimension_numbers<[1], [1], [0], [0], [0, 0, 1, 0], [], []>} : vector<16x8xf32>, vector<24x8xf32>, vector<16x24xf32> -> vector<16x24xf32>
    %524 = arith.addf %523, %32 : vector<16x24xf32>
    %cst_201 = arith.constant dense<0xFF800000> : vector<16xf32>
    %525 = vector.multi_reduction <maximumf>, %524, %cst_201 [1] : vector<16x24xf32> to vector<16xf32>
    %526 = vector.shape_cast %525 : vector<16xf32> to vector<16x1xf32>
    %527 = vector.broadcast %526 : vector<16x1xf32> to vector<16x24xf32>
    %528 = arith.subf %524, %527 : vector<16x24xf32>
    %529 = math.exp %528 : vector<16x24xf32>
    %530 = arith.mulf %529, %31 : vector<16x24xf32>
    %cst_202 = arith.constant dense<0.000000e+00> : vector<16xf32>
    %531 = vector.multi_reduction <add>, %530, %cst_202 [1] : vector<16x24xf32> to vector<16xf32>
    %532 = vector.shape_cast %531 : vector<16xf32> to vector<16x1xf32>
    %cst_203 = arith.constant 0.000000e+00 : f32
    %533 = vector.broadcast %cst_203 : f32 to vector<16x1xf32>
    %534 = arith.cmpf ogt, %532, %533 : vector<16x1xf32>
    %cst_204 = arith.constant 1.000000e+00 : f32
    %535 = vector.broadcast %cst_204 : f32 to vector<16x1xf32>
    %536 = arith.select %534, %532, %535 : vector<16x1xi1>, vector<16x1xf32>
    %537 = tpu.reciprocal %536 {approx = true} : vector<16x1xf32> -> vector<16x1xf32>
    %538 = vector.broadcast %537 : vector<16x1xf32> to vector<16x24xf32>
    %539 = arith.mulf %530, %538 : vector<16x24xf32>
    %540 = vector.extract_strided_slice %370 {offsets = [0, 24], sizes = [24, 8], strides = [1, 1]} : vector<24x32xf32> to vector<24x8xf32>
    %cst_205 = arith.constant dense<0.000000e+00> : vector<16x8xf32>
    %541 = tpu.matmul %539, %540, %cst_205 {dimension_numbers = #tpu.dot_dimension_numbers<[1], [0], [0], [1], [0, 0, 1, 1], [], []>} : vector<16x24xf32>, vector<24x8xf32>, vector<16x8xf32> -> vector<16x8xf32>
    %542 = tpu.concatenate %478, %499, %520, %541 in 1 : vector<16x8xf32>, vector<16x8xf32>, vector<16x8xf32>, vector<16x8xf32> -> vector<16x32xf32>
    %cst_206 = arith.constant 5.000000e-01 : f32
    %543 = vector.broadcast %cst_206 : f32 to vector<24x32xf32>
    %544 = arith.mulf %543, %457 : vector<24x32xf32>
    %cst_207 = arith.constant 0.707106769 : f32
    %545 = vector.broadcast %cst_207 : f32 to vector<24x32xf32>
    %546 = arith.mulf %457, %545 : vector<24x32xf32>
    %547 = math.absf %546 : vector<24x32xf32>
    %cst_208 = arith.constant 0.327591091 : f32
    %548 = vector.broadcast %cst_208 : f32 to vector<24x32xf32>
    %549 = arith.mulf %548, %547 : vector<24x32xf32>
    %cst_209 = arith.constant 1.000000e+00 : f32
    %550 = vector.broadcast %cst_209 : f32 to vector<24x32xf32>
    %551 = arith.addf %550, %549 : vector<24x32xf32>
    %cst_210 = arith.constant 1.000000e+00 : f32
    %552 = vector.broadcast %cst_210 : f32 to vector<24x32xf32>
    %553 = arith.divf %552, %551 : vector<24x32xf32>
    %cst_211 = arith.constant 1.06140542 : f32
    %554 = vector.broadcast %cst_211 : f32 to vector<24x32xf32>
    %555 = arith.mulf %554, %553 : vector<24x32xf32>
    %cst_212 = arith.constant 1.45315206 : f32
    %556 = vector.broadcast %cst_212 : f32 to vector<24x32xf32>
    %557 = arith.subf %555, %556 : vector<24x32xf32>
    %558 = arith.mulf %557, %553 : vector<24x32xf32>
    %cst_213 = arith.constant 1.42141378 : f32
    %559 = vector.broadcast %cst_213 : f32 to vector<24x32xf32>
    %560 = arith.addf %558, %559 : vector<24x32xf32>
    %561 = arith.mulf %560, %553 : vector<24x32xf32>
    %cst_214 = arith.constant 0.284496725 : f32
    %562 = vector.broadcast %cst_214 : f32 to vector<24x32xf32>
    %563 = arith.subf %561, %562 : vector<24x32xf32>
    %564 = arith.mulf %563, %553 : vector<24x32xf32>
    %cst_215 = arith.constant 0.254829586 : f32
    %565 = vector.broadcast %cst_215 : f32 to vector<24x32xf32>
    %566 = arith.addf %564, %565 : vector<24x32xf32>
    %567 = arith.mulf %566, %553 : vector<24x32xf32>
    %cst_216 = arith.constant 0.000000e+00 : f32
    %568 = vector.broadcast %cst_216 : f32 to vector<24x32xf32>
    %569 = arith.subf %568, %547 : vector<24x32xf32>
    %570 = arith.mulf %569, %547 : vector<24x32xf32>
    %571 = math.exp %570 : vector<24x32xf32>
    %572 = arith.mulf %567, %571 : vector<24x32xf32>
    %cst_217 = arith.constant 1.000000e+00 : f32
    %573 = vector.broadcast %cst_217 : f32 to vector<24x32xf32>
    %574 = arith.subf %573, %572 : vector<24x32xf32>
    %cst_218 = arith.constant 0.000000e+00 : f32
    %575 = vector.broadcast %cst_218 : f32 to vector<24x32xf32>
    %576 = arith.cmpf oge, %546, %575 : vector<24x32xf32>
    %cst_219 = arith.constant 0.000000e+00 : f32
    %577 = vector.broadcast %cst_219 : f32 to vector<24x32xf32>
    %578 = arith.subf %577, %574 : vector<24x32xf32>
    %579 = arith.select %576, %574, %578 : vector<24x32xi1>, vector<24x32xf32>
    %cst_220 = arith.constant 1.000000e+00 : f32
    %580 = vector.broadcast %cst_220 : f32 to vector<24x32xf32>
    %581 = arith.addf %580, %579 : vector<24x32xf32>
    %582 = arith.mulf %544, %581 : vector<24x32xf32>
    %c2_221 = arith.constant 2 : index
    %c0_222 = arith.constant 0 : index
    %c0_223 = arith.constant 0 : index
    %583 = vector.load %arg13[%c2_221, %c0_222, %c0_223] : memref<4x32x32xf32, #tpu.memory_space<vmem>>, vector<1x32x32xf32>
    %584 = vector.shape_cast %583 : vector<1x32x32xf32> to vector<32x32xf32>
    %cst_224 = arith.constant dense<0.000000e+00> : vector<24x32xf32>
    %585 = tpu.matmul %582, %584, %cst_224 {dimension_numbers = #tpu.dot_dimension_numbers<[1], [0], [0], [1], [0, 0, 1, 1], [], []>} : vector<24x32xf32>, vector<32x32xf32>, vector<24x32xf32> -> vector<24x32xf32>
    %c2_225 = arith.constant 2 : index
    %c0_226 = arith.constant 0 : index
    %c0_227 = arith.constant 0 : index
    %586 = vector.load %arg14[%c2_225, %c0_226, %c0_227] : memref<4x1x32xf32, #tpu.memory_space<vmem>>, vector<1x1x32xf32>
    %587 = vector.shape_cast %586 : vector<1x1x32xf32> to vector<1x32xf32>
    %588 = vector.broadcast %587 : vector<1x32xf32> to vector<24x32xf32>
    %589 = arith.addf %585, %588 : vector<24x32xf32>
    %c2_228 = arith.constant 2 : index
    %590 = memref.load %arg15[%c2_228] : memref<4xf32, #tpu.memory_space<smem>>
    %591 = vector.broadcast %590 : f32 to vector<24x32xf32>
    %592 = arith.mulf %591, %589 : vector<24x32xf32>
    %cst_229 = arith.constant 1.000000e+00 : f32
    %593 = arith.subf %cst_229, %590 : f32
    %594 = vector.broadcast %593 : f32 to vector<24x32xf32>
    %595 = arith.mulf %594, %287 : vector<24x32xf32>
    %596 = arith.addf %592, %595 : vector<24x32xf32>
    %cst_230 = arith.constant 5.000000e-01 : f32
    %597 = vector.broadcast %cst_230 : f32 to vector<16x32xf32>
    %598 = arith.mulf %597, %542 : vector<16x32xf32>
    %cst_231 = arith.constant 0.707106769 : f32
    %599 = vector.broadcast %cst_231 : f32 to vector<16x32xf32>
    %600 = arith.mulf %542, %599 : vector<16x32xf32>
    %601 = math.absf %600 : vector<16x32xf32>
    %cst_232 = arith.constant 0.327591091 : f32
    %602 = vector.broadcast %cst_232 : f32 to vector<16x32xf32>
    %603 = arith.mulf %602, %601 : vector<16x32xf32>
    %cst_233 = arith.constant 1.000000e+00 : f32
    %604 = vector.broadcast %cst_233 : f32 to vector<16x32xf32>
    %605 = arith.addf %604, %603 : vector<16x32xf32>
    %cst_234 = arith.constant 1.000000e+00 : f32
    %606 = vector.broadcast %cst_234 : f32 to vector<16x32xf32>
    %607 = arith.divf %606, %605 : vector<16x32xf32>
    %cst_235 = arith.constant 1.06140542 : f32
    %608 = vector.broadcast %cst_235 : f32 to vector<16x32xf32>
    %609 = arith.mulf %608, %607 : vector<16x32xf32>
    %cst_236 = arith.constant 1.45315206 : f32
    %610 = vector.broadcast %cst_236 : f32 to vector<16x32xf32>
    %611 = arith.subf %609, %610 : vector<16x32xf32>
    %612 = arith.mulf %611, %607 : vector<16x32xf32>
    %cst_237 = arith.constant 1.42141378 : f32
    %613 = vector.broadcast %cst_237 : f32 to vector<16x32xf32>
    %614 = arith.addf %612, %613 : vector<16x32xf32>
    %615 = arith.mulf %614, %607 : vector<16x32xf32>
    %cst_238 = arith.constant 0.284496725 : f32
    %616 = vector.broadcast %cst_238 : f32 to vector<16x32xf32>
    %617 = arith.subf %615, %616 : vector<16x32xf32>
    %618 = arith.mulf %617, %607 : vector<16x32xf32>
    %cst_239 = arith.constant 0.254829586 : f32
    %619 = vector.broadcast %cst_239 : f32 to vector<16x32xf32>
    %620 = arith.addf %618, %619 : vector<16x32xf32>
    %621 = arith.mulf %620, %607 : vector<16x32xf32>
    %cst_240 = arith.constant 0.000000e+00 : f32
    %622 = vector.broadcast %cst_240 : f32 to vector<16x32xf32>
    %623 = arith.subf %622, %601 : vector<16x32xf32>
    %624 = arith.mulf %623, %601 : vector<16x32xf32>
    %625 = math.exp %624 : vector<16x32xf32>
    %626 = arith.mulf %621, %625 : vector<16x32xf32>
    %cst_241 = arith.constant 1.000000e+00 : f32
    %627 = vector.broadcast %cst_241 : f32 to vector<16x32xf32>
    %628 = arith.subf %627, %626 : vector<16x32xf32>
    %cst_242 = arith.constant 0.000000e+00 : f32
    %629 = vector.broadcast %cst_242 : f32 to vector<16x32xf32>
    %630 = arith.cmpf oge, %600, %629 : vector<16x32xf32>
    %cst_243 = arith.constant 0.000000e+00 : f32
    %631 = vector.broadcast %cst_243 : f32 to vector<16x32xf32>
    %632 = arith.subf %631, %628 : vector<16x32xf32>
    %633 = arith.select %630, %628, %632 : vector<16x32xi1>, vector<16x32xf32>
    %cst_244 = arith.constant 1.000000e+00 : f32
    %634 = vector.broadcast %cst_244 : f32 to vector<16x32xf32>
    %635 = arith.addf %634, %633 : vector<16x32xf32>
    %636 = arith.mulf %598, %635 : vector<16x32xf32>
    %c3_245 = arith.constant 3 : index
    %c0_246 = arith.constant 0 : index
    %c0_247 = arith.constant 0 : index
    %637 = vector.load %arg13[%c3_245, %c0_246, %c0_247] : memref<4x32x32xf32, #tpu.memory_space<vmem>>, vector<1x32x32xf32>
    %638 = vector.shape_cast %637 : vector<1x32x32xf32> to vector<32x32xf32>
    %cst_248 = arith.constant dense<0.000000e+00> : vector<16x32xf32>
    %639 = tpu.matmul %636, %638, %cst_248 {dimension_numbers = #tpu.dot_dimension_numbers<[1], [0], [0], [1], [0, 0, 1, 1], [], []>} : vector<16x32xf32>, vector<32x32xf32>, vector<16x32xf32> -> vector<16x32xf32>
    %c3_249 = arith.constant 3 : index
    %c0_250 = arith.constant 0 : index
    %c0_251 = arith.constant 0 : index
    %640 = vector.load %arg14[%c3_249, %c0_250, %c0_251] : memref<4x1x32xf32, #tpu.memory_space<vmem>>, vector<1x1x32xf32>
    %641 = vector.shape_cast %640 : vector<1x1x32xf32> to vector<1x32xf32>
    %642 = vector.broadcast %641 : vector<1x32xf32> to vector<16x32xf32>
    %643 = arith.addf %639, %642 : vector<16x32xf32>
    %c3_252 = arith.constant 3 : index
    %644 = memref.load %arg15[%c3_252] : memref<4xf32, #tpu.memory_space<smem>>
    %645 = vector.broadcast %644 : f32 to vector<16x32xf32>
    %646 = arith.mulf %645, %643 : vector<16x32xf32>
    %cst_253 = arith.constant 1.000000e+00 : f32
    %647 = arith.subf %cst_253, %644 : f32
    %648 = vector.broadcast %647 : f32 to vector<16x32xf32>
    %649 = arith.mulf %648, %341 : vector<16x32xf32>
    %650 = arith.addf %646, %649 : vector<16x32xf32>
    %c0_254 = arith.constant 0 : index
    %c0_255 = arith.constant 0 : index
    %651 = vector.load %arg9[%c0_254, %c0_255] : memref<32x16xf32, #tpu.memory_space<vmem>>, vector<32x16xf32>
    %c0_256 = arith.constant 0 : index
    %c0_257 = arith.constant 0 : index
    %652 = vector.load %arg10[%c0_256, %c0_257] : memref<1x16xf32, #tpu.memory_space<vmem>>, vector<1x16xf32>
    %cst_258 = arith.constant dense<0.000000e+00> : vector<16x16xf32>
    %653 = tpu.matmul %650, %651, %cst_258 {dimension_numbers = #tpu.dot_dimension_numbers<[1], [0], [0], [1], [0, 0, 1, 1], [], []>} : vector<16x32xf32>, vector<32x16xf32>, vector<16x16xf32> -> vector<16x16xf32>
    %654 = vector.broadcast %652 : vector<1x16xf32> to vector<16x16xf32>
    %655 = arith.addf %653, %654 : vector<16x16xf32>
    %cst_259 = arith.constant 0.000000e+00 : f32
    %656 = vector.broadcast %cst_259 : f32 to vector<16x16xf32>
    %657 = arith.cmpf oge, %655, %656 : vector<16x16xf32>
    %cst_260 = arith.constant 0.00999999977 : f32
    %658 = vector.broadcast %cst_260 : f32 to vector<16x16xf32>
    %659 = arith.mulf %658, %655 : vector<16x16xf32>
    %660 = arith.select %657, %655, %659 : vector<16x16xi1>, vector<16x16xf32>
    %c0_261 = arith.constant 0 : index
    %c0_262 = arith.constant 0 : index
    %661 = vector.load %arg16[%c0_261, %c0_262] : memref<16x16xf32, #tpu.memory_space<vmem>>, vector<16x16xf32>
    tpu.vector_store %arg16[%c0_261, %c0_262], %660 {strides = array<i32>} : memref<16x16xf32, #tpu.memory_space<vmem>>, vector<16x16xf32>,
    %cst_263 = arith.constant dense<0.000000e+00> : vector<8x16xf32>
    %662 = tpu.matmul %19, %651, %cst_263 {dimension_numbers = #tpu.dot_dimension_numbers<[1], [0], [0], [1], [0, 0, 1, 1], [], []>} : vector<8x32xf32>, vector<32x16xf32>, vector<8x16xf32> -> vector<8x16xf32>
    %663 = vector.broadcast %652 : vector<1x16xf32> to vector<8x16xf32>
    %664 = arith.addf %662, %663 : vector<8x16xf32>
    %cst_264 = arith.constant 0.000000e+00 : f32
    %665 = vector.broadcast %cst_264 : f32 to vector<8x16xf32>
    %666 = arith.cmpf oge, %664, %665 : vector<8x16xf32>
    %cst_265 = arith.constant 0.00999999977 : f32
    %667 = vector.broadcast %cst_265 : f32 to vector<8x16xf32>
    %668 = arith.mulf %667, %664 : vector<8x16xf32>
    %669 = arith.select %666, %664, %668 : vector<8x16xi1>, vector<8x16xf32>
    %c0_266 = arith.constant 0 : index
    %c0_267 = arith.constant 0 : index
    %670 = vector.load %arg17[%c0_266, %c0_267] : memref<8x16xf32, #tpu.memory_space<vmem>>, vector<8x16xf32>
    tpu.vector_store %arg17[%c0_266, %c0_267], %669 {strides = array<i32>} : memref<8x16xf32, #tpu.memory_space<vmem>>, vector<8x16xf32>,
    %cst_268 = arith.constant dense<0.000000e+00> : vector<24x16xf32>
    %671 = tpu.matmul %596, %651, %cst_268 {dimension_numbers = #tpu.dot_dimension_numbers<[1], [0], [0], [1], [0, 0, 1, 1], [], []>} : vector<24x32xf32>, vector<32x16xf32>, vector<24x16xf32> -> vector<24x16xf32>
    %672 = vector.broadcast %652 : vector<1x16xf32> to vector<24x16xf32>
    %673 = arith.addf %671, %672 : vector<24x16xf32>
    %cst_269 = arith.constant 0.000000e+00 : f32
    %674 = vector.broadcast %cst_269 : f32 to vector<24x16xf32>
    %675 = arith.cmpf oge, %673, %674 : vector<24x16xf32>
    %cst_270 = arith.constant 0.00999999977 : f32
    %676 = vector.broadcast %cst_270 : f32 to vector<24x16xf32>
    %677 = arith.mulf %676, %673 : vector<24x16xf32>
    %678 = arith.select %675, %673, %677 : vector<24x16xi1>, vector<24x16xf32>
    %c0_271 = arith.constant 0 : index
    %c0_272 = arith.constant 0 : index
    %679 = vector.load %arg18[%c0_271, %c0_272] : memref<24x16xf32, #tpu.memory_space<vmem>>, vector<24x16xf32>
    tpu.vector_store %arg18[%c0_271, %c0_272], %678 {strides = array<i32>} : memref<24x16xf32, #tpu.memory_space<vmem>>, vector<24x16xf32>,
    return
  }
}

</mosaic_0001>

<llo_original>
// kernel: tpu_custom_call.1
$region0: #{tpu_custom_call.1}
  #allocation0 [shape = 'u32[]', space=smem, size = 0x4, offset = 0x4, fixed_abs, tag = 'smem constant byte address 0x4 - core index']
  #allocation1 [shape = 'u32[144,128]{1,0:T(1,128)}', space=vmem, size = 0x12000, scoped, tag = 'internal scratch']
  %s0 = inlined_call_operand.vmem [shape: f32[16,8], index: 0, kind: input, shape index: {}]
  %s1 = inlined_call_operand.hbm [shape: f32[8,8], index: 1, kind: input, shape index: {}]
  %s2 = inlined_call_operand.vmem [shape: f32[24,8], index: 2, kind: input, shape index: {}]
  %s3 = inlined_call_operand.vmem [shape: f32[24,24], index: 3, kind: input, shape index: {}]
  %s4 = inlined_call_operand.hbm [shape: f32[24,24], index: 4, kind: input, shape index: {}]
  %s5 = inlined_call_operand.hbm [shape: f32[16,24], index: 5, kind: input, shape index: {}]
  %s6 = inlined_call_operand.hbm [shape: f32[16,24], index: 6, kind: input, shape index: {}]
  %s7 = inlined_call_operand.hbm [shape: f32[8,32], index: 7, kind: input, shape index: {}]
  %s8 = inlined_call_operand.hbm [shape: f32[1,32], index: 8, kind: input, shape index: {}]
  %s9 = inlined_call_operand.vmem [shape: f32[32,16], index: 9, kind: input, shape index: {}]
  %s10 = inlined_call_operand.hbm [shape: f32[1,16], index: 10, kind: input, shape index: {}]
  %s11 = inlined_call_operand.hbm [shape: f32[6,32,96], index: 11, kind: input, shape index: {}]
  %s12 = inlined_call_operand.hbm [shape: f32[6,1,96], index: 12, kind: input, shape index: {}]
  %s13 = inlined_call_operand.vmem [shape: f32[4,32,32], index: 13, kind: input, shape index: {}]
  %s14 = inlined_call_operand.vmem [shape: f32[4,1,32], index: 14, kind: input, shape index: {}]
  %s15 = inlined_call_operand.vmem [shape: f32[4], index: 15, kind: input, shape index: {}]
  %s16 = inlined_call_operand.hbm [shape: f32[16,16], index: 16, kind: output, shape index: {0}]
  %s17 = inlined_call_operand.hbm [shape: f32[8,16], index: 17, kind: output, shape index: {1}]
  %s18 = inlined_call_operand.vmem [shape: f32[24,16], index: 18, kind: output, shape index: {2}]
  %19 = xla_tuple %s16, %s17, %s18
  %s20 = sld [smem:[#allocation0]]
  $region130: #{tpu_custom_call.1} parent=0
    _
  %s22 = ssub.s32 1, %s20
  %s23 = scalar_select 0, %s22, %s20
  $region1: #{tpu_custom_call.1} parent=0
    #allocation2 [shape = 'u8[4096]{0}', space=vmem, size = 0x1000, scoped, tag = 'input window, operand 1, single buffered']
    #allocation3 [shape = 's32[1]{0}', space=sflag, size = 0x4, scoped, tag = 'scoped memory for tpu_custom_call.1']
    #allocation4 [shape = 's32[1]{0}', space=sflag, size = 0x4, scoped, tag = 'scoped memory for tpu_custom_call.1']
    #allocation5 [shape = 's32[1]{0}', space=sflag, size = 0x4, scoped, tag = 'scoped memory for tpu_custom_call.1']
    #allocation6 [shape = 'u8[12288]{0}', space=vmem, size = 0x3000, scoped, tag = 'input window, operand 4, single buffered']
    #allocation7 [shape = 's32[1]{0}', space=sflag, size = 0x4, scoped, tag = 'scoped memory for tpu_custom_call.1']
    #allocation8 [shape = 'u8[8192]{0}', space=vmem, size = 0x2000, scoped, tag = 'input window, operand 5, single buffered']
    #allocation9 [shape = 'u8[8192]{0}', space=vmem, size = 0x2000, scoped, tag = 'input window, operand 6, single buffered']
    #allocation10 [shape = 's32[1]{0}', space=sflag, size = 0x4, scoped, tag = 'scoped memory for tpu_custom_call.1']
    #allocation11 [shape = 'u8[4096]{0}', space=vmem, size = 0x1000, scoped, tag = 'input window, operand 7, single buffered']
    #allocation12 [shape = 'u8[512]{0}', space=vmem, size = 0x400, scoped, tag = 'input window, operand 8, single buffered']
    #allocation13 [shape = 's32[1]{0}', space=sflag, size = 0x4, scoped, tag = 'scoped memory for tpu_custom_call.1']
    #allocation14 [shape = 'u8[512]{0}', space=vmem, size = 0x400, scoped, tag = 'input window, operand 10, single buffered']
    #allocation15 [shape = 'u8[98304]{0}', space=vmem, size = 0x18000, scoped, tag = 'input window, operand 11, single buffered']
    #allocation16 [shape = 's32[1]{0}', space=sflag, size = 0x4, scoped, tag = 'scoped memory for tpu_custom_call.1']
    #allocation17 [shape = 'u8[3072]{0}', space=vmem, size = 0xc00, scoped, tag = 'input window, operand 12, single buffered']
    #allocation18 [shape = 'u8[512]{0}', space=smem, size = 0x200, scoped, tag = 'input window, operand 15, single buffered']
    #allocation19 [shape = 'u8[8192]{0}', space=vmem, size = 0x2000, scoped, tag = 'output window, operand 0, single buffered']
    #allocation20 [shape = 'u8[4096]{0}', space=vmem, size = 0x1000, scoped, tag = 'output window, operand 1, single buffered']
    #allocation21 [shape = 's32[1]{0}', space=sflag, size = 0x4, scoped, tag = 'scoped memory for tpu_custom_call.1']
    %24 = vsyncpa [#allocation3], 0
    %25 = vsyncpa [#allocation7], 0
    %26 = vsyncpa [#allocation10], 0
    %27 = vsyncpa [#allocation13], 0
    %28 = vsyncpa [#allocation16], 0
    %29 = vsyncpa [#allocation5], 0
    %30 = vsyncpa [#allocation4], 0
    %31 = vsyncpa [#allocation21], 0
    // Predicated region
    $region2: #{tpu_custom_call.1} parent=1 // pred_check
      _
    $region3: #{tpu_custom_call.1} parent=1 // pred_check_branch
      %33 = sbr.rel (0) target = $region5
    $region4: #{tpu_custom_call.1} parent=1 // pred_region
      _
    $region5: #{tpu_custom_call.1} parent=1 // pred_fallthru
      _
    // Predicated region
    $region6: #{tpu_custom_call.1} parent=1 // pred_check
      _
    $region7: #{tpu_custom_call.1} parent=1 // pred_check_branch
      %35 = sbr.rel (0) target = $region9
    $region8: #{tpu_custom_call.1} parent=1 // pred_region
      %s37 = ssub.s32 128, 128
      %38 = vsyncadd [#allocation3], %s37
      %s40 = sshll.u32 [#allocation2], 4
      %s41 = int_to_ptr.vmem [resolvable:$true] %s40
      %43 = dma.hbm_to_vmem [thread:$0]  %s1, 128, %s41, [#allocation3]
    $region9: #{tpu_custom_call.1} parent=1 // pred_fallthru
      _
    // Predicated region
    $region10: #{tpu_custom_call.1} parent=1 // pred_check
      _
    $region11: #{tpu_custom_call.1} parent=1 // pred_check_branch
      %45 = sbr.rel (0) target = $region13
    $region12: #{tpu_custom_call.1} parent=1 // pred_region
      _
    $region13: #{tpu_custom_call.1} parent=1 // pred_fallthru
      _
    // Predicated region
    $region14: #{tpu_custom_call.1} parent=1 // pred_check
      _
    $region15: #{tpu_custom_call.1} parent=1 // pred_check_branch
      %47 = sbr.rel (0) target = $region17
    $region16: #{tpu_custom_call.1} parent=1 // pred_region
      _
    $region17: #{tpu_custom_call.1} parent=1 // pred_fallthru
      _
    // Predicated region
    $region18: #{tpu_custom_call.1} parent=1 // pred_check
      _
    $region19: #{tpu_custom_call.1} parent=1 // pred_check_branch
      %49 = sbr.rel (0) target = $region21
    $region20: #{tpu_custom_call.1} parent=1 // pred_region
      %s51 = ssub.s32 384, 384
      %52 = vsyncadd [#allocation7], %s51
      %s53 = sshll.u32 [#allocation6], 4
      %s54 = int_to_ptr.vmem [resolvable:$true] %s53
      %59 = dma.hbm_to_vmem [thread:$0]  %s4, 384, %s54, [#allocation7], 128, 128, 8
    $region21: #{tpu_custom_call.1} parent=1 // pred_fallthru
      _
    // Predicated region
    $region22: #{tpu_custom_call.1} parent=1 // pred_check
      _
    $region23: #{tpu_custom_call.1} parent=1 // pred_check_branch
      %61 = sbr.rel (0) target = $region25
    $region24: #{tpu_custom_call.1} parent=1 // pred_region
      %s63 = ssub.s32 256, 256
      %64 = vsyncadd [#allocation7], %s63
      %s65 = sshll.u32 [#allocation8], 4
      %s66 = int_to_ptr.vmem [resolvable:$true] %s65
      %71 = dma.hbm_to_vmem [thread:$0]  %s5, 256, %s66, [#allocation7], 128, 128, 8
    $region25: #{tpu_custom_call.1} parent=1 // pred_fallthru
      _
    // Predicated region
    $region26: #{tpu_custom_call.1} parent=1 // pred_check
      _
    $region27: #{tpu_custom_call.1} parent=1 // pred_check_branch
      %73 = sbr.rel (0) target = $region29
    $region28: #{tpu_custom_call.1} parent=1 // pred_region
      %s75 = ssub.s32 256, 256
      %76 = vsyncadd [#allocation10], %s75
      %s77 = sshll.u32 [#allocation9], 4
      %s78 = int_to_ptr.vmem [resolvable:$true] %s77
      %83 = dma.hbm_to_vmem [thread:$0]  %s6, 256, %s78, [#allocation10], 128, 128, 8
    $region29: #{tpu_custom_call.1} parent=1 // pred_fallthru
      _
    // Predicated region
    $region30: #{tpu_custom_call.1} parent=1 // pred_check
      _
    $region31: #{tpu_custom_call.1} parent=1 // pred_check_branch
      %85 = sbr.rel (0) target = $region33
    $region32: #{tpu_custom_call.1} parent=1 // pred_region
      %s87 = ssub.s32 128, 128
      %88 = vsyncadd [#allocation10], %s87
      %s90 = sshll.u32 [#allocation11], 4
      %s91 = int_to_ptr.vmem [resolvable:$true] %s90
      %93 = dma.hbm_to_vmem [thread:$0]  %s7, 128, %s91, [#allocation10]
    $region33: #{tpu_custom_call.1} parent=1 // pred_fallthru
      _
    // Predicated region
    $region34: #{tpu_custom_call.1} parent=1 // pred_check
      _
    $region35: #{tpu_custom_call.1} parent=1 // pred_check_branch
      %95 = sbr.rel (0) target = $region37
    $region36: #{tpu_custom_call.1} parent=1 // pred_region
      %s97 = ssub.s32 16, 16
      %98 = vsyncadd [#allocation13], %s97
      %s100 = sshll.u32 [#allocation12], 4
      %s101 = int_to_ptr.vmem [resolvable:$true] %s100
      %103 = dma.hbm_to_vmem [thread:$0]  %s8, 16, %s101, [#allocation13]
    $region37: #{tpu_custom_call.1} parent=1 // pred_fallthru
      _
    // Predicated region
    $region38: #{tpu_custom_call.1} parent=1 // pred_check
      _
    $region39: #{tpu_custom_call.1} parent=1 // pred_check_branch
      %105 = sbr.rel (0) target = $region41
    $region40: #{tpu_custom_call.1} parent=1 // pred_region
      _
    $region41: #{tpu_custom_call.1} parent=1 // pred_fallthru
      _
    // Predicated region
    $region42: #{tpu_custom_call.1} parent=1 // pred_check
      _
    $region43: #{tpu_custom_call.1} parent=1 // pred_check_branch
      %107 = sbr.rel (0) target = $region45
    $region44: #{tpu_custom_call.1} parent=1 // pred_region
      %s109 = ssub.s32 16, 16
      %110 = vsyncadd [#allocation13], %s109
      %s112 = sshll.u32 [#allocation14], 4
      %s113 = int_to_ptr.vmem [resolvable:$true] %s112
      %115 = dma.hbm_to_vmem [thread:$0]  %s10, 16, %s113, [#allocation13]
    $region45: #{tpu_custom_call.1} parent=1 // pred_fallthru
      _
    // Predicated region
    $region46: #{tpu_custom_call.1} parent=1 // pred_check
      _
    $region47: #{tpu_custom_call.1} parent=1 // pred_check_branch
      %117 = sbr.rel (0) target = $region49
    $region48: #{tpu_custom_call.1} parent=1 // pred_region
      %s119 = ssub.s32 3072, 3072
      %120 = vsyncadd [#allocation16], %s119
      %s121 = sshll.u32 [#allocation15], 4
      %s122 = int_to_ptr.vmem [resolvable:$true] %s121
      %127 = dma.hbm_to_vmem [thread:$0]  %s11, 3072, %s122, [#allocation16], 128, 128, 8
    $region49: #{tpu_custom_call.1} parent=1 // pred_fallthru
      _
    // Predicated region
    $region50: #{tpu_custom_call.1} parent=1 // pred_check
      _
    $region51: #{tpu_custom_call.1} parent=1 // pred_check_branch
      %129 = sbr.rel (0) target = $region53
    $region52: #{tpu_custom_call.1} parent=1 // pred_region
      %s131 = ssub.s32 96, 96
      %132 = vsyncadd [#allocation16], %s131
      %s133 = sshll.u32 [#allocation17], 4
      %s134 = int_to_ptr.vmem [resolvable:$true] %s133
      %139 = dma.hbm_to_vmem [thread:$0]  %s12, 96, %s134, [#allocation16], 16, 16, 1
    $region53: #{tpu_custom_call.1} parent=1 // pred_fallthru
      _
    // Predicated region
    $region54: #{tpu_custom_call.1} parent=1 // pred_check
      _
    $region55: #{tpu_custom_call.1} parent=1 // pred_check_branch
      %141 = sbr.rel (0) target = $region57
    $region56: #{tpu_custom_call.1} parent=1 // pred_region
      _
    $region57: #{tpu_custom_call.1} parent=1 // pred_fallthru
      _
    // Predicated region
    $region58: #{tpu_custom_call.1} parent=1 // pred_check
      _
    $region59: #{tpu_custom_call.1} parent=1 // pred_check_branch
      %143 = sbr.rel (0) target = $region61
    $region60: #{tpu_custom_call.1} parent=1 // pred_region
      _
    $region61: #{tpu_custom_call.1} parent=1 // pred_fallthru
      _
    // Predicated region
    $region62: #{tpu_custom_call.1} parent=1 // pred_check
      _
    $region63: #{tpu_custom_call.1} parent=1 // pred_check_branch
      %145 = sbr.rel (0) target = $region65
    $region64: #{tpu_custom_call.1} parent=1 // pred_region
      %s147 = ssub.s32 16, 16
      %148 = vsyncadd [#allocation5], %s147
      %s150 = sshll.u32 %s15, 4
      %s151 = int_to_ptr.vmem [resolvable:$true] %s150
      %153 = dma.vmem_to_smem %s151, 16, [#allocation18], [#allocation5]
    $region65: #{tpu_custom_call.1} parent=1 // pred_fallthru
      _
    // Predicated region
    $region66: #{tpu_custom_call.1} parent=1 // pred_check
      _
    $region67: #{tpu_custom_call.1} parent=1 // pred_check_branch
      %155 = sbr.rel (0) target = $region69
    $region68: #{tpu_custom_call.1} parent=1 // pred_region
      %156 = dma.done [#allocation3], 128
    $region69: #{tpu_custom_call.1} parent=1 // pred_fallthru
      _
    // Predicated region
    $region70: #{tpu_custom_call.1} parent=1 // pred_check
      _
    $region71: #{tpu_custom_call.1} parent=1 // pred_check_branch
      %158 = sbr.rel (0) target = $region73
    $region72: #{tpu_custom_call.1} parent=1 // pred_region
      %159 = dma.done [#allocation7], 384
    $region73: #{tpu_custom_call.1} parent=1 // pred_fallthru
      _
    // Predicated region
    $region74: #{tpu_custom_call.1} parent=1 // pred_check
      _
    $region75: #{tpu_custom_call.1} parent=1 // pred_check_branch
      %161 = sbr.rel (0) target = $region77
    $region76: #{tpu_custom_call.1} parent=1 // pred_region
      %162 = dma.done [#allocation7], 256
    $region77: #{tpu_custom_call.1} parent=1 // pred_fallthru
      _
    // Predicated region
    $region78: #{tpu_custom_call.1} parent=1 // pred_check
      _
    $region79: #{tpu_custom_call.1} parent=1 // pred_check_branch
      %164 = sbr.rel (0) target = $region81
    $region80: #{tpu_custom_call.1} parent=1 // pred_region
      %165 = dma.done [#allocation10], 256
    $region81: #{tpu_custom_call.1} parent=1 // pred_fallthru
      _
    // Predicated region
    $region82: #{tpu_custom_call.1} parent=1 // pred_check
      _
    $region83: #{tpu_custom_call.1} parent=1 // pred_check_branch
      %167 = sbr.rel (0) target = $region85
    $region84: #{tpu_custom_call.1} parent=1 // pred_region
      %168 = dma.done [#allocation10], 128
    $region85: #{tpu_custom_call.1} parent=1 // pred_fallthru
      _
    // Predicated region
    $region86: #{tpu_custom_call.1} parent=1 // pred_check
      _
    $region87: #{tpu_custom_call.1} parent=1 // pred_check_branch
      %170 = sbr.rel (0) target = $region89
    $region88: #{tpu_custom_call.1} parent=1 // pred_region
      %171 = dma.done [#allocation13], 16
    $region89: #{tpu_custom_call.1} parent=1 // pred_fallthru
      _
    // Predicated region
    $region90: #{tpu_custom_call.1} parent=1 // pred_check
      _
    $region91: #{tpu_custom_call.1} parent=1 // pred_check_branch
      %173 = sbr.rel (0) target = $region93
    $region92: #{tpu_custom_call.1} parent=1 // pred_region
      %174 = dma.done [#allocation13], 16
    $region93: #{tpu_custom_call.1} parent=1 // pred_fallthru
      _
    // Predicated region
    $region94: #{tpu_custom_call.1} parent=1 // pred_check
      _
    $region95: #{tpu_custom_call.1} parent=1 // pred_check_branch
      %176 = sbr.rel (0) target = $region97
    $region96: #{tpu_custom_call.1} parent=1 // pred_region
      %177 = dma.done [#allocation16], 3072
    $region97: #{tpu_custom_call.1} parent=1 // pred_fallthru
      _
    // Predicated region
    $region98: #{tpu_custom_call.1} parent=1 // pred_check
      _
    $region99: #{tpu_custom_call.1} parent=1 // pred_check_branch
      %179 = sbr.rel (0) target = $region101
    $region100: #{tpu_custom_call.1} parent=1 // pred_region
      %180 = dma.done [#allocation16], 96
    $region101: #{tpu_custom_call.1} parent=1 // pred_fallthru
      _
    // Predicated region
    $region102: #{tpu_custom_call.1} parent=1 // pred_check
      _
    $region103: #{tpu_custom_call.1} parent=1 // pred_check_branch
      %182 = sbr.rel (0) target = $region105
    $region104: #{tpu_custom_call.1} parent=1 // pred_region
      %183 = dma.done [#allocation5], 16
    $region105: #{tpu_custom_call.1} parent=1 // pred_fallthru
      _
    %184 = sfence
    %v185 = vld [vmem:[#allocation11] sm:$0xff]
    %v186 = vld [vmem:[#allocation12] sm:$0x1]
    %v187 = vld [vmem:[%s0] sm:$0xff]
    %v188 = vld [vmem:[%s0 + $0x8] sm:$0xff]
    %v190 = vlaneseq
    %v191 = vshrl.u32 %v190, 7
    %v192 = vsub.s32 0, %v191
    %v193 = vrot.slane %v186, %v192
    %vm195 = vcmask 64512
    %v197 = vsel %vm195, %v187, 0
    %v200 = vsel %vm195, %v188, 0
    %202 = vmatprep.subr.mxu0 0.0
    %203 = vmatpush1.msra.mxu0 %v185
    %204 = vmatprep.subr.mxu0 0.0
    %205 = vmatpush1.msra.mxu0 0.0
    %206 = vmatprep.subr.mxu0 0.0
    %207 = vmatpush1.msra.mxu0 0.0
    %208 = vmatprep.subr.mxu0 0.0
    %209 = vmatpush1.msra.mxu0 0.0
    %210 = vmatprep.subr.mxu0 0.0
    %211 = vmatpush1.msra.mxu0 0.0
    %212 = vmatprep.subr.mxu0 0.0
    %213 = vmatpush1.msra.mxu0 0.0
    %214 = vmatprep.subr.mxu0 0.0
    %215 = vmatpush1.msra.mxu0 0.0
    %216 = vmatprep.subr.mxu0 0.0
    %217 = vmatpush1.msra.mxu0 0.0
    %218 = vmatprep.subr.mxu0 0.0
    %219 = vmatpush1.msra.mxu0 0.0
    %220 = vmatprep.subr.mxu0 0.0
    %221 = vmatpush1.msra.mxu0 0.0
    %222 = vmatprep.subr.mxu0 0.0
    %223 = vmatpush1.msra.mxu0 0.0
    %224 = vmatprep.subr.mxu0 0.0
    %225 = vmatpush1.msra.mxu0 0.0
    %226 = vmatprep.subr.mxu0 0.0
    %227 = vmatpush1.msra.mxu0 0.0
    %228 = vmatprep.subr.mxu0 0.0
    %229 = vmatpush1.msra.mxu0 0.0
    %230 = vmatprep.subr.mxu0 0.0
    %231 = vmatpush1.msra.mxu0 0.0
    %232 = vmatprep.subr.mxu0 0.0
    %233 = vmatpush1.msra.mxu0 0.0
    %234 = vmatprep.subr.mxu0 0.0
    %235 = vmatpush1.msra.mxu0 0.0
    %236 = vmatprep.subr.mxu0 0.0
    %237 = vmatpush1.msra.mxu0 0.0
    %238 = vmatprep.subr.mxu0 0.0
    %239 = vmatpush1.msra.mxu0 0.0
    %240 = vmatprep.subr.mxu0 0.0
    %241 = vmatpush1.msra.mxu0 0.0
    %242 = vmatprep.subr.mxu0 0.0
    %243 = vmatpush1.msra.mxu0 0.0
    %244 = vmatprep.subr.mxu0 0.0
    %245 = vmatpush1.msra.mxu0 0.0
    %246 = vmatprep.subr.mxu0 0.0
    %247 = vmatpush1.msra.mxu0 0.0
    %248 = vmatprep.subr.mxu0 0.0
    %249 = vmatpush1.msra.mxu0 0.0
    %250 = vmatprep.subr.mxu0 0.0
    %251 = vmatpush1.msra.mxu0 0.0
    %252 = vmatprep.subr.mxu0 0.0
    %253 = vmatpush1.msra.mxu0 0.0
    %254 = vmatprep.subr.mxu0 0.0
    %255 = vmatpush1.msra.mxu0 0.0
    %256 = vmatprep.subr.mxu0 0.0
    %257 = vmatpush1.msra.mxu0 0.0
    %258 = vmatprep.subr.mxu0 0.0
    %259 = vmatpush1.msra.mxu0 0.0
    %260 = vmatprep.subr.mxu0 0.0
    %261 = vmatpush1.msra.mxu0 0.0
    %262 = vmatprep.subr.mxu0 0.0
    %263 = vmatpush1.msra.mxu0 0.0
    %264 = vmatprep.subr.mxu0 0.0
    %265 = vmatpush1.msra.mxu0 0.0
    %266 = vmatprep.mubr.f32.mxu0 0.0
    %267 = vmatmul.mubr.f32.gmra.mrb[0].mxu0 %v197
    %v268 = vpop.f32.mrb[0].mxu0
    %v269 = vadd.f32 %v193, %v268
    %v270 = vpop.f32.mrb[0].mxu0
    %271 = vmatprep.mubr.f32.mxu0 0.0
    %272 = vmatmul.mubr.f32.gmra.mrb[0].mxu0 %v200
    %v273 = vpop.f32.mrb[0].mxu0
    %v274 = vadd.f32 %v193, %v273
    %v275 = vpop.f32.mrb[0].mxu0
    %276 = vdwg.mxu0
    %vm277 = vcmp.ge.f32.partialorder %v269, 0.0
    %vm278 = vcmp.ge.f32.partialorder %v274, 0.0
    %v279 = vmul.f32 %v269, 0.01
    %v280 = vmul.f32 %v274, 0.01
    %v281 = vsel %vm277, %v269, %v279
    %v282 = vsel %vm278, %v274, %v280
    %v283 = vld [vmem:[#allocation2] sm:$0xff]
    %v285 = vsel %vm195, %v283, 0
    %287 = vmatprep.subr.mxu0 0.0
    %288 = vmatpush1.msra.mxu0 %v185
    %289 = vmatprep.subr.mxu0 0.0
    %290 = vmatpush1.msra.mxu0 0.0
    %291 = vmatprep.subr.mxu0 0.0
    %292 = vmatpush1.msra.mxu0 0.0
    %293 = vmatprep.subr.mxu0 0.0
    %294 = vmatpush1.msra.mxu0 0.0
    %295 = vmatprep.subr.mxu0 0.0
    %296 = vmatpush1.msra.mxu0 0.0
    %297 = vmatprep.subr.mxu0 0.0
    %298 = vmatpush1.msra.mxu0 0.0
    %299 = vmatprep.subr.mxu0 0.0
    %300 = vmatpush1.msra.mxu0 0.0
    %301 = vmatprep.subr.mxu0 0.0
    %302 = vmatpush1.msra.mxu0 0.0
    %303 = vmatprep.subr.mxu0 0.0
    %304 = vmatpush1.msra.mxu0 0.0
    %305 = vmatprep.subr.mxu0 0.0
    %306 = vmatpush1.msra.mxu0 0.0
    %307 = vmatprep.subr.mxu0 0.0
    %308 = vmatpush1.msra.mxu0 0.0
    %309 = vmatprep.subr.mxu0 0.0
    %310 = vmatpush1.msra.mxu0 0.0
    %311 = vmatprep.subr.mxu0 0.0
    %312 = vmatpush1.msra.mxu0 0.0
    %313 = vmatprep.subr.mxu0 0.0
    %314 = vmatpush1.msra.mxu0 0.0
    %315 = vmatprep.subr.mxu0 0.0
    %316 = vmatpush1.msra.mxu0 0.0
    %317 = vmatprep.subr.mxu0 0.0
    %318 = vmatpush1.msra.mxu0 0.0
    %319 = vmatprep.subr.mxu0 0.0
    %320 = vmatpush1.msra.mxu0 0.0
    %321 = vmatprep.subr.mxu0 0.0
    %322 = vmatpush1.msra.mxu0 0.0
    %323 = vmatprep.subr.mxu0 0.0
    %324 = vmatpush1.msra.mxu0 0.0
    %325 = vmatprep.subr.mxu0 0.0
    %326 = vmatpush1.msra.mxu0 0.0
    %327 = vmatprep.subr.mxu0 0.0
    %328 = vmatpush1.msra.mxu0 0.0
    %329 = vmatprep.subr.mxu0 0.0
    %330 = vmatpush1.msra.mxu0 0.0
    %331 = vmatprep.subr.mxu0 0.0
    %332 = vmatpush1.msra.mxu0 0.0
    %333 = vmatprep.subr.mxu0 0.0
    %334 = vmatpush1.msra.mxu0 0.0
    %335 = vmatprep.subr.mxu0 0.0
    %336 = vmatpush1.msra.mxu0 0.0
    %337 = vmatprep.subr.mxu0 0.0
    %338 = vmatpush1.msra.mxu0 0.0
    %339 = vmatprep.subr.mxu0 0.0
    %340 = vmatpush1.msra.mxu0 0.0
    %341 = vmatprep.subr.mxu0 0.0
    %342 = vmatpush1.msra.mxu0 0.0
    %343 = vmatprep.subr.mxu0 0.0
    %344 = vmatpush1.msra.mxu0 0.0
    %345 = vmatprep.subr.mxu0 0.0
    %346 = vmatpush1.msra.mxu0 0.0
    %347 = vmatprep.subr.mxu0 0.0
    %348 = vmatpush1.msra.mxu0 0.0
    %349 = vmatprep.subr.mxu0 0.0
    %350 = vmatpush1.msra.mxu0 0.0
    %351 = vmatprep.mubr.f32.mxu0 0.0
    %352 = vmatmul.mubr.f32.gmra.mrb[0].mxu0 %v285
    %v353 = vpop.f32.mrb[0].mxu0
    %v354 = vadd.f32 %v193, %v353
    %v355 = vpop.f32.mrb[0].mxu0
    %356 = vdwg.mxu0
    %vm357 = vcmp.ge.f32.partialorder %v354, 0.0
    %v358 = vmul.f32 %v354, 0.01
    %v359 = vsel %vm357, %v354, %v358
    %v360 = vld [vmem:[%s2] sm:$0xff]
    %v361 = vld [vmem:[%s2 + $0x8] sm:$0xff]
    %v362 = vld [vmem:[%s2 + $0x10] sm:$0xff]
    %v364 = vsel %vm195, %v360, 0
    %v367 = vsel %vm195, %v361, 0
    %v370 = vsel %vm195, %v362, 0
    %372 = vmatprep.subr.mxu0 0.0
    %373 = vmatpush1.msra.mxu0 %v185
    %374 = vmatprep.subr.mxu0 0.0
    %375 = vmatpush1.msra.mxu0 0.0
    %376 = vmatprep.subr.mxu0 0.0
    %377 = vmatpush1.msra.mxu0 0.0
    %378 = vmatprep.subr.mxu0 0.0
    %379 = vmatpush1.msra.mxu0 0.0
    %380 = vmatprep.subr.mxu0 0.0
    %381 = vmatpush1.msra.mxu0 0.0
    %382 = vmatprep.subr.mxu0 0.0
    %383 = vmatpush1.msra.mxu0 0.0
    %384 = vmatprep.subr.mxu0 0.0
    %385 = vmatpush1.msra.mxu0 0.0
    %386 = vmatprep.subr.mxu0 0.0
    %387 = vmatpush1.msra.mxu0 0.0
    %388 = vmatprep.subr.mxu0 0.0
    %389 = vmatpush1.msra.mxu0 0.0
    %390 = vmatprep.subr.mxu0 0.0
    %391 = vmatpush1.msra.mxu0 0.0
    %392 = vmatprep.subr.mxu0 0.0
    %393 = vmatpush1.msra.mxu0 0.0
    %394 = vmatprep.subr.mxu0 0.0
    %395 = vmatpush1.msra.mxu0 0.0
    %396 = vmatprep.subr.mxu0 0.0
    %397 = vmatpush1.msra.mxu0 0.0
    %398 = vmatprep.subr.mxu0 0.0
    %399 = vmatpush1.msra.mxu0 0.0
    %400 = vmatprep.subr.mxu0 0.0
    %401 = vmatpush1.msra.mxu0 0.0
    %402 = vmatprep.subr.mxu0 0.0
    %403 = vmatpush1.msra.mxu0 0.0
    %404 = vmatprep.subr.mxu0 0.0
    %405 = vmatpush1.msra.mxu0 0.0
    %406 = vmatprep.subr.mxu0 0.0
    %407 = vmatpush1.msra.mxu0 0.0
    %408 = vmatprep.subr.mxu0 0.0
    %409 = vmatpush1.msra.mxu0 0.0
    %410 = vmatprep.subr.mxu0 0.0
    %411 = vmatpush1.msra.mxu0 0.0
    %412 = vmatprep.subr.mxu0 0.0
    %413 = vmatpush1.msra.mxu0 0.0
    %414 = vmatprep.subr.mxu0 0.0
    %415 = vmatpush1.msra.mxu0 0.0
    %416 = vmatprep.subr.mxu0 0.0
    %417 = vmatpush1.msra.mxu0 0.0
    %418 = vmatprep.subr.mxu0 0.0
    %419 = vmatpush1.msra.mxu0 0.0
    %420 = vmatprep.subr.mxu0 0.0
    %421 = vmatpush1.msra.mxu0 0.0
    %422 = vmatprep.subr.mxu0 0.0
    %423 = vmatpush1.msra.mxu0 0.0
    %424 = vmatprep.subr.mxu0 0.0
    %425 = vmatpush1.msra.mxu0 0.0
    %426 = vmatprep.subr.mxu0 0.0
    %427 = vmatpush1.msra.mxu0 0.0
    %428 = vmatprep.subr.mxu0 0.0
    %429 = vmatpush1.msra.mxu0 0.0
    %430 = vmatprep.subr.mxu0 0.0
    %431 = vmatpush1.msra.mxu0 0.0
    %432 = vmatprep.subr.mxu0 0.0
    %433 = vmatpush1.msra.mxu0 0.0
    %434 = vmatprep.subr.mxu0 0.0
    %435 = vmatpush1.msra.mxu0 0.0
    %436 = vmatprep.mubr.f32.mxu0 0.0
    %437 = vmatmul.mubr.f32.gmra.mrb[0].mxu0 %v364
    %v438 = vpop.f32.mrb[0].mxu0
    %v439 = vadd.f32 %v193, %v438
    %v440 = vpop.f32.mrb[0].mxu0
    %441 = vmatprep.mubr.f32.mxu0 0.0
    %442 = vmatmul.mubr.f32.gmra.mrb[0].mxu0 %v367
    %v443 = vpop.f32.mrb[0].mxu0
    %v444 = vadd.f32 %v193, %v443
    %v445 = vpop.f32.mrb[0].mxu0
    %446 = vmatprep.mubr.f32.mxu0 0.0
    %447 = vmatmul.mubr.f32.gmra.mrb[0].mxu0 %v370
    %v448 = vpop.f32.mrb[0].mxu0
    %v449 = vadd.f32 %v193, %v448
    %v450 = vpop.f32.mrb[0].mxu0
    %451 = vdwg.mxu0
    %vm452 = vcmp.ge.f32.partialorder %v439, 0.0
    %vm453 = vcmp.ge.f32.partialorder %v444, 0.0
    %vm454 = vcmp.ge.f32.partialorder %v449, 0.0
    %v455 = vmul.f32 %v439, 0.01
    %v456 = vmul.f32 %v444, 0.01
    %v457 = vmul.f32 %v449, 0.01
    %v458 = vsel %vm452, %v439, %v455
    %v459 = vsel %vm453, %v444, %v456
    %v460 = vsel %vm454, %v449, %v457
    %v461 = vld [vmem:[%s3] sm:$0xff]
    %v462 = vld [vmem:[%s3 + $0x8] sm:$0xff]
    %v463 = vld [vmem:[%s3 + $0x10] sm:$0xff]
    %v464 = vld [vmem:[#allocation6] sm:$0xff]
    %v465 = vld [vmem:[#allocation6 + $0x8] sm:$0xff]
    %v466 = vld [vmem:[#allocation6 + $0x10] sm:$0xff]
    %v467 = vld [vmem:[#allocation8] sm:$0xff]
    %v468 = vld [vmem:[#allocation8 + $0x8] sm:$0xff]
    %v469 = vld [vmem:[#allocation9] sm:$0xff]
    %v470 = vld [vmem:[#allocation9 + $0x8] sm:$0xff]
    %v471 = vld [vmem:[#allocation15] sm:$0xff]
    %v472 = vld [vmem:[#allocation15 + $0x8] sm:$0xff]
    %v473 = vld [vmem:[#allocation15 + $0x10] sm:$0xff]
    %v474 = vld [vmem:[#allocation15 + $0x18] sm:$0xff]
    %v475 = vld [vmem:[#allocation17] sm:$0x1]
    %v477 = vlaneseq
    %v478 = vshrl.u32 %v477, 7
    %v479 = vsub.s32 0, %v478
    %v480 = vrot.slane %v475, %v479
    %vm482 = vcmask 261120
    %v484 = vsel %vm482, %v281, 0
    %v487 = vsel %vm482, %v282, 0
    %489 = vmatprep.subr.mxu0 0.0
    %490 = vmatpush1.msra.mxu0 %v471
    %491 = vmatprep.subr.mxu0 0.0
    %492 = vmatpush1.msra.mxu0 %v472
    %493 = vmatprep.subr.mxu0 0.0
    %494 = vmatpush1.msra.mxu0 %v473
    %495 = vmatprep.subr.mxu0 0.0
    %496 = vmatpush1.msra.mxu0 %v474
    %497 = vmatprep.subr.mxu0 0.0
    %498 = vmatpush1.msra.mxu0 0.0
    %499 = vmatprep.subr.mxu0 0.0
    %500 = vmatpush1.msra.mxu0 0.0
    %501 = vmatprep.subr.mxu0 0.0
    %502 = vmatpush1.msra.mxu0 0.0
    %503 = vmatprep.subr.mxu0 0.0
    %504 = vmatpush1.msra.mxu0 0.0
    %505 = vmatprep.subr.mxu0 0.0
    %506 = vmatpush1.msra.mxu0 0.0
    %507 = vmatprep.subr.mxu0 0.0
    %508 = vmatpush1.msra.mxu0 0.0
    %509 = vmatprep.subr.mxu0 0.0
    %510 = vmatpush1.msra.mxu0 0.0
    %511 = vmatprep.subr.mxu0 0.0
    %512 = vmatpush1.msra.mxu0 0.0
    %513 = vmatprep.subr.mxu0 0.0
    %514 = vmatpush1.msra.mxu0 0.0
    %515 = vmatprep.subr.mxu0 0.0
    %516 = vmatpush1.msra.mxu0 0.0
    %517 = vmatprep.subr.mxu0 0.0
    %518 = vmatpush1.msra.mxu0 0.0
    %519 = vmatprep.subr.mxu0 0.0
    %520 = vmatpush1.msra.mxu0 0.0
    %521 = vmatprep.subr.mxu0 0.0
    %522 = vmatpush1.msra.mxu0 0.0
    %523 = vmatprep.subr.mxu0 0.0
    %524 = vmatpush1.msra.mxu0 0.0
    %525 = vmatprep.subr.mxu0 0.0
    %526 = vmatpush1.msra.mxu0 0.0
    %527 = vmatprep.subr.mxu0 0.0
    %528 = vmatpush1.msra.mxu0 0.0
    %529 = vmatprep.subr.mxu0 0.0
    %530 = vmatpush1.msra.mxu0 0.0
    %531 = vmatprep.subr.mxu0 0.0
    %532 = vmatpush1.msra.mxu0 0.0
    %533 = vmatprep.subr.mxu0 0.0
    %534 = vmatpush1.msra.mxu0 0.0
    %535 = vmatprep.subr.mxu0 0.0
    %536 = vmatpush1.msra.mxu0 0.0
    %537 = vmatprep.subr.mxu0 0.0
    %538 = vmatpush1.msra.mxu0 0.0
    %539 = vmatprep.subr.mxu0 0.0
    %540 = vmatpush1.msra.mxu0 0.0
    %541 = vmatprep.subr.mxu0 0.0
    %542 = vmatpush1.msra.mxu0 0.0
    %543 = vmatprep.subr.mxu0 0.0
    %544 = vmatpush1.msra.mxu0 0.0
    %545 = vmatprep.subr.mxu0 0.0
    %546 = vmatpush1.msra.mxu0 0.0
    %547 = vmatprep.subr.mxu0 0.0
    %548 = vmatpush1.msra.mxu0 0.0
    %549 = vmatprep.subr.mxu0 0.0
    %550 = vmatpush1.msra.mxu0 0.0
    %551 = vmatprep.subr.mxu0 0.0
    %552 = vmatpush1.msra.mxu0 0.0
    %553 = vmatprep.mubr.f32.mxu0 0.0
    %554 = vmatmul.mubr.f32.gmra.mrb[0].mxu0 %v484
    %v555 = vpop.f32.mrb[0].mxu0
    %v556 = vadd.f32 %v480, %v555
    %v557 = vpop.f32.mrb[0].mxu0
    %558 = vmatprep.mubr.f32.mxu0 0.0
    %559 = vmatmul.mubr.f32.gmra.mrb[0].mxu0 %v487
    %v560 = vpop.f32.mrb[0].mxu0
    %v561 = vadd.f32 %v480, %v560
    %v562 = vpop.f32.mrb[0].mxu0
    %563 = vdwg.mxu0
    %s564 = scalar_lea.vmem [#allocation15], 32
    %v565 = vld [vmem:[%s564] sm:$0xff]
    %v566 = vld [vmem:[%s564 + $0x8] sm:$0xff]
    %v567 = vld [vmem:[%s564 + $0x10] sm:$0xff]
    %v568 = vld [vmem:[%s564 + $0x18] sm:$0xff]
    %s569 = scalar_lea.vmem [#allocation17], 1
    %v570 = vld [vmem:[%s569] sm:$0x1]
    %v572 = vlaneseq
    %v573 = vshrl.u32 %v572, 7
    %v574 = vsub.s32 0, %v573
    %v575 = vrot.slane %v570, %v574
    %v578 = vsel %vm482, %v359, 0
    %580 = vmatprep.subr.mxu0 0.0
    %581 = vmatpush1.msra.mxu0 %v565
    %582 = vmatprep.subr.mxu0 0.0
    %583 = vmatpush1.msra.mxu0 %v566
    %584 = vmatprep.subr.mxu0 0.0
    %585 = vmatpush1.msra.mxu0 %v567
    %586 = vmatprep.subr.mxu0 0.0
    %587 = vmatpush1.msra.mxu0 %v568
    %588 = vmatprep.subr.mxu0 0.0
    %589 = vmatpush1.msra.mxu0 0.0
    %590 = vmatprep.subr.mxu0 0.0
    %591 = vmatpush1.msra.mxu0 0.0
    %592 = vmatprep.subr.mxu0 0.0
    %593 = vmatpush1.msra.mxu0 0.0
    %594 = vmatprep.subr.mxu0 0.0
    %595 = vmatpush1.msra.mxu0 0.0
    %596 = vmatprep.subr.mxu0 0.0
    %597 = vmatpush1.msra.mxu0 0.0
    %598 = vmatprep.subr.mxu0 0.0
    %599 = vmatpush1.msra.mxu0 0.0
    %600 = vmatprep.subr.mxu0 0.0
    %601 = vmatpush1.msra.mxu0 0.0
    %602 = vmatprep.subr.mxu0 0.0
    %603 = vmatpush1.msra.mxu0 0.0
    %604 = vmatprep.subr.mxu0 0.0
    %605 = vmatpush1.msra.mxu0 0.0
    %606 = vmatprep.subr.mxu0 0.0
    %607 = vmatpush1.msra.mxu0 0.0
    %608 = vmatprep.subr.mxu0 0.0
    %609 = vmatpush1.msra.mxu0 0.0
    %610 = vmatprep.subr.mxu0 0.0
    %611 = vmatpush1.msra.mxu0 0.0
    %612 = vmatprep.subr.mxu0 0.0
    %613 = vmatpush1.msra.mxu0 0.0
    %614 = vmatprep.subr.mxu0 0.0
    %615 = vmatpush1.msra.mxu0 0.0
    %616 = vmatprep.subr.mxu0 0.0
    %617 = vmatpush1.msra.mxu0 0.0
    %618 = vmatprep.subr.mxu0 0.0
    %619 = vmatpush1.msra.mxu0 0.0
    %620 = vmatprep.subr.mxu0 0.0
    %621 = vmatpush1.msra.mxu0 0.0
    %622 = vmatprep.subr.mxu0 0.0
    %623 = vmatpush1.msra.mxu0 0.0
    %624 = vmatprep.subr.mxu0 0.0
    %625 = vmatpush1.msra.mxu0 0.0
    %626 = vmatprep.subr.mxu0 0.0
    %627 = vmatpush1.msra.mxu0 0.0
    %628 = vmatprep.subr.mxu0 0.0
    %629 = vmatpush1.msra.mxu0 0.0
    %630 = vmatprep.subr.mxu0 0.0
    %631 = vmatpush1.msra.mxu0 0.0
    %632 = vmatprep.subr.mxu0 0.0
    %633 = vmatpush1.msra.mxu0 0.0
    %634 = vmatprep.subr.mxu0 0.0
    %635 = vmatpush1.msra.mxu0 0.0
    %636 = vmatprep.subr.mxu0 0.0
    %637 = vmatpush1.msra.mxu0 0.0
    %638 = vmatprep.subr.mxu0 0.0
    %639 = vmatpush1.msra.mxu0 0.0
    %640 = vmatprep.subr.mxu0 0.0
    %641 = vmatpush1.msra.mxu0 0.0
    %642 = vmatprep.subr.mxu0 0.0
    %643 = vmatpush1.msra.mxu0 0.0
    %644 = vmatprep.mubr.f32.mxu0 0.0
    %645 = vmatmul.mubr.f32.gmra.mrb[0].mxu0 %v578
    %v646 = vpop.f32.mrb[0].mxu0
    %v647 = vadd.f32 %v575, %v646
    %v648 = vpop.f32.mrb[0].mxu0
    %649 = vdwg.mxu0
    %s650 = scalar_lea.vmem [#allocation15], 64
    %v651 = vld [vmem:[%s650] sm:$0xff]
    %v652 = vld [vmem:[%s650 + $0x8] sm:$0xff]
    %v653 = vld [vmem:[%s650 + $0x10] sm:$0xff]
    %v654 = vld [vmem:[%s650 + $0x18] sm:$0xff]
    %s655 = scalar_lea.vmem [#allocation17], 2
    %v656 = vld [vmem:[%s655] sm:$0x1]
    %v658 = vlaneseq
    %v659 = vshrl.u32 %v658, 7
    %v660 = vsub.s32 0, %v659
    %v661 = vrot.slane %v656, %v660
    %v664 = vsel %vm482, %v458, 0
    %v667 = vsel %vm482, %v459, 0
    %v670 = vsel %vm482, %v460, 0
    %672 = vmatprep.subr.mxu0 0.0
    %673 = vmatpush1.msra.mxu0 %v651
    %674 = vmatprep.subr.mxu0 0.0
    %675 = vmatpush1.msra.mxu0 %v652
    %676 = vmatprep.subr.mxu0 0.0
    %677 = vmatpush1.msra.mxu0 %v653
    %678 = vmatprep.subr.mxu0 0.0
    %679 = vmatpush1.msra.mxu0 %v654
    %680 = vmatprep.subr.mxu0 0.0
    %681 = vmatpush1.msra.mxu0 0.0
    %682 = vmatprep.subr.mxu0 0.0
    %683 = vmatpush1.msra.mxu0 0.0
    %684 = vmatprep.subr.mxu0 0.0
    %685 = vmatpush1.msra.mxu0 0.0
    %686 = vmatprep.subr.mxu0 0.0
    %687 = vmatpush1.msra.mxu0 0.0
    %688 = vmatprep.subr.mxu0 0.0
    %689 = vmatpush1.msra.mxu0 0.0
    %690 = vmatprep.subr.mxu0 0.0
    %691 = vmatpush1.msra.mxu0 0.0
    %692 = vmatprep.subr.mxu0 0.0
    %693 = vmatpush1.msra.mxu0 0.0
    %694 = vmatprep.subr.mxu0 0.0
    %695 = vmatpush1.msra.mxu0 0.0
    %696 = vmatprep.subr.mxu0 0.0
    %697 = vmatpush1.msra.mxu0 0.0
    %698 = vmatprep.subr.mxu0 0.0
    %699 = vmatpush1.msra.mxu0 0.0
    %700 = vmatprep.subr.mxu0 0.0
    %701 = vmatpush1.msra.mxu0 0.0
    %702 = vmatprep.subr.mxu0 0.0
    %703 = vmatpush1.msra.mxu0 0.0
    %704 = vmatprep.subr.mxu0 0.0
    %705 = vmatpush1.msra.mxu0 0.0
    %706 = vmatprep.subr.mxu0 0.0
    %707 = vmatpush1.msra.mxu0 0.0
    %708 = vmatprep.subr.mxu0 0.0
    %709 = vmatpush1.msra.mxu0 0.0
    %710 = vmatprep.subr.mxu0 0.0
    %711 = vmatpush1.msra.mxu0 0.0
    %712 = vmatprep.subr.mxu0 0.0
    %713 = vmatpush1.msra.mxu0 0.0
    %714 = vmatprep.subr.mxu0 0.0
    %715 = vmatpush1.msra.mxu0 0.0
    %716 = vmatprep.subr.mxu0 0.0
    %717 = vmatpush1.msra.mxu0 0.0
    %718 = vmatprep.subr.mxu0 0.0
    %719 = vmatpush1.msra.mxu0 0.0
    %720 = vmatprep.subr.mxu0 0.0
    %721 = vmatpush1.msra.mxu0 0.0
    %722 = vmatprep.subr.mxu0 0.0
    %723 = vmatpush1.msra.mxu0 0.0
    %724 = vmatprep.subr.mxu0 0.0
    %725 = vmatpush1.msra.mxu0 0.0
    %726 = vmatprep.subr.mxu0 0.0
    %727 = vmatpush1.msra.mxu0 0.0
    %728 = vmatprep.subr.mxu0 0.0
    %729 = vmatpush1.msra.mxu0 0.0
    %730 = vmatprep.subr.mxu0 0.0
    %731 = vmatpush1.msra.mxu0 0.0
    %732 = vmatprep.subr.mxu0 0.0
    %733 = vmatpush1.msra.mxu0 0.0
    %734 = vmatprep.subr.mxu0 0.0
    %735 = vmatpush1.msra.mxu0 0.0
    %736 = vmatprep.mubr.f32.mxu0 0.0
    %737 = vmatmul.mubr.f32.gmra.mrb[0].mxu0 %v664
    %v738 = vpop.f32.mrb[0].mxu0
    %v739 = vadd.f32 %v661, %v738
    %v740 = vpop.f32.mrb[0].mxu0
    %741 = vmatprep.mubr.f32.mxu0 0.0
    %742 = vmatmul.mubr.f32.gmra.mrb[0].mxu0 %v667
    %v743 = vpop.f32.mrb[0].mxu0
    %v744 = vadd.f32 %v661, %v743
    %v745 = vpop.f32.mrb[0].mxu0
    %746 = vmatprep.mubr.f32.mxu0 0.0
    %747 = vmatmul.mubr.f32.gmra.mrb[0].mxu0 %v670
    %v748 = vpop.f32.mrb[0].mxu0
    %v749 = vadd.f32 %v661, %v748
    %v750 = vpop.f32.mrb[0].mxu0
    %751 = vdwg.mxu0
    %755 = vrot.lane.b32.xlu0 %v739, 96
    %v756 = vpop.permute.xlu0 %755
    %757 = vrot.lane.b32.xlu0 %v744, 96
    %v758 = vpop.permute.xlu0 %757
    %759 = vrot.lane.b32.xlu0 %v749, 96
    %v760 = vpop.permute.xlu0 %759
    %v761 = vsel %vm195, %v756, 0
    %v763 = vsel %vm195, %v758, 0
    %v765 = vsel %vm195, %v760, 0
    %v768 = vsel %vm195, %v647, 0
    %v771 = vsel %vm195, %v556, 0
    %v774 = vsel %vm195, %v561, 0
    %776 = vmatprep.subr.mxu0 0.0
    %777 = vmatpush1.xpose.msra.mxu0 %v768
    %778 = vmatprep.subr.mxu0 0.0
    %779 = vmatpush1.xpose.msra.mxu0 %v771
    %780 = vmatprep.subr.mxu0 0.0
    %781 = vmatpush1.xpose.msra.mxu0 %v774
    %782 = vmatprep.subr.mxu0 0.0
    %783 = vmatpush1.xpose.msra.mxu0 0.0
    %784 = vmatprep.subr.mxu0 0.0
    %785 = vmatpush1.xpose.msra.mxu0 0.0
    %786 = vmatprep.subr.mxu0 0.0
    %787 = vmatpush1.xpose.msra.mxu0 0.0
    %788 = vmatprep.subr.mxu0 0.0
    %789 = vmatpush1.xpose.msra.mxu0 0.0
    %790 = vmatprep.subr.mxu0 0.0
    %791 = vmatpush1.xpose.msra.mxu0 0.0
    %792 = vmatprep.subr.mxu0 0.0
    %793 = vmatpush1.xpose.msra.mxu0 0.0
    %794 = vmatprep.subr.mxu0 0.0
    %795 = vmatpush1.xpose.msra.mxu0 0.0
    %796 = vmatprep.subr.mxu0 0.0
    %797 = vmatpush1.xpose.msra.mxu0 0.0
    %798 = vmatprep.subr.mxu0 0.0
    %799 = vmatpush1.xpose.msra.mxu0 0.0
    %800 = vmatprep.subr.mxu0 0.0
    %801 = vmatpush1.xpose.msra.mxu0 0.0
    %802 = vmatprep.subr.mxu0 0.0
    %803 = vmatpush1.xpose.msra.mxu0 0.0
    %804 = vmatprep.subr.mxu0 0.0
    %805 = vmatpush1.xpose.msra.mxu0 0.0
    %806 = vmatprep.subr.mxu0 0.0
    %807 = vmatpush1.xpose.msra.mxu0 0.0
    %808 = vmatprep.subr.mxu0 0.0
    %809 = vmatpush1.xpose.msra.mxu0 0.0
    %810 = vmatprep.subr.mxu0 0.0
    %811 = vmatpush1.xpose.msra.mxu0 0.0
    %812 = vmatprep.subr.mxu0 0.0
    %813 = vmatpush1.xpose.msra.mxu0 0.0
    %814 = vmatprep.subr.mxu0 0.0
    %815 = vmatpush1.xpose.msra.mxu0 0.0
    %816 = vmatprep.subr.mxu0 0.0
    %817 = vmatpush1.xpose.msra.mxu0 0.0
    %818 = vmatprep.subr.mxu0 0.0
    %819 = vmatpush1.xpose.msra.mxu0 0.0
    %820 = vmatprep.subr.mxu0 0.0
    %821 = vmatpush1.xpose.msra.mxu0 0.0
    %822 = vmatprep.subr.mxu0 0.0
    %823 = vmatpush1.xpose.msra.mxu0 0.0
    %824 = vmatprep.subr.mxu0 0.0
    %825 = vmatpush1.xpose.msra.mxu0 0.0
    %826 = vmatprep.subr.mxu0 0.0
    %827 = vmatpush1.xpose.msra.mxu0 0.0
    %828 = vmatprep.subr.mxu0 0.0
    %829 = vmatpush1.xpose.msra.mxu0 0.0
    %830 = vmatprep.subr.mxu0 0.0
    %831 = vmatpush1.xpose.msra.mxu0 0.0
    %832 = vmatprep.subr.mxu0 0.0
    %833 = vmatpush1.xpose.msra.mxu0 0.0
    %834 = vmatprep.subr.mxu0 0.0
    %835 = vmatpush1.xpose.msra.mxu0 0.0
    %836 = vmatprep.subr.mxu0 0.0
    %837 = vmatpush1.xpose.msra.mxu0 0.0
    %838 = vmatprep.subr.mxu0 0.0
    %839 = vmatpush1.xpose.msra.mxu0 0.0
    %840 = vmatprep.mubr.f32.mxu0 0.0
    %841 = vmatmul.mubr.f32.gmra.mrb[0].mxu0 %v761
    %v842 = vpop.f32.mrb[0].mxu0
    %v843 = vadd.f32 %v464, %v842
    %v844 = vpop.f32.mrb[0].mxu0
    %845 = vmatprep.mubr.f32.mxu0 0.0
    %846 = vmatmul.mubr.f32.gmra.mrb[0].mxu0 %v763
    %v847 = vpop.f32.mrb[0].mxu0
    %v848 = vadd.f32 %v465, %v847
    %v849 = vpop.f32.mrb[0].mxu0
    %850 = vmatprep.mubr.f32.mxu0 0.0
    %851 = vmatmul.mubr.f32.gmra.mrb[0].mxu0 %v765
    %v852 = vpop.f32.mrb[0].mxu0
    %v853 = vadd.f32 %v466, %v852
    %v854 = vpop.f32.mrb[0].mxu0
    %855 = vdwg.mxu0
    %vm856 = vcmask 195584
    %v857 = vsel %vm856, %v843, -inf
    %858 = vmax.xlane.f32.xlu0 %v857
    %v859 = vpop.xlane.xlu0 %858
    %v860 = vsel %vm856, %v848, -inf
    %861 = vmax.xlane.f32.xlu0 %v860
    %v862 = vpop.xlane.xlu0 %861
    %v863 = vsel %vm856, %v853, -inf
    %864 = vmax.xlane.f32.xlu0 %v863
    %v865 = vpop.xlane.xlu0 %864
    %v866 = vsub.f32 %v843, %v859
    %v867 = vsub.f32 %v848, %v862
    %v868 = vsub.f32 %v853, %v865
    %v869 = vmul.f32 %v866, 1.442695
    %v870 = vpow.pop %v869
    %v871 = vmul.f32 %v867, 1.442695
    %v872 = vpow.pop %v871
    %v873 = vmul.f32 %v868, 1.442695
    %v874 = vpow.pop %v873
    %v875 = vmul.f32 %v870, %v461
    %v876 = vmul.f32 %v872, %v462
    %v877 = vmul.f32 %v874, %v463
    %v878 = vsel %vm856, %v875, 0.0
    %879 = vadd.xlane.f32.xlu0 %v878
    %v880 = vpop.xlane.xlu0 %879
    %v881 = vsel %vm856, %v876, 0.0
    %882 = vadd.xlane.f32.xlu0 %v881
    %v883 = vpop.xlane.xlu0 %882
    %v884 = vsel %vm856, %v877, 0.0
    %885 = vadd.xlane.f32.xlu0 %v884
    %v886 = vpop.xlane.xlu0 %885
    %vm887 = vcmp.gt.f32.partialorder %v880, 0.0
    %vm888 = vcmp.gt.f32.partialorder %v883, 0.0
    %vm889 = vcmp.gt.f32.partialorder %v886, 0.0
    %v890 = vsel %vm887, %v880, 1.0
    %v891 = vsel %vm888, %v883, 1.0
    %v892 = vsel %vm889, %v886, 1.0
    %v893 = vrcp.pop %v890
    %v894 = vrcp.pop %v891
    %v895 = vrcp.pop %v892
    %v896 = vmul.f32 %v875, %v893
    %v897 = vmul.f32 %v876, %v894
    %v898 = vmul.f32 %v877, %v895
    %899 = vrot.lane.b32.xlu0 %v647, 64
    %v900 = vpop.permute.xlu0 %899
    %901 = vrot.lane.b32.xlu0 %v556, 64
    %v902 = vpop.permute.xlu0 %901
    %903 = vrot.lane.b32.xlu0 %v561, 64
    %v904 = vpop.permute.xlu0 %903
    %v909 = vsel %vm856, %v896, 0
    %v912 = vsel %vm856, %v897, 0
    %v915 = vsel %vm856, %v898, 0
    %917 = vmatprep.subr.mxu0 0.0
    %918 = vmatpush1.msra.mxu0 %v900
    %919 = vmatprep.subr.mxu0 0.0
    %920 = vmatpush1.msra.mxu0 %v902
    %921 = vmatprep.subr.mxu0 0.0
    %922 = vmatpush1.msra.mxu0 %v904
    %923 = vmatprep.subr.mxu0 0.0
    %924 = vmatpush1.msra.mxu0 0.0
    %925 = vmatprep.subr.mxu0 0.0
    %926 = vmatpush1.msra.mxu0 0.0
    %927 = vmatprep.subr.mxu0 0.0
    %928 = vmatpush1.msra.mxu0 0.0
    %929 = vmatprep.subr.mxu0 0.0
    %930 = vmatpush1.msra.mxu0 0.0
    %931 = vmatprep.subr.mxu0 0.0
    %932 = vmatpush1.msra.mxu0 0.0
    %933 = vmatprep.subr.mxu0 0.0
    %934 = vmatpush1.msra.mxu0 0.0
    %935 = vmatprep.subr.mxu0 0.0
    %936 = vmatpush1.msra.mxu0 0.0
    %937 = vmatprep.subr.mxu0 0.0
    %938 = vmatpush1.msra.mxu0 0.0
    %939 = vmatprep.subr.mxu0 0.0
    %940 = vmatpush1.msra.mxu0 0.0
    %941 = vmatprep.subr.mxu0 0.0
    %942 = vmatpush1.msra.mxu0 0.0
    %943 = vmatprep.subr.mxu0 0.0
    %944 = vmatpush1.msra.mxu0 0.0
    %945 = vmatprep.subr.mxu0 0.0
    %946 = vmatpush1.msra.mxu0 0.0
    %947 = vmatprep.subr.mxu0 0.0
    %948 = vmatpush1.msra.mxu0 0.0
    %949 = vmatprep.subr.mxu0 0.0
    %950 = vmatpush1.msra.mxu0 0.0
    %951 = vmatprep.subr.mxu0 0.0
    %952 = vmatpush1.msra.mxu0 0.0
    %953 = vmatprep.subr.mxu0 0.0
    %954 = vmatpush1.msra.mxu0 0.0
    %955 = vmatprep.subr.mxu0 0.0
    %956 = vmatpush1.msra.mxu0 0.0
    %957 = vmatprep.subr.mxu0 0.0
    %958 = vmatpush1.msra.mxu0 0.0
    %959 = vmatprep.subr.mxu0 0.0
    %960 = vmatpush1.msra.mxu0 0.0
    %961 = vmatprep.subr.mxu0 0.0
    %962 = vmatpush1.msra.mxu0 0.0
    %963 = vmatprep.subr.mxu0 0.0
    %964 = vmatpush1.msra.mxu0 0.0
    %965 = vmatprep.subr.mxu0 0.0
    %966 = vmatpush1.msra.mxu0 0.0
    %967 = vmatprep.subr.mxu0 0.0
    %968 = vmatpush1.msra.mxu0 0.0
    %969 = vmatprep.subr.mxu0 0.0
    %970 = vmatpush1.msra.mxu0 0.0
    %971 = vmatprep.subr.mxu0 0.0
    %972 = vmatpush1.msra.mxu0 0.0
    %973 = vmatprep.subr.mxu0 0.0
    %974 = vmatpush1.msra.mxu0 0.0
    %975 = vmatprep.subr.mxu0 0.0
    %976 = vmatpush1.msra.mxu0 0.0
    %977 = vmatprep.subr.mxu0 0.0
    %978 = vmatpush1.msra.mxu0 0.0
    %979 = vmatprep.subr.mxu0 0.0
    %980 = vmatpush1.msra.mxu0 0.0
    %981 = vmatprep.mubr.f32.mxu0 0.0
    %982 = vmatmul.mubr.f32.gmra.mrb[0].mxu0 %v909
    %v983 = vpop.f32.mrb[0].mxu0
    %v984 = vadd.f32 0.0, %v983
    %v985 = vpop.f32.mrb[0].mxu0
    %986 = vmatprep.mubr.f32.mxu0 0.0
    %987 = vmatmul.mubr.f32.gmra.mrb[0].mxu0 %v912
    %v988 = vpop.f32.mrb[0].mxu0
    %v989 = vadd.f32 0.0, %v988
    %v990 = vpop.f32.mrb[0].mxu0
    %991 = vmatprep.mubr.f32.mxu0 0.0
    %992 = vmatmul.mubr.f32.gmra.mrb[0].mxu0 %v915
    %v993 = vpop.f32.mrb[0].mxu0
    %v994 = vadd.f32 0.0, %v993
    %v995 = vpop.f32.mrb[0].mxu0
    %996 = vdwg.mxu0
    %997 = vrot.lane.b32.xlu0 %v739, 88
    %v998 = vpop.permute.xlu0 %997
    %999 = vrot.lane.b32.xlu0 %v744, 88
    %v1000 = vpop.permute.xlu0 %999
    %1001 = vrot.lane.b32.xlu0 %v749, 88
    %v1002 = vpop.permute.xlu0 %1001
    %1003 = vrot.lane.b32.xlu0 %v647, 120
    %v1004 = vpop.permute.xlu0 %1003
    %1005 = vrot.lane.b32.xlu0 %v556, 120
    %v1006 = vpop.permute.xlu0 %1005
    %1007 = vrot.lane.b32.xlu0 %v561, 120
    %v1008 = vpop.permute.xlu0 %1007
    %v1009 = vsel %vm195, %v998, 0
    %v1011 = vsel %vm195, %v1000, 0
    %v1013 = vsel %vm195, %v1002, 0
    %v1015 = vsel %vm195, %v1004, 0
    %v1017 = vsel %vm195, %v1006, 0
    %v1019 = vsel %vm195, %v1008, 0
    %1021 = vmatprep.subr.mxu0 0.0
    %1022 = vmatpush1.xpose.msra.mxu0 %v1015
    %1023 = vmatprep.subr.mxu0 0.0
    %1024 = vmatpush1.xpose.msra.mxu0 %v1017
    %1025 = vmatprep.subr.mxu0 0.0
    %1026 = vmatpush1.xpose.msra.mxu0 %v1019
    %1027 = vmatprep.subr.mxu0 0.0
    %1028 = vmatpush1.xpose.msra.mxu0 0.0
    %1029 = vmatprep.subr.mxu0 0.0
    %1030 = vmatpush1.xpose.msra.mxu0 0.0
    %1031 = vmatprep.subr.mxu0 0.0
    %1032 = vmatpush1.xpose.msra.mxu0 0.0
    %1033 = vmatprep.subr.mxu0 0.0
    %1034 = vmatpush1.xpose.msra.mxu0 0.0
    %1035 = vmatprep.subr.mxu0 0.0
    %1036 = vmatpush1.xpose.msra.mxu0 0.0
    %1037 = vmatprep.subr.mxu0 0.0
    %1038 = vmatpush1.xpose.msra.mxu0 0.0
    %1039 = vmatprep.subr.mxu0 0.0
    %1040 = vmatpush1.xpose.msra.mxu0 0.0
    %1041 = vmatprep.subr.mxu0 0.0
    %1042 = vmatpush1.xpose.msra.mxu0 0.0
    %1043 = vmatprep.subr.mxu0 0.0
    %1044 = vmatpush1.xpose.msra.mxu0 0.0
    %1045 = vmatprep.subr.mxu0 0.0
    %1046 = vmatpush1.xpose.msra.mxu0 0.0
    %1047 = vmatprep.subr.mxu0 0.0
    %1048 = vmatpush1.xpose.msra.mxu0 0.0
    %1049 = vmatprep.subr.mxu0 0.0
    %1050 = vmatpush1.xpose.msra.mxu0 0.0
    %1051 = vmatprep.subr.mxu0 0.0
    %1052 = vmatpush1.xpose.msra.mxu0 0.0
    %1053 = vmatprep.subr.mxu0 0.0
    %1054 = vmatpush1.xpose.msra.mxu0 0.0
    %1055 = vmatprep.subr.mxu0 0.0
    %1056 = vmatpush1.xpose.msra.mxu0 0.0
    %1057 = vmatprep.subr.mxu0 0.0
    %1058 = vmatpush1.xpose.msra.mxu0 0.0
    %1059 = vmatprep.subr.mxu0 0.0
    %1060 = vmatpush1.xpose.msra.mxu0 0.0
    %1061 = vmatprep.subr.mxu0 0.0
    %1062 = vmatpush1.xpose.msra.mxu0 0.0
    %1063 = vmatprep.subr.mxu0 0.0
    %1064 = vmatpush1.xpose.msra.mxu0 0.0
    %1065 = vmatprep.subr.mxu0 0.0
    %1066 = vmatpush1.xpose.msra.mxu0 0.0
    %1067 = vmatprep.subr.mxu0 0.0
    %1068 = vmatpush1.xpose.msra.mxu0 0.0
    %1069 = vmatprep.subr.mxu0 0.0
    %1070 = vmatpush1.xpose.msra.mxu0 0.0
    %1071 = vmatprep.subr.mxu0 0.0
    %1072 = vmatpush1.xpose.msra.mxu0 0.0
    %1073 = vmatprep.subr.mxu0 0.0
    %1074 = vmatpush1.xpose.msra.mxu0 0.0
    %1075 = vmatprep.subr.mxu0 0.0
    %1076 = vmatpush1.xpose.msra.mxu0 0.0
    %1077 = vmatprep.subr.mxu0 0.0
    %1078 = vmatpush1.xpose.msra.mxu0 0.0
    %1079 = vmatprep.subr.mxu0 0.0
    %1080 = vmatpush1.xpose.msra.mxu0 0.0
    %1081 = vmatprep.subr.mxu0 0.0
    %1082 = vmatpush1.xpose.msra.mxu0 0.0
    %1083 = vmatprep.subr.mxu0 0.0
    %1084 = vmatpush1.xpose.msra.mxu0 0.0
    %1085 = vmatprep.mubr.f32.mxu0 0.0
    %1086 = vmatmul.mubr.f32.gmra.mrb[0].mxu0 %v1009
    %v1087 = vpop.f32.mrb[0].mxu0
    %v1088 = vadd.f32 %v464, %v1087
    %v1089 = vpop.f32.mrb[0].mxu0
    %1090 = vmatprep.mubr.f32.mxu0 0.0
    %1091 = vmatmul.mubr.f32.gmra.mrb[0].mxu0 %v1011
    %v1092 = vpop.f32.mrb[0].mxu0
    %v1093 = vadd.f32 %v465, %v1092
    %v1094 = vpop.f32.mrb[0].mxu0
    %1095 = vmatprep.mubr.f32.mxu0 0.0
    %1096 = vmatmul.mubr.f32.gmra.mrb[0].mxu0 %v1013
    %v1097 = vpop.f32.mrb[0].mxu0
    %v1098 = vadd.f32 %v466, %v1097
    %v1099 = vpop.f32.mrb[0].mxu0
    %1100 = vdwg.mxu0
    %v1101 = vsel %vm856, %v1088, -inf
    %1102 = vmax.xlane.f32.xlu0 %v1101
    %v1103 = vpop.xlane.xlu0 %1102
    %v1104 = vsel %vm856, %v1093, -inf
    %1105 = vmax.xlane.f32.xlu0 %v1104
    %v1106 = vpop.xlane.xlu0 %1105
    %v1107 = vsel %vm856, %v1098, -inf
    %1108 = vmax.xlane.f32.xlu0 %v1107
    %v1109 = vpop.xlane.xlu0 %1108
    %v1110 = vsub.f32 %v1088, %v1103
    %v1111 = vsub.f32 %v1093, %v1106
    %v1112 = vsub.f32 %v1098, %v1109
    %v1113 = vmul.f32 %v1110, 1.442695
    %v1114 = vpow.pop %v1113
    %v1115 = vmul.f32 %v1111, 1.442695
    %v1116 = vpow.pop %v1115
    %v1117 = vmul.f32 %v1112, 1.442695
    %v1118 = vpow.pop %v1117
    %v1119 = vmul.f32 %v1114, %v461
    %v1120 = vmul.f32 %v1116, %v462
    %v1121 = vmul.f32 %v1118, %v463
    %v1122 = vsel %vm856, %v1119, 0.0
    %1123 = vadd.xlane.f32.xlu0 %v1122
    %v1124 = vpop.xlane.xlu0 %1123
    %v1125 = vsel %vm856, %v1120, 0.0
    %1126 = vadd.xlane.f32.xlu0 %v1125
    %v1127 = vpop.xlane.xlu0 %1126
    %v1128 = vsel %vm856, %v1121, 0.0
    %1129 = vadd.xlane.f32.xlu0 %v1128
    %v1130 = vpop.xlane.xlu0 %1129
    %vm1131 = vcmp.gt.f32.partialorder %v1124, 0.0
    %vm1132 = vcmp.gt.f32.partialorder %v1127, 0.0
    %vm1133 = vcmp.gt.f32.partialorder %v1130, 0.0
    %v1134 = vsel %vm1131, %v1124, 1.0
    %v1135 = vsel %vm1132, %v1127, 1.0
    %v1136 = vsel %vm1133, %v1130, 1.0
    %v1137 = vrcp.pop %v1134
    %v1138 = vrcp.pop %v1135
    %v1139 = vrcp.pop %v1136
    %v1140 = vmul.f32 %v1119, %v1137
    %v1141 = vmul.f32 %v1120, %v1138
    %v1142 = vmul.f32 %v1121, %v1139
    %1143 = vrot.lane.b32.xlu0 %v647, 56
    %v1144 = vpop.permute.xlu0 %1143
    %1145 = vrot.lane.b32.xlu0 %v556, 56
    %v1146 = vpop.permute.xlu0 %1145
    %1147 = vrot.lane.b32.xlu0 %v561, 56
    %v1148 = vpop.permute.xlu0 %1147
    %v1153 = vsel %vm856, %v1140, 0
    %v1156 = vsel %vm856, %v1141, 0
    %v1159 = vsel %vm856, %v1142, 0
    %1161 = vmatprep.subr.mxu0 0.0
    %1162 = vmatpush1.msra.mxu0 %v1144
    %1163 = vmatprep.subr.mxu0 0.0
    %1164 = vmatpush1.msra.mxu0 %v1146
    %1165 = vmatprep.subr.mxu0 0.0
    %1166 = vmatpush1.msra.mxu0 %v1148
    %1167 = vmatprep.subr.mxu0 0.0
    %1168 = vmatpush1.msra.mxu0 0.0
    %1169 = vmatprep.subr.mxu0 0.0
    %1170 = vmatpush1.msra.mxu0 0.0
    %1171 = vmatprep.subr.mxu0 0.0
    %1172 = vmatpush1.msra.mxu0 0.0
    %1173 = vmatprep.subr.mxu0 0.0
    %1174 = vmatpush1.msra.mxu0 0.0
    %1175 = vmatprep.subr.mxu0 0.0
    %1176 = vmatpush1.msra.mxu0 0.0
    %1177 = vmatprep.subr.mxu0 0.0
    %1178 = vmatpush1.msra.mxu0 0.0
    %1179 = vmatprep.subr.mxu0 0.0
    %1180 = vmatpush1.msra.mxu0 0.0
    %1181 = vmatprep.subr.mxu0 0.0
    %1182 = vmatpush1.msra.mxu0 0.0
    %1183 = vmatprep.subr.mxu0 0.0
    %1184 = vmatpush1.msra.mxu0 0.0
    %1185 = vmatprep.subr.mxu0 0.0
    %1186 = vmatpush1.msra.mxu0 0.0
    %1187 = vmatprep.subr.mxu0 0.0
    %1188 = vmatpush1.msra.mxu0 0.0
    %1189 = vmatprep.subr.mxu0 0.0
    %1190 = vmatpush1.msra.mxu0 0.0
    %1191 = vmatprep.subr.mxu0 0.0
    %1192 = vmatpush1.msra.mxu0 0.0
    %1193 = vmatprep.subr.mxu0 0.0
    %1194 = vmatpush1.msra.mxu0 0.0
    %1195 = vmatprep.subr.mxu0 0.0
    %1196 = vmatpush1.msra.mxu0 0.0
    %1197 = vmatprep.subr.mxu0 0.0
    %1198 = vmatpush1.msra.mxu0 0.0
    %1199 = vmatprep.subr.mxu0 0.0
    %1200 = vmatpush1.msra.mxu0 0.0
    %1201 = vmatprep.subr.mxu0 0.0
    %1202 = vmatpush1.msra.mxu0 0.0
    %1203 = vmatprep.subr.mxu0 0.0
    %1204 = vmatpush1.msra.mxu0 0.0
    %1205 = vmatprep.subr.mxu0 0.0
    %1206 = vmatpush1.msra.mxu0 0.0
    %1207 = vmatprep.subr.mxu0 0.0
    %1208 = vmatpush1.msra.mxu0 0.0
    %1209 = vmatprep.subr.mxu0 0.0
    %1210 = vmatpush1.msra.mxu0 0.0
    %1211 = vmatprep.subr.mxu0 0.0
    %1212 = vmatpush1.msra.mxu0 0.0
    %1213 = vmatprep.subr.mxu0 0.0
    %1214 = vmatpush1.msra.mxu0 0.0
    %1215 = vmatprep.subr.mxu0 0.0
    %1216 = vmatpush1.msra.mxu0 0.0
    %1217 = vmatprep.subr.mxu0 0.0
    %1218 = vmatpush1.msra.mxu0 0.0
    %1219 = vmatprep.subr.mxu0 0.0
    %1220 = vmatpush1.msra.mxu0 0.0
    %1221 = vmatprep.subr.mxu0 0.0
    %1222 = vmatpush1.msra.mxu0 0.0
    %1223 = vmatprep.subr.mxu0 0.0
    %1224 = vmatpush1.msra.mxu0 0.0
    %1225 = vmatprep.mubr.f32.mxu0 0.0
    %1226 = vmatmul.mubr.f32.gmra.mrb[0].mxu0 %v1153
    %v1227 = vpop.f32.mrb[0].mxu0
    %v1228 = vadd.f32 0.0, %v1227
    %v1229 = vpop.f32.mrb[0].mxu0
    %1230 = vmatprep.mubr.f32.mxu0 0.0
    %1231 = vmatmul.mubr.f32.gmra.mrb[0].mxu0 %v1156
    %v1232 = vpop.f32.mrb[0].mxu0
    %v1233 = vadd.f32 0.0, %v1232
    %v1234 = vpop.f32.mrb[0].mxu0
    %1235 = vmatprep.mubr.f32.mxu0 0.0
    %1236 = vmatmul.mubr.f32.gmra.mrb[0].mxu0 %v1159
    %v1237 = vpop.f32.mrb[0].mxu0
    %v1238 = vadd.f32 0.0, %v1237
    %v1239 = vpop.f32.mrb[0].mxu0
    %1240 = vdwg.mxu0
    %1241 = vrot.lane.b32.xlu0 %v739, 80
    %v1242 = vpop.permute.xlu0 %1241
    %1243 = vrot.lane.b32.xlu0 %v744, 80
    %v1244 = vpop.permute.xlu0 %1243
    %1245 = vrot.lane.b32.xlu0 %v749, 80
    %v1246 = vpop.permute.xlu0 %1245
    %1247 = vrot.lane.b32.xlu0 %v647, 112
    %v1248 = vpop.permute.xlu0 %1247
    %1249 = vrot.lane.b32.xlu0 %v556, 112
    %v1250 = vpop.permute.xlu0 %1249
    %1251 = vrot.lane.b32.xlu0 %v561, 112
    %v1252 = vpop.permute.xlu0 %1251
    %v1253 = vsel %vm195, %v1242, 0
    %v1255 = vsel %vm195, %v1244, 0
    %v1257 = vsel %vm195, %v1246, 0
    %v1259 = vsel %vm195, %v1248, 0
    %v1261 = vsel %vm195, %v1250, 0
    %v1263 = vsel %vm195, %v1252, 0
    %1265 = vmatprep.subr.mxu0 0.0
    %1266 = vmatpush1.xpose.msra.mxu0 %v1259
    %1267 = vmatprep.subr.mxu0 0.0
    %1268 = vmatpush1.xpose.msra.mxu0 %v1261
    %1269 = vmatprep.subr.mxu0 0.0
    %1270 = vmatpush1.xpose.msra.mxu0 %v1263
    %1271 = vmatprep.subr.mxu0 0.0
    %1272 = vmatpush1.xpose.msra.mxu0 0.0
    %1273 = vmatprep.subr.mxu0 0.0
    %1274 = vmatpush1.xpose.msra.mxu0 0.0
    %1275 = vmatprep.subr.mxu0 0.0
    %1276 = vmatpush1.xpose.msra.mxu0 0.0
    %1277 = vmatprep.subr.mxu0 0.0
    %1278 = vmatpush1.xpose.msra.mxu0 0.0
    %1279 = vmatprep.subr.mxu0 0.0
    %1280 = vmatpush1.xpose.msra.mxu0 0.0
    %1281 = vmatprep.subr.mxu0 0.0
    %1282 = vmatpush1.xpose.msra.mxu0 0.0
    %1283 = vmatprep.subr.mxu0 0.0
    %1284 = vmatpush1.xpose.msra.mxu0 0.0
    %1285 = vmatprep.subr.mxu0 0.0
    %1286 = vmatpush1.xpose.msra.mxu0 0.0
    %1287 = vmatprep.subr.mxu0 0.0
    %1288 = vmatpush1.xpose.msra.mxu0 0.0
    %1289 = vmatprep.subr.mxu0 0.0
    %1290 = vmatpush1.xpose.msra.mxu0 0.0
    %1291 = vmatprep.subr.mxu0 0.0
    %1292 = vmatpush1.xpose.msra.mxu0 0.0
    %1293 = vmatprep.subr.mxu0 0.0
    %1294 = vmatpush1.xpose.msra.mxu0 0.0
    %1295 = vmatprep.subr.mxu0 0.0
    %1296 = vmatpush1.xpose.msra.mxu0 0.0
    %1297 = vmatprep.subr.mxu0 0.0
    %1298 = vmatpush1.xpose.msra.mxu0 0.0
    %1299 = vmatprep.subr.mxu0 0.0
    %1300 = vmatpush1.xpose.msra.mxu0 0.0
    %1301 = vmatprep.subr.mxu0 0.0
    %1302 = vmatpush1.xpose.msra.mxu0 0.0
    %1303 = vmatprep.subr.mxu0 0.0
    %1304 = vmatpush1.xpose.msra.mxu0 0.0
    %1305 = vmatprep.subr.mxu0 0.0
    %1306 = vmatpush1.xpose.msra.mxu0 0.0
    %1307 = vmatprep.subr.mxu0 0.0
    %1308 = vmatpush1.xpose.msra.mxu0 0.0
    %1309 = vmatprep.subr.mxu0 0.0
    %1310 = vmatpush1.xpose.msra.mxu0 0.0
    %1311 = vmatprep.subr.mxu0 0.0
    %1312 = vmatpush1.xpose.msra.mxu0 0.0
    %1313 = vmatprep.subr.mxu0 0.0
    %1314 = vmatpush1.xpose.msra.mxu0 0.0
    %1315 = vmatprep.subr.mxu0 0.0
    %1316 = vmatpush1.xpose.msra.mxu0 0.0
    %1317 = vmatprep.subr.mxu0 0.0
    %1318 = vmatpush1.xpose.msra.mxu0 0.0
    %1319 = vmatprep.subr.mxu0 0.0
    %1320 = vmatpush1.xpose.msra.mxu0 0.0
    %1321 = vmatprep.subr.mxu0 0.0
    %1322 = vmatpush1.xpose.msra.mxu0 0.0
    %1323 = vmatprep.subr.mxu0 0.0
    %1324 = vmatpush1.xpose.msra.mxu0 0.0
    %1325 = vmatprep.subr.mxu0 0.0
    %1326 = vmatpush1.xpose.msra.mxu0 0.0
    %1327 = vmatprep.subr.mxu0 0.0
    %1328 = vmatpush1.xpose.msra.mxu0 0.0
    %1329 = vmatprep.mubr.f32.mxu0 0.0
    %1330 = vmatmul.mubr.f32.gmra.mrb[0].mxu0 %v1253
    %v1331 = vpop.f32.mrb[0].mxu0
    %v1332 = vadd.f32 %v464, %v1331
    %v1333 = vpop.f32.mrb[0].mxu0
    %1334 = vmatprep.mubr.f32.mxu0 0.0
    %1335 = vmatmul.mubr.f32.gmra.mrb[0].mxu0 %v1255
    %v1336 = vpop.f32.mrb[0].mxu0
    %v1337 = vadd.f32 %v465, %v1336
    %v1338 = vpop.f32.mrb[0].mxu0
    %1339 = vmatprep.mubr.f32.mxu0 0.0
    %1340 = vmatmul.mubr.f32.gmra.mrb[0].mxu0 %v1257
    %v1341 = vpop.f32.mrb[0].mxu0
    %v1342 = vadd.f32 %v466, %v1341
    %v1343 = vpop.f32.mrb[0].mxu0
    %1344 = vdwg.mxu0
    %v1345 = vsel %vm856, %v1332, -inf
    %1346 = vmax.xlane.f32.xlu0 %v1345
    %v1347 = vpop.xlane.xlu0 %1346
    %v1348 = vsel %vm856, %v1337, -inf
    %1349 = vmax.xlane.f32.xlu0 %v1348
    %v1350 = vpop.xlane.xlu0 %1349
    %v1351 = vsel %vm856, %v1342, -inf
    %1352 = vmax.xlane.f32.xlu0 %v1351
    %v1353 = vpop.xlane.xlu0 %1352
    %v1354 = vsub.f32 %v1332, %v1347
    %v1355 = vsub.f32 %v1337, %v1350
    %v1356 = vsub.f32 %v1342, %v1353
    %v1357 = vmul.f32 %v1354, 1.442695
    %v1358 = vpow.pop %v1357
    %v1359 = vmul.f32 %v1355, 1.442695
    %v1360 = vpow.pop %v1359
    %v1361 = vmul.f32 %v1356, 1.442695
    %v1362 = vpow.pop %v1361
    %v1363 = vmul.f32 %v1358, %v461
    %v1364 = vmul.f32 %v1360, %v462
    %v1365 = vmul.f32 %v1362, %v463
    %v1366 = vsel %vm856, %v1363, 0.0
    %1367 = vadd.xlane.f32.xlu0 %v1366
    %v1368 = vpop.xlane.xlu0 %1367
    %v1369 = vsel %vm856, %v1364, 0.0
    %1370 = vadd.xlane.f32.xlu0 %v1369
    %v1371 = vpop.xlane.xlu0 %1370
    %v1372 = vsel %vm856, %v1365, 0.0
    %1373 = vadd.xlane.f32.xlu0 %v1372
    %v1374 = vpop.xlane.xlu0 %1373
    %vm1375 = vcmp.gt.f32.partialorder %v1368, 0.0
    %vm1376 = vcmp.gt.f32.partialorder %v1371, 0.0
    %vm1377 = vcmp.gt.f32.partialorder %v1374, 0.0
    %v1378 = vsel %vm1375, %v1368, 1.0
    %v1379 = vsel %vm1376, %v1371, 1.0
    %v1380 = vsel %vm1377, %v1374, 1.0
    %v1381 = vrcp.pop %v1378
    %v1382 = vrcp.pop %v1379
    %v1383 = vrcp.pop %v1380
    %v1384 = vmul.f32 %v1363, %v1381
    %v1385 = vmul.f32 %v1364, %v1382
    %v1386 = vmul.f32 %v1365, %v1383
    %1387 = vrot.lane.b32.xlu0 %v647, 48
    %v1388 = vpop.permute.xlu0 %1387
    %1389 = vrot.lane.b32.xlu0 %v556, 48
    %v1390 = vpop.permute.xlu0 %1389
    %1391 = vrot.lane.b32.xlu0 %v561, 48
    %v1392 = vpop.permute.xlu0 %1391
    %v1397 = vsel %vm856, %v1384, 0
    %v1400 = vsel %vm856, %v1385, 0
    %v1403 = vsel %vm856, %v1386, 0
    %1405 = vmatprep.subr.mxu0 0.0
    %1406 = vmatpush1.msra.mxu0 %v1388
    %1407 = vmatprep.subr.mxu0 0.0
    %1408 = vmatpush1.msra.mxu0 %v1390
    %1409 = vmatprep.subr.mxu0 0.0
    %1410 = vmatpush1.msra.mxu0 %v1392
    %1411 = vmatprep.subr.mxu0 0.0
    %1412 = vmatpush1.msra.mxu0 0.0
    %1413 = vmatprep.subr.mxu0 0.0
    %1414 = vmatpush1.msra.mxu0 0.0
    %1415 = vmatprep.subr.mxu0 0.0
    %1416 = vmatpush1.msra.mxu0 0.0
    %1417 = vmatprep.subr.mxu0 0.0
    %1418 = vmatpush1.msra.mxu0 0.0
    %1419 = vmatprep.subr.mxu0 0.0
    %1420 = vmatpush1.msra.mxu0 0.0
    %1421 = vmatprep.subr.mxu0 0.0
    %1422 = vmatpush1.msra.mxu0 0.0
    %1423 = vmatprep.subr.mxu0 0.0
    %1424 = vmatpush1.msra.mxu0 0.0
    %1425 = vmatprep.subr.mxu0 0.0
    %1426 = vmatpush1.msra.mxu0 0.0
    %1427 = vmatprep.subr.mxu0 0.0
    %1428 = vmatpush1.msra.mxu0 0.0
    %1429 = vmatprep.subr.mxu0 0.0
    %1430 = vmatpush1.msra.mxu0 0.0
    %1431 = vmatprep.subr.mxu0 0.0
    %1432 = vmatpush1.msra.mxu0 0.0
    %1433 = vmatprep.subr.mxu0 0.0
    %1434 = vmatpush1.msra.mxu0 0.0
    %1435 = vmatprep.subr.mxu0 0.0
    %1436 = vmatpush1.msra.mxu0 0.0
    %1437 = vmatprep.subr.mxu0 0.0
    %1438 = vmatpush1.msra.mxu0 0.0
    %1439 = vmatprep.subr.mxu0 0.0
    %1440 = vmatpush1.msra.mxu0 0.0
    %1441 = vmatprep.subr.mxu0 0.0
    %1442 = vmatpush1.msra.mxu0 0.0
    %1443 = vmatprep.subr.mxu0 0.0
    %1444 = vmatpush1.msra.mxu0 0.0
    %1445 = vmatprep.subr.mxu0 0.0
    %1446 = vmatpush1.msra.mxu0 0.0
    %1447 = vmatprep.subr.mxu0 0.0
    %1448 = vmatpush1.msra.mxu0 0.0
    %1449 = vmatprep.subr.mxu0 0.0
    %1450 = vmatpush1.msra.mxu0 0.0
    %1451 = vmatprep.subr.mxu0 0.0
    %1452 = vmatpush1.msra.mxu0 0.0
    %1453 = vmatprep.subr.mxu0 0.0
    %1454 = vmatpush1.msra.mxu0 0.0
    %1455 = vmatprep.subr.mxu0 0.0
    %1456 = vmatpush1.msra.mxu0 0.0
    %1457 = vmatprep.subr.mxu0 0.0
    %1458 = vmatpush1.msra.mxu0 0.0
    %1459 = vmatprep.subr.mxu0 0.0
    %1460 = vmatpush1.msra.mxu0 0.0
    %1461 = vmatprep.subr.mxu0 0.0
    %1462 = vmatpush1.msra.mxu0 0.0
    %1463 = vmatprep.subr.mxu0 0.0
    %1464 = vmatpush1.msra.mxu0 0.0
    %1465 = vmatprep.subr.mxu0 0.0
    %1466 = vmatpush1.msra.mxu0 0.0
    %1467 = vmatprep.subr.mxu0 0.0
    %1468 = vmatpush1.msra.mxu0 0.0
    %1469 = vmatprep.mubr.f32.mxu0 0.0
    %1470 = vmatmul.mubr.f32.gmra.mrb[0].mxu0 %v1397
    %v1471 = vpop.f32.mrb[0].mxu0
    %v1472 = vadd.f32 0.0, %v1471
    %v1473 = vpop.f32.mrb[0].mxu0
    %1474 = vmatprep.mubr.f32.mxu0 0.0
    %1475 = vmatmul.mubr.f32.gmra.mrb[0].mxu0 %v1400
    %v1476 = vpop.f32.mrb[0].mxu0
    %v1477 = vadd.f32 0.0, %v1476
    %v1478 = vpop.f32.mrb[0].mxu0
    %1479 = vmatprep.mubr.f32.mxu0 0.0
    %1480 = vmatmul.mubr.f32.gmra.mrb[0].mxu0 %v1403
    %v1481 = vpop.f32.mrb[0].mxu0
    %v1482 = vadd.f32 0.0, %v1481
    %v1483 = vpop.f32.mrb[0].mxu0
    %1484 = vdwg.mxu0
    %1485 = vrot.lane.b32.xlu0 %v739, 72
    %v1486 = vpop.permute.xlu0 %1485
    %1487 = vrot.lane.b32.xlu0 %v744, 72
    %v1488 = vpop.permute.xlu0 %1487
    %1489 = vrot.lane.b32.xlu0 %v749, 72
    %v1490 = vpop.permute.xlu0 %1489
    %1491 = vrot.lane.b32.xlu0 %v647, 104
    %v1492 = vpop.permute.xlu0 %1491
    %1493 = vrot.lane.b32.xlu0 %v556, 104
    %v1494 = vpop.permute.xlu0 %1493
    %1495 = vrot.lane.b32.xlu0 %v561, 104
    %v1496 = vpop.permute.xlu0 %1495
    %v1497 = vsel %vm195, %v1486, 0
    %v1499 = vsel %vm195, %v1488, 0
    %v1501 = vsel %vm195, %v1490, 0
    %v1503 = vsel %vm195, %v1492, 0
    %v1505 = vsel %vm195, %v1494, 0
    %v1507 = vsel %vm195, %v1496, 0
    %1509 = vmatprep.subr.mxu0 0.0
    %1510 = vmatpush1.xpose.msra.mxu0 %v1503
    %1511 = vmatprep.subr.mxu0 0.0
    %1512 = vmatpush1.xpose.msra.mxu0 %v1505
    %1513 = vmatprep.subr.mxu0 0.0
    %1514 = vmatpush1.xpose.msra.mxu0 %v1507
    %1515 = vmatprep.subr.mxu0 0.0
    %1516 = vmatpush1.xpose.msra.mxu0 0.0
    %1517 = vmatprep.subr.mxu0 0.0
    %1518 = vmatpush1.xpose.msra.mxu0 0.0
    %1519 = vmatprep.subr.mxu0 0.0
    %1520 = vmatpush1.xpose.msra.mxu0 0.0
    %1521 = vmatprep.subr.mxu0 0.0
    %1522 = vmatpush1.xpose.msra.mxu0 0.0
    %1523 = vmatprep.subr.mxu0 0.0
    %1524 = vmatpush1.xpose.msra.mxu0 0.0
    %1525 = vmatprep.subr.mxu0 0.0
    %1526 = vmatpush1.xpose.msra.mxu0 0.0
    %1527 = vmatprep.subr.mxu0 0.0
    %1528 = vmatpush1.xpose.msra.mxu0 0.0
    %1529 = vmatprep.subr.mxu0 0.0
    %1530 = vmatpush1.xpose.msra.mxu0 0.0
    %1531 = vmatprep.subr.mxu0 0.0
    %1532 = vmatpush1.xpose.msra.mxu0 0.0
    %1533 = vmatprep.subr.mxu0 0.0
    %1534 = vmatpush1.xpose.msra.mxu0 0.0
    %1535 = vmatprep.subr.mxu0 0.0
    %1536 = vmatpush1.xpose.msra.mxu0 0.0
    %1537 = vmatprep.subr.mxu0 0.0
    %1538 = vmatpush1.xpose.msra.mxu0 0.0
    %1539 = vmatprep.subr.mxu0 0.0
    %1540 = vmatpush1.xpose.msra.mxu0 0.0
    %1541 = vmatprep.subr.mxu0 0.0
    %1542 = vmatpush1.xpose.msra.mxu0 0.0
    %1543 = vmatprep.subr.mxu0 0.0
    %1544 = vmatpush1.xpose.msra.mxu0 0.0
    %1545 = vmatprep.subr.mxu0 0.0
    %1546 = vmatpush1.xpose.msra.mxu0 0.0
    %1547 = vmatprep.subr.mxu0 0.0
    %1548 = vmatpush1.xpose.msra.mxu0 0.0
    %1549 = vmatprep.subr.mxu0 0.0
    %1550 = vmatpush1.xpose.msra.mxu0 0.0
    %1551 = vmatprep.subr.mxu0 0.0
    %1552 = vmatpush1.xpose.msra.mxu0 0.0
    %1553 = vmatprep.subr.mxu0 0.0
    %1554 = vmatpush1.xpose.msra.mxu0 0.0
    %1555 = vmatprep.subr.mxu0 0.0
    %1556 = vmatpush1.xpose.msra.mxu0 0.0
    %1557 = vmatprep.subr.mxu0 0.0
    %1558 = vmatpush1.xpose.msra.mxu0 0.0
    %1559 = vmatprep.subr.mxu0 0.0
    %1560 = vmatpush1.xpose.msra.mxu0 0.0
    %1561 = vmatprep.subr.mxu0 0.0
    %1562 = vmatpush1.xpose.msra.mxu0 0.0
    %1563 = vmatprep.subr.mxu0 0.0
    %1564 = vmatpush1.xpose.msra.mxu0 0.0
    %1565 = vmatprep.subr.mxu0 0.0
    %1566 = vmatpush1.xpose.msra.mxu0 0.0
    %1567 = vmatprep.subr.mxu0 0.0
    %1568 = vmatpush1.xpose.msra.mxu0 0.0
    %1569 = vmatprep.subr.mxu0 0.0
    %1570 = vmatpush1.xpose.msra.mxu0 0.0
    %1571 = vmatprep.subr.mxu0 0.0
    %1572 = vmatpush1.xpose.msra.mxu0 0.0
    %1573 = vmatprep.mubr.f32.mxu0 0.0
    %1574 = vmatmul.mubr.f32.gmra.mrb[0].mxu0 %v1497
    %v1575 = vpop.f32.mrb[0].mxu0
    %v1576 = vadd.f32 %v464, %v1575
    %v1577 = vpop.f32.mrb[0].mxu0
    %1578 = vmatprep.mubr.f32.mxu0 0.0
    %1579 = vmatmul.mubr.f32.gmra.mrb[0].mxu0 %v1499
    %v1580 = vpop.f32.mrb[0].mxu0
    %v1581 = vadd.f32 %v465, %v1580
    %v1582 = vpop.f32.mrb[0].mxu0
    %1583 = vmatprep.mubr.f32.mxu0 0.0
    %1584 = vmatmul.mubr.f32.gmra.mrb[0].mxu0 %v1501
    %v1585 = vpop.f32.mrb[0].mxu0
    %v1586 = vadd.f32 %v466, %v1585
    %v1587 = vpop.f32.mrb[0].mxu0
    %1588 = vdwg.mxu0
    %v1589 = vsel %vm856, %v1576, -inf
    %1590 = vmax.xlane.f32.xlu0 %v1589
    %v1591 = vpop.xlane.xlu0 %1590
    %v1592 = vsel %vm856, %v1581, -inf
    %1593 = vmax.xlane.f32.xlu0 %v1592
    %v1594 = vpop.xlane.xlu0 %1593
    %v1595 = vsel %vm856, %v1586, -inf
    %1596 = vmax.xlane.f32.xlu0 %v1595
    %v1597 = vpop.xlane.xlu0 %1596
    %v1598 = vsub.f32 %v1576, %v1591
    %v1599 = vsub.f32 %v1581, %v1594
    %v1600 = vsub.f32 %v1586, %v1597
    %v1601 = vmul.f32 %v1598, 1.442695
    %v1602 = vpow.pop %v1601
    %v1603 = vmul.f32 %v1599, 1.442695
    %v1604 = vpow.pop %v1603
    %v1605 = vmul.f32 %v1600, 1.442695
    %v1606 = vpow.pop %v1605
    %v1607 = vmul.f32 %v1602, %v461
    %v1608 = vmul.f32 %v1604, %v462
    %v1609 = vmul.f32 %v1606, %v463
    %v1610 = vsel %vm856, %v1607, 0.0
    %1611 = vadd.xlane.f32.xlu0 %v1610
    %v1612 = vpop.xlane.xlu0 %1611
    %v1613 = vsel %vm856, %v1608, 0.0
    %1614 = vadd.xlane.f32.xlu0 %v1613
    %v1615 = vpop.xlane.xlu0 %1614
    %v1616 = vsel %vm856, %v1609, 0.0
    %1617 = vadd.xlane.f32.xlu0 %v1616
    %v1618 = vpop.xlane.xlu0 %1617
    %vm1619 = vcmp.gt.f32.partialorder %v1612, 0.0
    %vm1620 = vcmp.gt.f32.partialorder %v1615, 0.0
    %vm1621 = vcmp.gt.f32.partialorder %v1618, 0.0
    %v1622 = vsel %vm1619, %v1612, 1.0
    %v1623 = vsel %vm1620, %v1615, 1.0
    %v1624 = vsel %vm1621, %v1618, 1.0
    %v1625 = vrcp.pop %v1622
    %v1626 = vrcp.pop %v1623
    %v1627 = vrcp.pop %v1624
    %v1628 = vmul.f32 %v1607, %v1625
    %v1629 = vmul.f32 %v1608, %v1626
    %v1630 = vmul.f32 %v1609, %v1627
    %1631 = vrot.lane.b32.xlu0 %v647, 40
    %v1632 = vpop.permute.xlu0 %1631
    %1633 = vrot.lane.b32.xlu0 %v556, 40
    %v1634 = vpop.permute.xlu0 %1633
    %1635 = vrot.lane.b32.xlu0 %v561, 40
    %v1636 = vpop.permute.xlu0 %1635
    %v1641 = vsel %vm856, %v1628, 0
    %v1644 = vsel %vm856, %v1629, 0
    %v1647 = vsel %vm856, %v1630, 0
    %1649 = vmatprep.subr.mxu0 0.0
    %1650 = vmatpush1.msra.mxu0 %v1632
    %1651 = vmatprep.subr.mxu0 0.0
    %1652 = vmatpush1.msra.mxu0 %v1634
    %1653 = vmatprep.subr.mxu0 0.0
    %1654 = vmatpush1.msra.mxu0 %v1636
    %1655 = vmatprep.subr.mxu0 0.0
    %1656 = vmatpush1.msra.mxu0 0.0
    %1657 = vmatprep.subr.mxu0 0.0
    %1658 = vmatpush1.msra.mxu0 0.0
    %1659 = vmatprep.subr.mxu0 0.0
    %1660 = vmatpush1.msra.mxu0 0.0
    %1661 = vmatprep.subr.mxu0 0.0
    %1662 = vmatpush1.msra.mxu0 0.0
    %1663 = vmatprep.subr.mxu0 0.0
    %1664 = vmatpush1.msra.mxu0 0.0
    %1665 = vmatprep.subr.mxu0 0.0
    %1666 = vmatpush1.msra.mxu0 0.0
    %1667 = vmatprep.subr.mxu0 0.0
    %1668 = vmatpush1.msra.mxu0 0.0
    %1669 = vmatprep.subr.mxu0 0.0
    %1670 = vmatpush1.msra.mxu0 0.0
    %1671 = vmatprep.subr.mxu0 0.0
    %1672 = vmatpush1.msra.mxu0 0.0
    %1673 = vmatprep.subr.mxu0 0.0
    %1674 = vmatpush1.msra.mxu0 0.0
    %1675 = vmatprep.subr.mxu0 0.0
    %1676 = vmatpush1.msra.mxu0 0.0
    %1677 = vmatprep.subr.mxu0 0.0
    %1678 = vmatpush1.msra.mxu0 0.0
    %1679 = vmatprep.subr.mxu0 0.0
    %1680 = vmatpush1.msra.mxu0 0.0
    %1681 = vmatprep.subr.mxu0 0.0
    %1682 = vmatpush1.msra.mxu0 0.0
    %1683 = vmatprep.subr.mxu0 0.0
    %1684 = vmatpush1.msra.mxu0 0.0
    %1685 = vmatprep.subr.mxu0 0.0
    %1686 = vmatpush1.msra.mxu0 0.0
    %1687 = vmatprep.subr.mxu0 0.0
    %1688 = vmatpush1.msra.mxu0 0.0
    %1689 = vmatprep.subr.mxu0 0.0
    %1690 = vmatpush1.msra.mxu0 0.0
    %1691 = vmatprep.subr.mxu0 0.0
    %1692 = vmatpush1.msra.mxu0 0.0
    %1693 = vmatprep.subr.mxu0 0.0
    %1694 = vmatpush1.msra.mxu0 0.0
    %1695 = vmatprep.subr.mxu0 0.0
    %1696 = vmatpush1.msra.mxu0 0.0
    %1697 = vmatprep.subr.mxu0 0.0
    %1698 = vmatpush1.msra.mxu0 0.0
    %1699 = vmatprep.subr.mxu0 0.0
    %1700 = vmatpush1.msra.mxu0 0.0
    %1701 = vmatprep.subr.mxu0 0.0
    %1702 = vmatpush1.msra.mxu0 0.0
    %1703 = vmatprep.subr.mxu0 0.0
    %1704 = vmatpush1.msra.mxu0 0.0
    %1705 = vmatprep.subr.mxu0 0.0
    %1706 = vmatpush1.msra.mxu0 0.0
    %1707 = vmatprep.subr.mxu0 0.0
    %1708 = vmatpush1.msra.mxu0 0.0
    %1709 = vmatprep.subr.mxu0 0.0
    %1710 = vmatpush1.msra.mxu0 0.0
    %1711 = vmatprep.subr.mxu0 0.0
    %1712 = vmatpush1.msra.mxu0 0.0
    %1713 = vmatprep.mubr.f32.mxu0 0.0
    %1714 = vmatmul.mubr.f32.gmra.mrb[0].mxu0 %v1641
    %v1715 = vpop.f32.mrb[0].mxu0
    %v1716 = vadd.f32 0.0, %v1715
    %v1717 = vpop.f32.mrb[0].mxu0
    %1718 = vmatprep.mubr.f32.mxu0 0.0
    %1719 = vmatmul.mubr.f32.gmra.mrb[0].mxu0 %v1644
    %v1720 = vpop.f32.mrb[0].mxu0
    %v1721 = vadd.f32 0.0, %v1720
    %v1722 = vpop.f32.mrb[0].mxu0
    %1723 = vmatprep.mubr.f32.mxu0 0.0
    %1724 = vmatmul.mubr.f32.gmra.mrb[0].mxu0 %v1647
    %v1725 = vpop.f32.mrb[0].mxu0
    %v1726 = vadd.f32 0.0, %v1725
    %v1727 = vpop.f32.mrb[0].mxu0
    %1728 = vdwg.mxu0
    %1732 = vrot.lane.b32.xlu0 %v1228, 8
    %v1733 = vpop.permute.xlu0 %1732
    %1734 = vrot.lane.b32.xlu0 %v1233, 8
    %v1735 = vpop.permute.xlu0 %1734
    %1736 = vrot.lane.b32.xlu0 %v1238, 8
    %v1737 = vpop.permute.xlu0 %1736
    %1744 = vrot.lane.b32.xlu0 %v1472, 16
    %v1745 = vpop.permute.xlu0 %1744
    %1746 = vrot.lane.b32.xlu0 %v1477, 16
    %v1747 = vpop.permute.xlu0 %1746
    %1748 = vrot.lane.b32.xlu0 %v1482, 16
    %v1749 = vpop.permute.xlu0 %1748
    %1756 = vrot.lane.b32.xlu0 %v1716, 24
    %v1757 = vpop.permute.xlu0 %1756
    %1758 = vrot.lane.b32.xlu0 %v1721, 24
    %v1759 = vpop.permute.xlu0 %1758
    %1760 = vrot.lane.b32.xlu0 %v1726, 24
    %v1761 = vpop.permute.xlu0 %1760
    %v1765 = vsel %vm195, %v984, %v1733
    %v1766 = vsel %vm195, %v989, %v1735
    %v1767 = vsel %vm195, %v994, %v1737
    %vm1768 = vcmask 130048
    %v1769 = vsel %vm1768, %v1765, %v1745
    %v1770 = vsel %vm1768, %v1766, %v1747
    %v1771 = vsel %vm1768, %v1767, %v1749
    %v1772 = vsel %vm856, %v1769, %v1757
    %v1773 = vsel %vm856, %v1770, %v1759
    %v1774 = vsel %vm856, %v1771, %v1761
    %1775 = vrot.lane.b32.xlu0 %v556, 96
    %v1776 = vpop.permute.xlu0 %1775
    %1777 = vrot.lane.b32.xlu0 %v561, 96
    %v1778 = vpop.permute.xlu0 %1777
    %v1779 = vsel %vm195, %v1776, 0
    %v1781 = vsel %vm195, %v1778, 0
    %v1783 = vsel %vm195, %v739, 0
    %v1785 = vsel %vm195, %v744, 0
    %v1787 = vsel %vm195, %v749, 0
    %1789 = vmatprep.subr.mxu0 0.0
    %1790 = vmatpush1.xpose.msra.mxu0 %v1783
    %1791 = vmatprep.subr.mxu0 0.0
    %1792 = vmatpush1.xpose.msra.mxu0 %v1785
    %1793 = vmatprep.subr.mxu0 0.0
    %1794 = vmatpush1.xpose.msra.mxu0 %v1787
    %1795 = vmatprep.subr.mxu0 0.0
    %1796 = vmatpush1.xpose.msra.mxu0 0.0
    %1797 = vmatprep.subr.mxu0 0.0
    %1798 = vmatpush1.xpose.msra.mxu0 0.0
    %1799 = vmatprep.subr.mxu0 0.0
    %1800 = vmatpush1.xpose.msra.mxu0 0.0
    %1801 = vmatprep.subr.mxu0 0.0
    %1802 = vmatpush1.xpose.msra.mxu0 0.0
    %1803 = vmatprep.subr.mxu0 0.0
    %1804 = vmatpush1.xpose.msra.mxu0 0.0
    %1805 = vmatprep.subr.mxu0 0.0
    %1806 = vmatpush1.xpose.msra.mxu0 0.0
    %1807 = vmatprep.subr.mxu0 0.0
    %1808 = vmatpush1.xpose.msra.mxu0 0.0
    %1809 = vmatprep.subr.mxu0 0.0
    %1810 = vmatpush1.xpose.msra.mxu0 0.0
    %1811 = vmatprep.subr.mxu0 0.0
    %1812 = vmatpush1.xpose.msra.mxu0 0.0
    %1813 = vmatprep.subr.mxu0 0.0
    %1814 = vmatpush1.xpose.msra.mxu0 0.0
    %1815 = vmatprep.subr.mxu0 0.0
    %1816 = vmatpush1.xpose.msra.mxu0 0.0
    %1817 = vmatprep.subr.mxu0 0.0
    %1818 = vmatpush1.xpose.msra.mxu0 0.0
    %1819 = vmatprep.subr.mxu0 0.0
    %1820 = vmatpush1.xpose.msra.mxu0 0.0
    %1821 = vmatprep.subr.mxu0 0.0
    %1822 = vmatpush1.xpose.msra.mxu0 0.0
    %1823 = vmatprep.subr.mxu0 0.0
    %1824 = vmatpush1.xpose.msra.mxu0 0.0
    %1825 = vmatprep.subr.mxu0 0.0
    %1826 = vmatpush1.xpose.msra.mxu0 0.0
    %1827 = vmatprep.subr.mxu0 0.0
    %1828 = vmatpush1.xpose.msra.mxu0 0.0
    %1829 = vmatprep.subr.mxu0 0.0
    %1830 = vmatpush1.xpose.msra.mxu0 0.0
    %1831 = vmatprep.subr.mxu0 0.0
    %1832 = vmatpush1.xpose.msra.mxu0 0.0
    %1833 = vmatprep.subr.mxu0 0.0
    %1834 = vmatpush1.xpose.msra.mxu0 0.0
    %1835 = vmatprep.subr.mxu0 0.0
    %1836 = vmatpush1.xpose.msra.mxu0 0.0
    %1837 = vmatprep.subr.mxu0 0.0
    %1838 = vmatpush1.xpose.msra.mxu0 0.0
    %1839 = vmatprep.subr.mxu0 0.0
    %1840 = vmatpush1.xpose.msra.mxu0 0.0
    %1841 = vmatprep.subr.mxu0 0.0
    %1842 = vmatpush1.xpose.msra.mxu0 0.0
    %1843 = vmatprep.subr.mxu0 0.0
    %1844 = vmatpush1.xpose.msra.mxu0 0.0
    %1845 = vmatprep.subr.mxu0 0.0
    %1846 = vmatpush1.xpose.msra.mxu0 0.0
    %1847 = vmatprep.subr.mxu0 0.0
    %1848 = vmatpush1.xpose.msra.mxu0 0.0
    %1849 = vmatprep.subr.mxu0 0.0
    %1850 = vmatpush1.xpose.msra.mxu0 0.0
    %1851 = vmatprep.subr.mxu0 0.0
    %1852 = vmatpush1.xpose.msra.mxu0 0.0
    %1853 = vmatprep.mubr.f32.mxu0 0.0
    %1854 = vmatmul.mubr.f32.gmra.mrb[0].mxu0 %v1779
    %v1855 = vpop.f32.mrb[0].mxu0
    %v1856 = vadd.f32 %v469, %v1855
    %v1857 = vpop.f32.mrb[0].mxu0
    %1858 = vmatprep.mubr.f32.mxu0 0.0
    %1859 = vmatmul.mubr.f32.gmra.mrb[0].mxu0 %v1781
    %v1860 = vpop.f32.mrb[0].mxu0
    %v1861 = vadd.f32 %v470, %v1860
    %v1862 = vpop.f32.mrb[0].mxu0
    %1863 = vdwg.mxu0
    %v1864 = vsel %vm856, %v1856, -inf
    %1865 = vmax.xlane.f32.xlu0 %v1864
    %v1866 = vpop.xlane.xlu0 %1865
    %v1867 = vsel %vm856, %v1861, -inf
    %1868 = vmax.xlane.f32.xlu0 %v1867
    %v1869 = vpop.xlane.xlu0 %1868
    %v1870 = vsub.f32 %v1856, %v1866
    %v1871 = vsub.f32 %v1861, %v1869
    %v1872 = vmul.f32 %v1870, 1.442695
    %v1873 = vpow.pop %v1872
    %v1874 = vmul.f32 %v1871, 1.442695
    %v1875 = vpow.pop %v1874
    %v1876 = vmul.f32 %v1873, %v467
    %v1877 = vmul.f32 %v1875, %v468
    %v1878 = vsel %vm856, %v1876, 0.0
    %1879 = vadd.xlane.f32.xlu0 %v1878
    %v1880 = vpop.xlane.xlu0 %1879
    %v1881 = vsel %vm856, %v1877, 0.0
    %1882 = vadd.xlane.f32.xlu0 %v1881
    %v1883 = vpop.xlane.xlu0 %1882
    %vm1884 = vcmp.gt.f32.partialorder %v1880, 0.0
    %vm1885 = vcmp.gt.f32.partialorder %v1883, 0.0
    %v1886 = vsel %vm1884, %v1880, 1.0
    %v1887 = vsel %vm1885, %v1883, 1.0
    %v1888 = vrcp.pop %v1886
    %v1889 = vrcp.pop %v1887
    %v1890 = vmul.f32 %v1876, %v1888
    %v1891 = vmul.f32 %v1877, %v1889
    %1892 = vrot.lane.b32.xlu0 %v739, 64
    %v1893 = vpop.permute.xlu0 %1892
    %1894 = vrot.lane.b32.xlu0 %v744, 64
    %v1895 = vpop.permute.xlu0 %1894
    %1896 = vrot.lane.b32.xlu0 %v749, 64
    %v1897 = vpop.permute.xlu0 %1896
    %v1902 = vsel %vm856, %v1890, 0
    %v1905 = vsel %vm856, %v1891, 0
    %1907 = vmatprep.subr.mxu0 0.0
    %1908 = vmatpush1.msra.mxu0 %v1893
    %1909 = vmatprep.subr.mxu0 0.0
    %1910 = vmatpush1.msra.mxu0 %v1895
    %1911 = vmatprep.subr.mxu0 0.0
    %1912 = vmatpush1.msra.mxu0 %v1897
    %1913 = vmatprep.subr.mxu0 0.0
    %1914 = vmatpush1.msra.mxu0 0.0
    %1915 = vmatprep.subr.mxu0 0.0
    %1916 = vmatpush1.msra.mxu0 0.0
    %1917 = vmatprep.subr.mxu0 0.0
    %1918 = vmatpush1.msra.mxu0 0.0
    %1919 = vmatprep.subr.mxu0 0.0
    %1920 = vmatpush1.msra.mxu0 0.0
    %1921 = vmatprep.subr.mxu0 0.0
    %1922 = vmatpush1.msra.mxu0 0.0
    %1923 = vmatprep.subr.mxu0 0.0
    %1924 = vmatpush1.msra.mxu0 0.0
    %1925 = vmatprep.subr.mxu0 0.0
    %1926 = vmatpush1.msra.mxu0 0.0
    %1927 = vmatprep.subr.mxu0 0.0
    %1928 = vmatpush1.msra.mxu0 0.0
    %1929 = vmatprep.subr.mxu0 0.0
    %1930 = vmatpush1.msra.mxu0 0.0
    %1931 = vmatprep.subr.mxu0 0.0
    %1932 = vmatpush1.msra.mxu0 0.0
    %1933 = vmatprep.subr.mxu0 0.0
    %1934 = vmatpush1.msra.mxu0 0.0
    %1935 = vmatprep.subr.mxu0 0.0
    %1936 = vmatpush1.msra.mxu0 0.0
    %1937 = vmatprep.subr.mxu0 0.0
    %1938 = vmatpush1.msra.mxu0 0.0
    %1939 = vmatprep.subr.mxu0 0.0
    %1940 = vmatpush1.msra.mxu0 0.0
    %1941 = vmatprep.subr.mxu0 0.0
    %1942 = vmatpush1.msra.mxu0 0.0
    %1943 = vmatprep.subr.mxu0 0.0
    %1944 = vmatpush1.msra.mxu0 0.0
    %1945 = vmatprep.subr.mxu0 0.0
    %1946 = vmatpush1.msra.mxu0 0.0
    %1947 = vmatprep.subr.mxu0 0.0
    %1948 = vmatpush1.msra.mxu0 0.0
    %1949 = vmatprep.subr.mxu0 0.0
    %1950 = vmatpush1.msra.mxu0 0.0
    %1951 = vmatprep.subr.mxu0 0.0
    %1952 = vmatpush1.msra.mxu0 0.0
    %1953 = vmatprep.subr.mxu0 0.0
    %1954 = vmatpush1.msra.mxu0 0.0
    %1955 = vmatprep.subr.mxu0 0.0
    %1956 = vmatpush1.msra.mxu0 0.0
    %1957 = vmatprep.subr.mxu0 0.0
    %1958 = vmatpush1.msra.mxu0 0.0
    %1959 = vmatprep.subr.mxu0 0.0
    %1960 = vmatpush1.msra.mxu0 0.0
    %1961 = vmatprep.subr.mxu0 0.0
    %1962 = vmatpush1.msra.mxu0 0.0
    %1963 = vmatprep.subr.mxu0 0.0
    %1964 = vmatpush1.msra.mxu0 0.0
    %1965 = vmatprep.subr.mxu0 0.0
    %1966 = vmatpush1.msra.mxu0 0.0
    %1967 = vmatprep.subr.mxu0 0.0
    %1968 = vmatpush1.msra.mxu0 0.0
    %1969 = vmatprep.subr.mxu0 0.0
    %1970 = vmatpush1.msra.mxu0 0.0
    %1971 = vmatprep.mubr.f32.mxu0 0.0
    %1972 = vmatmul.mubr.f32.gmra.mrb[0].mxu0 %v1902
    %v1973 = vpop.f32.mrb[0].mxu0
    %v1974 = vadd.f32 0.0, %v1973
    %v1975 = vpop.f32.mrb[0].mxu0
    %1976 = vmatprep.mubr.f32.mxu0 0.0
    %1977 = vmatmul.mubr.f32.gmra.mrb[0].mxu0 %v1905
    %v1978 = vpop.f32.mrb[0].mxu0
    %v1979 = vadd.f32 0.0, %v1978
    %v1980 = vpop.f32.mrb[0].mxu0
    %1981 = vdwg.mxu0
    %1982 = vrot.lane.b32.xlu0 %v556, 88
    %v1983 = vpop.permute.xlu0 %1982
    %1984 = vrot.lane.b32.xlu0 %v561, 88
    %v1985 = vpop.permute.xlu0 %1984
    %1986 = vrot.lane.b32.xlu0 %v739, 120
    %v1987 = vpop.permute.xlu0 %1986
    %1988 = vrot.lane.b32.xlu0 %v744, 120
    %v1989 = vpop.permute.xlu0 %1988
    %1990 = vrot.lane.b32.xlu0 %v749, 120
    %v1991 = vpop.permute.xlu0 %1990
    %v1992 = vsel %vm195, %v1983, 0
    %v1994 = vsel %vm195, %v1985, 0
    %v1996 = vsel %vm195, %v1987, 0
    %v1998 = vsel %vm195, %v1989, 0
    %v2000 = vsel %vm195, %v1991, 0
    %2002 = vmatprep.subr.mxu0 0.0
    %2003 = vmatpush1.xpose.msra.mxu0 %v1996
    %2004 = vmatprep.subr.mxu0 0.0
    %2005 = vmatpush1.xpose.msra.mxu0 %v1998
    %2006 = vmatprep.subr.mxu0 0.0
    %2007 = vmatpush1.xpose.msra.mxu0 %v2000
    %2008 = vmatprep.subr.mxu0 0.0
    %2009 = vmatpush1.xpose.msra.mxu0 0.0
    %2010 = vmatprep.subr.mxu0 0.0
    %2011 = vmatpush1.xpose.msra.mxu0 0.0
    %2012 = vmatprep.subr.mxu0 0.0
    %2013 = vmatpush1.xpose.msra.mxu0 0.0
    %2014 = vmatprep.subr.mxu0 0.0
    %2015 = vmatpush1.xpose.msra.mxu0 0.0
    %2016 = vmatprep.subr.mxu0 0.0
    %2017 = vmatpush1.xpose.msra.mxu0 0.0
    %2018 = vmatprep.subr.mxu0 0.0
    %2019 = vmatpush1.xpose.msra.mxu0 0.0
    %2020 = vmatprep.subr.mxu0 0.0
    %2021 = vmatpush1.xpose.msra.mxu0 0.0
    %2022 = vmatprep.subr.mxu0 0.0
    %2023 = vmatpush1.xpose.msra.mxu0 0.0
    %2024 = vmatprep.subr.mxu0 0.0
    %2025 = vmatpush1.xpose.msra.mxu0 0.0
    %2026 = vmatprep.subr.mxu0 0.0
    %2027 = vmatpush1.xpose.msra.mxu0 0.0
    %2028 = vmatprep.subr.mxu0 0.0
    %2029 = vmatpush1.xpose.msra.mxu0 0.0
    %2030 = vmatprep.subr.mxu0 0.0
    %2031 = vmatpush1.xpose.msra.mxu0 0.0
    %2032 = vmatprep.subr.mxu0 0.0
    %2033 = vmatpush1.xpose.msra.mxu0 0.0
    %2034 = vmatprep.subr.mxu0 0.0
    %2035 = vmatpush1.xpose.msra.mxu0 0.0
    %2036 = vmatprep.subr.mxu0 0.0
    %2037 = vmatpush1.xpose.msra.mxu0 0.0
    %2038 = vmatprep.subr.mxu0 0.0
    %2039 = vmatpush1.xpose.msra.mxu0 0.0
    %2040 = vmatprep.subr.mxu0 0.0
    %2041 = vmatpush1.xpose.msra.mxu0 0.0
    %2042 = vmatprep.subr.mxu0 0.0
    %2043 = vmatpush1.xpose.msra.mxu0 0.0
    %2044 = vmatprep.subr.mxu0 0.0
    %2045 = vmatpush1.xpose.msra.mxu0 0.0
    %2046 = vmatprep.subr.mxu0 0.0
    %2047 = vmatpush1.xpose.msra.mxu0 0.0
    %2048 = vmatprep.subr.mxu0 0.0
    %2049 = vmatpush1.xpose.msra.mxu0 0.0
    %2050 = vmatprep.subr.mxu0 0.0
    %2051 = vmatpush1.xpose.msra.mxu0 0.0
    %2052 = vmatprep.subr.mxu0 0.0
    %2053 = vmatpush1.xpose.msra.mxu0 0.0
    %2054 = vmatprep.subr.mxu0 0.0
    %2055 = vmatpush1.xpose.msra.mxu0 0.0
    %2056 = vmatprep.subr.mxu0 0.0
    %2057 = vmatpush1.xpose.msra.mxu0 0.0
    %2058 = vmatprep.subr.mxu0 0.0
    %2059 = vmatpush1.xpose.msra.mxu0 0.0
    %2060 = vmatprep.subr.mxu0 0.0
    %2061 = vmatpush1.xpose.msra.mxu0 0.0
    %2062 = vmatprep.subr.mxu0 0.0
    %2063 = vmatpush1.xpose.msra.mxu0 0.0
    %2064 = vmatprep.subr.mxu0 0.0
    %2065 = vmatpush1.xpose.msra.mxu0 0.0
    %2066 = vmatprep.mubr.f32.mxu0 0.0
    %2067 = vmatmul.mubr.f32.gmra.mrb[0].mxu0 %v1992
    %v2068 = vpop.f32.mrb[0].mxu0
    %v2069 = vadd.f32 %v469, %v2068
    %v2070 = vpop.f32.mrb[0].mxu0
    %2071 = vmatprep.mubr.f32.mxu0 0.0
    %2072 = vmatmul.mubr.f32.gmra.mrb[0].mxu0 %v1994
    %v2073 = vpop.f32.mrb[0].mxu0
    %v2074 = vadd.f32 %v470, %v2073
    %v2075 = vpop.f32.mrb[0].mxu0
    %2076 = vdwg.mxu0
    %v2077 = vsel %vm856, %v2069, -inf
    %2078 = vmax.xlane.f32.xlu0 %v2077
    %v2079 = vpop.xlane.xlu0 %2078
    %v2080 = vsel %vm856, %v2074, -inf
    %2081 = vmax.xlane.f32.xlu0 %v2080
    %v2082 = vpop.xlane.xlu0 %2081
    %v2083 = vsub.f32 %v2069, %v2079
    %v2084 = vsub.f32 %v2074, %v2082
    %v2085 = vmul.f32 %v2083, 1.442695
    %v2086 = vpow.pop %v2085
    %v2087 = vmul.f32 %v2084, 1.442695
    %v2088 = vpow.pop %v2087
    %v2089 = vmul.f32 %v2086, %v467
    %v2090 = vmul.f32 %v2088, %v468
    %v2091 = vsel %vm856, %v2089, 0.0
    %2092 = vadd.xlane.f32.xlu0 %v2091
    %v2093 = vpop.xlane.xlu0 %2092
    %v2094 = vsel %vm856, %v2090, 0.0
    %2095 = vadd.xlane.f32.xlu0 %v2094
    %v2096 = vpop.xlane.xlu0 %2095
    %vm2097 = vcmp.gt.f32.partialorder %v2093, 0.0
    %vm2098 = vcmp.gt.f32.partialorder %v2096, 0.0
    %v2099 = vsel %vm2097, %v2093, 1.0
    %v2100 = vsel %vm2098, %v2096, 1.0
    %v2101 = vrcp.pop %v2099
    %v2102 = vrcp.pop %v2100
    %v2103 = vmul.f32 %v2089, %v2101
    %v2104 = vmul.f32 %v2090, %v2102
    %2105 = vrot.lane.b32.xlu0 %v739, 56
    %v2106 = vpop.permute.xlu0 %2105
    %2107 = vrot.lane.b32.xlu0 %v744, 56
    %v2108 = vpop.permute.xlu0 %2107
    %2109 = vrot.lane.b32.xlu0 %v749, 56
    %v2110 = vpop.permute.xlu0 %2109
    %v2115 = vsel %vm856, %v2103, 0
    %v2118 = vsel %vm856, %v2104, 0
    %2120 = vmatprep.subr.mxu0 0.0
    %2121 = vmatpush1.msra.mxu0 %v2106
    %2122 = vmatprep.subr.mxu0 0.0
    %2123 = vmatpush1.msra.mxu0 %v2108
    %2124 = vmatprep.subr.mxu0 0.0
    %2125 = vmatpush1.msra.mxu0 %v2110
    %2126 = vmatprep.subr.mxu0 0.0
    %2127 = vmatpush1.msra.mxu0 0.0
    %2128 = vmatprep.subr.mxu0 0.0
    %2129 = vmatpush1.msra.mxu0 0.0
    %2130 = vmatprep.subr.mxu0 0.0
    %2131 = vmatpush1.msra.mxu0 0.0
    %2132 = vmatprep.subr.mxu0 0.0
    %2133 = vmatpush1.msra.mxu0 0.0
    %2134 = vmatprep.subr.mxu0 0.0
    %2135 = vmatpush1.msra.mxu0 0.0
    %2136 = vmatprep.subr.mxu0 0.0
    %2137 = vmatpush1.msra.mxu0 0.0
    %2138 = vmatprep.subr.mxu0 0.0
    %2139 = vmatpush1.msra.mxu0 0.0
    %2140 = vmatprep.subr.mxu0 0.0
    %2141 = vmatpush1.msra.mxu0 0.0
    %2142 = vmatprep.subr.mxu0 0.0
    %2143 = vmatpush1.msra.mxu0 0.0
    %2144 = vmatprep.subr.mxu0 0.0
    %2145 = vmatpush1.msra.mxu0 0.0
    %2146 = vmatprep.subr.mxu0 0.0
    %2147 = vmatpush1.msra.mxu0 0.0
    %2148 = vmatprep.subr.mxu0 0.0
    %2149 = vmatpush1.msra.mxu0 0.0
    %2150 = vmatprep.subr.mxu0 0.0
    %2151 = vmatpush1.msra.mxu0 0.0
    %2152 = vmatprep.subr.mxu0 0.0
    %2153 = vmatpush1.msra.mxu0 0.0
    %2154 = vmatprep.subr.mxu0 0.0
    %2155 = vmatpush1.msra.mxu0 0.0
    %2156 = vmatprep.subr.mxu0 0.0
    %2157 = vmatpush1.msra.mxu0 0.0
    %2158 = vmatprep.subr.mxu0 0.0
    %2159 = vmatpush1.msra.mxu0 0.0
    %2160 = vmatprep.subr.mxu0 0.0
    %2161 = vmatpush1.msra.mxu0 0.0
    %2162 = vmatprep.subr.mxu0 0.0
    %2163 = vmatpush1.msra.mxu0 0.0
    %2164 = vmatprep.subr.mxu0 0.0
    %2165 = vmatpush1.msra.mxu0 0.0
    %2166 = vmatprep.subr.mxu0 0.0
    %2167 = vmatpush1.msra.mxu0 0.0
    %2168 = vmatprep.subr.mxu0 0.0
    %2169 = vmatpush1.msra.mxu0 0.0
    %2170 = vmatprep.subr.mxu0 0.0
    %2171 = vmatpush1.msra.mxu0 0.0
    %2172 = vmatprep.subr.mxu0 0.0
    %2173 = vmatpush1.msra.mxu0 0.0
    %2174 = vmatprep.subr.mxu0 0.0
    %2175 = vmatpush1.msra.mxu0 0.0
    %2176 = vmatprep.subr.mxu0 0.0
    %2177 = vmatpush1.msra.mxu0 0.0
    %2178 = vmatprep.subr.mxu0 0.0
    %2179 = vmatpush1.msra.mxu0 0.0
    %2180 = vmatprep.subr.mxu0 0.0
    %2181 = vmatpush1.msra.mxu0 0.0
    %2182 = vmatprep.subr.mxu0 0.0
    %2183 = vmatpush1.msra.mxu0 0.0
    %2184 = vmatprep.mubr.f32.mxu0 0.0
    %2185 = vmatmul.mubr.f32.gmra.mrb[0].mxu0 %v2115
    %v2186 = vpop.f32.mrb[0].mxu0
    %v2187 = vadd.f32 0.0, %v2186
    %v2188 = vpop.f32.mrb[0].mxu0
    %2189 = vmatprep.mubr.f32.mxu0 0.0
    %2190 = vmatmul.mubr.f32.gmra.mrb[0].mxu0 %v2118
    %v2191 = vpop.f32.mrb[0].mxu0
    %v2192 = vadd.f32 0.0, %v2191
    %v2193 = vpop.f32.mrb[0].mxu0
    %2194 = vdwg.mxu0
    %2195 = vrot.lane.b32.xlu0 %v556, 80
    %v2196 = vpop.permute.xlu0 %2195
    %2197 = vrot.lane.b32.xlu0 %v561, 80
    %v2198 = vpop.permute.xlu0 %2197
    %2199 = vrot.lane.b32.xlu0 %v739, 112
    %v2200 = vpop.permute.xlu0 %2199
    %2201 = vrot.lane.b32.xlu0 %v744, 112
    %v2202 = vpop.permute.xlu0 %2201
    %2203 = vrot.lane.b32.xlu0 %v749, 112
    %v2204 = vpop.permute.xlu0 %2203
    %v2205 = vsel %vm195, %v2196, 0
    %v2207 = vsel %vm195, %v2198, 0
    %v2209 = vsel %vm195, %v2200, 0
    %v2211 = vsel %vm195, %v2202, 0
    %v2213 = vsel %vm195, %v2204, 0
    %2215 = vmatprep.subr.mxu0 0.0
    %2216 = vmatpush1.xpose.msra.mxu0 %v2209
    %2217 = vmatprep.subr.mxu0 0.0
    %2218 = vmatpush1.xpose.msra.mxu0 %v2211
    %2219 = vmatprep.subr.mxu0 0.0
    %2220 = vmatpush1.xpose.msra.mxu0 %v2213
    %2221 = vmatprep.subr.mxu0 0.0
    %2222 = vmatpush1.xpose.msra.mxu0 0.0
    %2223 = vmatprep.subr.mxu0 0.0
    %2224 = vmatpush1.xpose.msra.mxu0 0.0
    %2225 = vmatprep.subr.mxu0 0.0
    %2226 = vmatpush1.xpose.msra.mxu0 0.0
    %2227 = vmatprep.subr.mxu0 0.0
    %2228 = vmatpush1.xpose.msra.mxu0 0.0
    %2229 = vmatprep.subr.mxu0 0.0
    %2230 = vmatpush1.xpose.msra.mxu0 0.0
    %2231 = vmatprep.subr.mxu0 0.0
    %2232 = vmatpush1.xpose.msra.mxu0 0.0
    %2233 = vmatprep.subr.mxu0 0.0
    %2234 = vmatpush1.xpose.msra.mxu0 0.0
    %2235 = vmatprep.subr.mxu0 0.0
    %2236 = vmatpush1.xpose.msra.mxu0 0.0
    %2237 = vmatprep.subr.mxu0 0.0
    %2238 = vmatpush1.xpose.msra.mxu0 0.0
    %2239 = vmatprep.subr.mxu0 0.0
    %2240 = vmatpush1.xpose.msra.mxu0 0.0
    %2241 = vmatprep.subr.mxu0 0.0
    %2242 = vmatpush1.xpose.msra.mxu0 0.0
    %2243 = vmatprep.subr.mxu0 0.0
    %2244 = vmatpush1.xpose.msra.mxu0 0.0
    %2245 = vmatprep.subr.mxu0 0.0
    %2246 = vmatpush1.xpose.msra.mxu0 0.0
    %2247 = vmatprep.subr.mxu0 0.0
    %2248 = vmatpush1.xpose.msra.mxu0 0.0
    %2249 = vmatprep.subr.mxu0 0.0
    %2250 = vmatpush1.xpose.msra.mxu0 0.0
    %2251 = vmatprep.subr.mxu0 0.0
    %2252 = vmatpush1.xpose.msra.mxu0 0.0
    %2253 = vmatprep.subr.mxu0 0.0
    %2254 = vmatpush1.xpose.msra.mxu0 0.0
    %2255 = vmatprep.subr.mxu0 0.0
    %2256 = vmatpush1.xpose.msra.mxu0 0.0
    %2257 = vmatprep.subr.mxu0 0.0
    %2258 = vmatpush1.xpose.msra.mxu0 0.0
    %2259 = vmatprep.subr.mxu0 0.0
    %2260 = vmatpush1.xpose.msra.mxu0 0.0
    %2261 = vmatprep.subr.mxu0 0.0
    %2262 = vmatpush1.xpose.msra.mxu0 0.0
    %2263 = vmatprep.subr.mxu0 0.0
    %2264 = vmatpush1.xpose.msra.mxu0 0.0
    %2265 = vmatprep.subr.mxu0 0.0
    %2266 = vmatpush1.xpose.msra.mxu0 0.0
    %2267 = vmatprep.subr.mxu0 0.0
    %2268 = vmatpush1.xpose.msra.mxu0 0.0
    %2269 = vmatprep.subr.mxu0 0.0
    %2270 = vmatpush1.xpose.msra.mxu0 0.0
    %2271 = vmatprep.subr.mxu0 0.0
    %2272 = vmatpush1.xpose.msra.mxu0 0.0
    %2273 = vmatprep.subr.mxu0 0.0
    %2274 = vmatpush1.xpose.msra.mxu0 0.0
    %2275 = vmatprep.subr.mxu0 0.0
    %2276 = vmatpush1.xpose.msra.mxu0 0.0
    %2277 = vmatprep.subr.mxu0 0.0
    %2278 = vmatpush1.xpose.msra.mxu0 0.0
    %2279 = vmatprep.mubr.f32.mxu0 0.0
    %2280 = vmatmul.mubr.f32.gmra.mrb[0].mxu0 %v2205
    %v2281 = vpop.f32.mrb[0].mxu0
    %v2282 = vadd.f32 %v469, %v2281
    %v2283 = vpop.f32.mrb[0].mxu0
    %2284 = vmatprep.mubr.f32.mxu0 0.0
    %2285 = vmatmul.mubr.f32.gmra.mrb[0].mxu0 %v2207
    %v2286 = vpop.f32.mrb[0].mxu0
    %v2287 = vadd.f32 %v470, %v2286
    %v2288 = vpop.f32.mrb[0].mxu0
    %2289 = vdwg.mxu0
    %v2290 = vsel %vm856, %v2282, -inf
    %2291 = vmax.xlane.f32.xlu0 %v2290
    %v2292 = vpop.xlane.xlu0 %2291
    %v2293 = vsel %vm856, %v2287, -inf
    %2294 = vmax.xlane.f32.xlu0 %v2293
    %v2295 = vpop.xlane.xlu0 %2294
    %v2296 = vsub.f32 %v2282, %v2292
    %v2297 = vsub.f32 %v2287, %v2295
    %v2298 = vmul.f32 %v2296, 1.442695
    %v2299 = vpow.pop %v2298
    %v2300 = vmul.f32 %v2297, 1.442695
    %v2301 = vpow.pop %v2300
    %v2302 = vmul.f32 %v2299, %v467
    %v2303 = vmul.f32 %v2301, %v468
    %v2304 = vsel %vm856, %v2302, 0.0
    %2305 = vadd.xlane.f32.xlu0 %v2304
    %v2306 = vpop.xlane.xlu0 %2305
    %v2307 = vsel %vm856, %v2303, 0.0
    %2308 = vadd.xlane.f32.xlu0 %v2307
    %v2309 = vpop.xlane.xlu0 %2308
    %vm2310 = vcmp.gt.f32.partialorder %v2306, 0.0
    %vm2311 = vcmp.gt.f32.partialorder %v2309, 0.0
    %v2312 = vsel %vm2310, %v2306, 1.0
    %v2313 = vsel %vm2311, %v2309, 1.0
    %v2314 = vrcp.pop %v2312
    %v2315 = vrcp.pop %v2313
    %v2316 = vmul.f32 %v2302, %v2314
    %v2317 = vmul.f32 %v2303, %v2315
    %2318 = vrot.lane.b32.xlu0 %v739, 48
    %v2319 = vpop.permute.xlu0 %2318
    %2320 = vrot.lane.b32.xlu0 %v744, 48
    %v2321 = vpop.permute.xlu0 %2320
    %2322 = vrot.lane.b32.xlu0 %v749, 48
    %v2323 = vpop.permute.xlu0 %2322
    %v2328 = vsel %vm856, %v2316, 0
    %v2331 = vsel %vm856, %v2317, 0
    %2333 = vmatprep.subr.mxu0 0.0
    %2334 = vmatpush1.msra.mxu0 %v2319
    %2335 = vmatprep.subr.mxu0 0.0
    %2336 = vmatpush1.msra.mxu0 %v2321
    %2337 = vmatprep.subr.mxu0 0.0
    %2338 = vmatpush1.msra.mxu0 %v2323
    %2339 = vmatprep.subr.mxu0 0.0
    %2340 = vmatpush1.msra.mxu0 0.0
    %2341 = vmatprep.subr.mxu0 0.0
    %2342 = vmatpush1.msra.mxu0 0.0
    %2343 = vmatprep.subr.mxu0 0.0
    %2344 = vmatpush1.msra.mxu0 0.0
    %2345 = vmatprep.subr.mxu0 0.0
    %2346 = vmatpush1.msra.mxu0 0.0
    %2347 = vmatprep.subr.mxu0 0.0
    %2348 = vmatpush1.msra.mxu0 0.0
    %2349 = vmatprep.subr.mxu0 0.0
    %2350 = vmatpush1.msra.mxu0 0.0
    %2351 = vmatprep.subr.mxu0 0.0
    %2352 = vmatpush1.msra.mxu0 0.0
    %2353 = vmatprep.subr.mxu0 0.0
    %2354 = vmatpush1.msra.mxu0 0.0
    %2355 = vmatprep.subr.mxu0 0.0
    %2356 = vmatpush1.msra.mxu0 0.0
    %2357 = vmatprep.subr.mxu0 0.0
    %2358 = vmatpush1.msra.mxu0 0.0
    %2359 = vmatprep.subr.mxu0 0.0
    %2360 = vmatpush1.msra.mxu0 0.0
    %2361 = vmatprep.subr.mxu0 0.0
    %2362 = vmatpush1.msra.mxu0 0.0
    %2363 = vmatprep.subr.mxu0 0.0
    %2364 = vmatpush1.msra.mxu0 0.0
    %2365 = vmatprep.subr.mxu0 0.0
    %2366 = vmatpush1.msra.mxu0 0.0
    %2367 = vmatprep.subr.mxu0 0.0
    %2368 = vmatpush1.msra.mxu0 0.0
    %2369 = vmatprep.subr.mxu0 0.0
    %2370 = vmatpush1.msra.mxu0 0.0
    %2371 = vmatprep.subr.mxu0 0.0
    %2372 = vmatpush1.msra.mxu0 0.0
    %2373 = vmatprep.subr.mxu0 0.0
    %2374 = vmatpush1.msra.mxu0 0.0
    %2375 = vmatprep.subr.mxu0 0.0
    %2376 = vmatpush1.msra.mxu0 0.0
    %2377 = vmatprep.subr.mxu0 0.0
    %2378 = vmatpush1.msra.mxu0 0.0
    %2379 = vmatprep.subr.mxu0 0.0
    %2380 = vmatpush1.msra.mxu0 0.0
    %2381 = vmatprep.subr.mxu0 0.0
    %2382 = vmatpush1.msra.mxu0 0.0
    %2383 = vmatprep.subr.mxu0 0.0
    %2384 = vmatpush1.msra.mxu0 0.0
    %2385 = vmatprep.subr.mxu0 0.0
    %2386 = vmatpush1.msra.mxu0 0.0
    %2387 = vmatprep.subr.mxu0 0.0
    %2388 = vmatpush1.msra.mxu0 0.0
    %2389 = vmatprep.subr.mxu0 0.0
    %2390 = vmatpush1.msra.mxu0 0.0
    %2391 = vmatprep.subr.mxu0 0.0
    %2392 = vmatpush1.msra.mxu0 0.0
    %2393 = vmatprep.subr.mxu0 0.0
    %2394 = vmatpush1.msra.mxu0 0.0
    %2395 = vmatprep.subr.mxu0 0.0
    %2396 = vmatpush1.msra.mxu0 0.0
    %2397 = vmatprep.mubr.f32.mxu0 0.0
    %2398 = vmatmul.mubr.f32.gmra.mrb[0].mxu0 %v2328
    %v2399 = vpop.f32.mrb[0].mxu0
    %v2400 = vadd.f32 0.0, %v2399
    %v2401 = vpop.f32.mrb[0].mxu0
    %2402 = vmatprep.mubr.f32.mxu0 0.0
    %2403 = vmatmul.mubr.f32.gmra.mrb[0].mxu0 %v2331
    %v2404 = vpop.f32.mrb[0].mxu0
    %v2405 = vadd.f32 0.0, %v2404
    %v2406 = vpop.f32.mrb[0].mxu0
    %2407 = vdwg.mxu0
    %2408 = vrot.lane.b32.xlu0 %v556, 72
    %v2409 = vpop.permute.xlu0 %2408
    %2410 = vrot.lane.b32.xlu0 %v561, 72
    %v2411 = vpop.permute.xlu0 %2410
    %2412 = vrot.lane.b32.xlu0 %v739, 104
    %v2413 = vpop.permute.xlu0 %2412
    %2414 = vrot.lane.b32.xlu0 %v744, 104
    %v2415 = vpop.permute.xlu0 %2414
    %2416 = vrot.lane.b32.xlu0 %v749, 104
    %v2417 = vpop.permute.xlu0 %2416
    %v2418 = vsel %vm195, %v2409, 0
    %v2420 = vsel %vm195, %v2411, 0
    %v2422 = vsel %vm195, %v2413, 0
    %v2424 = vsel %vm195, %v2415, 0
    %v2426 = vsel %vm195, %v2417, 0
    %2428 = vmatprep.subr.mxu0 0.0
    %2429 = vmatpush1.xpose.msra.mxu0 %v2422
    %2430 = vmatprep.subr.mxu0 0.0
    %2431 = vmatpush1.xpose.msra.mxu0 %v2424
    %2432 = vmatprep.subr.mxu0 0.0
    %2433 = vmatpush1.xpose.msra.mxu0 %v2426
    %2434 = vmatprep.subr.mxu0 0.0
    %2435 = vmatpush1.xpose.msra.mxu0 0.0
    %2436 = vmatprep.subr.mxu0 0.0
    %2437 = vmatpush1.xpose.msra.mxu0 0.0
    %2438 = vmatprep.subr.mxu0 0.0
    %2439 = vmatpush1.xpose.msra.mxu0 0.0
    %2440 = vmatprep.subr.mxu0 0.0
    %2441 = vmatpush1.xpose.msra.mxu0 0.0
    %2442 = vmatprep.subr.mxu0 0.0
    %2443 = vmatpush1.xpose.msra.mxu0 0.0
    %2444 = vmatprep.subr.mxu0 0.0
    %2445 = vmatpush1.xpose.msra.mxu0 0.0
    %2446 = vmatprep.subr.mxu0 0.0
    %2447 = vmatpush1.xpose.msra.mxu0 0.0
    %2448 = vmatprep.subr.mxu0 0.0
    %2449 = vmatpush1.xpose.msra.mxu0 0.0
    %2450 = vmatprep.subr.mxu0 0.0
    %2451 = vmatpush1.xpose.msra.mxu0 0.0
    %2452 = vmatprep.subr.mxu0 0.0
    %2453 = vmatpush1.xpose.msra.mxu0 0.0
    %2454 = vmatprep.subr.mxu0 0.0
    %2455 = vmatpush1.xpose.msra.mxu0 0.0
    %2456 = vmatprep.subr.mxu0 0.0
    %2457 = vmatpush1.xpose.msra.mxu0 0.0
    %2458 = vmatprep.subr.mxu0 0.0
    %2459 = vmatpush1.xpose.msra.mxu0 0.0
    %2460 = vmatprep.subr.mxu0 0.0
    %2461 = vmatpush1.xpose.msra.mxu0 0.0
    %2462 = vmatprep.subr.mxu0 0.0
    %2463 = vmatpush1.xpose.msra.mxu0 0.0
    %2464 = vmatprep.subr.mxu0 0.0
    %2465 = vmatpush1.xpose.msra.mxu0 0.0
    %2466 = vmatprep.subr.mxu0 0.0
    %2467 = vmatpush1.xpose.msra.mxu0 0.0
    %2468 = vmatprep.subr.mxu0 0.0
    %2469 = vmatpush1.xpose.msra.mxu0 0.0
    %2470 = vmatprep.subr.mxu0 0.0
    %2471 = vmatpush1.xpose.msra.mxu0 0.0
    %2472 = vmatprep.subr.mxu0 0.0
    %2473 = vmatpush1.xpose.msra.mxu0 0.0
    %2474 = vmatprep.subr.mxu0 0.0
    %2475 = vmatpush1.xpose.msra.mxu0 0.0
    %2476 = vmatprep.subr.mxu0 0.0
    %2477 = vmatpush1.xpose.msra.mxu0 0.0
    %2478 = vmatprep.subr.mxu0 0.0
    %2479 = vmatpush1.xpose.msra.mxu0 0.0
    %2480 = vmatprep.subr.mxu0 0.0
    %2481 = vmatpush1.xpose.msra.mxu0 0.0
    %2482 = vmatprep.subr.mxu0 0.0
    %2483 = vmatpush1.xpose.msra.mxu0 0.0
    %2484 = vmatprep.subr.mxu0 0.0
    %2485 = vmatpush1.xpose.msra.mxu0 0.0
    %2486 = vmatprep.subr.mxu0 0.0
    %2487 = vmatpush1.xpose.msra.mxu0 0.0
    %2488 = vmatprep.subr.mxu0 0.0
    %2489 = vmatpush1.xpose.msra.mxu0 0.0
    %2490 = vmatprep.subr.mxu0 0.0
    %2491 = vmatpush1.xpose.msra.mxu0 0.0
    %2492 = vmatprep.mubr.f32.mxu0 0.0
    %2493 = vmatmul.mubr.f32.gmra.mrb[0].mxu0 %v2418
    %v2494 = vpop.f32.mrb[0].mxu0
    %v2495 = vadd.f32 %v469, %v2494
    %v2496 = vpop.f32.mrb[0].mxu0
    %2497 = vmatprep.mubr.f32.mxu0 0.0
    %2498 = vmatmul.mubr.f32.gmra.mrb[0].mxu0 %v2420
    %v2499 = vpop.f32.mrb[0].mxu0
    %v2500 = vadd.f32 %v470, %v2499
    %v2501 = vpop.f32.mrb[0].mxu0
    %2502 = vdwg.mxu0
    %v2503 = vsel %vm856, %v2495, -inf
    %2504 = vmax.xlane.f32.xlu0 %v2503
    %v2505 = vpop.xlane.xlu0 %2504
    %v2506 = vsel %vm856, %v2500, -inf
    %2507 = vmax.xlane.f32.xlu0 %v2506
    %v2508 = vpop.xlane.xlu0 %2507
    %v2509 = vsub.f32 %v2495, %v2505
    %v2510 = vsub.f32 %v2500, %v2508
    %v2511 = vmul.f32 %v2509, 1.442695
    %v2512 = vpow.pop %v2511
    %v2513 = vmul.f32 %v2510, 1.442695
    %v2514 = vpow.pop %v2513
    %v2515 = vmul.f32 %v2512, %v467
    %v2516 = vmul.f32 %v2514, %v468
    %v2517 = vsel %vm856, %v2515, 0.0
    %2518 = vadd.xlane.f32.xlu0 %v2517
    %v2519 = vpop.xlane.xlu0 %2518
    %v2520 = vsel %vm856, %v2516, 0.0
    %2521 = vadd.xlane.f32.xlu0 %v2520
    %v2522 = vpop.xlane.xlu0 %2521
    %vm2523 = vcmp.gt.f32.partialorder %v2519, 0.0
    %vm2524 = vcmp.gt.f32.partialorder %v2522, 0.0
    %v2525 = vsel %vm2523, %v2519, 1.0
    %v2526 = vsel %vm2524, %v2522, 1.0
    %v2527 = vrcp.pop %v2525
    %v2528 = vrcp.pop %v2526
    %v2529 = vmul.f32 %v2515, %v2527
    %v2530 = vmul.f32 %v2516, %v2528
    %2531 = vrot.lane.b32.xlu0 %v739, 40
    %v2532 = vpop.permute.xlu0 %2531
    %2533 = vrot.lane.b32.xlu0 %v744, 40
    %v2534 = vpop.permute.xlu0 %2533
    %2535 = vrot.lane.b32.xlu0 %v749, 40
    %v2536 = vpop.permute.xlu0 %2535
    %v2541 = vsel %vm856, %v2529, 0
    %v2544 = vsel %vm856, %v2530, 0
    %2546 = vmatprep.subr.mxu0 0.0
    %2547 = vmatpush1.msra.mxu0 %v2532
    %2548 = vmatprep.subr.mxu0 0.0
    %2549 = vmatpush1.msra.mxu0 %v2534
    %2550 = vmatprep.subr.mxu0 0.0
    %2551 = vmatpush1.msra.mxu0 %v2536
    %2552 = vmatprep.subr.mxu0 0.0
    %2553 = vmatpush1.msra.mxu0 0.0
    %2554 = vmatprep.subr.mxu0 0.0
    %2555 = vmatpush1.msra.mxu0 0.0
    %2556 = vmatprep.subr.mxu0 0.0
    %2557 = vmatpush1.msra.mxu0 0.0
    %2558 = vmatprep.subr.mxu0 0.0
    %2559 = vmatpush1.msra.mxu0 0.0
    %2560 = vmatprep.subr.mxu0 0.0
    %2561 = vmatpush1.msra.mxu0 0.0
    %2562 = vmatprep.subr.mxu0 0.0
    %2563 = vmatpush1.msra.mxu0 0.0
    %2564 = vmatprep.subr.mxu0 0.0
    %2565 = vmatpush1.msra.mxu0 0.0
    %2566 = vmatprep.subr.mxu0 0.0
    %2567 = vmatpush1.msra.mxu0 0.0
    %2568 = vmatprep.subr.mxu0 0.0
    %2569 = vmatpush1.msra.mxu0 0.0
    %2570 = vmatprep.subr.mxu0 0.0
    %2571 = vmatpush1.msra.mxu0 0.0
    %2572 = vmatprep.subr.mxu0 0.0
    %2573 = vmatpush1.msra.mxu0 0.0
    %2574 = vmatprep.subr.mxu0 0.0
    %2575 = vmatpush1.msra.mxu0 0.0
    %2576 = vmatprep.subr.mxu0 0.0
    %2577 = vmatpush1.msra.mxu0 0.0
    %2578 = vmatprep.subr.mxu0 0.0
    %2579 = vmatpush1.msra.mxu0 0.0
    %2580 = vmatprep.subr.mxu0 0.0
    %2581 = vmatpush1.msra.mxu0 0.0
    %2582 = vmatprep.subr.mxu0 0.0
    %2583 = vmatpush1.msra.mxu0 0.0
    %2584 = vmatprep.subr.mxu0 0.0
    %2585 = vmatpush1.msra.mxu0 0.0
    %2586 = vmatprep.subr.mxu0 0.0
    %2587 = vmatpush1.msra.mxu0 0.0
    %2588 = vmatprep.subr.mxu0 0.0
    %2589 = vmatpush1.msra.mxu0 0.0
    %2590 = vmatprep.subr.mxu0 0.0
    %2591 = vmatpush1.msra.mxu0 0.0
    %2592 = vmatprep.subr.mxu0 0.0
    %2593 = vmatpush1.msra.mxu0 0.0
    %2594 = vmatprep.subr.mxu0 0.0
    %2595 = vmatpush1.msra.mxu0 0.0
    %2596 = vmatprep.subr.mxu0 0.0
    %2597 = vmatpush1.msra.mxu0 0.0
    %2598 = vmatprep.subr.mxu0 0.0
    %2599 = vmatpush1.msra.mxu0 0.0
    %2600 = vmatprep.subr.mxu0 0.0
    %2601 = vmatpush1.msra.mxu0 0.0
    %2602 = vmatprep.subr.mxu0 0.0
    %2603 = vmatpush1.msra.mxu0 0.0
    %2604 = vmatprep.subr.mxu0 0.0
    %2605 = vmatpush1.msra.mxu0 0.0
    %2606 = vmatprep.subr.mxu0 0.0
    %2607 = vmatpush1.msra.mxu0 0.0
    %2608 = vmatprep.subr.mxu0 0.0
    %2609 = vmatpush1.msra.mxu0 0.0
    %2610 = vmatprep.mubr.f32.mxu0 0.0
    %2611 = vmatmul.mubr.f32.gmra.mrb[0].mxu0 %v2541
    %v2612 = vpop.f32.mrb[0].mxu0
    %v2613 = vadd.f32 0.0, %v2612
    %v2614 = vpop.f32.mrb[0].mxu0
    %2615 = vmatprep.mubr.f32.mxu0 0.0
    %2616 = vmatmul.mubr.f32.gmra.mrb[0].mxu0 %v2544
    %v2617 = vpop.f32.mrb[0].mxu0
    %v2618 = vadd.f32 0.0, %v2617
    %v2619 = vpop.f32.mrb[0].mxu0
    %2620 = vdwg.mxu0
    %2623 = vrot.lane.b32.xlu0 %v2187, 8
    %v2624 = vpop.permute.xlu0 %2623
    %2625 = vrot.lane.b32.xlu0 %v2192, 8
    %v2626 = vpop.permute.xlu0 %2625
    %2631 = vrot.lane.b32.xlu0 %v2400, 16
    %v2632 = vpop.permute.xlu0 %2631
    %2633 = vrot.lane.b32.xlu0 %v2405, 16
    %v2634 = vpop.permute.xlu0 %2633
    %2639 = vrot.lane.b32.xlu0 %v2613, 24
    %v2640 = vpop.permute.xlu0 %2639
    %2641 = vrot.lane.b32.xlu0 %v2618, 24
    %v2642 = vpop.permute.xlu0 %2641
    %v2645 = vsel %vm195, %v1974, %v2624
    %v2646 = vsel %vm195, %v1979, %v2626
    %v2647 = vsel %vm1768, %v2645, %v2632
    %v2648 = vsel %vm1768, %v2646, %v2634
    %v2649 = vsel %vm856, %v2647, %v2640
    %v2650 = vsel %vm856, %v2648, %v2642
    %v2651 = vmul.f32 %v1772, 0.5
    %v2652 = vmul.f32 %v1773, 0.5
    %v2653 = vmul.f32 %v1774, 0.5
    %v2654 = vmul.f32 %v1772, 0.70710677
    %v2655 = vmul.f32 %v1773, 0.70710677
    %v2656 = vmul.f32 %v1774, 0.70710677
    %v2657 = vand.u32 2147483647, %v2654
    %v2658 = vand.u32 2147483647, %v2655
    %v2659 = vand.u32 2147483647, %v2656
    %v2660 = vmul.f32 %v2657, 0.3275911
    %v2661 = vmul.f32 %v2658, 0.3275911
    %v2662 = vmul.f32 %v2659, 0.3275911
    %v2663 = vadd.f32 %v2660, 1.0
    %v2664 = vadd.f32 %v2661, 1.0
    %v2665 = vadd.f32 %v2662, 1.0
    %v2666 = vrcp.pop %v2663
    %v2667 = vmul.f32 1.0, %v2666
    %v2668 = vrcp.pop %v2664
    %v2669 = vmul.f32 1.0, %v2668
    %v2670 = vrcp.pop %v2665
    %v2671 = vmul.f32 1.0, %v2670
    %v2672 = vmul.f32 %v2667, 1.0614054
    %v2673 = vmul.f32 %v2669, 1.0614054
    %v2674 = vmul.f32 %v2671, 1.0614054
    %v2675 = vsub.f32 %v2672, 1.4531521
    %v2676 = vsub.f32 %v2673, 1.4531521
    %v2677 = vsub.f32 %v2674, 1.4531521
    %v2678 = vmul.f32 %v2675, %v2667
    %v2679 = vmul.f32 %v2676, %v2669
    %v2680 = vmul.f32 %v2677, %v2671
    %v2681 = vadd.f32 %v2678, 1.4214138
    %v2682 = vadd.f32 %v2679, 1.4214138
    %v2683 = vadd.f32 %v2680, 1.4214138
    %v2684 = vmul.f32 %v2681, %v2667
    %v2685 = vmul.f32 %v2682, %v2669
    %v2686 = vmul.f32 %v2683, %v2671
    %v2687 = vsub.f32 %v2684, 0.28449672
    %v2688 = vsub.f32 %v2685, 0.28449672
    %v2689 = vsub.f32 %v2686, 0.28449672
    %v2690 = vmul.f32 %v2687, %v2667
    %v2691 = vmul.f32 %v2688, %v2669
    %v2692 = vmul.f32 %v2689, %v2671
    %v2693 = vadd.f32 %v2690, 0.2548296
    %v2694 = vadd.f32 %v2691, 0.2548296
    %v2695 = vadd.f32 %v2692, 0.2548296
    %v2696 = vmul.f32 %v2693, %v2667
    %v2697 = vmul.f32 %v2694, %v2669
    %v2698 = vmul.f32 %v2695, %v2671
    %v2699 = vsub.f32 0.0, %v2657
    %v2700 = vsub.f32 0.0, %v2658
    %v2701 = vsub.f32 0.0, %v2659
    %v2702 = vmul.f32 %v2699, %v2657
    %v2703 = vmul.f32 %v2700, %v2658
    %v2704 = vmul.f32 %v2701, %v2659
    %v2705 = vmul.f32 %v2702, 1.442695
    %v2706 = vpow.pop %v2705
    %v2707 = vmul.f32 %v2703, 1.442695
    %v2708 = vpow.pop %v2707
    %v2709 = vmul.f32 %v2704, 1.442695
    %v2710 = vpow.pop %v2709
    %v2711 = vmul.f32 %v2696, %v2706
    %v2712 = vmul.f32 %v2697, %v2708
    %v2713 = vmul.f32 %v2698, %v2710
    %v2714 = vsub.f32 1.0, %v2711
    %v2715 = vsub.f32 1.0, %v2712
    %v2716 = vsub.f32 1.0, %v2713
    %vm2717 = vcmp.ge.f32.partialorder %v2654, 0.0
    %vm2718 = vcmp.ge.f32.partialorder %v2655, 0.0
    %vm2719 = vcmp.ge.f32.partialorder %v2656, 0.0
    %v2720 = vsub.f32 0.0, %v2714
    %v2721 = vsub.f32 0.0, %v2715
    %v2722 = vsub.f32 0.0, %v2716
    %v2723 = vsel %vm2717, %v2714, %v2720
    %v2724 = vsel %vm2718, %v2715, %v2721
    %v2725 = vsel %vm2719, %v2716, %v2722
    %v2726 = vadd.f32 %v2723, 1.0
    %v2727 = vadd.f32 %v2724, 1.0
    %v2728 = vadd.f32 %v2725, 1.0
    %v2729 = vmul.f32 %v2651, %v2726
    %v2730 = vmul.f32 %v2652, %v2727
    %v2731 = vmul.f32 %v2653, %v2728
    %v2732 = vld [vmem:[%s13] sm:$0xff]
    %v2733 = vld [vmem:[%s13 + $0x8] sm:$0xff]
    %v2734 = vld [vmem:[%s13 + $0x10] sm:$0xff]
    %v2735 = vld [vmem:[%s13 + $0x18] sm:$0xff]
    %v2736 = vld [vmem:[%s14] sm:$0x1]
    %v2738 = vlaneseq
    %v2739 = vshrl.u32 %v2738, 7
    %v2740 = vsub.s32 0, %v2739
    %v2741 = vrot.slane %v2736, %v2740
    %v2744 = vsel %vm482, %v2729, 0
    %v2747 = vsel %vm482, %v2730, 0
    %v2750 = vsel %vm482, %v2731, 0
    %2752 = vmatprep.subr.mxu0 0.0
    %2753 = vmatpush1.msra.mxu0 %v2732
    %2754 = vmatprep.subr.mxu0 0.0
    %2755 = vmatpush1.msra.mxu0 %v2733
    %2756 = vmatprep.subr.mxu0 0.0
    %2757 = vmatpush1.msra.mxu0 %v2734
    %2758 = vmatprep.subr.mxu0 0.0
    %2759 = vmatpush1.msra.mxu0 %v2735
    %2760 = vmatprep.subr.mxu0 0.0
    %2761 = vmatpush1.msra.mxu0 0.0
    %2762 = vmatprep.subr.mxu0 0.0
    %2763 = vmatpush1.msra.mxu0 0.0
    %2764 = vmatprep.subr.mxu0 0.0
    %2765 = vmatpush1.msra.mxu0 0.0
    %2766 = vmatprep.subr.mxu0 0.0
    %2767 = vmatpush1.msra.mxu0 0.0
    %2768 = vmatprep.subr.mxu0 0.0
    %2769 = vmatpush1.msra.mxu0 0.0
    %2770 = vmatprep.subr.mxu0 0.0
    %2771 = vmatpush1.msra.mxu0 0.0
    %2772 = vmatprep.subr.mxu0 0.0
    %2773 = vmatpush1.msra.mxu0 0.0
    %2774 = vmatprep.subr.mxu0 0.0
    %2775 = vmatpush1.msra.mxu0 0.0
    %2776 = vmatprep.subr.mxu0 0.0
    %2777 = vmatpush1.msra.mxu0 0.0
    %2778 = vmatprep.subr.mxu0 0.0
    %2779 = vmatpush1.msra.mxu0 0.0
    %2780 = vmatprep.subr.mxu0 0.0
    %2781 = vmatpush1.msra.mxu0 0.0
    %2782 = vmatprep.subr.mxu0 0.0
    %2783 = vmatpush1.msra.mxu0 0.0
    %2784 = vmatprep.subr.mxu0 0.0
    %2785 = vmatpush1.msra.mxu0 0.0
    %2786 = vmatprep.subr.mxu0 0.0
    %2787 = vmatpush1.msra.mxu0 0.0
    %2788 = vmatprep.subr.mxu0 0.0
    %2789 = vmatpush1.msra.mxu0 0.0
    %2790 = vmatprep.subr.mxu0 0.0
    %2791 = vmatpush1.msra.mxu0 0.0
    %2792 = vmatprep.subr.mxu0 0.0
    %2793 = vmatpush1.msra.mxu0 0.0
    %2794 = vmatprep.subr.mxu0 0.0
    %2795 = vmatpush1.msra.mxu0 0.0
    %2796 = vmatprep.subr.mxu0 0.0
    %2797 = vmatpush1.msra.mxu0 0.0
    %2798 = vmatprep.subr.mxu0 0.0
    %2799 = vmatpush1.msra.mxu0 0.0
    %2800 = vmatprep.subr.mxu0 0.0
    %2801 = vmatpush1.msra.mxu0 0.0
    %2802 = vmatprep.subr.mxu0 0.0
    %2803 = vmatpush1.msra.mxu0 0.0
    %2804 = vmatprep.subr.mxu0 0.0
    %2805 = vmatpush1.msra.mxu0 0.0
    %2806 = vmatprep.subr.mxu0 0.0
    %2807 = vmatpush1.msra.mxu0 0.0
    %2808 = vmatprep.subr.mxu0 0.0
    %2809 = vmatpush1.msra.mxu0 0.0
    %2810 = vmatprep.subr.mxu0 0.0
    %2811 = vmatpush1.msra.mxu0 0.0
    %2812 = vmatprep.subr.mxu0 0.0
    %2813 = vmatpush1.msra.mxu0 0.0
    %2814 = vmatprep.subr.mxu0 0.0
    %2815 = vmatpush1.msra.mxu0 0.0
    %2816 = vmatprep.mubr.f32.mxu0 0.0
    %2817 = vmatmul.mubr.f32.gmra.mrb[0].mxu0 %v2744
    %v2818 = vpop.f32.mrb[0].mxu0
    %v2819 = vadd.f32 %v2741, %v2818
    %v2820 = vpop.f32.mrb[0].mxu0
    %2821 = vmatprep.mubr.f32.mxu0 0.0
    %2822 = vmatmul.mubr.f32.gmra.mrb[0].mxu0 %v2747
    %v2823 = vpop.f32.mrb[0].mxu0
    %v2824 = vadd.f32 %v2741, %v2823
    %v2825 = vpop.f32.mrb[0].mxu0
    %2826 = vmatprep.mubr.f32.mxu0 0.0
    %2827 = vmatmul.mubr.f32.gmra.mrb[0].mxu0 %v2750
    %v2828 = vpop.f32.mrb[0].mxu0
    %v2829 = vadd.f32 %v2741, %v2828
    %v2830 = vpop.f32.mrb[0].mxu0
    %2831 = vdwg.mxu0
    %s2832 = sld [smem:[#allocation18]]
    %v2833 = vstv %s2832
    %v2834 = vmul.f32 %v2833, %v2819
    %v2835 = vmul.f32 %v2833, %v2824
    %v2836 = vmul.f32 %v2833, %v2829
    %s2837 = ssub.f32 1.0, %s2832
    %v2838 = vstv %s2837
    %v2839 = vmul.f32 %v2838, %v458
    %v2840 = vmul.f32 %v2838, %v459
    %v2841 = vmul.f32 %v2838, %v460
    %v2842 = vadd.f32 %v2834, %v2839
    %v2843 = vadd.f32 %v2835, %v2840
    %v2844 = vadd.f32 %v2836, %v2841
    %v2845 = vmul.f32 %v2649, 0.5
    %v2846 = vmul.f32 %v2650, 0.5
    %v2847 = vmul.f32 %v2649, 0.70710677
    %v2848 = vmul.f32 %v2650, 0.70710677
    %v2849 = vand.u32 2147483647, %v2847
    %v2850 = vand.u32 2147483647, %v2848
    %v2851 = vmul.f32 %v2849, 0.3275911
    %v2852 = vmul.f32 %v2850, 0.3275911
    %v2853 = vadd.f32 %v2851, 1.0
    %v2854 = vadd.f32 %v2852, 1.0
    %v2855 = vrcp.pop %v2853
    %v2856 = vmul.f32 1.0, %v2855
    %v2857 = vrcp.pop %v2854
    %v2858 = vmul.f32 1.0, %v2857
    %v2859 = vmul.f32 %v2856, 1.0614054
    %v2860 = vmul.f32 %v2858, 1.0614054
    %v2861 = vsub.f32 %v2859, 1.4531521
    %v2862 = vsub.f32 %v2860, 1.4531521
    %v2863 = vmul.f32 %v2861, %v2856
    %v2864 = vmul.f32 %v2862, %v2858
    %v2865 = vadd.f32 %v2863, 1.4214138
    %v2866 = vadd.f32 %v2864, 1.4214138
    %v2867 = vmul.f32 %v2865, %v2856
    %v2868 = vmul.f32 %v2866, %v2858
    %v2869 = vsub.f32 %v2867, 0.28449672
    %v2870 = vsub.f32 %v2868, 0.28449672
    %v2871 = vmul.f32 %v2869, %v2856
    %v2872 = vmul.f32 %v2870, %v2858
    %v2873 = vadd.f32 %v2871, 0.2548296
    %v2874 = vadd.f32 %v2872, 0.2548296
    %v2875 = vmul.f32 %v2873, %v2856
    %v2876 = vmul.f32 %v2874, %v2858
    %v2877 = vsub.f32 0.0, %v2849
    %v2878 = vsub.f32 0.0, %v2850
    %v2879 = vmul.f32 %v2877, %v2849
    %v2880 = vmul.f32 %v2878, %v2850
    %v2881 = vmul.f32 %v2879, 1.442695
    %v2882 = vpow.pop %v2881
    %v2883 = vmul.f32 %v2880, 1.442695
    %v2884 = vpow.pop %v2883
    %v2885 = vmul.f32 %v2875, %v2882
    %v2886 = vmul.f32 %v2876, %v2884
    %v2887 = vsub.f32 1.0, %v2885
    %v2888 = vsub.f32 1.0, %v2886
    %vm2889 = vcmp.ge.f32.partialorder %v2847, 0.0
    %vm2890 = vcmp.ge.f32.partialorder %v2848, 0.0
    %v2891 = vsub.f32 0.0, %v2887
    %v2892 = vsub.f32 0.0, %v2888
    %v2893 = vsel %vm2889, %v2887, %v2891
    %v2894 = vsel %vm2890, %v2888, %v2892
    %v2895 = vadd.f32 %v2893, 1.0
    %v2896 = vadd.f32 %v2894, 1.0
    %v2897 = vmul.f32 %v2845, %v2895
    %v2898 = vmul.f32 %v2846, %v2896
    %s2899 = scalar_lea.vmem %s13, 32
    %v2900 = vld [vmem:[%s2899] sm:$0xff]
    %v2901 = vld [vmem:[%s2899 + $0x8] sm:$0xff]
    %v2902 = vld [vmem:[%s2899 + $0x10] sm:$0xff]
    %v2903 = vld [vmem:[%s2899 + $0x18] sm:$0xff]
    %s2904 = scalar_lea.vmem %s14, 1
    %v2905 = vld [vmem:[%s2904] sm:$0x1]
    %v2907 = vlaneseq
    %v2908 = vshrl.u32 %v2907, 7
    %v2909 = vsub.s32 0, %v2908
    %v2910 = vrot.slane %v2905, %v2909
    %v2913 = vsel %vm482, %v2897, 0
    %v2916 = vsel %vm482, %v2898, 0
    %2918 = vmatprep.subr.mxu0 0.0
    %2919 = vmatpush1.msra.mxu0 %v2900
    %2920 = vmatprep.subr.mxu0 0.0
    %2921 = vmatpush1.msra.mxu0 %v2901
    %2922 = vmatprep.subr.mxu0 0.0
    %2923 = vmatpush1.msra.mxu0 %v2902
    %2924 = vmatprep.subr.mxu0 0.0
    %2925 = vmatpush1.msra.mxu0 %v2903
    %2926 = vmatprep.subr.mxu0 0.0
    %2927 = vmatpush1.msra.mxu0 0.0
    %2928 = vmatprep.subr.mxu0 0.0
    %2929 = vmatpush1.msra.mxu0 0.0
    %2930 = vmatprep.subr.mxu0 0.0
    %2931 = vmatpush1.msra.mxu0 0.0
    %2932 = vmatprep.subr.mxu0 0.0
    %2933 = vmatpush1.msra.mxu0 0.0
    %2934 = vmatprep.subr.mxu0 0.0
    %2935 = vmatpush1.msra.mxu0 0.0
    %2936 = vmatprep.subr.mxu0 0.0
    %2937 = vmatpush1.msra.mxu0 0.0
    %2938 = vmatprep.subr.mxu0 0.0
    %2939 = vmatpush1.msra.mxu0 0.0
    %2940 = vmatprep.subr.mxu0 0.0
    %2941 = vmatpush1.msra.mxu0 0.0
    %2942 = vmatprep.subr.mxu0 0.0
    %2943 = vmatpush1.msra.mxu0 0.0
    %2944 = vmatprep.subr.mxu0 0.0
    %2945 = vmatpush1.msra.mxu0 0.0
    %2946 = vmatprep.subr.mxu0 0.0
    %2947 = vmatpush1.msra.mxu0 0.0
    %2948 = vmatprep.subr.mxu0 0.0
    %2949 = vmatpush1.msra.mxu0 0.0
    %2950 = vmatprep.subr.mxu0 0.0
    %2951 = vmatpush1.msra.mxu0 0.0
    %2952 = vmatprep.subr.mxu0 0.0
    %2953 = vmatpush1.msra.mxu0 0.0
    %2954 = vmatprep.subr.mxu0 0.0
    %2955 = vmatpush1.msra.mxu0 0.0
    %2956 = vmatprep.subr.mxu0 0.0
    %2957 = vmatpush1.msra.mxu0 0.0
    %2958 = vmatprep.subr.mxu0 0.0
    %2959 = vmatpush1.msra.mxu0 0.0
    %2960 = vmatprep.subr.mxu0 0.0
    %2961 = vmatpush1.msra.mxu0 0.0
    %2962 = vmatprep.subr.mxu0 0.0
    %2963 = vmatpush1.msra.mxu0 0.0
    %2964 = vmatprep.subr.mxu0 0.0
    %2965 = vmatpush1.msra.mxu0 0.0
    %2966 = vmatprep.subr.mxu0 0.0
    %2967 = vmatpush1.msra.mxu0 0.0
    %2968 = vmatprep.subr.mxu0 0.0
    %2969 = vmatpush1.msra.mxu0 0.0
    %2970 = vmatprep.subr.mxu0 0.0
    %2971 = vmatpush1.msra.mxu0 0.0
    %2972 = vmatprep.subr.mxu0 0.0
    %2973 = vmatpush1.msra.mxu0 0.0
    %2974 = vmatprep.subr.mxu0 0.0
    %2975 = vmatpush1.msra.mxu0 0.0
    %2976 = vmatprep.subr.mxu0 0.0
    %2977 = vmatpush1.msra.mxu0 0.0
    %2978 = vmatprep.subr.mxu0 0.0
    %2979 = vmatpush1.msra.mxu0 0.0
    %2980 = vmatprep.subr.mxu0 0.0
    %2981 = vmatpush1.msra.mxu0 0.0
    %2982 = vmatprep.mubr.f32.mxu0 0.0
    %2983 = vmatmul.mubr.f32.gmra.mrb[0].mxu0 %v2913
    %v2984 = vpop.f32.mrb[0].mxu0
    %v2985 = vadd.f32 %v2910, %v2984
    %v2986 = vpop.f32.mrb[0].mxu0
    %2987 = vmatprep.mubr.f32.mxu0 0.0
    %2988 = vmatmul.mubr.f32.gmra.mrb[0].mxu0 %v2916
    %v2989 = vpop.f32.mrb[0].mxu0
    %v2990 = vadd.f32 %v2910, %v2989
    %v2991 = vpop.f32.mrb[0].mxu0
    %2992 = vdwg.mxu0
    %s2993 = sld [smem:[#allocation18 + $0x1]]
    %v2994 = vstv %s2993
    %v2995 = vmul.f32 %v2994, %v2985
    %v2996 = vmul.f32 %v2994, %v2990
    %s2997 = ssub.f32 1.0, %s2993
    %v2998 = vstv %s2997
    %v2999 = vmul.f32 %v2998, %v281
    %v3000 = vmul.f32 %v2998, %v282
    %v3001 = vadd.f32 %v2995, %v2999
    %v3002 = vadd.f32 %v2996, %v3000
    %s3003 = scalar_lea.vmem [#allocation15], 96
    %v3004 = vld [vmem:[%s3003] sm:$0xff]
    %v3005 = vld [vmem:[%s3003 + $0x8] sm:$0xff]
    %v3006 = vld [vmem:[%s3003 + $0x10] sm:$0xff]
    %v3007 = vld [vmem:[%s3003 + $0x18] sm:$0xff]
    %s3008 = scalar_lea.vmem [#allocation17], 3
    %v3009 = vld [vmem:[%s3008] sm:$0x1]
    %v3011 = vlaneseq
    %v3012 = vshrl.u32 %v3011, 7
    %v3013 = vsub.s32 0, %v3012
    %v3014 = vrot.slane %v3009, %v3013
    %v3017 = vsel %vm482, %v3001, 0
    %v3020 = vsel %vm482, %v3002, 0
    %3022 = vmatprep.subr.mxu0 0.0
    %3023 = vmatpush1.msra.mxu0 %v3004
    %3024 = vmatprep.subr.mxu0 0.0
    %3025 = vmatpush1.msra.mxu0 %v3005
    %3026 = vmatprep.subr.mxu0 0.0
    %3027 = vmatpush1.msra.mxu0 %v3006
    %3028 = vmatprep.subr.mxu0 0.0
    %3029 = vmatpush1.msra.mxu0 %v3007
    %3030 = vmatprep.subr.mxu0 0.0
    %3031 = vmatpush1.msra.mxu0 0.0
    %3032 = vmatprep.subr.mxu0 0.0
    %3033 = vmatpush1.msra.mxu0 0.0
    %3034 = vmatprep.subr.mxu0 0.0
    %3035 = vmatpush1.msra.mxu0 0.0
    %3036 = vmatprep.subr.mxu0 0.0
    %3037 = vmatpush1.msra.mxu0 0.0
    %3038 = vmatprep.subr.mxu0 0.0
    %3039 = vmatpush1.msra.mxu0 0.0
    %3040 = vmatprep.subr.mxu0 0.0
    %3041 = vmatpush1.msra.mxu0 0.0
    %3042 = vmatprep.subr.mxu0 0.0
    %3043 = vmatpush1.msra.mxu0 0.0
    %3044 = vmatprep.subr.mxu0 0.0
    %3045 = vmatpush1.msra.mxu0 0.0
    %3046 = vmatprep.subr.mxu0 0.0
    %3047 = vmatpush1.msra.mxu0 0.0
    %3048 = vmatprep.subr.mxu0 0.0
    %3049 = vmatpush1.msra.mxu0 0.0
    %3050 = vmatprep.subr.mxu0 0.0
    %3051 = vmatpush1.msra.mxu0 0.0
    %3052 = vmatprep.subr.mxu0 0.0
    %3053 = vmatpush1.msra.mxu0 0.0
    %3054 = vmatprep.subr.mxu0 0.0
    %3055 = vmatpush1.msra.mxu0 0.0
    %3056 = vmatprep.subr.mxu0 0.0
    %3057 = vmatpush1.msra.mxu0 0.0
    %3058 = vmatprep.subr.mxu0 0.0
    %3059 = vmatpush1.msra.mxu0 0.0
    %3060 = vmatprep.subr.mxu0 0.0
    %3061 = vmatpush1.msra.mxu0 0.0
    %3062 = vmatprep.subr.mxu0 0.0
    %3063 = vmatpush1.msra.mxu0 0.0
    %3064 = vmatprep.subr.mxu0 0.0
    %3065 = vmatpush1.msra.mxu0 0.0
    %3066 = vmatprep.subr.mxu0 0.0
    %3067 = vmatpush1.msra.mxu0 0.0
    %3068 = vmatprep.subr.mxu0 0.0
    %3069 = vmatpush1.msra.mxu0 0.0
    %3070 = vmatprep.subr.mxu0 0.0
    %3071 = vmatpush1.msra.mxu0 0.0
    %3072 = vmatprep.subr.mxu0 0.0
    %3073 = vmatpush1.msra.mxu0 0.0
    %3074 = vmatprep.subr.mxu0 0.0
    %3075 = vmatpush1.msra.mxu0 0.0
    %3076 = vmatprep.subr.mxu0 0.0
    %3077 = vmatpush1.msra.mxu0 0.0
    %3078 = vmatprep.subr.mxu0 0.0
    %3079 = vmatpush1.msra.mxu0 0.0
    %3080 = vmatprep.subr.mxu0 0.0
    %3081 = vmatpush1.msra.mxu0 0.0
    %3082 = vmatprep.subr.mxu0 0.0
    %3083 = vmatpush1.msra.mxu0 0.0
    %3084 = vmatprep.subr.mxu0 0.0
    %3085 = vmatpush1.msra.mxu0 0.0
    %3086 = vmatprep.mubr.f32.mxu0 0.0
    %3087 = vmatmul.mubr.f32.gmra.mrb[0].mxu0 %v3017
    %v3088 = vpop.f32.mrb[0].mxu0
    %v3089 = vadd.f32 %v3014, %v3088
    %v3090 = vpop.f32.mrb[0].mxu0
    %3091 = vmatprep.mubr.f32.mxu0 0.0
    %3092 = vmatmul.mubr.f32.gmra.mrb[0].mxu0 %v3020
    %v3093 = vpop.f32.mrb[0].mxu0
    %v3094 = vadd.f32 %v3014, %v3093
    %v3095 = vpop.f32.mrb[0].mxu0
    %3096 = vdwg.mxu0
    %s3097 = scalar_lea.vmem [#allocation15], 128
    %v3098 = vld [vmem:[%s3097] sm:$0xff]
    %v3099 = vld [vmem:[%s3097 + $0x8] sm:$0xff]
    %v3100 = vld [vmem:[%s3097 + $0x10] sm:$0xff]
    %v3101 = vld [vmem:[%s3097 + $0x18] sm:$0xff]
    %s3102 = scalar_lea.vmem [#allocation17], 4
    %v3103 = vld [vmem:[%s3102] sm:$0x1]
    %v3105 = vlaneseq
    %v3106 = vshrl.u32 %v3105, 7
    %v3107 = vsub.s32 0, %v3106
    %v3108 = vrot.slane %v3103, %v3107
    %3110 = vmatprep.subr.mxu0 0.0
    %3111 = vmatpush1.msra.mxu0 %v3098
    %3112 = vmatprep.subr.mxu0 0.0
    %3113 = vmatpush1.msra.mxu0 %v3099
    %3114 = vmatprep.subr.mxu0 0.0
    %3115 = vmatpush1.msra.mxu0 %v3100
    %3116 = vmatprep.subr.mxu0 0.0
    %3117 = vmatpush1.msra.mxu0 %v3101
    %3118 = vmatprep.subr.mxu0 0.0
    %3119 = vmatpush1.msra.mxu0 0.0
    %3120 = vmatprep.subr.mxu0 0.0
    %3121 = vmatpush1.msra.mxu0 0.0
    %3122 = vmatprep.subr.mxu0 0.0
    %3123 = vmatpush1.msra.mxu0 0.0
    %3124 = vmatprep.subr.mxu0 0.0
    %3125 = vmatpush1.msra.mxu0 0.0
    %3126 = vmatprep.subr.mxu0 0.0
    %3127 = vmatpush1.msra.mxu0 0.0
    %3128 = vmatprep.subr.mxu0 0.0
    %3129 = vmatpush1.msra.mxu0 0.0
    %3130 = vmatprep.subr.mxu0 0.0
    %3131 = vmatpush1.msra.mxu0 0.0
    %3132 = vmatprep.subr.mxu0 0.0
    %3133 = vmatpush1.msra.mxu0 0.0
    %3134 = vmatprep.subr.mxu0 0.0
    %3135 = vmatpush1.msra.mxu0 0.0
    %3136 = vmatprep.subr.mxu0 0.0
    %3137 = vmatpush1.msra.mxu0 0.0
    %3138 = vmatprep.subr.mxu0 0.0
    %3139 = vmatpush1.msra.mxu0 0.0
    %3140 = vmatprep.subr.mxu0 0.0
    %3141 = vmatpush1.msra.mxu0 0.0
    %3142 = vmatprep.subr.mxu0 0.0
    %3143 = vmatpush1.msra.mxu0 0.0
    %3144 = vmatprep.subr.mxu0 0.0
    %3145 = vmatpush1.msra.mxu0 0.0
    %3146 = vmatprep.subr.mxu0 0.0
    %3147 = vmatpush1.msra.mxu0 0.0
    %3148 = vmatprep.subr.mxu0 0.0
    %3149 = vmatpush1.msra.mxu0 0.0
    %3150 = vmatprep.subr.mxu0 0.0
    %3151 = vmatpush1.msra.mxu0 0.0
    %3152 = vmatprep.subr.mxu0 0.0
    %3153 = vmatpush1.msra.mxu0 0.0
    %3154 = vmatprep.subr.mxu0 0.0
    %3155 = vmatpush1.msra.mxu0 0.0
    %3156 = vmatprep.subr.mxu0 0.0
    %3157 = vmatpush1.msra.mxu0 0.0
    %3158 = vmatprep.subr.mxu0 0.0
    %3159 = vmatpush1.msra.mxu0 0.0
    %3160 = vmatprep.subr.mxu0 0.0
    %3161 = vmatpush1.msra.mxu0 0.0
    %3162 = vmatprep.subr.mxu0 0.0
    %3163 = vmatpush1.msra.mxu0 0.0
    %3164 = vmatprep.subr.mxu0 0.0
    %3165 = vmatpush1.msra.mxu0 0.0
    %3166 = vmatprep.subr.mxu0 0.0
    %3167 = vmatpush1.msra.mxu0 0.0
    %3168 = vmatprep.subr.mxu0 0.0
    %3169 = vmatpush1.msra.mxu0 0.0
    %3170 = vmatprep.subr.mxu0 0.0
    %3171 = vmatpush1.msra.mxu0 0.0
    %3172 = vmatprep.subr.mxu0 0.0
    %3173 = vmatpush1.msra.mxu0 0.0
    %3174 = vmatprep.mubr.f32.mxu0 0.0
    %3175 = vmatmul.mubr.f32.gmra.mrb[0].mxu0 %v578
    %v3176 = vpop.f32.mrb[0].mxu0
    %v3177 = vadd.f32 %v3108, %v3176
    %v3178 = vpop.f32.mrb[0].mxu0
    %3179 = vdwg.mxu0
    %s3180 = scalar_lea.vmem [#allocation15], 160
    %v3181 = vld [vmem:[%s3180] sm:$0xff]
    %v3182 = vld [vmem:[%s3180 + $0x8] sm:$0xff]
    %v3183 = vld [vmem:[%s3180 + $0x10] sm:$0xff]
    %v3184 = vld [vmem:[%s3180 + $0x18] sm:$0xff]
    %s3185 = scalar_lea.vmem [#allocation17], 5
    %v3186 = vld [vmem:[%s3185] sm:$0x1]
    %v3188 = vlaneseq
    %v3189 = vshrl.u32 %v3188, 7
    %v3190 = vsub.s32 0, %v3189
    %v3191 = vrot.slane %v3186, %v3190
    %v3194 = vsel %vm482, %v2842, 0
    %v3197 = vsel %vm482, %v2843, 0
    %v3200 = vsel %vm482, %v2844, 0
    %3202 = vmatprep.subr.mxu0 0.0
    %3203 = vmatpush1.msra.mxu0 %v3181
    %3204 = vmatprep.subr.mxu0 0.0
    %3205 = vmatpush1.msra.mxu0 %v3182
    %3206 = vmatprep.subr.mxu0 0.0
    %3207 = vmatpush1.msra.mxu0 %v3183
    %3208 = vmatprep.subr.mxu0 0.0
    %3209 = vmatpush1.msra.mxu0 %v3184
    %3210 = vmatprep.subr.mxu0 0.0
    %3211 = vmatpush1.msra.mxu0 0.0
    %3212 = vmatprep.subr.mxu0 0.0
    %3213 = vmatpush1.msra.mxu0 0.0
    %3214 = vmatprep.subr.mxu0 0.0
    %3215 = vmatpush1.msra.mxu0 0.0
    %3216 = vmatprep.subr.mxu0 0.0
    %3217 = vmatpush1.msra.mxu0 0.0
    %3218 = vmatprep.subr.mxu0 0.0
    %3219 = vmatpush1.msra.mxu0 0.0
    %3220 = vmatprep.subr.mxu0 0.0
    %3221 = vmatpush1.msra.mxu0 0.0
    %3222 = vmatprep.subr.mxu0 0.0
    %3223 = vmatpush1.msra.mxu0 0.0
    %3224 = vmatprep.subr.mxu0 0.0
    %3225 = vmatpush1.msra.mxu0 0.0
    %3226 = vmatprep.subr.mxu0 0.0
    %3227 = vmatpush1.msra.mxu0 0.0
    %3228 = vmatprep.subr.mxu0 0.0
    %3229 = vmatpush1.msra.mxu0 0.0
    %3230 = vmatprep.subr.mxu0 0.0
    %3231 = vmatpush1.msra.mxu0 0.0
    %3232 = vmatprep.subr.mxu0 0.0
    %3233 = vmatpush1.msra.mxu0 0.0
    %3234 = vmatprep.subr.mxu0 0.0
    %3235 = vmatpush1.msra.mxu0 0.0
    %3236 = vmatprep.subr.mxu0 0.0
    %3237 = vmatpush1.msra.mxu0 0.0
    %3238 = vmatprep.subr.mxu0 0.0
    %3239 = vmatpush1.msra.mxu0 0.0
    %3240 = vmatprep.subr.mxu0 0.0
    %3241 = vmatpush1.msra.mxu0 0.0
    %3242 = vmatprep.subr.mxu0 0.0
    %3243 = vmatpush1.msra.mxu0 0.0
    %3244 = vmatprep.subr.mxu0 0.0
    %3245 = vmatpush1.msra.mxu0 0.0
    %3246 = vmatprep.subr.mxu0 0.0
    %3247 = vmatpush1.msra.mxu0 0.0
    %3248 = vmatprep.subr.mxu0 0.0
    %3249 = vmatpush1.msra.mxu0 0.0
    %3250 = vmatprep.subr.mxu0 0.0
    %3251 = vmatpush1.msra.mxu0 0.0
    %3252 = vmatprep.subr.mxu0 0.0
    %3253 = vmatpush1.msra.mxu0 0.0
    %3254 = vmatprep.subr.mxu0 0.0
    %3255 = vmatpush1.msra.mxu0 0.0
    %3256 = vmatprep.subr.mxu0 0.0
    %3257 = vmatpush1.msra.mxu0 0.0
    %3258 = vmatprep.subr.mxu0 0.0
    %3259 = vmatpush1.msra.mxu0 0.0
    %3260 = vmatprep.subr.mxu0 0.0
    %3261 = vmatpush1.msra.mxu0 0.0
    %3262 = vmatprep.subr.mxu0 0.0
    %3263 = vmatpush1.msra.mxu0 0.0
    %3264 = vmatprep.subr.mxu0 0.0
    %3265 = vmatpush1.msra.mxu0 0.0
    %3266 = vmatprep.mubr.f32.mxu0 0.0
    %3267 = vmatmul.mubr.f32.gmra.mrb[0].mxu0 %v3194
    %v3268 = vpop.f32.mrb[0].mxu0
    %v3269 = vadd.f32 %v3191, %v3268
    %v3270 = vpop.f32.mrb[0].mxu0
    %3271 = vmatprep.mubr.f32.mxu0 0.0
    %3272 = vmatmul.mubr.f32.gmra.mrb[0].mxu0 %v3197
    %v3273 = vpop.f32.mrb[0].mxu0
    %v3274 = vadd.f32 %v3191, %v3273
    %v3275 = vpop.f32.mrb[0].mxu0
    %3276 = vmatprep.mubr.f32.mxu0 0.0
    %3277 = vmatmul.mubr.f32.gmra.mrb[0].mxu0 %v3200
    %v3278 = vpop.f32.mrb[0].mxu0
    %v3279 = vadd.f32 %v3191, %v3278
    %v3280 = vpop.f32.mrb[0].mxu0
    %3281 = vdwg.mxu0
    %3285 = vrot.lane.b32.xlu0 %v3269, 96
    %v3286 = vpop.permute.xlu0 %3285
    %3287 = vrot.lane.b32.xlu0 %v3274, 96
    %v3288 = vpop.permute.xlu0 %3287
    %3289 = vrot.lane.b32.xlu0 %v3279, 96
    %v3290 = vpop.permute.xlu0 %3289
    %v3291 = vsel %vm195, %v3286, 0
    %v3293 = vsel %vm195, %v3288, 0
    %v3295 = vsel %vm195, %v3290, 0
    %v3298 = vsel %vm195, %v3177, 0
    %v3301 = vsel %vm195, %v3089, 0
    %v3304 = vsel %vm195, %v3094, 0
    %3306 = vmatprep.subr.mxu0 0.0
    %3307 = vmatpush1.xpose.msra.mxu0 %v3298
    %3308 = vmatprep.subr.mxu0 0.0
    %3309 = vmatpush1.xpose.msra.mxu0 %v3301
    %3310 = vmatprep.subr.mxu0 0.0
    %3311 = vmatpush1.xpose.msra.mxu0 %v3304
    %3312 = vmatprep.subr.mxu0 0.0
    %3313 = vmatpush1.xpose.msra.mxu0 0.0
    %3314 = vmatprep.subr.mxu0 0.0
    %3315 = vmatpush1.xpose.msra.mxu0 0.0
    %3316 = vmatprep.subr.mxu0 0.0
    %3317 = vmatpush1.xpose.msra.mxu0 0.0
    %3318 = vmatprep.subr.mxu0 0.0
    %3319 = vmatpush1.xpose.msra.mxu0 0.0
    %3320 = vmatprep.subr.mxu0 0.0
    %3321 = vmatpush1.xpose.msra.mxu0 0.0
    %3322 = vmatprep.subr.mxu0 0.0
    %3323 = vmatpush1.xpose.msra.mxu0 0.0
    %3324 = vmatprep.subr.mxu0 0.0
    %3325 = vmatpush1.xpose.msra.mxu0 0.0
    %3326 = vmatprep.subr.mxu0 0.0
    %3327 = vmatpush1.xpose.msra.mxu0 0.0
    %3328 = vmatprep.subr.mxu0 0.0
    %3329 = vmatpush1.xpose.msra.mxu0 0.0
    %3330 = vmatprep.subr.mxu0 0.0
    %3331 = vmatpush1.xpose.msra.mxu0 0.0
    %3332 = vmatprep.subr.mxu0 0.0
    %3333 = vmatpush1.xpose.msra.mxu0 0.0
    %3334 = vmatprep.subr.mxu0 0.0
    %3335 = vmatpush1.xpose.msra.mxu0 0.0
    %3336 = vmatprep.subr.mxu0 0.0
    %3337 = vmatpush1.xpose.msra.mxu0 0.0
    %3338 = vmatprep.subr.mxu0 0.0
    %3339 = vmatpush1.xpose.msra.mxu0 0.0
    %3340 = vmatprep.subr.mxu0 0.0
    %3341 = vmatpush1.xpose.msra.mxu0 0.0
    %3342 = vmatprep.subr.mxu0 0.0
    %3343 = vmatpush1.xpose.msra.mxu0 0.0
    %3344 = vmatprep.subr.mxu0 0.0
    %3345 = vmatpush1.xpose.msra.mxu0 0.0
    %3346 = vmatprep.subr.mxu0 0.0
    %3347 = vmatpush1.xpose.msra.mxu0 0.0
    %3348 = vmatprep.subr.mxu0 0.0
    %3349 = vmatpush1.xpose.msra.mxu0 0.0
    %3350 = vmatprep.subr.mxu0 0.0
    %3351 = vmatpush1.xpose.msra.mxu0 0.0
    %3352 = vmatprep.subr.mxu0 0.0
    %3353 = vmatpush1.xpose.msra.mxu0 0.0
    %3354 = vmatprep.subr.mxu0 0.0
    %3355 = vmatpush1.xpose.msra.mxu0 0.0
    %3356 = vmatprep.subr.mxu0 0.0
    %3357 = vmatpush1.xpose.msra.mxu0 0.0
    %3358 = vmatprep.subr.mxu0 0.0
    %3359 = vmatpush1.xpose.msra.mxu0 0.0
    %3360 = vmatprep.subr.mxu0 0.0
    %3361 = vmatpush1.xpose.msra.mxu0 0.0
    %3362 = vmatprep.subr.mxu0 0.0
    %3363 = vmatpush1.xpose.msra.mxu0 0.0
    %3364 = vmatprep.subr.mxu0 0.0
    %3365 = vmatpush1.xpose.msra.mxu0 0.0
    %3366 = vmatprep.subr.mxu0 0.0
    %3367 = vmatpush1.xpose.msra.mxu0 0.0
    %3368 = vmatprep.subr.mxu0 0.0
    %3369 = vmatpush1.xpose.msra.mxu0 0.0
    %3370 = vmatprep.mubr.f32.mxu0 0.0
    %3371 = vmatmul.mubr.f32.gmra.mrb[0].mxu0 %v3291
    %v3372 = vpop.f32.mrb[0].mxu0
    %v3373 = vadd.f32 %v464, %v3372
    %v3374 = vpop.f32.mrb[0].mxu0
    %3375 = vmatprep.mubr.f32.mxu0 0.0
    %3376 = vmatmul.mubr.f32.gmra.mrb[0].mxu0 %v3293
    %v3377 = vpop.f32.mrb[0].mxu0
    %v3378 = vadd.f32 %v465, %v3377
    %v3379 = vpop.f32.mrb[0].mxu0
    %3380 = vmatprep.mubr.f32.mxu0 0.0
    %3381 = vmatmul.mubr.f32.gmra.mrb[0].mxu0 %v3295
    %v3382 = vpop.f32.mrb[0].mxu0
    %v3383 = vadd.f32 %v466, %v3382
    %v3384 = vpop.f32.mrb[0].mxu0
    %3385 = vdwg.mxu0
    %v3386 = vsel %vm856, %v3373, -inf
    %3387 = vmax.xlane.f32.xlu0 %v3386
    %v3388 = vpop.xlane.xlu0 %3387
    %v3389 = vsel %vm856, %v3378, -inf
    %3390 = vmax.xlane.f32.xlu0 %v3389
    %v3391 = vpop.xlane.xlu0 %3390
    %v3392 = vsel %vm856, %v3383, -inf
    %3393 = vmax.xlane.f32.xlu0 %v3392
    %v3394 = vpop.xlane.xlu0 %3393
    %v3395 = vsub.f32 %v3373, %v3388
    %v3396 = vsub.f32 %v3378, %v3391
    %v3397 = vsub.f32 %v3383, %v3394
    %v3398 = vmul.f32 %v3395, 1.442695
    %v3399 = vpow.pop %v3398
    %v3400 = vmul.f32 %v3396, 1.442695
    %v3401 = vpow.pop %v3400
    %v3402 = vmul.f32 %v3397, 1.442695
    %v3403 = vpow.pop %v3402
    %v3404 = vmul.f32 %v3399, %v461
    %v3405 = vmul.f32 %v3401, %v462
    %v3406 = vmul.f32 %v3403, %v463
    %v3407 = vsel %vm856, %v3404, 0.0
    %3408 = vadd.xlane.f32.xlu0 %v3407
    %v3409 = vpop.xlane.xlu0 %3408
    %v3410 = vsel %vm856, %v3405, 0.0
    %3411 = vadd.xlane.f32.xlu0 %v3410
    %v3412 = vpop.xlane.xlu0 %3411
    %v3413 = vsel %vm856, %v3406, 0.0
    %3414 = vadd.xlane.f32.xlu0 %v3413
    %v3415 = vpop.xlane.xlu0 %3414
    %vm3416 = vcmp.gt.f32.partialorder %v3409, 0.0
    %vm3417 = vcmp.gt.f32.partialorder %v3412, 0.0
    %vm3418 = vcmp.gt.f32.partialorder %v3415, 0.0
    %v3419 = vsel %vm3416, %v3409, 1.0
    %v3420 = vsel %vm3417, %v3412, 1.0
    %v3421 = vsel %vm3418, %v3415, 1.0
    %v3422 = vrcp.pop %v3419
    %v3423 = vrcp.pop %v3420
    %v3424 = vrcp.pop %v3421
    %v3425 = vmul.f32 %v3404, %v3422
    %v3426 = vmul.f32 %v3405, %v3423
    %v3427 = vmul.f32 %v3406, %v3424
    %3428 = vrot.lane.b32.xlu0 %v3177, 64
    %v3429 = vpop.permute.xlu0 %3428
    %3430 = vrot.lane.b32.xlu0 %v3089, 64
    %v3431 = vpop.permute.xlu0 %3430
    %3432 = vrot.lane.b32.xlu0 %v3094, 64
    %v3433 = vpop.permute.xlu0 %3432
    %v3438 = vsel %vm856, %v3425, 0
    %v3441 = vsel %vm856, %v3426, 0
    %v3444 = vsel %vm856, %v3427, 0
    %3446 = vmatprep.subr.mxu0 0.0
    %3447 = vmatpush1.msra.mxu0 %v3429
    %3448 = vmatprep.subr.mxu0 0.0
    %3449 = vmatpush1.msra.mxu0 %v3431
    %3450 = vmatprep.subr.mxu0 0.0
    %3451 = vmatpush1.msra.mxu0 %v3433
    %3452 = vmatprep.subr.mxu0 0.0
    %3453 = vmatpush1.msra.mxu0 0.0
    %3454 = vmatprep.subr.mxu0 0.0
    %3455 = vmatpush1.msra.mxu0 0.0
    %3456 = vmatprep.subr.mxu0 0.0
    %3457 = vmatpush1.msra.mxu0 0.0
    %3458 = vmatprep.subr.mxu0 0.0
    %3459 = vmatpush1.msra.mxu0 0.0
    %3460 = vmatprep.subr.mxu0 0.0
    %3461 = vmatpush1.msra.mxu0 0.0
    %3462 = vmatprep.subr.mxu0 0.0
    %3463 = vmatpush1.msra.mxu0 0.0
    %3464 = vmatprep.subr.mxu0 0.0
    %3465 = vmatpush1.msra.mxu0 0.0
    %3466 = vmatprep.subr.mxu0 0.0
    %3467 = vmatpush1.msra.mxu0 0.0
    %3468 = vmatprep.subr.mxu0 0.0
    %3469 = vmatpush1.msra.mxu0 0.0
    %3470 = vmatprep.subr.mxu0 0.0
    %3471 = vmatpush1.msra.mxu0 0.0
    %3472 = vmatprep.subr.mxu0 0.0
    %3473 = vmatpush1.msra.mxu0 0.0
    %3474 = vmatprep.subr.mxu0 0.0
    %3475 = vmatpush1.msra.mxu0 0.0
    %3476 = vmatprep.subr.mxu0 0.0
    %3477 = vmatpush1.msra.mxu0 0.0
    %3478 = vmatprep.subr.mxu0 0.0
    %3479 = vmatpush1.msra.mxu0 0.0
    %3480 = vmatprep.subr.mxu0 0.0
    %3481 = vmatpush1.msra.mxu0 0.0
    %3482 = vmatprep.subr.mxu0 0.0
    %3483 = vmatpush1.msra.mxu0 0.0
    %3484 = vmatprep.subr.mxu0 0.0
    %3485 = vmatpush1.msra.mxu0 0.0
    %3486 = vmatprep.subr.mxu0 0.0
    %3487 = vmatpush1.msra.mxu0 0.0
    %3488 = vmatprep.subr.mxu0 0.0
    %3489 = vmatpush1.msra.mxu0 0.0
    %3490 = vmatprep.subr.mxu0 0.0
    %3491 = vmatpush1.msra.mxu0 0.0
    %3492 = vmatprep.subr.mxu0 0.0
    %3493 = vmatpush1.msra.mxu0 0.0
    %3494 = vmatprep.subr.mxu0 0.0
    %3495 = vmatpush1.msra.mxu0 0.0
    %3496 = vmatprep.subr.mxu0 0.0
    %3497 = vmatpush1.msra.mxu0 0.0
    %3498 = vmatprep.subr.mxu0 0.0
    %3499 = vmatpush1.msra.mxu0 0.0
    %3500 = vmatprep.subr.mxu0 0.0
    %3501 = vmatpush1.msra.mxu0 0.0
    %3502 = vmatprep.subr.mxu0 0.0
    %3503 = vmatpush1.msra.mxu0 0.0
    %3504 = vmatprep.subr.mxu0 0.0
    %3505 = vmatpush1.msra.mxu0 0.0
    %3506 = vmatprep.subr.mxu0 0.0
    %3507 = vmatpush1.msra.mxu0 0.0
    %3508 = vmatprep.subr.mxu0 0.0
    %3509 = vmatpush1.msra.mxu0 0.0
    %3510 = vmatprep.mubr.f32.mxu0 0.0
    %3511 = vmatmul.mubr.f32.gmra.mrb[0].mxu0 %v3438
    %v3512 = vpop.f32.mrb[0].mxu0
    %v3513 = vadd.f32 0.0, %v3512
    %v3514 = vpop.f32.mrb[0].mxu0
    %3515 = vmatprep.mubr.f32.mxu0 0.0
    %3516 = vmatmul.mubr.f32.gmra.mrb[0].mxu0 %v3441
    %v3517 = vpop.f32.mrb[0].mxu0
    %v3518 = vadd.f32 0.0, %v3517
    %v3519 = vpop.f32.mrb[0].mxu0
    %3520 = vmatprep.mubr.f32.mxu0 0.0
    %3521 = vmatmul.mubr.f32.gmra.mrb[0].mxu0 %v3444
    %v3522 = vpop.f32.mrb[0].mxu0
    %v3523 = vadd.f32 0.0, %v3522
    %v3524 = vpop.f32.mrb[0].mxu0
    %3525 = vdwg.mxu0
    %3526 = vrot.lane.b32.xlu0 %v3269, 88
    %v3527 = vpop.permute.xlu0 %3526
    %3528 = vrot.lane.b32.xlu0 %v3274, 88
    %v3529 = vpop.permute.xlu0 %3528
    %3530 = vrot.lane.b32.xlu0 %v3279, 88
    %v3531 = vpop.permute.xlu0 %3530
    %3532 = vrot.lane.b32.xlu0 %v3177, 120
    %v3533 = vpop.permute.xlu0 %3532
    %3534 = vrot.lane.b32.xlu0 %v3089, 120
    %v3535 = vpop.permute.xlu0 %3534
    %3536 = vrot.lane.b32.xlu0 %v3094, 120
    %v3537 = vpop.permute.xlu0 %3536
    %v3538 = vsel %vm195, %v3527, 0
    %v3540 = vsel %vm195, %v3529, 0
    %v3542 = vsel %vm195, %v3531, 0
    %v3544 = vsel %vm195, %v3533, 0
    %v3546 = vsel %vm195, %v3535, 0
    %v3548 = vsel %vm195, %v3537, 0
    %3550 = vmatprep.subr.mxu0 0.0
    %3551 = vmatpush1.xpose.msra.mxu0 %v3544
    %3552 = vmatprep.subr.mxu0 0.0
    %3553 = vmatpush1.xpose.msra.mxu0 %v3546
    %3554 = vmatprep.subr.mxu0 0.0
    %3555 = vmatpush1.xpose.msra.mxu0 %v3548
    %3556 = vmatprep.subr.mxu0 0.0
    %3557 = vmatpush1.xpose.msra.mxu0 0.0
    %3558 = vmatprep.subr.mxu0 0.0
    %3559 = vmatpush1.xpose.msra.mxu0 0.0
    %3560 = vmatprep.subr.mxu0 0.0
    %3561 = vmatpush1.xpose.msra.mxu0 0.0
    %3562 = vmatprep.subr.mxu0 0.0
    %3563 = vmatpush1.xpose.msra.mxu0 0.0
    %3564 = vmatprep.subr.mxu0 0.0
    %3565 = vmatpush1.xpose.msra.mxu0 0.0
    %3566 = vmatprep.subr.mxu0 0.0
    %3567 = vmatpush1.xpose.msra.mxu0 0.0
    %3568 = vmatprep.subr.mxu0 0.0
    %3569 = vmatpush1.xpose.msra.mxu0 0.0
    %3570 = vmatprep.subr.mxu0 0.0
    %3571 = vmatpush1.xpose.msra.mxu0 0.0
    %3572 = vmatprep.subr.mxu0 0.0
    %3573 = vmatpush1.xpose.msra.mxu0 0.0
    %3574 = vmatprep.subr.mxu0 0.0
    %3575 = vmatpush1.xpose.msra.mxu0 0.0
    %3576 = vmatprep.subr.mxu0 0.0
    %3577 = vmatpush1.xpose.msra.mxu0 0.0
    %3578 = vmatprep.subr.mxu0 0.0
    %3579 = vmatpush1.xpose.msra.mxu0 0.0
    %3580 = vmatprep.subr.mxu0 0.0
    %3581 = vmatpush1.xpose.msra.mxu0 0.0
    %3582 = vmatprep.subr.mxu0 0.0
    %3583 = vmatpush1.xpose.msra.mxu0 0.0
    %3584 = vmatprep.subr.mxu0 0.0
    %3585 = vmatpush1.xpose.msra.mxu0 0.0
    %3586 = vmatprep.subr.mxu0 0.0
    %3587 = vmatpush1.xpose.msra.mxu0 0.0
    %3588 = vmatprep.subr.mxu0 0.0
    %3589 = vmatpush1.xpose.msra.mxu0 0.0
    %3590 = vmatprep.subr.mxu0 0.0
    %3591 = vmatpush1.xpose.msra.mxu0 0.0
    %3592 = vmatprep.subr.mxu0 0.0
    %3593 = vmatpush1.xpose.msra.mxu0 0.0
    %3594 = vmatprep.subr.mxu0 0.0
    %3595 = vmatpush1.xpose.msra.mxu0 0.0
    %3596 = vmatprep.subr.mxu0 0.0
    %3597 = vmatpush1.xpose.msra.mxu0 0.0
    %3598 = vmatprep.subr.mxu0 0.0
    %3599 = vmatpush1.xpose.msra.mxu0 0.0
    %3600 = vmatprep.subr.mxu0 0.0
    %3601 = vmatpush1.xpose.msra.mxu0 0.0
    %3602 = vmatprep.subr.mxu0 0.0
    %3603 = vmatpush1.xpose.msra.mxu0 0.0
    %3604 = vmatprep.subr.mxu0 0.0
    %3605 = vmatpush1.xpose.msra.mxu0 0.0
    %3606 = vmatprep.subr.mxu0 0.0
    %3607 = vmatpush1.xpose.msra.mxu0 0.0
    %3608 = vmatprep.subr.mxu0 0.0
    %3609 = vmatpush1.xpose.msra.mxu0 0.0
    %3610 = vmatprep.subr.mxu0 0.0
    %3611 = vmatpush1.xpose.msra.mxu0 0.0
    %3612 = vmatprep.subr.mxu0 0.0
    %3613 = vmatpush1.xpose.msra.mxu0 0.0
    %3614 = vmatprep.mubr.f32.mxu0 0.0
    %3615 = vmatmul.mubr.f32.gmra.mrb[0].mxu0 %v3538
    %v3616 = vpop.f32.mrb[0].mxu0
    %v3617 = vadd.f32 %v464, %v3616
    %v3618 = vpop.f32.mrb[0].mxu0
    %3619 = vmatprep.mubr.f32.mxu0 0.0
    %3620 = vmatmul.mubr.f32.gmra.mrb[0].mxu0 %v3540
    %v3621 = vpop.f32.mrb[0].mxu0
    %v3622 = vadd.f32 %v465, %v3621
    %v3623 = vpop.f32.mrb[0].mxu0
    %3624 = vmatprep.mubr.f32.mxu0 0.0
    %3625 = vmatmul.mubr.f32.gmra.mrb[0].mxu0 %v3542
    %v3626 = vpop.f32.mrb[0].mxu0
    %v3627 = vadd.f32 %v466, %v3626
    %v3628 = vpop.f32.mrb[0].mxu0
    %3629 = vdwg.mxu0
    %v3630 = vsel %vm856, %v3617, -inf
    %3631 = vmax.xlane.f32.xlu0 %v3630
    %v3632 = vpop.xlane.xlu0 %3631
    %v3633 = vsel %vm856, %v3622, -inf
    %3634 = vmax.xlane.f32.xlu0 %v3633
    %v3635 = vpop.xlane.xlu0 %3634
    %v3636 = vsel %vm856, %v3627, -inf
    %3637 = vmax.xlane.f32.xlu0 %v3636
    %v3638 = vpop.xlane.xlu0 %3637
    %v3639 = vsub.f32 %v3617, %v3632
    %v3640 = vsub.f32 %v3622, %v3635
    %v3641 = vsub.f32 %v3627, %v3638
    %v3642 = vmul.f32 %v3639, 1.442695
    %v3643 = vpow.pop %v3642
    %v3644 = vmul.f32 %v3640, 1.442695
    %v3645 = vpow.pop %v3644
    %v3646 = vmul.f32 %v3641, 1.442695
    %v3647 = vpow.pop %v3646
    %v3648 = vmul.f32 %v3643, %v461
    %v3649 = vmul.f32 %v3645, %v462
    %v3650 = vmul.f32 %v3647, %v463
    %v3651 = vsel %vm856, %v3648, 0.0
    %3652 = vadd.xlane.f32.xlu0 %v3651
    %v3653 = vpop.xlane.xlu0 %3652
    %v3654 = vsel %vm856, %v3649, 0.0
    %3655 = vadd.xlane.f32.xlu0 %v3654
    %v3656 = vpop.xlane.xlu0 %3655
    %v3657 = vsel %vm856, %v3650, 0.0
    %3658 = vadd.xlane.f32.xlu0 %v3657
    %v3659 = vpop.xlane.xlu0 %3658
    %vm3660 = vcmp.gt.f32.partialorder %v3653, 0.0
    %vm3661 = vcmp.gt.f32.partialorder %v3656, 0.0
    %vm3662 = vcmp.gt.f32.partialorder %v3659, 0.0
    %v3663 = vsel %vm3660, %v3653, 1.0
    %v3664 = vsel %vm3661, %v3656, 1.0
    %v3665 = vsel %vm3662, %v3659, 1.0
    %v3666 = vrcp.pop %v3663
    %v3667 = vrcp.pop %v3664
    %v3668 = vrcp.pop %v3665
    %v3669 = vmul.f32 %v3648, %v3666
    %v3670 = vmul.f32 %v3649, %v3667
    %v3671 = vmul.f32 %v3650, %v3668
    %3672 = vrot.lane.b32.xlu0 %v3177, 56
    %v3673 = vpop.permute.xlu0 %3672
    %3674 = vrot.lane.b32.xlu0 %v3089, 56
    %v3675 = vpop.permute.xlu0 %3674
    %3676 = vrot.lane.b32.xlu0 %v3094, 56
    %v3677 = vpop.permute.xlu0 %3676
    %v3682 = vsel %vm856, %v3669, 0
    %v3685 = vsel %vm856, %v3670, 0
    %v3688 = vsel %vm856, %v3671, 0
    %3690 = vmatprep.subr.mxu0 0.0
    %3691 = vmatpush1.msra.mxu0 %v3673
    %3692 = vmatprep.subr.mxu0 0.0
    %3693 = vmatpush1.msra.mxu0 %v3675
    %3694 = vmatprep.subr.mxu0 0.0
    %3695 = vmatpush1.msra.mxu0 %v3677
    %3696 = vmatprep.subr.mxu0 0.0
    %3697 = vmatpush1.msra.mxu0 0.0
    %3698 = vmatprep.subr.mxu0 0.0
    %3699 = vmatpush1.msra.mxu0 0.0
    %3700 = vmatprep.subr.mxu0 0.0
    %3701 = vmatpush1.msra.mxu0 0.0
    %3702 = vmatprep.subr.mxu0 0.0
    %3703 = vmatpush1.msra.mxu0 0.0
    %3704 = vmatprep.subr.mxu0 0.0
    %3705 = vmatpush1.msra.mxu0 0.0
    %3706 = vmatprep.subr.mxu0 0.0
    %3707 = vmatpush1.msra.mxu0 0.0
    %3708 = vmatprep.subr.mxu0 0.0
    %3709 = vmatpush1.msra.mxu0 0.0
    %3710 = vmatprep.subr.mxu0 0.0
    %3711 = vmatpush1.msra.mxu0 0.0
    %3712 = vmatprep.subr.mxu0 0.0
    %3713 = vmatpush1.msra.mxu0 0.0
    %3714 = vmatprep.subr.mxu0 0.0
    %3715 = vmatpush1.msra.mxu0 0.0
    %3716 = vmatprep.subr.mxu0 0.0
    %3717 = vmatpush1.msra.mxu0 0.0
    %3718 = vmatprep.subr.mxu0 0.0
    %3719 = vmatpush1.msra.mxu0 0.0
    %3720 = vmatprep.subr.mxu0 0.0
    %3721 = vmatpush1.msra.mxu0 0.0
    %3722 = vmatprep.subr.mxu0 0.0
    %3723 = vmatpush1.msra.mxu0 0.0
    %3724 = vmatprep.subr.mxu0 0.0
    %3725 = vmatpush1.msra.mxu0 0.0
    %3726 = vmatprep.subr.mxu0 0.0
    %3727 = vmatpush1.msra.mxu0 0.0
    %3728 = vmatprep.subr.mxu0 0.0
    %3729 = vmatpush1.msra.mxu0 0.0
    %3730 = vmatprep.subr.mxu0 0.0
    %3731 = vmatpush1.msra.mxu0 0.0
    %3732 = vmatprep.subr.mxu0 0.0
    %3733 = vmatpush1.msra.mxu0 0.0
    %3734 = vmatprep.subr.mxu0 0.0
    %3735 = vmatpush1.msra.mxu0 0.0
    %3736 = vmatprep.subr.mxu0 0.0
    %3737 = vmatpush1.msra.mxu0 0.0
    %3738 = vmatprep.subr.mxu0 0.0
    %3739 = vmatpush1.msra.mxu0 0.0
    %3740 = vmatprep.subr.mxu0 0.0
    %3741 = vmatpush1.msra.mxu0 0.0
    %3742 = vmatprep.subr.mxu0 0.0
    %3743 = vmatpush1.msra.mxu0 0.0
    %3744 = vmatprep.subr.mxu0 0.0
    %3745 = vmatpush1.msra.mxu0 0.0
    %3746 = vmatprep.subr.mxu0 0.0
    %3747 = vmatpush1.msra.mxu0 0.0
    %3748 = vmatprep.subr.mxu0 0.0
    %3749 = vmatpush1.msra.mxu0 0.0
    %3750 = vmatprep.subr.mxu0 0.0
    %3751 = vmatpush1.msra.mxu0 0.0
    %3752 = vmatprep.subr.mxu0 0.0
    %3753 = vmatpush1.msra.mxu0 0.0
    %3754 = vmatprep.mubr.f32.mxu0 0.0
    %3755 = vmatmul.mubr.f32.gmra.mrb[0].mxu0 %v3682
    %v3756 = vpop.f32.mrb[0].mxu0
    %v3757 = vadd.f32 0.0, %v3756
    %v3758 = vpop.f32.mrb[0].mxu0
    %3759 = vmatprep.mubr.f32.mxu0 0.0
    %3760 = vmatmul.mubr.f32.gmra.mrb[0].mxu0 %v3685
    %v3761 = vpop.f32.mrb[0].mxu0
    %v3762 = vadd.f32 0.0, %v3761
    %v3763 = vpop.f32.mrb[0].mxu0
    %3764 = vmatprep.mubr.f32.mxu0 0.0
    %3765 = vmatmul.mubr.f32.gmra.mrb[0].mxu0 %v3688
    %v3766 = vpop.f32.mrb[0].mxu0
    %v3767 = vadd.f32 0.0, %v3766
    %v3768 = vpop.f32.mrb[0].mxu0
    %3769 = vdwg.mxu0
    %3770 = vrot.lane.b32.xlu0 %v3269, 80
    %v3771 = vpop.permute.xlu0 %3770
    %3772 = vrot.lane.b32.xlu0 %v3274, 80
    %v3773 = vpop.permute.xlu0 %3772
    %3774 = vrot.lane.b32.xlu0 %v3279, 80
    %v3775 = vpop.permute.xlu0 %3774
    %3776 = vrot.lane.b32.xlu0 %v3177, 112
    %v3777 = vpop.permute.xlu0 %3776
    %3778 = vrot.lane.b32.xlu0 %v3089, 112
    %v3779 = vpop.permute.xlu0 %3778
    %3780 = vrot.lane.b32.xlu0 %v3094, 112
    %v3781 = vpop.permute.xlu0 %3780
    %v3782 = vsel %vm195, %v3771, 0
    %v3784 = vsel %vm195, %v3773, 0
    %v3786 = vsel %vm195, %v3775, 0
    %v3788 = vsel %vm195, %v3777, 0
    %v3790 = vsel %vm195, %v3779, 0
    %v3792 = vsel %vm195, %v3781, 0
    %3794 = vmatprep.subr.mxu0 0.0
    %3795 = vmatpush1.xpose.msra.mxu0 %v3788
    %3796 = vmatprep.subr.mxu0 0.0
    %3797 = vmatpush1.xpose.msra.mxu0 %v3790
    %3798 = vmatprep.subr.mxu0 0.0
    %3799 = vmatpush1.xpose.msra.mxu0 %v3792
    %3800 = vmatprep.subr.mxu0 0.0
    %3801 = vmatpush1.xpose.msra.mxu0 0.0
    %3802 = vmatprep.subr.mxu0 0.0
    %3803 = vmatpush1.xpose.msra.mxu0 0.0
    %3804 = vmatprep.subr.mxu0 0.0
    %3805 = vmatpush1.xpose.msra.mxu0 0.0
    %3806 = vmatprep.subr.mxu0 0.0
    %3807 = vmatpush1.xpose.msra.mxu0 0.0
    %3808 = vmatprep.subr.mxu0 0.0
    %3809 = vmatpush1.xpose.msra.mxu0 0.0
    %3810 = vmatprep.subr.mxu0 0.0
    %3811 = vmatpush1.xpose.msra.mxu0 0.0
    %3812 = vmatprep.subr.mxu0 0.0
    %3813 = vmatpush1.xpose.msra.mxu0 0.0
    %3814 = vmatprep.subr.mxu0 0.0
    %3815 = vmatpush1.xpose.msra.mxu0 0.0
    %3816 = vmatprep.subr.mxu0 0.0
    %3817 = vmatpush1.xpose.msra.mxu0 0.0
    %3818 = vmatprep.subr.mxu0 0.0
    %3819 = vmatpush1.xpose.msra.mxu0 0.0
    %3820 = vmatprep.subr.mxu0 0.0
    %3821 = vmatpush1.xpose.msra.mxu0 0.0
    %3822 = vmatprep.subr.mxu0 0.0
    %3823 = vmatpush1.xpose.msra.mxu0 0.0
    %3824 = vmatprep.subr.mxu0 0.0
    %3825 = vmatpush1.xpose.msra.mxu0 0.0
    %3826 = vmatprep.subr.mxu0 0.0
    %3827 = vmatpush1.xpose.msra.mxu0 0.0
    %3828 = vmatprep.subr.mxu0 0.0
    %3829 = vmatpush1.xpose.msra.mxu0 0.0
    %3830 = vmatprep.subr.mxu0 0.0
    %3831 = vmatpush1.xpose.msra.mxu0 0.0
    %3832 = vmatprep.subr.mxu0 0.0
    %3833 = vmatpush1.xpose.msra.mxu0 0.0
    %3834 = vmatprep.subr.mxu0 0.0
    %3835 = vmatpush1.xpose.msra.mxu0 0.0
    %3836 = vmatprep.subr.mxu0 0.0
    %3837 = vmatpush1.xpose.msra.mxu0 0.0
    %3838 = vmatprep.subr.mxu0 0.0
    %3839 = vmatpush1.xpose.msra.mxu0 0.0
    %3840 = vmatprep.subr.mxu0 0.0
    %3841 = vmatpush1.xpose.msra.mxu0 0.0
    %3842 = vmatprep.subr.mxu0 0.0
    %3843 = vmatpush1.xpose.msra.mxu0 0.0
    %3844 = vmatprep.subr.mxu0 0.0
    %3845 = vmatpush1.xpose.msra.mxu0 0.0
    %3846 = vmatprep.subr.mxu0 0.0
    %3847 = vmatpush1.xpose.msra.mxu0 0.0
    %3848 = vmatprep.subr.mxu0 0.0
    %3849 = vmatpush1.xpose.msra.mxu0 0.0
    %3850 = vmatprep.subr.mxu0 0.0
    %3851 = vmatpush1.xpose.msra.mxu0 0.0
    %3852 = vmatprep.subr.mxu0 0.0
    %3853 = vmatpush1.xpose.msra.mxu0 0.0
    %3854 = vmatprep.subr.mxu0 0.0
    %3855 = vmatpush1.xpose.msra.mxu0 0.0
    %3856 = vmatprep.subr.mxu0 0.0
    %3857 = vmatpush1.xpose.msra.mxu0 0.0
    %3858 = vmatprep.mubr.f32.mxu0 0.0
    %3859 = vmatmul.mubr.f32.gmra.mrb[0].mxu0 %v3782
    %v3860 = vpop.f32.mrb[0].mxu0
    %v3861 = vadd.f32 %v464, %v3860
    %v3862 = vpop.f32.mrb[0].mxu0
    %3863 = vmatprep.mubr.f32.mxu0 0.0
    %3864 = vmatmul.mubr.f32.gmra.mrb[0].mxu0 %v3784
    %v3865 = vpop.f32.mrb[0].mxu0
    %v3866 = vadd.f32 %v465, %v3865
    %v3867 = vpop.f32.mrb[0].mxu0
    %3868 = vmatprep.mubr.f32.mxu0 0.0
    %3869 = vmatmul.mubr.f32.gmra.mrb[0].mxu0 %v3786
    %v3870 = vpop.f32.mrb[0].mxu0
    %v3871 = vadd.f32 %v466, %v3870
    %v3872 = vpop.f32.mrb[0].mxu0
    %3873 = vdwg.mxu0
    %v3874 = vsel %vm856, %v3861, -inf
    %3875 = vmax.xlane.f32.xlu0 %v3874
    %v3876 = vpop.xlane.xlu0 %3875
    %v3877 = vsel %vm856, %v3866, -inf
    %3878 = vmax.xlane.f32.xlu0 %v3877
    %v3879 = vpop.xlane.xlu0 %3878
    %v3880 = vsel %vm856, %v3871, -inf
    %3881 = vmax.xlane.f32.xlu0 %v3880
    %v3882 = vpop.xlane.xlu0 %3881
    %v3883 = vsub.f32 %v3861, %v3876
    %v3884 = vsub.f32 %v3866, %v3879
    %v3885 = vsub.f32 %v3871, %v3882
    %v3886 = vmul.f32 %v3883, 1.442695
    %v3887 = vpow.pop %v3886
    %v3888 = vmul.f32 %v3884, 1.442695
    %v3889 = vpow.pop %v3888
    %v3890 = vmul.f32 %v3885, 1.442695
    %v3891 = vpow.pop %v3890
    %v3892 = vmul.f32 %v3887, %v461
    %v3893 = vmul.f32 %v3889, %v462
    %v3894 = vmul.f32 %v3891, %v463
    %v3895 = vsel %vm856, %v3892, 0.0
    %3896 = vadd.xlane.f32.xlu0 %v3895
    %v3897 = vpop.xlane.xlu0 %3896
    %v3898 = vsel %vm856, %v3893, 0.0
    %3899 = vadd.xlane.f32.xlu0 %v3898
    %v3900 = vpop.xlane.xlu0 %3899
    %v3901 = vsel %vm856, %v3894, 0.0
    %3902 = vadd.xlane.f32.xlu0 %v3901
    %v3903 = vpop.xlane.xlu0 %3902
    %vm3904 = vcmp.gt.f32.partialorder %v3897, 0.0
    %vm3905 = vcmp.gt.f32.partialorder %v3900, 0.0
    %vm3906 = vcmp.gt.f32.partialorder %v3903, 0.0
    %v3907 = vsel %vm3904, %v3897, 1.0
    %v3908 = vsel %vm3905, %v3900, 1.0
    %v3909 = vsel %vm3906, %v3903, 1.0
    %v3910 = vrcp.pop %v3907
    %v3911 = vrcp.pop %v3908
    %v3912 = vrcp.pop %v3909
    %v3913 = vmul.f32 %v3892, %v3910
    %v3914 = vmul.f32 %v3893, %v3911
    %v3915 = vmul.f32 %v3894, %v3912
    %3916 = vrot.lane.b32.xlu0 %v3177, 48
    %v3917 = vpop.permute.xlu0 %3916
    %3918 = vrot.lane.b32.xlu0 %v3089, 48
    %v3919 = vpop.permute.xlu0 %3918
    %3920 = vrot.lane.b32.xlu0 %v3094, 48
    %v3921 = vpop.permute.xlu0 %3920
    %v3926 = vsel %vm856, %v3913, 0
    %v3929 = vsel %vm856, %v3914, 0
    %v3932 = vsel %vm856, %v3915, 0
    %3934 = vmatprep.subr.mxu0 0.0
    %3935 = vmatpush1.msra.mxu0 %v3917
    %3936 = vmatprep.subr.mxu0 0.0
    %3937 = vmatpush1.msra.mxu0 %v3919
    %3938 = vmatprep.subr.mxu0 0.0
    %3939 = vmatpush1.msra.mxu0 %v3921
    %3940 = vmatprep.subr.mxu0 0.0
    %3941 = vmatpush1.msra.mxu0 0.0
    %3942 = vmatprep.subr.mxu0 0.0
    %3943 = vmatpush1.msra.mxu0 0.0
    %3944 = vmatprep.subr.mxu0 0.0
    %3945 = vmatpush1.msra.mxu0 0.0
    %3946 = vmatprep.subr.mxu0 0.0
    %3947 = vmatpush1.msra.mxu0 0.0
    %3948 = vmatprep.subr.mxu0 0.0
    %3949 = vmatpush1.msra.mxu0 0.0
    %3950 = vmatprep.subr.mxu0 0.0
    %3951 = vmatpush1.msra.mxu0 0.0
    %3952 = vmatprep.subr.mxu0 0.0
    %3953 = vmatpush1.msra.mxu0 0.0
    %3954 = vmatprep.subr.mxu0 0.0
    %3955 = vmatpush1.msra.mxu0 0.0
    %3956 = vmatprep.subr.mxu0 0.0
    %3957 = vmatpush1.msra.mxu0 0.0
    %3958 = vmatprep.subr.mxu0 0.0
    %3959 = vmatpush1.msra.mxu0 0.0
    %3960 = vmatprep.subr.mxu0 0.0
    %3961 = vmatpush1.msra.mxu0 0.0
    %3962 = vmatprep.subr.mxu0 0.0
    %3963 = vmatpush1.msra.mxu0 0.0
    %3964 = vmatprep.subr.mxu0 0.0
    %3965 = vmatpush1.msra.mxu0 0.0
    %3966 = vmatprep.subr.mxu0 0.0
    %3967 = vmatpush1.msra.mxu0 0.0
    %3968 = vmatprep.subr.mxu0 0.0
    %3969 = vmatpush1.msra.mxu0 0.0
    %3970 = vmatprep.subr.mxu0 0.0
    %3971 = vmatpush1.msra.mxu0 0.0
    %3972 = vmatprep.subr.mxu0 0.0
    %3973 = vmatpush1.msra.mxu0 0.0
    %3974 = vmatprep.subr.mxu0 0.0
    %3975 = vmatpush1.msra.mxu0 0.0
    %3976 = vmatprep.subr.mxu0 0.0
    %3977 = vmatpush1.msra.mxu0 0.0
    %3978 = vmatprep.subr.mxu0 0.0
    %3979 = vmatpush1.msra.mxu0 0.0
    %3980 = vmatprep.subr.mxu0 0.0
    %3981 = vmatpush1.msra.mxu0 0.0
    %3982 = vmatprep.subr.mxu0 0.0
    %3983 = vmatpush1.msra.mxu0 0.0
    %3984 = vmatprep.subr.mxu0 0.0
    %3985 = vmatpush1.msra.mxu0 0.0
    %3986 = vmatprep.subr.mxu0 0.0
    %3987 = vmatpush1.msra.mxu0 0.0
    %3988 = vmatprep.subr.mxu0 0.0
    %3989 = vmatpush1.msra.mxu0 0.0
    %3990 = vmatprep.subr.mxu0 0.0
    %3991 = vmatpush1.msra.mxu0 0.0
    %3992 = vmatprep.subr.mxu0 0.0
    %3993 = vmatpush1.msra.mxu0 0.0
    %3994 = vmatprep.subr.mxu0 0.0
    %3995 = vmatpush1.msra.mxu0 0.0
    %3996 = vmatprep.subr.mxu0 0.0
    %3997 = vmatpush1.msra.mxu0 0.0
    %3998 = vmatprep.mubr.f32.mxu0 0.0
    %3999 = vmatmul.mubr.f32.gmra.mrb[0].mxu0 %v3926
    %v4000 = vpop.f32.mrb[0].mxu0
    %v4001 = vadd.f32 0.0, %v4000
    %v4002 = vpop.f32.mrb[0].mxu0
    %4003 = vmatprep.mubr.f32.mxu0 0.0
    %4004 = vmatmul.mubr.f32.gmra.mrb[0].mxu0 %v3929
    %v4005 = vpop.f32.mrb[0].mxu0
    %v4006 = vadd.f32 0.0, %v4005
    %v4007 = vpop.f32.mrb[0].mxu0
    %4008 = vmatprep.mubr.f32.mxu0 0.0
    %4009 = vmatmul.mubr.f32.gmra.mrb[0].mxu0 %v3932
    %v4010 = vpop.f32.mrb[0].mxu0
    %v4011 = vadd.f32 0.0, %v4010
    %v4012 = vpop.f32.mrb[0].mxu0
    %4013 = vdwg.mxu0
    %4014 = vrot.lane.b32.xlu0 %v3269, 72
    %v4015 = vpop.permute.xlu0 %4014
    %4016 = vrot.lane.b32.xlu0 %v3274, 72
    %v4017 = vpop.permute.xlu0 %4016
    %4018 = vrot.lane.b32.xlu0 %v3279, 72
    %v4019 = vpop.permute.xlu0 %4018
    %4020 = vrot.lane.b32.xlu0 %v3177, 104
    %v4021 = vpop.permute.xlu0 %4020
    %4022 = vrot.lane.b32.xlu0 %v3089, 104
    %v4023 = vpop.permute.xlu0 %4022
    %4024 = vrot.lane.b32.xlu0 %v3094, 104
    %v4025 = vpop.permute.xlu0 %4024
    %v4026 = vsel %vm195, %v4015, 0
    %v4028 = vsel %vm195, %v4017, 0
    %v4030 = vsel %vm195, %v4019, 0
    %v4032 = vsel %vm195, %v4021, 0
    %v4034 = vsel %vm195, %v4023, 0
    %v4036 = vsel %vm195, %v4025, 0
    %4038 = vmatprep.subr.mxu0 0.0
    %4039 = vmatpush1.xpose.msra.mxu0 %v4032
    %4040 = vmatprep.subr.mxu0 0.0
    %4041 = vmatpush1.xpose.msra.mxu0 %v4034
    %4042 = vmatprep.subr.mxu0 0.0
    %4043 = vmatpush1.xpose.msra.mxu0 %v4036
    %4044 = vmatprep.subr.mxu0 0.0
    %4045 = vmatpush1.xpose.msra.mxu0 0.0
    %4046 = vmatprep.subr.mxu0 0.0
    %4047 = vmatpush1.xpose.msra.mxu0 0.0
    %4048 = vmatprep.subr.mxu0 0.0
    %4049 = vmatpush1.xpose.msra.mxu0 0.0
    %4050 = vmatprep.subr.mxu0 0.0
    %4051 = vmatpush1.xpose.msra.mxu0 0.0
    %4052 = vmatprep.subr.mxu0 0.0
    %4053 = vmatpush1.xpose.msra.mxu0 0.0
    %4054 = vmatprep.subr.mxu0 0.0
    %4055 = vmatpush1.xpose.msra.mxu0 0.0
    %4056 = vmatprep.subr.mxu0 0.0
    %4057 = vmatpush1.xpose.msra.mxu0 0.0
    %4058 = vmatprep.subr.mxu0 0.0
    %4059 = vmatpush1.xpose.msra.mxu0 0.0
    %4060 = vmatprep.subr.mxu0 0.0
    %4061 = vmatpush1.xpose.msra.mxu0 0.0
    %4062 = vmatprep.subr.mxu0 0.0
    %4063 = vmatpush1.xpose.msra.mxu0 0.0
    %4064 = vmatprep.subr.mxu0 0.0
    %4065 = vmatpush1.xpose.msra.mxu0 0.0
    %4066 = vmatprep.subr.mxu0 0.0
    %4067 = vmatpush1.xpose.msra.mxu0 0.0
    %4068 = vmatprep.subr.mxu0 0.0
    %4069 = vmatpush1.xpose.msra.mxu0 0.0
    %4070 = vmatprep.subr.mxu0 0.0
    %4071 = vmatpush1.xpose.msra.mxu0 0.0
    %4072 = vmatprep.subr.mxu0 0.0
    %4073 = vmatpush1.xpose.msra.mxu0 0.0
    %4074 = vmatprep.subr.mxu0 0.0
    %4075 = vmatpush1.xpose.msra.mxu0 0.0
    %4076 = vmatprep.subr.mxu0 0.0
    %4077 = vmatpush1.xpose.msra.mxu0 0.0
    %4078 = vmatprep.subr.mxu0 0.0
    %4079 = vmatpush1.xpose.msra.mxu0 0.0
    %4080 = vmatprep.subr.mxu0 0.0
    %4081 = vmatpush1.xpose.msra.mxu0 0.0
    %4082 = vmatprep.subr.mxu0 0.0
    %4083 = vmatpush1.xpose.msra.mxu0 0.0
    %4084 = vmatprep.subr.mxu0 0.0
    %4085 = vmatpush1.xpose.msra.mxu0 0.0
    %4086 = vmatprep.subr.mxu0 0.0
    %4087 = vmatpush1.xpose.msra.mxu0 0.0
    %4088 = vmatprep.subr.mxu0 0.0
    %4089 = vmatpush1.xpose.msra.mxu0 0.0
    %4090 = vmatprep.subr.mxu0 0.0
    %4091 = vmatpush1.xpose.msra.mxu0 0.0
    %4092 = vmatprep.subr.mxu0 0.0
    %4093 = vmatpush1.xpose.msra.mxu0 0.0
    %4094 = vmatprep.subr.mxu0 0.0
    %4095 = vmatpush1.xpose.msra.mxu0 0.0
    %4096 = vmatprep.subr.mxu0 0.0
    %4097 = vmatpush1.xpose.msra.mxu0 0.0
    %4098 = vmatprep.subr.mxu0 0.0
    %4099 = vmatpush1.xpose.msra.mxu0 0.0
    %4100 = vmatprep.subr.mxu0 0.0
    %4101 = vmatpush1.xpose.msra.mxu0 0.0
    %4102 = vmatprep.mubr.f32.mxu0 0.0
    %4103 = vmatmul.mubr.f32.gmra.mrb[0].mxu0 %v4026
    %v4104 = vpop.f32.mrb[0].mxu0
    %v4105 = vadd.f32 %v464, %v4104
    %v4106 = vpop.f32.mrb[0].mxu0
    %4107 = vmatprep.mubr.f32.mxu0 0.0
    %4108 = vmatmul.mubr.f32.gmra.mrb[0].mxu0 %v4028
    %v4109 = vpop.f32.mrb[0].mxu0
    %v4110 = vadd.f32 %v465, %v4109
    %v4111 = vpop.f32.mrb[0].mxu0
    %4112 = vmatprep.mubr.f32.mxu0 0.0
    %4113 = vmatmul.mubr.f32.gmra.mrb[0].mxu0 %v4030
    %v4114 = vpop.f32.mrb[0].mxu0
    %v4115 = vadd.f32 %v466, %v4114
    %v4116 = vpop.f32.mrb[0].mxu0
    %4117 = vdwg.mxu0
    %v4118 = vsel %vm856, %v4105, -inf
    %4119 = vmax.xlane.f32.xlu0 %v4118
    %v4120 = vpop.xlane.xlu0 %4119
    %v4121 = vsel %vm856, %v4110, -inf
    %4122 = vmax.xlane.f32.xlu0 %v4121
    %v4123 = vpop.xlane.xlu0 %4122
    %v4124 = vsel %vm856, %v4115, -inf
    %4125 = vmax.xlane.f32.xlu0 %v4124
    %v4126 = vpop.xlane.xlu0 %4125
    %v4127 = vsub.f32 %v4105, %v4120
    %v4128 = vsub.f32 %v4110, %v4123
    %v4129 = vsub.f32 %v4115, %v4126
    %v4130 = vmul.f32 %v4127, 1.442695
    %v4131 = vpow.pop %v4130
    %v4132 = vmul.f32 %v4128, 1.442695
    %v4133 = vpow.pop %v4132
    %v4134 = vmul.f32 %v4129, 1.442695
    %v4135 = vpow.pop %v4134
    %v4136 = vmul.f32 %v4131, %v461
    %v4137 = vmul.f32 %v4133, %v462
    %v4138 = vmul.f32 %v4135, %v463
    %v4139 = vsel %vm856, %v4136, 0.0
    %4140 = vadd.xlane.f32.xlu0 %v4139
    %v4141 = vpop.xlane.xlu0 %4140
    %v4142 = vsel %vm856, %v4137, 0.0
    %4143 = vadd.xlane.f32.xlu0 %v4142
    %v4144 = vpop.xlane.xlu0 %4143
    %v4145 = vsel %vm856, %v4138, 0.0
    %4146 = vadd.xlane.f32.xlu0 %v4145
    %v4147 = vpop.xlane.xlu0 %4146
    %vm4148 = vcmp.gt.f32.partialorder %v4141, 0.0
    %vm4149 = vcmp.gt.f32.partialorder %v4144, 0.0
    %vm4150 = vcmp.gt.f32.partialorder %v4147, 0.0
    %v4151 = vsel %vm4148, %v4141, 1.0
    %v4152 = vsel %vm4149, %v4144, 1.0
    %v4153 = vsel %vm4150, %v4147, 1.0
    %v4154 = vrcp.pop %v4151
    %v4155 = vrcp.pop %v4152
    %v4156 = vrcp.pop %v4153
    %v4157 = vmul.f32 %v4136, %v4154
    %v4158 = vmul.f32 %v4137, %v4155
    %v4159 = vmul.f32 %v4138, %v4156
    %4160 = vrot.lane.b32.xlu0 %v3177, 40
    %v4161 = vpop.permute.xlu0 %4160
    %4162 = vrot.lane.b32.xlu0 %v3089, 40
    %v4163 = vpop.permute.xlu0 %4162
    %4164 = vrot.lane.b32.xlu0 %v3094, 40
    %v4165 = vpop.permute.xlu0 %4164
    %v4170 = vsel %vm856, %v4157, 0
    %v4173 = vsel %vm856, %v4158, 0
    %v4176 = vsel %vm856, %v4159, 0
    %4178 = vmatprep.subr.mxu0 0.0
    %4179 = vmatpush1.msra.mxu0 %v4161
    %4180 = vmatprep.subr.mxu0 0.0
    %4181 = vmatpush1.msra.mxu0 %v4163
    %4182 = vmatprep.subr.mxu0 0.0
    %4183 = vmatpush1.msra.mxu0 %v4165
    %4184 = vmatprep.subr.mxu0 0.0
    %4185 = vmatpush1.msra.mxu0 0.0
    %4186 = vmatprep.subr.mxu0 0.0
    %4187 = vmatpush1.msra.mxu0 0.0
    %4188 = vmatprep.subr.mxu0 0.0
    %4189 = vmatpush1.msra.mxu0 0.0
    %4190 = vmatprep.subr.mxu0 0.0
    %4191 = vmatpush1.msra.mxu0 0.0
    %4192 = vmatprep.subr.mxu0 0.0
    %4193 = vmatpush1.msra.mxu0 0.0
    %4194 = vmatprep.subr.mxu0 0.0
    %4195 = vmatpush1.msra.mxu0 0.0
    %4196 = vmatprep.subr.mxu0 0.0
    %4197 = vmatpush1.msra.mxu0 0.0
    %4198 = vmatprep.subr.mxu0 0.0
    %4199 = vmatpush1.msra.mxu0 0.0
    %4200 = vmatprep.subr.mxu0 0.0
    %4201 = vmatpush1.msra.mxu0 0.0
    %4202 = vmatprep.subr.mxu0 0.0
    %4203 = vmatpush1.msra.mxu0 0.0
    %4204 = vmatprep.subr.mxu0 0.0
    %4205 = vmatpush1.msra.mxu0 0.0
    %4206 = vmatprep.subr.mxu0 0.0
    %4207 = vmatpush1.msra.mxu0 0.0
    %4208 = vmatprep.subr.mxu0 0.0
    %4209 = vmatpush1.msra.mxu0 0.0
    %4210 = vmatprep.subr.mxu0 0.0
    %4211 = vmatpush1.msra.mxu0 0.0
    %4212 = vmatprep.subr.mxu0 0.0
    %4213 = vmatpush1.msra.mxu0 0.0
    %4214 = vmatprep.subr.mxu0 0.0
    %4215 = vmatpush1.msra.mxu0 0.0
    %4216 = vmatprep.subr.mxu0 0.0
    %4217 = vmatpush1.msra.mxu0 0.0
    %4218 = vmatprep.subr.mxu0 0.0
    %4219 = vmatpush1.msra.mxu0 0.0
    %4220 = vmatprep.subr.mxu0 0.0
    %4221 = vmatpush1.msra.mxu0 0.0
    %4222 = vmatprep.subr.mxu0 0.0
    %4223 = vmatpush1.msra.mxu0 0.0
    %4224 = vmatprep.subr.mxu0 0.0
    %4225 = vmatpush1.msra.mxu0 0.0
    %4226 = vmatprep.subr.mxu0 0.0
    %4227 = vmatpush1.msra.mxu0 0.0
    %4228 = vmatprep.subr.mxu0 0.0
    %4229 = vmatpush1.msra.mxu0 0.0
    %4230 = vmatprep.subr.mxu0 0.0
    %4231 = vmatpush1.msra.mxu0 0.0
    %4232 = vmatprep.subr.mxu0 0.0
    %4233 = vmatpush1.msra.mxu0 0.0
    %4234 = vmatprep.subr.mxu0 0.0
    %4235 = vmatpush1.msra.mxu0 0.0
    %4236 = vmatprep.subr.mxu0 0.0
    %4237 = vmatpush1.msra.mxu0 0.0
    %4238 = vmatprep.subr.mxu0 0.0
    %4239 = vmatpush1.msra.mxu0 0.0
    %4240 = vmatprep.subr.mxu0 0.0
    %4241 = vmatpush1.msra.mxu0 0.0
    %4242 = vmatprep.mubr.f32.mxu0 0.0
    %4243 = vmatmul.mubr.f32.gmra.mrb[0].mxu0 %v4170
    %v4244 = vpop.f32.mrb[0].mxu0
    %v4245 = vadd.f32 0.0, %v4244
    %v4246 = vpop.f32.mrb[0].mxu0
    %4247 = vmatprep.mubr.f32.mxu0 0.0
    %4248 = vmatmul.mubr.f32.gmra.mrb[0].mxu0 %v4173
    %v4249 = vpop.f32.mrb[0].mxu0
    %v4250 = vadd.f32 0.0, %v4249
    %v4251 = vpop.f32.mrb[0].mxu0
    %4252 = vmatprep.mubr.f32.mxu0 0.0
    %4253 = vmatmul.mubr.f32.gmra.mrb[0].mxu0 %v4176
    %v4254 = vpop.f32.mrb[0].mxu0
    %v4255 = vadd.f32 0.0, %v4254
    %v4256 = vpop.f32.mrb[0].mxu0
    %4257 = vdwg.mxu0
    %4261 = vrot.lane.b32.xlu0 %v3757, 8
    %v4262 = vpop.permute.xlu0 %4261
    %4263 = vrot.lane.b32.xlu0 %v3762, 8
    %v4264 = vpop.permute.xlu0 %4263
    %4265 = vrot.lane.b32.xlu0 %v3767, 8
    %v4266 = vpop.permute.xlu0 %4265
    %4273 = vrot.lane.b32.xlu0 %v4001, 16
    %v4274 = vpop.permute.xlu0 %4273
    %4275 = vrot.lane.b32.xlu0 %v4006, 16
    %v4276 = vpop.permute.xlu0 %4275
    %4277 = vrot.lane.b32.xlu0 %v4011, 16
    %v4278 = vpop.permute.xlu0 %4277
    %4285 = vrot.lane.b32.xlu0 %v4245, 24
    %v4286 = vpop.permute.xlu0 %4285
    %4287 = vrot.lane.b32.xlu0 %v4250, 24
    %v4288 = vpop.permute.xlu0 %4287
    %4289 = vrot.lane.b32.xlu0 %v4255, 24
    %v4290 = vpop.permute.xlu0 %4289
    %v4294 = vsel %vm195, %v3513, %v4262
    %v4295 = vsel %vm195, %v3518, %v4264
    %v4296 = vsel %vm195, %v3523, %v4266
    %v4297 = vsel %vm1768, %v4294, %v4274
    %v4298 = vsel %vm1768, %v4295, %v4276
    %v4299 = vsel %vm1768, %v4296, %v4278
    %v4300 = vsel %vm856, %v4297, %v4286
    %v4301 = vsel %vm856, %v4298, %v4288
    %v4302 = vsel %vm856, %v4299, %v4290
    %4303 = vrot.lane.b32.xlu0 %v3089, 96
    %v4304 = vpop.permute.xlu0 %4303
    %4305 = vrot.lane.b32.xlu0 %v3094, 96
    %v4306 = vpop.permute.xlu0 %4305
    %v4307 = vsel %vm195, %v4304, 0
    %v4309 = vsel %vm195, %v4306, 0
    %v4311 = vsel %vm195, %v3269, 0
    %v4313 = vsel %vm195, %v3274, 0
    %v4315 = vsel %vm195, %v3279, 0
    %4317 = vmatprep.subr.mxu0 0.0
    %4318 = vmatpush1.xpose.msra.mxu0 %v4311
    %4319 = vmatprep.subr.mxu0 0.0
    %4320 = vmatpush1.xpose.msra.mxu0 %v4313
    %4321 = vmatprep.subr.mxu0 0.0
    %4322 = vmatpush1.xpose.msra.mxu0 %v4315
    %4323 = vmatprep.subr.mxu0 0.0
    %4324 = vmatpush1.xpose.msra.mxu0 0.0
    %4325 = vmatprep.subr.mxu0 0.0
    %4326 = vmatpush1.xpose.msra.mxu0 0.0
    %4327 = vmatprep.subr.mxu0 0.0
    %4328 = vmatpush1.xpose.msra.mxu0 0.0
    %4329 = vmatprep.subr.mxu0 0.0
    %4330 = vmatpush1.xpose.msra.mxu0 0.0
    %4331 = vmatprep.subr.mxu0 0.0
    %4332 = vmatpush1.xpose.msra.mxu0 0.0
    %4333 = vmatprep.subr.mxu0 0.0
    %4334 = vmatpush1.xpose.msra.mxu0 0.0
    %4335 = vmatprep.subr.mxu0 0.0
    %4336 = vmatpush1.xpose.msra.mxu0 0.0
    %4337 = vmatprep.subr.mxu0 0.0
    %4338 = vmatpush1.xpose.msra.mxu0 0.0
    %4339 = vmatprep.subr.mxu0 0.0
    %4340 = vmatpush1.xpose.msra.mxu0 0.0
    %4341 = vmatprep.subr.mxu0 0.0
    %4342 = vmatpush1.xpose.msra.mxu0 0.0
    %4343 = vmatprep.subr.mxu0 0.0
    %4344 = vmatpush1.xpose.msra.mxu0 0.0
    %4345 = vmatprep.subr.mxu0 0.0
    %4346 = vmatpush1.xpose.msra.mxu0 0.0
    %4347 = vmatprep.subr.mxu0 0.0
    %4348 = vmatpush1.xpose.msra.mxu0 0.0
    %4349 = vmatprep.subr.mxu0 0.0
    %4350 = vmatpush1.xpose.msra.mxu0 0.0
    %4351 = vmatprep.subr.mxu0 0.0
    %4352 = vmatpush1.xpose.msra.mxu0 0.0
    %4353 = vmatprep.subr.mxu0 0.0
    %4354 = vmatpush1.xpose.msra.mxu0 0.0
    %4355 = vmatprep.subr.mxu0 0.0
    %4356 = vmatpush1.xpose.msra.mxu0 0.0
    %4357 = vmatprep.subr.mxu0 0.0
    %4358 = vmatpush1.xpose.msra.mxu0 0.0
    %4359 = vmatprep.subr.mxu0 0.0
    %4360 = vmatpush1.xpose.msra.mxu0 0.0
    %4361 = vmatprep.subr.mxu0 0.0
    %4362 = vmatpush1.xpose.msra.mxu0 0.0
    %4363 = vmatprep.subr.mxu0 0.0
    %4364 = vmatpush1.xpose.msra.mxu0 0.0
    %4365 = vmatprep.subr.mxu0 0.0
    %4366 = vmatpush1.xpose.msra.mxu0 0.0
    %4367 = vmatprep.subr.mxu0 0.0
    %4368 = vmatpush1.xpose.msra.mxu0 0.0
    %4369 = vmatprep.subr.mxu0 0.0
    %4370 = vmatpush1.xpose.msra.mxu0 0.0
    %4371 = vmatprep.subr.mxu0 0.0
    %4372 = vmatpush1.xpose.msra.mxu0 0.0
    %4373 = vmatprep.subr.mxu0 0.0
    %4374 = vmatpush1.xpose.msra.mxu0 0.0
    %4375 = vmatprep.subr.mxu0 0.0
    %4376 = vmatpush1.xpose.msra.mxu0 0.0
    %4377 = vmatprep.subr.mxu0 0.0
    %4378 = vmatpush1.xpose.msra.mxu0 0.0
    %4379 = vmatprep.subr.mxu0 0.0
    %4380 = vmatpush1.xpose.msra.mxu0 0.0
    %4381 = vmatprep.mubr.f32.mxu0 0.0
    %4382 = vmatmul.mubr.f32.gmra.mrb[0].mxu0 %v4307
    %v4383 = vpop.f32.mrb[0].mxu0
    %v4384 = vadd.f32 %v469, %v4383
    %v4385 = vpop.f32.mrb[0].mxu0
    %4386 = vmatprep.mubr.f32.mxu0 0.0
    %4387 = vmatmul.mubr.f32.gmra.mrb[0].mxu0 %v4309
    %v4388 = vpop.f32.mrb[0].mxu0
    %v4389 = vadd.f32 %v470, %v4388
    %v4390 = vpop.f32.mrb[0].mxu0
    %4391 = vdwg.mxu0
    %v4392 = vsel %vm856, %v4384, -inf
    %4393 = vmax.xlane.f32.xlu0 %v4392
    %v4394 = vpop.xlane.xlu0 %4393
    %v4395 = vsel %vm856, %v4389, -inf
    %4396 = vmax.xlane.f32.xlu0 %v4395
    %v4397 = vpop.xlane.xlu0 %4396
    %v4398 = vsub.f32 %v4384, %v4394
    %v4399 = vsub.f32 %v4389, %v4397
    %v4400 = vmul.f32 %v4398, 1.442695
    %v4401 = vpow.pop %v4400
    %v4402 = vmul.f32 %v4399, 1.442695
    %v4403 = vpow.pop %v4402
    %v4404 = vmul.f32 %v4401, %v467
    %v4405 = vmul.f32 %v4403, %v468
    %v4406 = vsel %vm856, %v4404, 0.0
    %4407 = vadd.xlane.f32.xlu0 %v4406
    %v4408 = vpop.xlane.xlu0 %4407
    %v4409 = vsel %vm856, %v4405, 0.0
    %4410 = vadd.xlane.f32.xlu0 %v4409
    %v4411 = vpop.xlane.xlu0 %4410
    %vm4412 = vcmp.gt.f32.partialorder %v4408, 0.0
    %vm4413 = vcmp.gt.f32.partialorder %v4411, 0.0
    %v4414 = vsel %vm4412, %v4408, 1.0
    %v4415 = vsel %vm4413, %v4411, 1.0
    %v4416 = vrcp.pop %v4414
    %v4417 = vrcp.pop %v4415
    %v4418 = vmul.f32 %v4404, %v4416
    %v4419 = vmul.f32 %v4405, %v4417
    %4420 = vrot.lane.b32.xlu0 %v3269, 64
    %v4421 = vpop.permute.xlu0 %4420
    %4422 = vrot.lane.b32.xlu0 %v3274, 64
    %v4423 = vpop.permute.xlu0 %4422
    %4424 = vrot.lane.b32.xlu0 %v3279, 64
    %v4425 = vpop.permute.xlu0 %4424
    %v4430 = vsel %vm856, %v4418, 0
    %v4433 = vsel %vm856, %v4419, 0
    %4435 = vmatprep.subr.mxu0 0.0
    %4436 = vmatpush1.msra.mxu0 %v4421
    %4437 = vmatprep.subr.mxu0 0.0
    %4438 = vmatpush1.msra.mxu0 %v4423
    %4439 = vmatprep.subr.mxu0 0.0
    %4440 = vmatpush1.msra.mxu0 %v4425
    %4441 = vmatprep.subr.mxu0 0.0
    %4442 = vmatpush1.msra.mxu0 0.0
    %4443 = vmatprep.subr.mxu0 0.0
    %4444 = vmatpush1.msra.mxu0 0.0
    %4445 = vmatprep.subr.mxu0 0.0
    %4446 = vmatpush1.msra.mxu0 0.0
    %4447 = vmatprep.subr.mxu0 0.0
    %4448 = vmatpush1.msra.mxu0 0.0
    %4449 = vmatprep.subr.mxu0 0.0
    %4450 = vmatpush1.msra.mxu0 0.0
    %4451 = vmatprep.subr.mxu0 0.0
    %4452 = vmatpush1.msra.mxu0 0.0
    %4453 = vmatprep.subr.mxu0 0.0
    %4454 = vmatpush1.msra.mxu0 0.0
    %4455 = vmatprep.subr.mxu0 0.0
    %4456 = vmatpush1.msra.mxu0 0.0
    %4457 = vmatprep.subr.mxu0 0.0
    %4458 = vmatpush1.msra.mxu0 0.0
    %4459 = vmatprep.subr.mxu0 0.0
    %4460 = vmatpush1.msra.mxu0 0.0
    %4461 = vmatprep.subr.mxu0 0.0
    %4462 = vmatpush1.msra.mxu0 0.0
    %4463 = vmatprep.subr.mxu0 0.0
    %4464 = vmatpush1.msra.mxu0 0.0
    %4465 = vmatprep.subr.mxu0 0.0
    %4466 = vmatpush1.msra.mxu0 0.0
    %4467 = vmatprep.subr.mxu0 0.0
    %4468 = vmatpush1.msra.mxu0 0.0
    %4469 = vmatprep.subr.mxu0 0.0
    %4470 = vmatpush1.msra.mxu0 0.0
    %4471 = vmatprep.subr.mxu0 0.0
    %4472 = vmatpush1.msra.mxu0 0.0
    %4473 = vmatprep.subr.mxu0 0.0
    %4474 = vmatpush1.msra.mxu0 0.0
    %4475 = vmatprep.subr.mxu0 0.0
    %4476 = vmatpush1.msra.mxu0 0.0
    %4477 = vmatprep.subr.mxu0 0.0
    %4478 = vmatpush1.msra.mxu0 0.0
    %4479 = vmatprep.subr.mxu0 0.0
    %4480 = vmatpush1.msra.mxu0 0.0
    %4481 = vmatprep.subr.mxu0 0.0
    %4482 = vmatpush1.msra.mxu0 0.0
    %4483 = vmatprep.subr.mxu0 0.0
    %4484 = vmatpush1.msra.mxu0 0.0
    %4485 = vmatprep.subr.mxu0 0.0
    %4486 = vmatpush1.msra.mxu0 0.0
    %4487 = vmatprep.subr.mxu0 0.0
    %4488 = vmatpush1.msra.mxu0 0.0
    %4489 = vmatprep.subr.mxu0 0.0
    %4490 = vmatpush1.msra.mxu0 0.0
    %4491 = vmatprep.subr.mxu0 0.0
    %4492 = vmatpush1.msra.mxu0 0.0
    %4493 = vmatprep.subr.mxu0 0.0
    %4494 = vmatpush1.msra.mxu0 0.0
    %4495 = vmatprep.subr.mxu0 0.0
    %4496 = vmatpush1.msra.mxu0 0.0
    %4497 = vmatprep.subr.mxu0 0.0
    %4498 = vmatpush1.msra.mxu0 0.0
    %4499 = vmatprep.mubr.f32.mxu0 0.0
    %4500 = vmatmul.mubr.f32.gmra.mrb[0].mxu0 %v4430
    %v4501 = vpop.f32.mrb[0].mxu0
    %v4502 = vadd.f32 0.0, %v4501
    %v4503 = vpop.f32.mrb[0].mxu0
    %4504 = vmatprep.mubr.f32.mxu0 0.0
    %4505 = vmatmul.mubr.f32.gmra.mrb[0].mxu0 %v4433
    %v4506 = vpop.f32.mrb[0].mxu0
    %v4507 = vadd.f32 0.0, %v4506
    %v4508 = vpop.f32.mrb[0].mxu0
    %4509 = vdwg.mxu0
    %4510 = vrot.lane.b32.xlu0 %v3089, 88
    %v4511 = vpop.permute.xlu0 %4510
    %4512 = vrot.lane.b32.xlu0 %v3094, 88
    %v4513 = vpop.permute.xlu0 %4512
    %4514 = vrot.lane.b32.xlu0 %v3269, 120
    %v4515 = vpop.permute.xlu0 %4514
    %4516 = vrot.lane.b32.xlu0 %v3274, 120
    %v4517 = vpop.permute.xlu0 %4516
    %4518 = vrot.lane.b32.xlu0 %v3279, 120
    %v4519 = vpop.permute.xlu0 %4518
    %v4520 = vsel %vm195, %v4511, 0
    %v4522 = vsel %vm195, %v4513, 0
    %v4524 = vsel %vm195, %v4515, 0
    %v4526 = vsel %vm195, %v4517, 0
    %v4528 = vsel %vm195, %v4519, 0
    %4530 = vmatprep.subr.mxu0 0.0
    %4531 = vmatpush1.xpose.msra.mxu0 %v4524
    %4532 = vmatprep.subr.mxu0 0.0
    %4533 = vmatpush1.xpose.msra.mxu0 %v4526
    %4534 = vmatprep.subr.mxu0 0.0
    %4535 = vmatpush1.xpose.msra.mxu0 %v4528
    %4536 = vmatprep.subr.mxu0 0.0
    %4537 = vmatpush1.xpose.msra.mxu0 0.0
    %4538 = vmatprep.subr.mxu0 0.0
    %4539 = vmatpush1.xpose.msra.mxu0 0.0
    %4540 = vmatprep.subr.mxu0 0.0
    %4541 = vmatpush1.xpose.msra.mxu0 0.0
    %4542 = vmatprep.subr.mxu0 0.0
    %4543 = vmatpush1.xpose.msra.mxu0 0.0
    %4544 = vmatprep.subr.mxu0 0.0
    %4545 = vmatpush1.xpose.msra.mxu0 0.0
    %4546 = vmatprep.subr.mxu0 0.0
    %4547 = vmatpush1.xpose.msra.mxu0 0.0
    %4548 = vmatprep.subr.mxu0 0.0
    %4549 = vmatpush1.xpose.msra.mxu0 0.0
    %4550 = vmatprep.subr.mxu0 0.0
    %4551 = vmatpush1.xpose.msra.mxu0 0.0
    %4552 = vmatprep.subr.mxu0 0.0
    %4553 = vmatpush1.xpose.msra.mxu0 0.0
    %4554 = vmatprep.subr.mxu0 0.0
    %4555 = vmatpush1.xpose.msra.mxu0 0.0
    %4556 = vmatprep.subr.mxu0 0.0
    %4557 = vmatpush1.xpose.msra.mxu0 0.0
    %4558 = vmatprep.subr.mxu0 0.0
    %4559 = vmatpush1.xpose.msra.mxu0 0.0
    %4560 = vmatprep.subr.mxu0 0.0
    %4561 = vmatpush1.xpose.msra.mxu0 0.0
    %4562 = vmatprep.subr.mxu0 0.0
    %4563 = vmatpush1.xpose.msra.mxu0 0.0
    %4564 = vmatprep.subr.mxu0 0.0
    %4565 = vmatpush1.xpose.msra.mxu0 0.0
    %4566 = vmatprep.subr.mxu0 0.0
    %4567 = vmatpush1.xpose.msra.mxu0 0.0
    %4568 = vmatprep.subr.mxu0 0.0
    %4569 = vmatpush1.xpose.msra.mxu0 0.0
    %4570 = vmatprep.subr.mxu0 0.0
    %4571 = vmatpush1.xpose.msra.mxu0 0.0
    %4572 = vmatprep.subr.mxu0 0.0
    %4573 = vmatpush1.xpose.msra.mxu0 0.0
    %4574 = vmatprep.subr.mxu0 0.0
    %4575 = vmatpush1.xpose.msra.mxu0 0.0
    %4576 = vmatprep.subr.mxu0 0.0
    %4577 = vmatpush1.xpose.msra.mxu0 0.0
    %4578 = vmatprep.subr.mxu0 0.0
    %4579 = vmatpush1.xpose.msra.mxu0 0.0
    %4580 = vmatprep.subr.mxu0 0.0
    %4581 = vmatpush1.xpose.msra.mxu0 0.0
    %4582 = vmatprep.subr.mxu0 0.0
    %4583 = vmatpush1.xpose.msra.mxu0 0.0
    %4584 = vmatprep.subr.mxu0 0.0
    %4585 = vmatpush1.xpose.msra.mxu0 0.0
    %4586 = vmatprep.subr.mxu0 0.0
    %4587 = vmatpush1.xpose.msra.mxu0 0.0
    %4588 = vmatprep.subr.mxu0 0.0
    %4589 = vmatpush1.xpose.msra.mxu0 0.0
    %4590 = vmatprep.subr.mxu0 0.0
    %4591 = vmatpush1.xpose.msra.mxu0 0.0
    %4592 = vmatprep.subr.mxu0 0.0
    %4593 = vmatpush1.xpose.msra.mxu0 0.0
    %4594 = vmatprep.mubr.f32.mxu0 0.0
    %4595 = vmatmul.mubr.f32.gmra.mrb[0].mxu0 %v4520
    %v4596 = vpop.f32.mrb[0].mxu0
    %v4597 = vadd.f32 %v469, %v4596
    %v4598 = vpop.f32.mrb[0].mxu0
    %4599 = vmatprep.mubr.f32.mxu0 0.0
    %4600 = vmatmul.mubr.f32.gmra.mrb[0].mxu0 %v4522
    %v4601 = vpop.f32.mrb[0].mxu0
    %v4602 = vadd.f32 %v470, %v4601
    %v4603 = vpop.f32.mrb[0].mxu0
    %4604 = vdwg.mxu0
    %v4605 = vsel %vm856, %v4597, -inf
    %4606 = vmax.xlane.f32.xlu0 %v4605
    %v4607 = vpop.xlane.xlu0 %4606
    %v4608 = vsel %vm856, %v4602, -inf
    %4609 = vmax.xlane.f32.xlu0 %v4608
    %v4610 = vpop.xlane.xlu0 %4609
    %v4611 = vsub.f32 %v4597, %v4607
    %v4612 = vsub.f32 %v4602, %v4610
    %v4613 = vmul.f32 %v4611, 1.442695
    %v4614 = vpow.pop %v4613
    %v4615 = vmul.f32 %v4612, 1.442695
    %v4616 = vpow.pop %v4615
    %v4617 = vmul.f32 %v4614, %v467
    %v4618 = vmul.f32 %v4616, %v468
    %v4619 = vsel %vm856, %v4617, 0.0
    %4620 = vadd.xlane.f32.xlu0 %v4619
    %v4621 = vpop.xlane.xlu0 %4620
    %v4622 = vsel %vm856, %v4618, 0.0
    %4623 = vadd.xlane.f32.xlu0 %v4622
    %v4624 = vpop.xlane.xlu0 %4623
    %vm4625 = vcmp.gt.f32.partialorder %v4621, 0.0
    %vm4626 = vcmp.gt.f32.partialorder %v4624, 0.0
    %v4627 = vsel %vm4625, %v4621, 1.0
    %v4628 = vsel %vm4626, %v4624, 1.0
    %v4629 = vrcp.pop %v4627
    %v4630 = vrcp.pop %v4628
    %v4631 = vmul.f32 %v4617, %v4629
    %v4632 = vmul.f32 %v4618, %v4630
    %4633 = vrot.lane.b32.xlu0 %v3269, 56
    %v4634 = vpop.permute.xlu0 %4633
    %4635 = vrot.lane.b32.xlu0 %v3274, 56
    %v4636 = vpop.permute.xlu0 %4635
    %4637 = vrot.lane.b32.xlu0 %v3279, 56
    %v4638 = vpop.permute.xlu0 %4637
    %v4643 = vsel %vm856, %v4631, 0
    %v4646 = vsel %vm856, %v4632, 0
    %4648 = vmatprep.subr.mxu0 0.0
    %4649 = vmatpush1.msra.mxu0 %v4634
    %4650 = vmatprep.subr.mxu0 0.0
    %4651 = vmatpush1.msra.mxu0 %v4636
    %4652 = vmatprep.subr.mxu0 0.0
    %4653 = vmatpush1.msra.mxu0 %v4638
    %4654 = vmatprep.subr.mxu0 0.0
    %4655 = vmatpush1.msra.mxu0 0.0
    %4656 = vmatprep.subr.mxu0 0.0
    %4657 = vmatpush1.msra.mxu0 0.0
    %4658 = vmatprep.subr.mxu0 0.0
    %4659 = vmatpush1.msra.mxu0 0.0
    %4660 = vmatprep.subr.mxu0 0.0
    %4661 = vmatpush1.msra.mxu0 0.0
    %4662 = vmatprep.subr.mxu0 0.0
    %4663 = vmatpush1.msra.mxu0 0.0
    %4664 = vmatprep.subr.mxu0 0.0
    %4665 = vmatpush1.msra.mxu0 0.0
    %4666 = vmatprep.subr.mxu0 0.0
    %4667 = vmatpush1.msra.mxu0 0.0
    %4668 = vmatprep.subr.mxu0 0.0
    %4669 = vmatpush1.msra.mxu0 0.0
    %4670 = vmatprep.subr.mxu0 0.0
    %4671 = vmatpush1.msra.mxu0 0.0
    %4672 = vmatprep.subr.mxu0 0.0
    %4673 = vmatpush1.msra.mxu0 0.0
    %4674 = vmatprep.subr.mxu0 0.0
    %4675 = vmatpush1.msra.mxu0 0.0
    %4676 = vmatprep.subr.mxu0 0.0
    %4677 = vmatpush1.msra.mxu0 0.0
    %4678 = vmatprep.subr.mxu0 0.0
    %4679 = vmatpush1.msra.mxu0 0.0
    %4680 = vmatprep.subr.mxu0 0.0
    %4681 = vmatpush1.msra.mxu0 0.0
    %4682 = vmatprep.subr.mxu0 0.0
    %4683 = vmatpush1.msra.mxu0 0.0
    %4684 = vmatprep.subr.mxu0 0.0
    %4685 = vmatpush1.msra.mxu0 0.0
    %4686 = vmatprep.subr.mxu0 0.0
    %4687 = vmatpush1.msra.mxu0 0.0
    %4688 = vmatprep.subr.mxu0 0.0
    %4689 = vmatpush1.msra.mxu0 0.0
    %4690 = vmatprep.subr.mxu0 0.0
    %4691 = vmatpush1.msra.mxu0 0.0
    %4692 = vmatprep.subr.mxu0 0.0
    %4693 = vmatpush1.msra.mxu0 0.0
    %4694 = vmatprep.subr.mxu0 0.0
    %4695 = vmatpush1.msra.mxu0 0.0
    %4696 = vmatprep.subr.mxu0 0.0
    %4697 = vmatpush1.msra.mxu0 0.0
    %4698 = vmatprep.subr.mxu0 0.0
    %4699 = vmatpush1.msra.mxu0 0.0
    %4700 = vmatprep.subr.mxu0 0.0
    %4701 = vmatpush1.msra.mxu0 0.0
    %4702 = vmatprep.subr.mxu0 0.0
    %4703 = vmatpush1.msra.mxu0 0.0
    %4704 = vmatprep.subr.mxu0 0.0
    %4705 = vmatpush1.msra.mxu0 0.0
    %4706 = vmatprep.subr.mxu0 0.0
    %4707 = vmatpush1.msra.mxu0 0.0
    %4708 = vmatprep.subr.mxu0 0.0
    %4709 = vmatpush1.msra.mxu0 0.0
    %4710 = vmatprep.subr.mxu0 0.0
    %4711 = vmatpush1.msra.mxu0 0.0
    %4712 = vmatprep.mubr.f32.mxu0 0.0
    %4713 = vmatmul.mubr.f32.gmra.mrb[0].mxu0 %v4643
    %v4714 = vpop.f32.mrb[0].mxu0
    %v4715 = vadd.f32 0.0, %v4714
    %v4716 = vpop.f32.mrb[0].mxu0
    %4717 = vmatprep.mubr.f32.mxu0 0.0
    %4718 = vmatmul.mubr.f32.gmra.mrb[0].mxu0 %v4646
    %v4719 = vpop.f32.mrb[0].mxu0
    %v4720 = vadd.f32 0.0, %v4719
    %v4721 = vpop.f32.mrb[0].mxu0
    %4722 = vdwg.mxu0
    %4723 = vrot.lane.b32.xlu0 %v3089, 80
    %v4724 = vpop.permute.xlu0 %4723
    %4725 = vrot.lane.b32.xlu0 %v3094, 80
    %v4726 = vpop.permute.xlu0 %4725
    %4727 = vrot.lane.b32.xlu0 %v3269, 112
    %v4728 = vpop.permute.xlu0 %4727
    %4729 = vrot.lane.b32.xlu0 %v3274, 112
    %v4730 = vpop.permute.xlu0 %4729
    %4731 = vrot.lane.b32.xlu0 %v3279, 112
    %v4732 = vpop.permute.xlu0 %4731
    %v4733 = vsel %vm195, %v4724, 0
    %v4735 = vsel %vm195, %v4726, 0
    %v4737 = vsel %vm195, %v4728, 0
    %v4739 = vsel %vm195, %v4730, 0
    %v4741 = vsel %vm195, %v4732, 0
    %4743 = vmatprep.subr.mxu0 0.0
    %4744 = vmatpush1.xpose.msra.mxu0 %v4737
    %4745 = vmatprep.subr.mxu0 0.0
    %4746 = vmatpush1.xpose.msra.mxu0 %v4739
    %4747 = vmatprep.subr.mxu0 0.0
    %4748 = vmatpush1.xpose.msra.mxu0 %v4741
    %4749 = vmatprep.subr.mxu0 0.0
    %4750 = vmatpush1.xpose.msra.mxu0 0.0
    %4751 = vmatprep.subr.mxu0 0.0
    %4752 = vmatpush1.xpose.msra.mxu0 0.0
    %4753 = vmatprep.subr.mxu0 0.0
    %4754 = vmatpush1.xpose.msra.mxu0 0.0
    %4755 = vmatprep.subr.mxu0 0.0
    %4756 = vmatpush1.xpose.msra.mxu0 0.0
    %4757 = vmatprep.subr.mxu0 0.0
    %4758 = vmatpush1.xpose.msra.mxu0 0.0
    %4759 = vmatprep.subr.mxu0 0.0
    %4760 = vmatpush1.xpose.msra.mxu0 0.0
    %4761 = vmatprep.subr.mxu0 0.0
    %4762 = vmatpush1.xpose.msra.mxu0 0.0
    %4763 = vmatprep.subr.mxu0 0.0
    %4764 = vmatpush1.xpose.msra.mxu0 0.0
    %4765 = vmatprep.subr.mxu0 0.0
    %4766 = vmatpush1.xpose.msra.mxu0 0.0
    %4767 = vmatprep.subr.mxu0 0.0
    %4768 = vmatpush1.xpose.msra.mxu0 0.0
    %4769 = vmatprep.subr.mxu0 0.0
    %4770 = vmatpush1.xpose.msra.mxu0 0.0
    %4771 = vmatprep.subr.mxu0 0.0
    %4772 = vmatpush1.xpose.msra.mxu0 0.0
    %4773 = vmatprep.subr.mxu0 0.0
    %4774 = vmatpush1.xpose.msra.mxu0 0.0
    %4775 = vmatprep.subr.mxu0 0.0
    %4776 = vmatpush1.xpose.msra.mxu0 0.0
    %4777 = vmatprep.subr.mxu0 0.0
    %4778 = vmatpush1.xpose.msra.mxu0 0.0
    %4779 = vmatprep.subr.mxu0 0.0
    %4780 = vmatpush1.xpose.msra.mxu0 0.0
    %4781 = vmatprep.subr.mxu0 0.0
    %4782 = vmatpush1.xpose.msra.mxu0 0.0
    %4783 = vmatprep.subr.mxu0 0.0
    %4784 = vmatpush1.xpose.msra.mxu0 0.0
    %4785 = vmatprep.subr.mxu0 0.0
    %4786 = vmatpush1.xpose.msra.mxu0 0.0
    %4787 = vmatprep.subr.mxu0 0.0
    %4788 = vmatpush1.xpose.msra.mxu0 0.0
    %4789 = vmatprep.subr.mxu0 0.0
    %4790 = vmatpush1.xpose.msra.mxu0 0.0
    %4791 = vmatprep.subr.mxu0 0.0
    %4792 = vmatpush1.xpose.msra.mxu0 0.0
    %4793 = vmatprep.subr.mxu0 0.0
    %4794 = vmatpush1.xpose.msra.mxu0 0.0
    %4795 = vmatprep.subr.mxu0 0.0
    %4796 = vmatpush1.xpose.msra.mxu0 0.0
    %4797 = vmatprep.subr.mxu0 0.0
    %4798 = vmatpush1.xpose.msra.mxu0 0.0
    %4799 = vmatprep.subr.mxu0 0.0
    %4800 = vmatpush1.xpose.msra.mxu0 0.0
    %4801 = vmatprep.subr.mxu0 0.0
    %4802 = vmatpush1.xpose.msra.mxu0 0.0
    %4803 = vmatprep.subr.mxu0 0.0
    %4804 = vmatpush1.xpose.msra.mxu0 0.0
    %4805 = vmatprep.subr.mxu0 0.0
    %4806 = vmatpush1.xpose.msra.mxu0 0.0
    %4807 = vmatprep.mubr.f32.mxu0 0.0
    %4808 = vmatmul.mubr.f32.gmra.mrb[0].mxu0 %v4733
    %v4809 = vpop.f32.mrb[0].mxu0
    %v4810 = vadd.f32 %v469, %v4809
    %v4811 = vpop.f32.mrb[0].mxu0
    %4812 = vmatprep.mubr.f32.mxu0 0.0
    %4813 = vmatmul.mubr.f32.gmra.mrb[0].mxu0 %v4735
    %v4814 = vpop.f32.mrb[0].mxu0
    %v4815 = vadd.f32 %v470, %v4814
    %v4816 = vpop.f32.mrb[0].mxu0
    %4817 = vdwg.mxu0
    %v4818 = vsel %vm856, %v4810, -inf
    %4819 = vmax.xlane.f32.xlu0 %v4818
    %v4820 = vpop.xlane.xlu0 %4819
    %v4821 = vsel %vm856, %v4815, -inf
    %4822 = vmax.xlane.f32.xlu0 %v4821
    %v4823 = vpop.xlane.xlu0 %4822
    %v4824 = vsub.f32 %v4810, %v4820
    %v4825 = vsub.f32 %v4815, %v4823
    %v4826 = vmul.f32 %v4824, 1.442695
    %v4827 = vpow.pop %v4826
    %v4828 = vmul.f32 %v4825, 1.442695
    %v4829 = vpow.pop %v4828
    %v4830 = vmul.f32 %v4827, %v467
    %v4831 = vmul.f32 %v4829, %v468
    %v4832 = vsel %vm856, %v4830, 0.0
    %4833 = vadd.xlane.f32.xlu0 %v4832
    %v4834 = vpop.xlane.xlu0 %4833
    %v4835 = vsel %vm856, %v4831, 0.0
    %4836 = vadd.xlane.f32.xlu0 %v4835
    %v4837 = vpop.xlane.xlu0 %4836
    %vm4838 = vcmp.gt.f32.partialorder %v4834, 0.0
    %vm4839 = vcmp.gt.f32.partialorder %v4837, 0.0
    %v4840 = vsel %vm4838, %v4834, 1.0
    %v4841 = vsel %vm4839, %v4837, 1.0
    %v4842 = vrcp.pop %v4840
    %v4843 = vrcp.pop %v4841
    %v4844 = vmul.f32 %v4830, %v4842
    %v4845 = vmul.f32 %v4831, %v4843
    %4846 = vrot.lane.b32.xlu0 %v3269, 48
    %v4847 = vpop.permute.xlu0 %4846
    %4848 = vrot.lane.b32.xlu0 %v3274, 48
    %v4849 = vpop.permute.xlu0 %4848
    %4850 = vrot.lane.b32.xlu0 %v3279, 48
    %v4851 = vpop.permute.xlu0 %4850
    %v4856 = vsel %vm856, %v4844, 0
    %v4859 = vsel %vm856, %v4845, 0
    %4861 = vmatprep.subr.mxu0 0.0
    %4862 = vmatpush1.msra.mxu0 %v4847
    %4863 = vmatprep.subr.mxu0 0.0
    %4864 = vmatpush1.msra.mxu0 %v4849
    %4865 = vmatprep.subr.mxu0 0.0
    %4866 = vmatpush1.msra.mxu0 %v4851
    %4867 = vmatprep.subr.mxu0 0.0
    %4868 = vmatpush1.msra.mxu0 0.0
    %4869 = vmatprep.subr.mxu0 0.0
    %4870 = vmatpush1.msra.mxu0 0.0
    %4871 = vmatprep.subr.mxu0 0.0
    %4872 = vmatpush1.msra.mxu0 0.0
    %4873 = vmatprep.subr.mxu0 0.0
    %4874 = vmatpush1.msra.mxu0 0.0
    %4875 = vmatprep.subr.mxu0 0.0
    %4876 = vmatpush1.msra.mxu0 0.0
    %4877 = vmatprep.subr.mxu0 0.0
    %4878 = vmatpush1.msra.mxu0 0.0
    %4879 = vmatprep.subr.mxu0 0.0
    %4880 = vmatpush1.msra.mxu0 0.0
    %4881 = vmatprep.subr.mxu0 0.0
    %4882 = vmatpush1.msra.mxu0 0.0
    %4883 = vmatprep.subr.mxu0 0.0
    %4884 = vmatpush1.msra.mxu0 0.0
    %4885 = vmatprep.subr.mxu0 0.0
    %4886 = vmatpush1.msra.mxu0 0.0
    %4887 = vmatprep.subr.mxu0 0.0
    %4888 = vmatpush1.msra.mxu0 0.0
    %4889 = vmatprep.subr.mxu0 0.0
    %4890 = vmatpush1.msra.mxu0 0.0
    %4891 = vmatprep.subr.mxu0 0.0
    %4892 = vmatpush1.msra.mxu0 0.0
    %4893 = vmatprep.subr.mxu0 0.0
    %4894 = vmatpush1.msra.mxu0 0.0
    %4895 = vmatprep.subr.mxu0 0.0
    %4896 = vmatpush1.msra.mxu0 0.0
    %4897 = vmatprep.subr.mxu0 0.0
    %4898 = vmatpush1.msra.mxu0 0.0
    %4899 = vmatprep.subr.mxu0 0.0
    %4900 = vmatpush1.msra.mxu0 0.0
    %4901 = vmatprep.subr.mxu0 0.0
    %4902 = vmatpush1.msra.mxu0 0.0
    %4903 = vmatprep.subr.mxu0 0.0
    %4904 = vmatpush1.msra.mxu0 0.0
    %4905 = vmatprep.subr.mxu0 0.0
    %4906 = vmatpush1.msra.mxu0 0.0
    %4907 = vmatprep.subr.mxu0 0.0
    %4908 = vmatpush1.msra.mxu0 0.0
    %4909 = vmatprep.subr.mxu0 0.0
    %4910 = vmatpush1.msra.mxu0 0.0
    %4911 = vmatprep.subr.mxu0 0.0
    %4912 = vmatpush1.msra.mxu0 0.0
    %4913 = vmatprep.subr.mxu0 0.0
    %4914 = vmatpush1.msra.mxu0 0.0
    %4915 = vmatprep.subr.mxu0 0.0
    %4916 = vmatpush1.msra.mxu0 0.0
    %4917 = vmatprep.subr.mxu0 0.0
    %4918 = vmatpush1.msra.mxu0 0.0
    %4919 = vmatprep.subr.mxu0 0.0
    %4920 = vmatpush1.msra.mxu0 0.0
    %4921 = vmatprep.subr.mxu0 0.0
    %4922 = vmatpush1.msra.mxu0 0.0
    %4923 = vmatprep.subr.mxu0 0.0
    %4924 = vmatpush1.msra.mxu0 0.0
    %4925 = vmatprep.mubr.f32.mxu0 0.0
    %4926 = vmatmul.mubr.f32.gmra.mrb[0].mxu0 %v4856
    %v4927 = vpop.f32.mrb[0].mxu0
    %v4928 = vadd.f32 0.0, %v4927
    %v4929 = vpop.f32.mrb[0].mxu0
    %4930 = vmatprep.mubr.f32.mxu0 0.0
    %4931 = vmatmul.mubr.f32.gmra.mrb[0].mxu0 %v4859
    %v4932 = vpop.f32.mrb[0].mxu0
    %v4933 = vadd.f32 0.0, %v4932
    %v4934 = vpop.f32.mrb[0].mxu0
    %4935 = vdwg.mxu0
    %4936 = vrot.lane.b32.xlu0 %v3089, 72
    %v4937 = vpop.permute.xlu0 %4936
    %4938 = vrot.lane.b32.xlu0 %v3094, 72
    %v4939 = vpop.permute.xlu0 %4938
    %4940 = vrot.lane.b32.xlu0 %v3269, 104
    %v4941 = vpop.permute.xlu0 %4940
    %4942 = vrot.lane.b32.xlu0 %v3274, 104
    %v4943 = vpop.permute.xlu0 %4942
    %4944 = vrot.lane.b32.xlu0 %v3279, 104
    %v4945 = vpop.permute.xlu0 %4944
    %v4946 = vsel %vm195, %v4937, 0
    %v4948 = vsel %vm195, %v4939, 0
    %v4950 = vsel %vm195, %v4941, 0
    %v4952 = vsel %vm195, %v4943, 0
    %v4954 = vsel %vm195, %v4945, 0
    %4956 = vmatprep.subr.mxu0 0.0
    %4957 = vmatpush1.xpose.msra.mxu0 %v4950
    %4958 = vmatprep.subr.mxu0 0.0
    %4959 = vmatpush1.xpose.msra.mxu0 %v4952
    %4960 = vmatprep.subr.mxu0 0.0
    %4961 = vmatpush1.xpose.msra.mxu0 %v4954
    %4962 = vmatprep.subr.mxu0 0.0
    %4963 = vmatpush1.xpose.msra.mxu0 0.0
    %4964 = vmatprep.subr.mxu0 0.0
    %4965 = vmatpush1.xpose.msra.mxu0 0.0
    %4966 = vmatprep.subr.mxu0 0.0
    %4967 = vmatpush1.xpose.msra.mxu0 0.0
    %4968 = vmatprep.subr.mxu0 0.0
    %4969 = vmatpush1.xpose.msra.mxu0 0.0
    %4970 = vmatprep.subr.mxu0 0.0
    %4971 = vmatpush1.xpose.msra.mxu0 0.0
    %4972 = vmatprep.subr.mxu0 0.0
    %4973 = vmatpush1.xpose.msra.mxu0 0.0
    %4974 = vmatprep.subr.mxu0 0.0
    %4975 = vmatpush1.xpose.msra.mxu0 0.0
    %4976 = vmatprep.subr.mxu0 0.0
    %4977 = vmatpush1.xpose.msra.mxu0 0.0
    %4978 = vmatprep.subr.mxu0 0.0
    %4979 = vmatpush1.xpose.msra.mxu0 0.0
    %4980 = vmatprep.subr.mxu0 0.0
    %4981 = vmatpush1.xpose.msra.mxu0 0.0
    %4982 = vmatprep.subr.mxu0 0.0
    %4983 = vmatpush1.xpose.msra.mxu0 0.0
    %4984 = vmatprep.subr.mxu0 0.0
    %4985 = vmatpush1.xpose.msra.mxu0 0.0
    %4986 = vmatprep.subr.mxu0 0.0
    %4987 = vmatpush1.xpose.msra.mxu0 0.0
    %4988 = vmatprep.subr.mxu0 0.0
    %4989 = vmatpush1.xpose.msra.mxu0 0.0
    %4990 = vmatprep.subr.mxu0 0.0
    %4991 = vmatpush1.xpose.msra.mxu0 0.0
    %4992 = vmatprep.subr.mxu0 0.0
    %4993 = vmatpush1.xpose.msra.mxu0 0.0
    %4994 = vmatprep.subr.mxu0 0.0
    %4995 = vmatpush1.xpose.msra.mxu0 0.0
    %4996 = vmatprep.subr.mxu0 0.0
    %4997 = vmatpush1.xpose.msra.mxu0 0.0
    %4998 = vmatprep.subr.mxu0 0.0
    %4999 = vmatpush1.xpose.msra.mxu0 0.0
    %5000 = vmatprep.subr.mxu0 0.0
    %5001 = vmatpush1.xpose.msra.mxu0 0.0
    %5002 = vmatprep.subr.mxu0 0.0
    %5003 = vmatpush1.xpose.msra.mxu0 0.0
    %5004 = vmatprep.subr.mxu0 0.0
    %5005 = vmatpush1.xpose.msra.mxu0 0.0
    %5006 = vmatprep.subr.mxu0 0.0
    %5007 = vmatpush1.xpose.msra.mxu0 0.0
    %5008 = vmatprep.subr.mxu0 0.0
    %5009 = vmatpush1.xpose.msra.mxu0 0.0
    %5010 = vmatprep.subr.mxu0 0.0
    %5011 = vmatpush1.xpose.msra.mxu0 0.0
    %5012 = vmatprep.subr.mxu0 0.0
    %5013 = vmatpush1.xpose.msra.mxu0 0.0
    %5014 = vmatprep.subr.mxu0 0.0
    %5015 = vmatpush1.xpose.msra.mxu0 0.0
    %5016 = vmatprep.subr.mxu0 0.0
    %5017 = vmatpush1.xpose.msra.mxu0 0.0
    %5018 = vmatprep.subr.mxu0 0.0
    %5019 = vmatpush1.xpose.msra.mxu0 0.0
    %5020 = vmatprep.mubr.f32.mxu0 0.0
    %5021 = vmatmul.mubr.f32.gmra.mrb[0].mxu0 %v4946
    %v5022 = vpop.f32.mrb[0].mxu0
    %v5023 = vadd.f32 %v469, %v5022
    %v5024 = vpop.f32.mrb[0].mxu0
    %5025 = vmatprep.mubr.f32.mxu0 0.0
    %5026 = vmatmul.mubr.f32.gmra.mrb[0].mxu0 %v4948
    %v5027 = vpop.f32.mrb[0].mxu0
    %v5028 = vadd.f32 %v470, %v5027
    %v5029 = vpop.f32.mrb[0].mxu0
    %5030 = vdwg.mxu0
    %v5031 = vsel %vm856, %v5023, -inf
    %5032 = vmax.xlane.f32.xlu0 %v5031
    %v5033 = vpop.xlane.xlu0 %5032
    %v5034 = vsel %vm856, %v5028, -inf
    %5035 = vmax.xlane.f32.xlu0 %v5034
    %v5036 = vpop.xlane.xlu0 %5035
    %v5037 = vsub.f32 %v5023, %v5033
    %v5038 = vsub.f32 %v5028, %v5036
    %v5039 = vmul.f32 %v5037, 1.442695
    %v5040 = vpow.pop %v5039
    %v5041 = vmul.f32 %v5038, 1.442695
    %v5042 = vpow.pop %v5041
    %v5043 = vmul.f32 %v5040, %v467
    %v5044 = vmul.f32 %v5042, %v468
    %v5045 = vsel %vm856, %v5043, 0.0
    %5046 = vadd.xlane.f32.xlu0 %v5045
    %v5047 = vpop.xlane.xlu0 %5046
    %v5048 = vsel %vm856, %v5044, 0.0
    %5049 = vadd.xlane.f32.xlu0 %v5048
    %v5050 = vpop.xlane.xlu0 %5049
    %vm5051 = vcmp.gt.f32.partialorder %v5047, 0.0
    %vm5052 = vcmp.gt.f32.partialorder %v5050, 0.0
    %v5053 = vsel %vm5051, %v5047, 1.0
    %v5054 = vsel %vm5052, %v5050, 1.0
    %v5055 = vrcp.pop %v5053
    %v5056 = vrcp.pop %v5054
    %v5057 = vmul.f32 %v5043, %v5055
    %v5058 = vmul.f32 %v5044, %v5056
    %5059 = vrot.lane.b32.xlu0 %v3269, 40
    %v5060 = vpop.permute.xlu0 %5059
    %5061 = vrot.lane.b32.xlu0 %v3274, 40
    %v5062 = vpop.permute.xlu0 %5061
    %5063 = vrot.lane.b32.xlu0 %v3279, 40
    %v5064 = vpop.permute.xlu0 %5063
    %v5069 = vsel %vm856, %v5057, 0
    %v5072 = vsel %vm856, %v5058, 0
    %5074 = vmatprep.subr.mxu0 0.0
    %5075 = vmatpush1.msra.mxu0 %v5060
    %5076 = vmatprep.subr.mxu0 0.0
    %5077 = vmatpush1.msra.mxu0 %v5062
    %5078 = vmatprep.subr.mxu0 0.0
    %5079 = vmatpush1.msra.mxu0 %v5064
    %5080 = vmatprep.subr.mxu0 0.0
    %5081 = vmatpush1.msra.mxu0 0.0
    %5082 = vmatprep.subr.mxu0 0.0
    %5083 = vmatpush1.msra.mxu0 0.0
    %5084 = vmatprep.subr.mxu0 0.0
    %5085 = vmatpush1.msra.mxu0 0.0
    %5086 = vmatprep.subr.mxu0 0.0
    %5087 = vmatpush1.msra.mxu0 0.0
    %5088 = vmatprep.subr.mxu0 0.0
    %5089 = vmatpush1.msra.mxu0 0.0
    %5090 = vmatprep.subr.mxu0 0.0
    %5091 = vmatpush1.msra.mxu0 0.0
    %5092 = vmatprep.subr.mxu0 0.0
    %5093 = vmatpush1.msra.mxu0 0.0
    %5094 = vmatprep.subr.mxu0 0.0
    %5095 = vmatpush1.msra.mxu0 0.0
    %5096 = vmatprep.subr.mxu0 0.0
    %5097 = vmatpush1.msra.mxu0 0.0
    %5098 = vmatprep.subr.mxu0 0.0
    %5099 = vmatpush1.msra.mxu0 0.0
    %5100 = vmatprep.subr.mxu0 0.0
    %5101 = vmatpush1.msra.mxu0 0.0
    %5102 = vmatprep.subr.mxu0 0.0
    %5103 = vmatpush1.msra.mxu0 0.0
    %5104 = vmatprep.subr.mxu0 0.0
    %5105 = vmatpush1.msra.mxu0 0.0
    %5106 = vmatprep.subr.mxu0 0.0
    %5107 = vmatpush1.msra.mxu0 0.0
    %5108 = vmatprep.subr.mxu0 0.0
    %5109 = vmatpush1.msra.mxu0 0.0
    %5110 = vmatprep.subr.mxu0 0.0
    %5111 = vmatpush1.msra.mxu0 0.0
    %5112 = vmatprep.subr.mxu0 0.0
    %5113 = vmatpush1.msra.mxu0 0.0
    %5114 = vmatprep.subr.mxu0 0.0
    %5115 = vmatpush1.msra.mxu0 0.0
    %5116 = vmatprep.subr.mxu0 0.0
    %5117 = vmatpush1.msra.mxu0 0.0
    %5118 = vmatprep.subr.mxu0 0.0
    %5119 = vmatpush1.msra.mxu0 0.0
    %5120 = vmatprep.subr.mxu0 0.0
    %5121 = vmatpush1.msra.mxu0 0.0
    %5122 = vmatprep.subr.mxu0 0.0
    %5123 = vmatpush1.msra.mxu0 0.0
    %5124 = vmatprep.subr.mxu0 0.0
    %5125 = vmatpush1.msra.mxu0 0.0
    %5126 = vmatprep.subr.mxu0 0.0
    %5127 = vmatpush1.msra.mxu0 0.0
    %5128 = vmatprep.subr.mxu0 0.0
    %5129 = vmatpush1.msra.mxu0 0.0
    %5130 = vmatprep.subr.mxu0 0.0
    %5131 = vmatpush1.msra.mxu0 0.0
    %5132 = vmatprep.subr.mxu0 0.0
    %5133 = vmatpush1.msra.mxu0 0.0
    %5134 = vmatprep.subr.mxu0 0.0
    %5135 = vmatpush1.msra.mxu0 0.0
    %5136 = vmatprep.subr.mxu0 0.0
    %5137 = vmatpush1.msra.mxu0 0.0
    %5138 = vmatprep.mubr.f32.mxu0 0.0
    %5139 = vmatmul.mubr.f32.gmra.mrb[0].mxu0 %v5069
    %v5140 = vpop.f32.mrb[0].mxu0
    %v5141 = vadd.f32 0.0, %v5140
    %v5142 = vpop.f32.mrb[0].mxu0
    %5143 = vmatprep.mubr.f32.mxu0 0.0
    %5144 = vmatmul.mubr.f32.gmra.mrb[0].mxu0 %v5072
    %v5145 = vpop.f32.mrb[0].mxu0
    %v5146 = vadd.f32 0.0, %v5145
    %v5147 = vpop.f32.mrb[0].mxu0
    %5148 = vdwg.mxu0
    %5151 = vrot.lane.b32.xlu0 %v4715, 8
    %v5152 = vpop.permute.xlu0 %5151
    %5153 = vrot.lane.b32.xlu0 %v4720, 8
    %v5154 = vpop.permute.xlu0 %5153
    %5159 = vrot.lane.b32.xlu0 %v4928, 16
    %v5160 = vpop.permute.xlu0 %5159
    %5161 = vrot.lane.b32.xlu0 %v4933, 16
    %v5162 = vpop.permute.xlu0 %5161
    %5167 = vrot.lane.b32.xlu0 %v5141, 24
    %v5168 = vpop.permute.xlu0 %5167
    %5169 = vrot.lane.b32.xlu0 %v5146, 24
    %v5170 = vpop.permute.xlu0 %5169
    %v5173 = vsel %vm195, %v4502, %v5152
    %v5174 = vsel %vm195, %v4507, %v5154
    %v5175 = vsel %vm1768, %v5173, %v5160
    %v5176 = vsel %vm1768, %v5174, %v5162
    %v5177 = vsel %vm856, %v5175, %v5168
    %v5178 = vsel %vm856, %v5176, %v5170
    %v5179 = vmul.f32 %v4300, 0.5
    %v5180 = vmul.f32 %v4301, 0.5
    %v5181 = vmul.f32 %v4302, 0.5
    %v5182 = vmul.f32 %v4300, 0.70710677
    %v5183 = vmul.f32 %v4301, 0.70710677
    %v5184 = vmul.f32 %v4302, 0.70710677
    %v5185 = vand.u32 2147483647, %v5182
    %v5186 = vand.u32 2147483647, %v5183
    %v5187 = vand.u32 2147483647, %v5184
    %v5188 = vmul.f32 %v5185, 0.3275911
    %v5189 = vmul.f32 %v5186, 0.3275911
    %v5190 = vmul.f32 %v5187, 0.3275911
    %v5191 = vadd.f32 %v5188, 1.0
    %v5192 = vadd.f32 %v5189, 1.0
    %v5193 = vadd.f32 %v5190, 1.0
    %v5194 = vrcp.pop %v5191
    %v5195 = vmul.f32 1.0, %v5194
    %v5196 = vrcp.pop %v5192
    %v5197 = vmul.f32 1.0, %v5196
    %v5198 = vrcp.pop %v5193
    %v5199 = vmul.f32 1.0, %v5198
    %v5200 = vmul.f32 %v5195, 1.0614054
    %v5201 = vmul.f32 %v5197, 1.0614054
    %v5202 = vmul.f32 %v5199, 1.0614054
    %v5203 = vsub.f32 %v5200, 1.4531521
    %v5204 = vsub.f32 %v5201, 1.4531521
    %v5205 = vsub.f32 %v5202, 1.4531521
    %v5206 = vmul.f32 %v5203, %v5195
    %v5207 = vmul.f32 %v5204, %v5197
    %v5208 = vmul.f32 %v5205, %v5199
    %v5209 = vadd.f32 %v5206, 1.4214138
    %v5210 = vadd.f32 %v5207, 1.4214138
    %v5211 = vadd.f32 %v5208, 1.4214138
    %v5212 = vmul.f32 %v5209, %v5195
    %v5213 = vmul.f32 %v5210, %v5197
    %v5214 = vmul.f32 %v5211, %v5199
    %v5215 = vsub.f32 %v5212, 0.28449672
    %v5216 = vsub.f32 %v5213, 0.28449672
    %v5217 = vsub.f32 %v5214, 0.28449672
    %v5218 = vmul.f32 %v5215, %v5195
    %v5219 = vmul.f32 %v5216, %v5197
    %v5220 = vmul.f32 %v5217, %v5199
    %v5221 = vadd.f32 %v5218, 0.2548296
    %v5222 = vadd.f32 %v5219, 0.2548296
    %v5223 = vadd.f32 %v5220, 0.2548296
    %v5224 = vmul.f32 %v5221, %v5195
    %v5225 = vmul.f32 %v5222, %v5197
    %v5226 = vmul.f32 %v5223, %v5199
    %v5227 = vsub.f32 0.0, %v5185
    %v5228 = vsub.f32 0.0, %v5186
    %v5229 = vsub.f32 0.0, %v5187
    %v5230 = vmul.f32 %v5227, %v5185
    %v5231 = vmul.f32 %v5228, %v5186
    %v5232 = vmul.f32 %v5229, %v5187
    %v5233 = vmul.f32 %v5230, 1.442695
    %v5234 = vpow.pop %v5233
    %v5235 = vmul.f32 %v5231, 1.442695
    %v5236 = vpow.pop %v5235
    %v5237 = vmul.f32 %v5232, 1.442695
    %v5238 = vpow.pop %v5237
    %v5239 = vmul.f32 %v5224, %v5234
    %v5240 = vmul.f32 %v5225, %v5236
    %v5241 = vmul.f32 %v5226, %v5238
    %v5242 = vsub.f32 1.0, %v5239
    %v5243 = vsub.f32 1.0, %v5240
    %v5244 = vsub.f32 1.0, %v5241
    %vm5245 = vcmp.ge.f32.partialorder %v5182, 0.0
    %vm5246 = vcmp.ge.f32.partialorder %v5183, 0.0
    %vm5247 = vcmp.ge.f32.partialorder %v5184, 0.0
    %v5248 = vsub.f32 0.0, %v5242
    %v5249 = vsub.f32 0.0, %v5243
    %v5250 = vsub.f32 0.0, %v5244
    %v5251 = vsel %vm5245, %v5242, %v5248
    %v5252 = vsel %vm5246, %v5243, %v5249
    %v5253 = vsel %vm5247, %v5244, %v5250
    %v5254 = vadd.f32 %v5251, 1.0
    %v5255 = vadd.f32 %v5252, 1.0
    %v5256 = vadd.f32 %v5253, 1.0
    %v5257 = vmul.f32 %v5179, %v5254
    %v5258 = vmul.f32 %v5180, %v5255
    %v5259 = vmul.f32 %v5181, %v5256
    %s5260 = scalar_lea.vmem %s13, 64
    %v5261 = vld [vmem:[%s5260] sm:$0xff]
    %v5262 = vld [vmem:[%s5260 + $0x8] sm:$0xff]
    %v5263 = vld [vmem:[%s5260 + $0x10] sm:$0xff]
    %v5264 = vld [vmem:[%s5260 + $0x18] sm:$0xff]
    %s5265 = scalar_lea.vmem %s14, 2
    %v5266 = vld [vmem:[%s5265] sm:$0x1]
    %v5268 = vlaneseq
    %v5269 = vshrl.u32 %v5268, 7
    %v5270 = vsub.s32 0, %v5269
    %v5271 = vrot.slane %v5266, %v5270
    %v5274 = vsel %vm482, %v5257, 0
    %v5277 = vsel %vm482, %v5258, 0
    %v5280 = vsel %vm482, %v5259, 0
    %5282 = vmatprep.subr.mxu0 0.0
    %5283 = vmatpush1.msra.mxu0 %v5261
    %5284 = vmatprep.subr.mxu0 0.0
    %5285 = vmatpush1.msra.mxu0 %v5262
    %5286 = vmatprep.subr.mxu0 0.0
    %5287 = vmatpush1.msra.mxu0 %v5263
    %5288 = vmatprep.subr.mxu0 0.0
    %5289 = vmatpush1.msra.mxu0 %v5264
    %5290 = vmatprep.subr.mxu0 0.0
    %5291 = vmatpush1.msra.mxu0 0.0
    %5292 = vmatprep.subr.mxu0 0.0
    %5293 = vmatpush1.msra.mxu0 0.0
    %5294 = vmatprep.subr.mxu0 0.0
    %5295 = vmatpush1.msra.mxu0 0.0
    %5296 = vmatprep.subr.mxu0 0.0
    %5297 = vmatpush1.msra.mxu0 0.0
    %5298 = vmatprep.subr.mxu0 0.0
    %5299 = vmatpush1.msra.mxu0 0.0
    %5300 = vmatprep.subr.mxu0 0.0
    %5301 = vmatpush1.msra.mxu0 0.0
    %5302 = vmatprep.subr.mxu0 0.0
    %5303 = vmatpush1.msra.mxu0 0.0
    %5304 = vmatprep.subr.mxu0 0.0
    %5305 = vmatpush1.msra.mxu0 0.0
    %5306 = vmatprep.subr.mxu0 0.0
    %5307 = vmatpush1.msra.mxu0 0.0
    %5308 = vmatprep.subr.mxu0 0.0
    %5309 = vmatpush1.msra.mxu0 0.0
    %5310 = vmatprep.subr.mxu0 0.0
    %5311 = vmatpush1.msra.mxu0 0.0
    %5312 = vmatprep.subr.mxu0 0.0
    %5313 = vmatpush1.msra.mxu0 0.0
    %5314 = vmatprep.subr.mxu0 0.0
    %5315 = vmatpush1.msra.mxu0 0.0
    %5316 = vmatprep.subr.mxu0 0.0
    %5317 = vmatpush1.msra.mxu0 0.0
    %5318 = vmatprep.subr.mxu0 0.0
    %5319 = vmatpush1.msra.mxu0 0.0
    %5320 = vmatprep.subr.mxu0 0.0
    %5321 = vmatpush1.msra.mxu0 0.0
    %5322 = vmatprep.subr.mxu0 0.0
    %5323 = vmatpush1.msra.mxu0 0.0
    %5324 = vmatprep.subr.mxu0 0.0
    %5325 = vmatpush1.msra.mxu0 0.0
    %5326 = vmatprep.subr.mxu0 0.0
    %5327 = vmatpush1.msra.mxu0 0.0
    %5328 = vmatprep.subr.mxu0 0.0
    %5329 = vmatpush1.msra.mxu0 0.0
    %5330 = vmatprep.subr.mxu0 0.0
    %5331 = vmatpush1.msra.mxu0 0.0
    %5332 = vmatprep.subr.mxu0 0.0
    %5333 = vmatpush1.msra.mxu0 0.0
    %5334 = vmatprep.subr.mxu0 0.0
    %5335 = vmatpush1.msra.mxu0 0.0
    %5336 = vmatprep.subr.mxu0 0.0
    %5337 = vmatpush1.msra.mxu0 0.0
    %5338 = vmatprep.subr.mxu0 0.0
    %5339 = vmatpush1.msra.mxu0 0.0
    %5340 = vmatprep.subr.mxu0 0.0
    %5341 = vmatpush1.msra.mxu0 0.0
    %5342 = vmatprep.subr.mxu0 0.0
    %5343 = vmatpush1.msra.mxu0 0.0
    %5344 = vmatprep.subr.mxu0 0.0
    %5345 = vmatpush1.msra.mxu0 0.0
    %5346 = vmatprep.mubr.f32.mxu0 0.0
    %5347 = vmatmul.mubr.f32.gmra.mrb[0].mxu0 %v5274
    %v5348 = vpop.f32.mrb[0].mxu0
    %v5349 = vadd.f32 %v5271, %v5348
    %v5350 = vpop.f32.mrb[0].mxu0
    %5351 = vmatprep.mubr.f32.mxu0 0.0
    %5352 = vmatmul.mubr.f32.gmra.mrb[0].mxu0 %v5277
    %v5353 = vpop.f32.mrb[0].mxu0
    %v5354 = vadd.f32 %v5271, %v5353
    %v5355 = vpop.f32.mrb[0].mxu0
    %5356 = vmatprep.mubr.f32.mxu0 0.0
    %5357 = vmatmul.mubr.f32.gmra.mrb[0].mxu0 %v5280
    %v5358 = vpop.f32.mrb[0].mxu0
    %v5359 = vadd.f32 %v5271, %v5358
    %v5360 = vpop.f32.mrb[0].mxu0
    %5361 = vdwg.mxu0
    %s5362 = sld [smem:[#allocation18 + $0x2]]
    %v5363 = vstv %s5362
    %v5364 = vmul.f32 %v5363, %v5349
    %v5365 = vmul.f32 %v5363, %v5354
    %v5366 = vmul.f32 %v5363, %v5359
    %s5367 = ssub.f32 1.0, %s5362
    %v5368 = vstv %s5367
    %v5369 = vmul.f32 %v5368, %v2842
    %v5370 = vmul.f32 %v5368, %v2843
    %v5371 = vmul.f32 %v5368, %v2844
    %v5372 = vadd.f32 %v5364, %v5369
    %v5373 = vadd.f32 %v5365, %v5370
    %v5374 = vadd.f32 %v5366, %v5371
    %v5375 = vmul.f32 %v5177, 0.5
    %v5376 = vmul.f32 %v5178, 0.5
    %v5377 = vmul.f32 %v5177, 0.70710677
    %v5378 = vmul.f32 %v5178, 0.70710677
    %v5379 = vand.u32 2147483647, %v5377
    %v5380 = vand.u32 2147483647, %v5378
    %v5381 = vmul.f32 %v5379, 0.3275911
    %v5382 = vmul.f32 %v5380, 0.3275911
    %v5383 = vadd.f32 %v5381, 1.0
    %v5384 = vadd.f32 %v5382, 1.0
    %v5385 = vrcp.pop %v5383
    %v5386 = vmul.f32 1.0, %v5385
    %v5387 = vrcp.pop %v5384
    %v5388 = vmul.f32 1.0, %v5387
    %v5389 = vmul.f32 %v5386, 1.0614054
    %v5390 = vmul.f32 %v5388, 1.0614054
    %v5391 = vsub.f32 %v5389, 1.4531521
    %v5392 = vsub.f32 %v5390, 1.4531521
    %v5393 = vmul.f32 %v5391, %v5386
    %v5394 = vmul.f32 %v5392, %v5388
    %v5395 = vadd.f32 %v5393, 1.4214138
    %v5396 = vadd.f32 %v5394, 1.4214138
    %v5397 = vmul.f32 %v5395, %v5386
    %v5398 = vmul.f32 %v5396, %v5388
    %v5399 = vsub.f32 %v5397, 0.28449672
    %v5400 = vsub.f32 %v5398, 0.28449672
    %v5401 = vmul.f32 %v5399, %v5386
    %v5402 = vmul.f32 %v5400, %v5388
    %v5403 = vadd.f32 %v5401, 0.2548296
    %v5404 = vadd.f32 %v5402, 0.2548296
    %v5405 = vmul.f32 %v5403, %v5386
    %v5406 = vmul.f32 %v5404, %v5388
    %v5407 = vsub.f32 0.0, %v5379
    %v5408 = vsub.f32 0.0, %v5380
    %v5409 = vmul.f32 %v5407, %v5379
    %v5410 = vmul.f32 %v5408, %v5380
    %v5411 = vmul.f32 %v5409, 1.442695
    %v5412 = vpow.pop %v5411
    %v5413 = vmul.f32 %v5410, 1.442695
    %v5414 = vpow.pop %v5413
    %v5415 = vmul.f32 %v5405, %v5412
    %v5416 = vmul.f32 %v5406, %v5414
    %v5417 = vsub.f32 1.0, %v5415
    %v5418 = vsub.f32 1.0, %v5416
    %vm5419 = vcmp.ge.f32.partialorder %v5377, 0.0
    %vm5420 = vcmp.ge.f32.partialorder %v5378, 0.0
    %v5421 = vsub.f32 0.0, %v5417
    %v5422 = vsub.f32 0.0, %v5418
    %v5423 = vsel %vm5419, %v5417, %v5421
    %v5424 = vsel %vm5420, %v5418, %v5422
    %v5425 = vadd.f32 %v5423, 1.0
    %v5426 = vadd.f32 %v5424, 1.0
    %v5427 = vmul.f32 %v5375, %v5425
    %v5428 = vmul.f32 %v5376, %v5426
    %s5429 = scalar_lea.vmem %s13, 96
    %v5430 = vld [vmem:[%s5429] sm:$0xff]
    %v5431 = vld [vmem:[%s5429 + $0x8] sm:$0xff]
    %v5432 = vld [vmem:[%s5429 + $0x10] sm:$0xff]
    %v5433 = vld [vmem:[%s5429 + $0x18] sm:$0xff]
    %s5434 = scalar_lea.vmem %s14, 3
    %v5435 = vld [vmem:[%s5434] sm:$0x1]
    %v5437 = vlaneseq
    %v5438 = vshrl.u32 %v5437, 7
    %v5439 = vsub.s32 0, %v5438
    %v5440 = vrot.slane %v5435, %v5439
    %v5443 = vsel %vm482, %v5427, 0
    %v5446 = vsel %vm482, %v5428, 0
    %5448 = vmatprep.subr.mxu0 0.0
    %5449 = vmatpush1.msra.mxu0 %v5430
    %5450 = vmatprep.subr.mxu0 0.0
    %5451 = vmatpush1.msra.mxu0 %v5431
    %5452 = vmatprep.subr.mxu0 0.0
    %5453 = vmatpush1.msra.mxu0 %v5432
    %5454 = vmatprep.subr.mxu0 0.0
    %5455 = vmatpush1.msra.mxu0 %v5433
    %5456 = vmatprep.subr.mxu0 0.0
    %5457 = vmatpush1.msra.mxu0 0.0
    %5458 = vmatprep.subr.mxu0 0.0
    %5459 = vmatpush1.msra.mxu0 0.0
    %5460 = vmatprep.subr.mxu0 0.0
    %5461 = vmatpush1.msra.mxu0 0.0
    %5462 = vmatprep.subr.mxu0 0.0
    %5463 = vmatpush1.msra.mxu0 0.0
    %5464 = vmatprep.subr.mxu0 0.0
    %5465 = vmatpush1.msra.mxu0 0.0
    %5466 = vmatprep.subr.mxu0 0.0
    %5467 = vmatpush1.msra.mxu0 0.0
    %5468 = vmatprep.subr.mxu0 0.0
    %5469 = vmatpush1.msra.mxu0 0.0
    %5470 = vmatprep.subr.mxu0 0.0
    %5471 = vmatpush1.msra.mxu0 0.0
    %5472 = vmatprep.subr.mxu0 0.0
    %5473 = vmatpush1.msra.mxu0 0.0
    %5474 = vmatprep.subr.mxu0 0.0
    %5475 = vmatpush1.msra.mxu0 0.0
    %5476 = vmatprep.subr.mxu0 0.0
    %5477 = vmatpush1.msra.mxu0 0.0
    %5478 = vmatprep.subr.mxu0 0.0
    %5479 = vmatpush1.msra.mxu0 0.0
    %5480 = vmatprep.subr.mxu0 0.0
    %5481 = vmatpush1.msra.mxu0 0.0
    %5482 = vmatprep.subr.mxu0 0.0
    %5483 = vmatpush1.msra.mxu0 0.0
    %5484 = vmatprep.subr.mxu0 0.0
    %5485 = vmatpush1.msra.mxu0 0.0
    %5486 = vmatprep.subr.mxu0 0.0
    %5487 = vmatpush1.msra.mxu0 0.0
    %5488 = vmatprep.subr.mxu0 0.0
    %5489 = vmatpush1.msra.mxu0 0.0
    %5490 = vmatprep.subr.mxu0 0.0
    %5491 = vmatpush1.msra.mxu0 0.0
    %5492 = vmatprep.subr.mxu0 0.0
    %5493 = vmatpush1.msra.mxu0 0.0
    %5494 = vmatprep.subr.mxu0 0.0
    %5495 = vmatpush1.msra.mxu0 0.0
    %5496 = vmatprep.subr.mxu0 0.0
    %5497 = vmatpush1.msra.mxu0 0.0
    %5498 = vmatprep.subr.mxu0 0.0
    %5499 = vmatpush1.msra.mxu0 0.0
    %5500 = vmatprep.subr.mxu0 0.0
    %5501 = vmatpush1.msra.mxu0 0.0
    %5502 = vmatprep.subr.mxu0 0.0
    %5503 = vmatpush1.msra.mxu0 0.0
    %5504 = vmatprep.subr.mxu0 0.0
    %5505 = vmatpush1.msra.mxu0 0.0
    %5506 = vmatprep.subr.mxu0 0.0
    %5507 = vmatpush1.msra.mxu0 0.0
    %5508 = vmatprep.subr.mxu0 0.0
    %5509 = vmatpush1.msra.mxu0 0.0
    %5510 = vmatprep.subr.mxu0 0.0
    %5511 = vmatpush1.msra.mxu0 0.0
    %5512 = vmatprep.mubr.f32.mxu0 0.0
    %5513 = vmatmul.mubr.f32.gmra.mrb[0].mxu0 %v5443
    %v5514 = vpop.f32.mrb[0].mxu0
    %v5515 = vadd.f32 %v5440, %v5514
    %v5516 = vpop.f32.mrb[0].mxu0
    %5517 = vmatprep.mubr.f32.mxu0 0.0
    %5518 = vmatmul.mubr.f32.gmra.mrb[0].mxu0 %v5446
    %v5519 = vpop.f32.mrb[0].mxu0
    %v5520 = vadd.f32 %v5440, %v5519
    %v5521 = vpop.f32.mrb[0].mxu0
    %5522 = vdwg.mxu0
    %s5523 = sld [smem:[#allocation18 + $0x3]]
    %v5524 = vstv %s5523
    %v5525 = vmul.f32 %v5524, %v5515
    %v5526 = vmul.f32 %v5524, %v5520
    %s5527 = ssub.f32 1.0, %s5523
    %v5528 = vstv %s5527
    %v5529 = vmul.f32 %v5528, %v3001
    %v5530 = vmul.f32 %v5528, %v3002
    %v5531 = vadd.f32 %v5525, %v5529
    %v5532 = vadd.f32 %v5526, %v5530
    %v5533 = vld [vmem:[%s9] sm:$0xff]
    %v5534 = vld [vmem:[%s9 + $0x8] sm:$0xff]
    %v5535 = vld [vmem:[%s9 + $0x10] sm:$0xff]
    %v5536 = vld [vmem:[%s9 + $0x18] sm:$0xff]
    %v5537 = vld [vmem:[#allocation14] sm:$0x1]
    %v5539 = vlaneseq
    %v5540 = vshrl.u32 %v5539, 7
    %v5541 = vsub.s32 0, %v5540
    %v5542 = vrot.slane %v5537, %v5541
    %v5545 = vsel %vm482, %v5531, 0
    %v5548 = vsel %vm482, %v5532, 0
    %5550 = vmatprep.subr.mxu0 0.0
    %5551 = vmatpush1.msra.mxu0 %v5533
    %5552 = vmatprep.subr.mxu0 0.0
    %5553 = vmatpush1.msra.mxu0 %v5534
    %5554 = vmatprep.subr.mxu0 0.0
    %5555 = vmatpush1.msra.mxu0 %v5535
    %5556 = vmatprep.subr.mxu0 0.0
    %5557 = vmatpush1.msra.mxu0 %v5536
    %5558 = vmatprep.subr.mxu0 0.0
    %5559 = vmatpush1.msra.mxu0 0.0
    %5560 = vmatprep.subr.mxu0 0.0
    %5561 = vmatpush1.msra.mxu0 0.0
    %5562 = vmatprep.subr.mxu0 0.0
    %5563 = vmatpush1.msra.mxu0 0.0
    %5564 = vmatprep.subr.mxu0 0.0
    %5565 = vmatpush1.msra.mxu0 0.0
    %5566 = vmatprep.subr.mxu0 0.0
    %5567 = vmatpush1.msra.mxu0 0.0
    %5568 = vmatprep.subr.mxu0 0.0
    %5569 = vmatpush1.msra.mxu0 0.0
    %5570 = vmatprep.subr.mxu0 0.0
    %5571 = vmatpush1.msra.mxu0 0.0
    %5572 = vmatprep.subr.mxu0 0.0
    %5573 = vmatpush1.msra.mxu0 0.0
    %5574 = vmatprep.subr.mxu0 0.0
    %5575 = vmatpush1.msra.mxu0 0.0
    %5576 = vmatprep.subr.mxu0 0.0
    %5577 = vmatpush1.msra.mxu0 0.0
    %5578 = vmatprep.subr.mxu0 0.0
    %5579 = vmatpush1.msra.mxu0 0.0
    %5580 = vmatprep.subr.mxu0 0.0
    %5581 = vmatpush1.msra.mxu0 0.0
    %5582 = vmatprep.subr.mxu0 0.0
    %5583 = vmatpush1.msra.mxu0 0.0
    %5584 = vmatprep.subr.mxu0 0.0
    %5585 = vmatpush1.msra.mxu0 0.0
    %5586 = vmatprep.subr.mxu0 0.0
    %5587 = vmatpush1.msra.mxu0 0.0
    %5588 = vmatprep.subr.mxu0 0.0
    %5589 = vmatpush1.msra.mxu0 0.0
    %5590 = vmatprep.subr.mxu0 0.0
    %5591 = vmatpush1.msra.mxu0 0.0
    %5592 = vmatprep.subr.mxu0 0.0
    %5593 = vmatpush1.msra.mxu0 0.0
    %5594 = vmatprep.subr.mxu0 0.0
    %5595 = vmatpush1.msra.mxu0 0.0
    %5596 = vmatprep.subr.mxu0 0.0
    %5597 = vmatpush1.msra.mxu0 0.0
    %5598 = vmatprep.subr.mxu0 0.0
    %5599 = vmatpush1.msra.mxu0 0.0
    %5600 = vmatprep.subr.mxu0 0.0
    %5601 = vmatpush1.msra.mxu0 0.0
    %5602 = vmatprep.subr.mxu0 0.0
    %5603 = vmatpush1.msra.mxu0 0.0
    %5604 = vmatprep.subr.mxu0 0.0
    %5605 = vmatpush1.msra.mxu0 0.0
    %5606 = vmatprep.subr.mxu0 0.0
    %5607 = vmatpush1.msra.mxu0 0.0
    %5608 = vmatprep.subr.mxu0 0.0
    %5609 = vmatpush1.msra.mxu0 0.0
    %5610 = vmatprep.subr.mxu0 0.0
    %5611 = vmatpush1.msra.mxu0 0.0
    %5612 = vmatprep.subr.mxu0 0.0
    %5613 = vmatpush1.msra.mxu0 0.0
    %5614 = vmatprep.mubr.f32.mxu0 0.0
    %5615 = vmatmul.mubr.f32.gmra.mrb[0].mxu0 %v5545
    %v5616 = vpop.f32.mrb[0].mxu0
    %v5617 = vadd.f32 %v5542, %v5616
    %v5618 = vpop.f32.mrb[0].mxu0
    %5619 = vmatprep.mubr.f32.mxu0 0.0
    %5620 = vmatmul.mubr.f32.gmra.mrb[0].mxu0 %v5548
    %v5621 = vpop.f32.mrb[0].mxu0
    %v5622 = vadd.f32 %v5542, %v5621
    %v5623 = vpop.f32.mrb[0].mxu0
    %5624 = vdwg.mxu0
    %vm5625 = vcmp.ge.f32.partialorder %v5617, 0.0
    %vm5626 = vcmp.ge.f32.partialorder %v5622, 0.0
    %v5627 = vmul.f32 %v5617, 0.01
    %v5628 = vmul.f32 %v5622, 0.01
    %v5629 = vsel %vm5625, %v5617, %v5627
    %v5630 = vsel %vm5626, %v5622, %v5628
    %5631 = vst.msk [vmem:[#allocation19] sm:$0xff] %vm1768, %v5629
    %5632 = vst.msk [vmem:[#allocation19 + $0x8] sm:$0xff] %vm1768, %v5630
    %5633 = vmatprep.subr.mxu0 0.0
    %5634 = vmatpush1.msra.mxu0 %v5533
    %5635 = vmatprep.subr.mxu0 0.0
    %5636 = vmatpush1.msra.mxu0 %v5534
    %5637 = vmatprep.subr.mxu0 0.0
    %5638 = vmatpush1.msra.mxu0 %v5535
    %5639 = vmatprep.subr.mxu0 0.0
    %5640 = vmatpush1.msra.mxu0 %v5536
    %5641 = vmatprep.subr.mxu0 0.0
    %5642 = vmatpush1.msra.mxu0 0.0
    %5643 = vmatprep.subr.mxu0 0.0
    %5644 = vmatpush1.msra.mxu0 0.0
    %5645 = vmatprep.subr.mxu0 0.0
    %5646 = vmatpush1.msra.mxu0 0.0
    %5647 = vmatprep.subr.mxu0 0.0
    %5648 = vmatpush1.msra.mxu0 0.0
    %5649 = vmatprep.subr.mxu0 0.0
    %5650 = vmatpush1.msra.mxu0 0.0
    %5651 = vmatprep.subr.mxu0 0.0
    %5652 = vmatpush1.msra.mxu0 0.0
    %5653 = vmatprep.subr.mxu0 0.0
    %5654 = vmatpush1.msra.mxu0 0.0
    %5655 = vmatprep.subr.mxu0 0.0
    %5656 = vmatpush1.msra.mxu0 0.0
    %5657 = vmatprep.subr.mxu0 0.0
    %5658 = vmatpush1.msra.mxu0 0.0
    %5659 = vmatprep.subr.mxu0 0.0
    %5660 = vmatpush1.msra.mxu0 0.0
    %5661 = vmatprep.subr.mxu0 0.0
    %5662 = vmatpush1.msra.mxu0 0.0
    %5663 = vmatprep.subr.mxu0 0.0
    %5664 = vmatpush1.msra.mxu0 0.0
    %5665 = vmatprep.subr.mxu0 0.0
    %5666 = vmatpush1.msra.mxu0 0.0
    %5667 = vmatprep.subr.mxu0 0.0
    %5668 = vmatpush1.msra.mxu0 0.0
    %5669 = vmatprep.subr.mxu0 0.0
    %5670 = vmatpush1.msra.mxu0 0.0
    %5671 = vmatprep.subr.mxu0 0.0
    %5672 = vmatpush1.msra.mxu0 0.0
    %5673 = vmatprep.subr.mxu0 0.0
    %5674 = vmatpush1.msra.mxu0 0.0
    %5675 = vmatprep.subr.mxu0 0.0
    %5676 = vmatpush1.msra.mxu0 0.0
    %5677 = vmatprep.subr.mxu0 0.0
    %5678 = vmatpush1.msra.mxu0 0.0
    %5679 = vmatprep.subr.mxu0 0.0
    %5680 = vmatpush1.msra.mxu0 0.0
    %5681 = vmatprep.subr.mxu0 0.0
    %5682 = vmatpush1.msra.mxu0 0.0
    %5683 = vmatprep.subr.mxu0 0.0
    %5684 = vmatpush1.msra.mxu0 0.0
    %5685 = vmatprep.subr.mxu0 0.0
    %5686 = vmatpush1.msra.mxu0 0.0
    %5687 = vmatprep.subr.mxu0 0.0
    %5688 = vmatpush1.msra.mxu0 0.0
    %5689 = vmatprep.subr.mxu0 0.0
    %5690 = vmatpush1.msra.mxu0 0.0
    %5691 = vmatprep.subr.mxu0 0.0
    %5692 = vmatpush1.msra.mxu0 0.0
    %5693 = vmatprep.subr.mxu0 0.0
    %5694 = vmatpush1.msra.mxu0 0.0
    %5695 = vmatprep.subr.mxu0 0.0
    %5696 = vmatpush1.msra.mxu0 0.0
    %5697 = vmatprep.mubr.f32.mxu0 0.0
    %5698 = vmatmul.mubr.f32.gmra.mrb[0].mxu0 %v578
    %v5699 = vpop.f32.mrb[0].mxu0
    %v5700 = vadd.f32 %v5542, %v5699
    %v5701 = vpop.f32.mrb[0].mxu0
    %5702 = vdwg.mxu0
    %vm5703 = vcmp.ge.f32.partialorder %v5700, 0.0
    %v5704 = vmul.f32 %v5700, 0.01
    %v5705 = vsel %vm5703, %v5700, %v5704
    %5706 = vst.msk [vmem:[#allocation20] sm:$0xff] %vm1768, %v5705
    %v5708 = vsel %vm482, %v5372, 0
    %v5711 = vsel %vm482, %v5373, 0
    %v5714 = vsel %vm482, %v5374, 0
    %5716 = vmatprep.subr.mxu0 0.0
    %5717 = vmatpush1.msra.mxu0 %v5533
    %5718 = vmatprep.subr.mxu0 0.0
    %5719 = vmatpush1.msra.mxu0 %v5534
    %5720 = vmatprep.subr.mxu0 0.0
    %5721 = vmatpush1.msra.mxu0 %v5535
    %5722 = vmatprep.subr.mxu0 0.0
    %5723 = vmatpush1.msra.mxu0 %v5536
    %5724 = vmatprep.subr.mxu0 0.0
    %5725 = vmatpush1.msra.mxu0 0.0
    %5726 = vmatprep.subr.mxu0 0.0
    %5727 = vmatpush1.msra.mxu0 0.0
    %5728 = vmatprep.subr.mxu0 0.0
    %5729 = vmatpush1.msra.mxu0 0.0
    %5730 = vmatprep.subr.mxu0 0.0
    %5731 = vmatpush1.msra.mxu0 0.0
    %5732 = vmatprep.subr.mxu0 0.0
    %5733 = vmatpush1.msra.mxu0 0.0
    %5734 = vmatprep.subr.mxu0 0.0
    %5735 = vmatpush1.msra.mxu0 0.0
    %5736 = vmatprep.subr.mxu0 0.0
    %5737 = vmatpush1.msra.mxu0 0.0
    %5738 = vmatprep.subr.mxu0 0.0
    %5739 = vmatpush1.msra.mxu0 0.0
    %5740 = vmatprep.subr.mxu0 0.0
    %5741 = vmatpush1.msra.mxu0 0.0
    %5742 = vmatprep.subr.mxu0 0.0
    %5743 = vmatpush1.msra.mxu0 0.0
    %5744 = vmatprep.subr.mxu0 0.0
    %5745 = vmatpush1.msra.mxu0 0.0
    %5746 = vmatprep.subr.mxu0 0.0
    %5747 = vmatpush1.msra.mxu0 0.0
    %5748 = vmatprep.subr.mxu0 0.0
    %5749 = vmatpush1.msra.mxu0 0.0
    %5750 = vmatprep.subr.mxu0 0.0
    %5751 = vmatpush1.msra.mxu0 0.0
    %5752 = vmatprep.subr.mxu0 0.0
    %5753 = vmatpush1.msra.mxu0 0.0
    %5754 = vmatprep.subr.mxu0 0.0
    %5755 = vmatpush1.msra.mxu0 0.0
    %5756 = vmatprep.subr.mxu0 0.0
    %5757 = vmatpush1.msra.mxu0 0.0
    %5758 = vmatprep.subr.mxu0 0.0
    %5759 = vmatpush1.msra.mxu0 0.0
    %5760 = vmatprep.subr.mxu0 0.0
    %5761 = vmatpush1.msra.mxu0 0.0
    %5762 = vmatprep.subr.mxu0 0.0
    %5763 = vmatpush1.msra.mxu0 0.0
    %5764 = vmatprep.subr.mxu0 0.0
    %5765 = vmatpush1.msra.mxu0 0.0
    %5766 = vmatprep.subr.mxu0 0.0
    %5767 = vmatpush1.msra.mxu0 0.0
    %5768 = vmatprep.subr.mxu0 0.0
    %5769 = vmatpush1.msra.mxu0 0.0
    %5770 = vmatprep.subr.mxu0 0.0
    %5771 = vmatpush1.msra.mxu0 0.0
    %5772 = vmatprep.subr.mxu0 0.0
    %5773 = vmatpush1.msra.mxu0 0.0
    %5774 = vmatprep.subr.mxu0 0.0
    %5775 = vmatpush1.msra.mxu0 0.0
    %5776 = vmatprep.subr.mxu0 0.0
    %5777 = vmatpush1.msra.mxu0 0.0
    %5778 = vmatprep.subr.mxu0 0.0
    %5779 = vmatpush1.msra.mxu0 0.0
    %5780 = vmatprep.mubr.f32.mxu0 0.0
    %5781 = vmatmul.mubr.f32.gmra.mrb[0].mxu0 %v5708
    %v5782 = vpop.f32.mrb[0].mxu0
    %v5783 = vadd.f32 %v5542, %v5782
    %v5784 = vpop.f32.mrb[0].mxu0
    %5785 = vmatprep.mubr.f32.mxu0 0.0
    %5786 = vmatmul.mubr.f32.gmra.mrb[0].mxu0 %v5711
    %v5787 = vpop.f32.mrb[0].mxu0
    %v5788 = vadd.f32 %v5542, %v5787
    %v5789 = vpop.f32.mrb[0].mxu0
    %5790 = vmatprep.mubr.f32.mxu0 0.0
    %5791 = vmatmul.mubr.f32.gmra.mrb[0].mxu0 %v5714
    %v5792 = vpop.f32.mrb[0].mxu0
    %v5793 = vadd.f32 %v5542, %v5792
    %v5794 = vpop.f32.mrb[0].mxu0
    %5795 = vdwg.mxu0
    %vm5796 = vcmp.ge.f32.partialorder %v5783, 0.0
    %vm5797 = vcmp.ge.f32.partialorder %v5788, 0.0
    %vm5798 = vcmp.ge.f32.partialorder %v5793, 0.0
    %v5799 = vmul.f32 %v5783, 0.01
    %v5800 = vmul.f32 %v5788, 0.01
    %v5801 = vmul.f32 %v5793, 0.01
    %v5802 = vsel %vm5796, %v5783, %v5799
    %v5803 = vsel %vm5797, %v5788, %v5800
    %v5804 = vsel %vm5798, %v5793, %v5801
    %5805 = vst.msk [vmem:[%s18] sm:$0xff] %vm1768, %v5802
    %5806 = vst.msk [vmem:[%s18 + $0x8] sm:$0xff] %vm1768, %v5803
    %5807 = vst.msk [vmem:[%s18 + $0x10] sm:$0xff] %vm1768, %v5804
    // Predicated region
    $region106: #{tpu_custom_call.1} parent=1 // pred_check
      _
    $region107: #{tpu_custom_call.1} parent=1 // pred_check_branch
      %5809 = sbr.rel (0) target = $region109
    $region108: #{tpu_custom_call.1} parent=1 // pred_region
      %s5811 = ssub.s32 256, 256
      %5812 = vsyncadd [#allocation4], %s5811
      %s5813 = sshll.u32 [#allocation19], 4
      %s5814 = int_to_ptr.vmem [resolvable:$true] %s5813
      %5819 = dma.vmem_to_hbm [thread:$0]  %s5814, 256, %s16, [#allocation4], 128, 128, 8
    $region109: #{tpu_custom_call.1} parent=1 // pred_fallthru
      _
    // Predicated region
    $region110: #{tpu_custom_call.1} parent=1 // pred_check
      _
    $region111: #{tpu_custom_call.1} parent=1 // pred_check_branch
      %5821 = sbr.rel (0) target = $region113
    $region112: #{tpu_custom_call.1} parent=1 // pred_region
      %s5823 = ssub.s32 128, 128
      %5824 = vsyncadd [#allocation21], %s5823
      %s5826 = sshll.u32 [#allocation20], 4
      %s5827 = int_to_ptr.vmem [resolvable:$true] %s5826
      %5829 = dma.vmem_to_hbm [thread:$0]  %s5827, 128, %s17, [#allocation21]
    $region113: #{tpu_custom_call.1} parent=1 // pred_fallthru
      _
    // Predicated region
    $region114: #{tpu_custom_call.1} parent=1 // pred_check
      _
    $region115: #{tpu_custom_call.1} parent=1 // pred_check_branch
      %5831 = sbr.rel (0) target = $region117
    $region116: #{tpu_custom_call.1} parent=1 // pred_region
      _
    $region117: #{tpu_custom_call.1} parent=1 // pred_fallthru
      _
    // Predicated region
    $region118: #{tpu_custom_call.1} parent=1 // pred_check
      _
    $region119: #{tpu_custom_call.1} parent=1 // pred_check_branch
      %5833 = sbr.rel (0) target = $region121
    $region120: #{tpu_custom_call.1} parent=1 // pred_region
      %5834 = dma.done [#allocation4], 256
    $region121: #{tpu_custom_call.1} parent=1 // pred_fallthru
      _
    // Predicated region
    $region122: #{tpu_custom_call.1} parent=1 // pred_check
      _
    $region123: #{tpu_custom_call.1} parent=1 // pred_check_branch
      %5836 = sbr.rel (0) target = $region125
    $region124: #{tpu_custom_call.1} parent=1 // pred_region
      %5837 = dma.done [#allocation21], 128
    $region125: #{tpu_custom_call.1} parent=1 // pred_fallthru
      _
    // Predicated region
    $region126: #{tpu_custom_call.1} parent=1 // pred_check
      _
    $region127: #{tpu_custom_call.1} parent=1 // pred_check_branch
      %5839 = sbr.rel (0) target = $region129
    $region128: #{tpu_custom_call.1} parent=1 // pred_region
      _
    $region129: #{tpu_custom_call.1} parent=1 // pred_fallthru
      _
    %5840 = vsyncpa [#allocation3], 1
    %5841 = vsyncpa [#allocation7], 1
    %5842 = vsyncpa [#allocation10], 1
    %5843 = vsyncpa [#allocation13], 1
    %5844 = vsyncpa [#allocation16], 1
    %5845 = vsyncpa [#allocation4], 1
    %5846 = vsyncpa [#allocation21], 1
    %5847 = vsyncpa [#allocation5], 1

</llo_original>
